<compile_context>
chip_gen: v5e
topology: v5e:2x2
jax: 0.10.0
libtpu: 0.0.40
codegen_flags: <defaults>
</compile_context>

<pallas_src>
import functools

import jax
import jax.numpy as jnp
from jax.experimental import pallas as pl
from jax.experimental.pallas import tpu as pltpu


def _round_up(x, m):
    return (x + m - 1) // m * m


# -----------------------------------------------------------------------------
# Pallas kernel 1: transposed conv matmul  out = relu(W2d @ cols + bias)
#   W2d: (Cout8, Kp) bf16   cols: (Kp, Mp) bf16   bias: (Cout8, 1) f32
#   -> out: (Cout8, Mp) bf16
# Grid tiles the big spatial axis M (lanes, tile 512) so stores are lane-dense,
# the DMA pipelines, and v7x's two cores can split the work ("parallel").
# -----------------------------------------------------------------------------
def _conv_kernel(w_ref, cols_ref, b_ref, o_ref, *, relu):
    y = jnp.dot(w_ref[...], cols_ref[...], preferred_element_type=jnp.float32)
    y = y + b_ref[...]                       # (Cout8, 1) broadcast over lanes
    if relu:
        y = jnp.maximum(y, 0.0)
    o_ref[...] = y.astype(o_ref.dtype)


def conv_matmul(w2d, cols, bias, *, relu=True, tile_m=512):
    co, kk = w2d.shape
    kk2, m = cols.shape
    assert kk == kk2 and bias.shape == (co, 1)
    m_pad = _round_up(m, tile_m)
    if m_pad != m:
        cols = jnp.pad(cols, ((0, 0), (0, m_pad - m)))
    flops = 2 * co * kk * m_pad
    bytes_acc = 2 * (co * kk + kk * m_pad + co * m_pad) + 4 * co
    out = pl.pallas_call(
        functools.partial(_conv_kernel, relu=relu),
        out_shape=jax.ShapeDtypeStruct((co, m_pad), jnp.bfloat16),
        grid=(m_pad // tile_m,),
        in_specs=[pl.BlockSpec((co, kk), lambda i: (0, 0)),
                  pl.BlockSpec((kk, tile_m), lambda i: (0, i)),
                  pl.BlockSpec((co, 1), lambda i: (0, 0))],
        out_specs=pl.BlockSpec((co, tile_m), lambda i: (0, i)),
        compiler_params=pltpu.CompilerParams(
            dimension_semantics=("parallel",)),
        cost_estimate=pl.CostEstimate(flops=flops, transcendentals=0,
                                      bytes_accessed=bytes_acc),
    )(w2d, cols, bias)
    return out[:, :m]


# -----------------------------------------------------------------------------
# Pallas kernel 2: fused FC stack (int8 weight streaming)
#   fc1 (int8 deq + BN1 fold, ReLU) -> fc2 (int8 deq) partial accumulation.
# Grid: (core_split, steps) — the leading "parallel" axis shards the 8192
# hidden axis across v7x's two TensorCores; the trailing "arbitrary" axis
# streams hidden tiles.  Each core accumulates its fc2 partial in f32 directly
# in its (1, B, 512) output block.  Cross-core sum + BN2 + ReLU + fc3 is a
# tiny XLA epilogue in the wrapper.
# -----------------------------------------------------------------------------
def _fc_kernel(a_ref, w1_ref, s1_ref, sh1_ref, w2_ref, o_ref):
    j = pl.program_id(1)

    @pl.when(j == 0)
    def _():
        o_ref[...] = jnp.zeros_like(o_ref)

    # int8 -> bf16 dequant is a VPU cast; per-column dequant scales are folded
    # into s1_ref (fc1) / applied after the cross-core sum (fc2).
    w1 = w1_ref[...].astype(jnp.bfloat16)
    h1 = jnp.dot(a_ref[...], w1, preferred_element_type=jnp.float32)
    h1 = jnp.maximum(h1 * s1_ref[...] + sh1_ref[...], 0.0).astype(jnp.bfloat16)
    w2 = w2_ref[...].astype(jnp.bfloat16)
    o_ref[...] += jnp.dot(h1, w2, preferred_element_type=jnp.float32)[None]


def fc_stack(x_flat, prep, *, tile_h=2048, core_split=2):
    a = x_flat.astype(jnp.bfloat16)                  # (B, 400)
    b, k1 = a.shape
    w1q, s1, sh1 = prep["fc1_wq"], prep["fc1_scale"], prep["fc1_shift"]
    w2q, s2, sh2 = prep["fc2_wq"], prep["fc2_scale"], prep["fc2_shift"]
    w3, b3 = prep["fc3_wt"], prep["fc3_bias"]
    h1 = w1q.shape[1]                                # 8192
    h2 = w2q.shape[1]                                # 512
    tile_h = min(tile_h, h1 // core_split)
    assert h1 % (core_split * tile_h) == 0 and w1q.shape[0] == k1
    steps = h1 // (core_split * tile_h)              # reduction steps per core

    flops = 2 * b * (k1 * h1 + h1 * h2)
    bytes_acc = (2 * a.size + w1q.size + w2q.size
                 + 4 * (s1.size + sh1.size) + 4 * core_split * b * h2)

    partial = pl.pallas_call(
        _fc_kernel,
        out_shape=jax.ShapeDtypeStruct((core_split, b, h2), jnp.float32),
        grid_spec=pltpu.PrefetchScalarGridSpec(
            num_scalar_prefetch=0,
            grid=(core_split, steps),                # (parallel, reduction)
            in_specs=[
                pl.BlockSpec((b, k1), lambda c, j: (0, 0)),          # acts
                pl.BlockSpec((k1, tile_h),
                             lambda c, j: (0, c * steps + j)),       # fc1 w
                pl.BlockSpec((1, tile_h),
                             lambda c, j: (0, c * steps + j)),       # scale1
                pl.BlockSpec((1, tile_h),
                             lambda c, j: (0, c * steps + j)),       # shift1
                pl.BlockSpec((tile_h, h2),
                             lambda c, j: (c * steps + j, 0)),       # fc2 w
            ],
            out_specs=pl.BlockSpec((1, b, h2), lambda c, j: (c, 0, 0)),
        ),
        compiler_params=pltpu.CompilerParams(
            dimension_semantics=("parallel", "arbitrary"),
            vmem_limit_bytes=32 * 1024 * 1024),
        cost_estimate=pl.CostEstimate(flops=flops, transcendentals=0,
                                      bytes_accessed=bytes_acc),
    )(a, w1q, s1, sh1, w2q)

    # Tiny XLA epilogue: cross-core sum, (dequant * BN2) scale+shift, ReLU, fc3.
    acc2 = jnp.sum(partial, axis=0)                  # (B, 512) f32
    h = jnp.maximum(acc2 * s2 + sh2, 0.0)
    return jnp.dot(h, w3, preferred_element_type=jnp.float32) + b3


# -----------------------------------------------------------------------------
# XLA layout glue: im2col (K on sublanes, spatial on lanes, bf16 output) and
# 2x2 max-pool.  These tensors are <64 KB — a pallas_call is pure overhead.
# -----------------------------------------------------------------------------
def _im2col_T(y, k, pad, k_pad):
    # y: (C, N, H, W) -> cols: (k_pad, N*Ho*Wo) bf16, K ordered (c, ki, kj)
    if pad:
        y = jnp.pad(y, ((0, 0), (0, 0), (pad, pad), (pad, pad)))
    c, n, h, w = y.shape
    ho, wo = h - k + 1, w - k + 1
    rows = [y[:, :, di:di + ho, dj:dj + wo]
            for di in range(k) for dj in range(k)]
    cols = jnp.stack(rows, axis=1).reshape(c * k * k, n * ho * wo)
    if k_pad > c * k * k:
        cols = jnp.pad(cols, ((0, k_pad - c * k * k), (0, 0)))
    return cols.astype(jnp.bfloat16), ho, wo


def _maxpool2x2(y):
    # y: (C, N, H, W) -> (C, N, H//2, W//2)  (floor, like nn.MaxPool2d(2))
    c, n, h, w = y.shape
    ho, wo = h // 2, w // 2
    y = y[:, :, :2 * ho, :2 * wo].reshape(c, n, ho, 2, wo, 2)
    return y.max(axis=(3, 5))


# -----------------------------------------------------------------------------
# Parameters (deterministic, PyTorch-default-style uniform fan-in init)
# -----------------------------------------------------------------------------
def _uniform(key, shape, fan_in):
    bound = float(fan_in) ** -0.5
    return jax.random.uniform(key, shape, jnp.float32, -bound, bound)


def init_params(key, flat_dim, num_classes=10):
    ks = jax.random.split(key, 16)
    p = {}
    p["conv1_w"] = _uniform(ks[0], (6, 1, 3, 3), 1 * 9)
    p["conv1_b"] = _uniform(ks[1], (6,), 1 * 9)
    p["c21_w"] = _uniform(ks[2], (1, 3, 5, 5), 3 * 25)
    p["c21_b"] = _uniform(ks[3], (1,), 3 * 25)
    p["c22_w"] = _uniform(ks[4], (1, 4, 5, 5), 4 * 25)
    p["c22_b"] = _uniform(ks[5], (1,), 4 * 25)
    p["c23_w"] = _uniform(ks[6], (1, 4, 5, 5), 4 * 25)
    p["c23_b"] = _uniform(ks[7], (1,), 4 * 25)
    p["c24_w"] = _uniform(ks[8], (1, 6, 5, 5), 6 * 25)
    p["c24_b"] = _uniform(ks[9], (1,), 6 * 25)
    p["fc1_w"] = _uniform(ks[10], (8192, flat_dim), flat_dim)
    p["fc1_b"] = _uniform(ks[11], (8192,), flat_dim)
    p["fc2_w"] = _uniform(ks[12], (512, 8192), 8192)
    p["fc2_b"] = _uniform(ks[13], (512,), 8192)
    p["fc3_w"] = _uniform(ks[14], (num_classes, 512), 512)
    p["fc3_b"] = _uniform(ks[15], (num_classes,), 512)
    # BatchNorm1d parameters / running stats (eval mode).
    # TODO(synk): training-mode BatchNorm (batch statistics) not implemented.
    p["bn1_gamma"] = jnp.ones((8192,), jnp.float32)
    p["bn1_beta"] = jnp.zeros((8192,), jnp.float32)
    p["bn1_mean"] = jnp.zeros((8192,), jnp.float32)
    p["bn1_var"] = jnp.ones((8192,), jnp.float32)
    p["bn2_gamma"] = jnp.ones((512,), jnp.float32)
    p["bn2_beta"] = jnp.zeros((512,), jnp.float32)
    p["bn2_mean"] = jnp.zeros((512,), jnp.float32)
    p["bn2_var"] = jnp.ones((512,), jnp.float32)
    return p


# Channel selections of the 16 branch convs (order matches the torch.cat order:
# out_1 (6) + out_2 (6) + out_3 (3) + out_4 (1)).
_GROUPS = ([tuple((j + d) % 6 for d in range(3)) for j in range(6)]       # conv2_1_1
           + [tuple((j + d) % 6 for d in range(4)) for j in range(6)]     # conv2_1_2
           + [(0, 1, 3, 4), (1, 2, 4, 5), (2, 3, 5, 0)]                   # conv2_1_3
           + [(0, 1, 2, 3, 4, 5)])                                        # conv2_1_4


def _build_conv2_group(p):
    ws = [p["c21_w"]] * 6 + [p["c22_w"]] * 6 + [p["c23_w"]] * 3 + [p["c24_w"]]
    bs = [p["c21_b"]] * 6 + [p["c22_b"]] * 6 + [p["c23_b"]] * 3 + [p["c24_b"]]
    w_big = jnp.zeros((16, 6, 5, 5), jnp.float32)
    for o, (sel, w) in enumerate(zip(_GROUPS, ws)):
        for slot, ch in enumerate(sel):
            w_big = w_big.at[o, ch].set(w[0, slot])
    b_big = jnp.concatenate(bs).reshape(16)
    return w_big, b_big


def _quant_int8_cols(w_t):
    # Symmetric per-output-column int8 quantization of a (K, N) weight.
    amax = jnp.max(jnp.abs(w_t), axis=0, keepdims=True)          # (1, N)
    scale = jnp.maximum(amax, 1e-12) / 127.0
    wq = jnp.clip(jnp.round(w_t / scale), -127.0, 127.0).astype(jnp.int8)
    return wq, scale


# -----------------------------------------------------------------------------
# One-time parameter preparation (run OUTSIDE the jit'd forward):
# transposes, pads, BN folds, int8 quantization and bf16 casts happen once.
# -----------------------------------------------------------------------------
def prepare_params(params, eps=1e-5):
    prep = {}
    # conv1: (6,1,3,3) -> bf16 (8,16) (Cout 6->8 sublanes, K 9->16), bias (8,1)
    w1 = params["conv1_w"].reshape(6, 9)
    prep["conv1_w2d"] = (jnp.zeros((8, 16), jnp.float32)
                         .at[:6, :9].set(w1)).astype(jnp.bfloat16)
    prep["conv1_bias"] = (jnp.zeros((8, 1), jnp.float32)
                          .at[:6, 0].set(params["conv1_b"]))
    # conv2: folded 6->16 conv, (16,6,5,5) -> bf16 (16,160) (K 150->160)
    w_big, b_big = _build_conv2_group(params)
    prep["conv2_w2d"] = (jnp.zeros((16, 160), jnp.float32)
                         .at[:, :150].set(w_big.reshape(16, 150))
                         ).astype(jnp.bfloat16)
    prep["conv2_bias"] = b_big.reshape(16, 1)
    # fc1: per-column int8 quant; dequant scale folded into the BN1 scale.
    wq1, qs1 = _quant_int8_cols(params["fc1_w"].T)               # (400, 8192)
    s1 = params["bn1_gamma"] / jnp.sqrt(params["bn1_var"] + eps)
    prep["fc1_wq"] = wq1
    prep["fc1_scale"] = (qs1 * s1.reshape(1, -1)).astype(jnp.float32)
    prep["fc1_shift"] = ((params["fc1_b"] - params["bn1_mean"]) * s1
                         + params["bn1_beta"]).reshape(1, -1)
    # fc2: same; combined scale applied in the XLA epilogue after the sum.
    wq2, qs2 = _quant_int8_cols(params["fc2_w"].T)               # (8192, 512)
    s2 = params["bn2_gamma"] / jnp.sqrt(params["bn2_var"] + eps)
    prep["fc2_wq"] = wq2
    prep["fc2_scale"] = (qs2 * s2.reshape(1, -1)).astype(jnp.float32)
    prep["fc2_shift"] = ((params["fc2_b"] - params["bn2_mean"]) * s2
                         + params["bn2_beta"]).reshape(1, -1)
    # fc3: tiny (512 x num_classes), runs in the XLA epilogue in f32.
    prep["fc3_wt"] = params["fc3_w"].T.astype(jnp.float32)
    prep["fc3_bias"] = params["fc3_b"].astype(jnp.float32)
    return prep


# -----------------------------------------------------------------------------
# Forward pass
# -----------------------------------------------------------------------------
def lenet_forward(prep, x):
    # x: (N, 1, 28, 28) NCHW f32
    n = x.shape[0]
    y = x.transpose(1, 0, 2, 3)                                  # (C, N, H, W)

    # conv1: Conv2d(1->6, k3, pad2) + ReLU (fused), then MaxPool2d(2)
    cols, ho, wo = _im2col_T(y, k=3, pad=2, k_pad=prep["conv1_w2d"].shape[1])
    y = conv_matmul(prep["conv1_w2d"], cols, prep["conv1_bias"], relu=True)
    y = y[:6].reshape(6, n, ho, wo)
    y = _maxpool2x2(y)                                           # (6,N,15,15)

    # conv2 branch group (folded 6->16 conv) + fused ReLU (exact — see header),
    # then "conv3" = MaxPool2d(2) (its ReLU is the fused one above).
    cols, ho, wo = _im2col_T(y, k=5, pad=0, k_pad=prep["conv2_w2d"].shape[1])
    y = conv_matmul(prep["conv2_w2d"], cols, prep["conv2_bias"], relu=True)
    y = y.reshape(16, n, ho, wo)
    y = _maxpool2x2(y)                                           # (16,N,5,5)

    # flatten in PyTorch NCHW view order
    x_flat = y.transpose(1, 0, 2, 3).reshape(n, -1)              # (N, 400)

    # fc1+BN1+ReLU -> fc2 partials (Pallas) | sum+BN2+ReLU+fc3 (tiny XLA)
    return fc_stack(x_flat, prep)


if __name__ == "__main__":
    key = jax.random.PRNGKey(0)
    kx, kp = jax.random.split(key)

    # MNIST-like input (NCHW): 28 -> conv1 30 -> pool 15 -> conv2 11 -> pool 5
    x = jax.random.normal(kx, (2, 1, 28, 28), jnp.float32)
    flat_dim = 16 * 5 * 5   # 400 (module's 46656 implies a 222x222 input)

    params = init_params(kp, flat_dim, num_classes=10)
    prep = prepare_params(params)        # one-time weight prep, outside jit

    fwd = jax.jit(lenet_forward)
    out = fwd(prep, x)
    jax.block_until_ready(out)
    assert out.shape == (2, 10) and out.dtype == jnp.float32
    print("KERNEL_OK")
</pallas_src>

<mosaic_0001>
module attributes {stable_mosaic.version = 11 : i64} {
  func.func @_conv_kernel(%arg0: i32, %arg1: memref<8x16xbf16, #tpu.memory_space<vmem>>, %arg2: memref<16x512xbf16, #tpu.memory_space<vmem>>, %arg3: memref<8x1xf32, #tpu.memory_space<vmem>>, %arg4: memref<8x512xbf16, #tpu.memory_space<vmem>>) attributes {dimension_semantics = [#tpu.dimension_semantics<parallel>], iteration_bounds = array<i64: 4>, scalar_prefetch = 0 : i64, scratch_operands = 0 : i64, tpu.core_type = #tpu.core_type<tc>, window_params = [{pipeline_mode = #tpu.pipeline_mode<synchronous>, transform_indices = @transform_0, window_bounds = array<i64: 8, 16>}, {transform_indices = @transform_1, window_bounds = array<i64: 16, 512>}, {pipeline_mode = #tpu.pipeline_mode<synchronous>, transform_indices = @transform_2, window_bounds = array<i64: 8, 1>}, {transform_indices = @transform_3, window_bounds = array<i64: 8, 512>}]} {
    %c0 = arith.constant 0 : index
    %c0_0 = arith.constant 0 : index
    %0 = vector.load %arg1[%c0, %c0_0] : memref<8x16xbf16, #tpu.memory_space<vmem>>, vector<8x16xbf16>
    %c0_1 = arith.constant 0 : index
    %c0_2 = arith.constant 0 : index
    %1 = vector.load %arg2[%c0_1, %c0_2] : memref<16x512xbf16, #tpu.memory_space<vmem>>, vector<16x512xbf16>
    %cst = arith.constant dense<0.000000e+00> : vector<8x512xf32>
    %2 = tpu.matmul %0, %1, %cst {dimension_numbers = #tpu.dot_dimension_numbers<[1], [0], [0], [1], [0, 0, 1, 1], [], []>} : vector<8x16xbf16>, vector<16x512xbf16>, vector<8x512xf32> -> vector<8x512xf32>
    %c0_3 = arith.constant 0 : index
    %c0_4 = arith.constant 0 : index
    %3 = vector.load %arg3[%c0_3, %c0_4] : memref<8x1xf32, #tpu.memory_space<vmem>>, vector<8x1xf32>
    %4 = vector.broadcast %3 : vector<8x1xf32> to vector<8x512xf32>
    %5 = arith.addf %2, %4 : vector<8x512xf32>
    %cst_5 = arith.constant 0.000000e+00 : f32
    %6 = vector.broadcast %cst_5 : f32 to vector<8x512xf32>
    %7 = arith.maximumf %5, %6 : vector<8x512xf32>
    %8 = arith.truncf %7 : vector<8x512xf32> to vector<8x512xbf16>
    %c0_6 = arith.constant 0 : index
    %c0_7 = arith.constant 0 : index
    %9 = vector.load %arg4[%c0_6, %c0_7] : memref<8x512xbf16, #tpu.memory_space<vmem>>, vector<8x512xbf16>
    tpu.vector_store %arg4[%c0_6, %c0_7], %8 {strides = array<i32>} : memref<8x512xbf16, #tpu.memory_space<vmem>>, vector<8x512xbf16>,
    return
  }
  func.func @transform_0(%arg0: i32) -> (i32, i32) {
    %c0_i32 = arith.constant 0 : i32
    %c0_i32_0 = arith.constant 0 : i32
    %c0_i32_1 = arith.constant 0 : i32
    return %c0_i32, %c0_i32_0 : i32, i32
  }
  func.func @transform_1(%arg0: i32) -> (i32, i32) {
    %c0_i32 = arith.constant 0 : i32
    %c0_i32_0 = arith.constant 0 : i32
    return %c0_i32, %arg0 : i32, i32
  }
  func.func @transform_2(%arg0: i32) -> (i32, i32) {
    %c0_i32 = arith.constant 0 : i32
    %c0_i32_0 = arith.constant 0 : i32
    %c0_i32_1 = arith.constant 0 : i32
    return %c0_i32, %c0_i32_0 : i32, i32
  }
  func.func @transform_3(%arg0: i32) -> (i32, i32) {
    %c0_i32 = arith.constant 0 : i32
    %c0_i32_0 = arith.constant 0 : i32
    return %c0_i32, %arg0 : i32, i32
  }
}

module attributes {stable_mosaic.version = 11 : i64} {
  func.func @_conv_kernel(%arg0: i32, %arg1: memref<16x160xbf16, #tpu.memory_space<vmem>>, %arg2: memref<160x512xbf16, #tpu.memory_space<vmem>>, %arg3: memref<16x1xf32, #tpu.memory_space<vmem>>, %arg4: memref<16x512xbf16, #tpu.memory_space<vmem>>) attributes {dimension_semantics = [#tpu.dimension_semantics<parallel>], iteration_bounds = array<i64: 1>, scalar_prefetch = 0 : i64, scratch_operands = 0 : i64, tpu.core_type = #tpu.core_type<tc>, window_params = [{pipeline_mode = #tpu.pipeline_mode<synchronous>, transform_indices = @transform_0, window_bounds = array<i64: 16, 160>}, {transform_indices = @transform_1, window_bounds = array<i64: 160, 512>}, {pipeline_mode = #tpu.pipeline_mode<synchronous>, transform_indices = @transform_2, window_bounds = array<i64: 16, 1>}, {transform_indices = @transform_3, window_bounds = array<i64: 16, 512>}]} {
    %c0 = arith.constant 0 : index
    %c0_0 = arith.constant 0 : index
    %0 = vector.load %arg1[%c0, %c0_0] : memref<16x160xbf16, #tpu.memory_space<vmem>>, vector<16x160xbf16>
    %c0_1 = arith.constant 0 : index
    %c0_2 = arith.constant 0 : index
    %1 = vector.load %arg2[%c0_1, %c0_2] : memref<160x512xbf16, #tpu.memory_space<vmem>>, vector<160x512xbf16>
    %cst = arith.constant dense<0.000000e+00> : vector<16x512xf32>
    %2 = tpu.matmul %0, %1, %cst {dimension_numbers = #tpu.dot_dimension_numbers<[1], [0], [0], [1], [0, 0, 1, 1], [], []>} : vector<16x160xbf16>, vector<160x512xbf16>, vector<16x512xf32> -> vector<16x512xf32>
    %c0_3 = arith.constant 0 : index
    %c0_4 = arith.constant 0 : index
    %3 = vector.load %arg3[%c0_3, %c0_4] : memref<16x1xf32, #tpu.memory_space<vmem>>, vector<16x1xf32>
    %4 = vector.broadcast %3 : vector<16x1xf32> to vector<16x512xf32>
    %5 = arith.addf %2, %4 : vector<16x512xf32>
    %cst_5 = arith.constant 0.000000e+00 : f32
    %6 = vector.broadcast %cst_5 : f32 to vector<16x512xf32>
    %7 = arith.maximumf %5, %6 : vector<16x512xf32>
    %8 = arith.truncf %7 : vector<16x512xf32> to vector<16x512xbf16>
    %c0_6 = arith.constant 0 : index
    %c0_7 = arith.constant 0 : index
    %9 = vector.load %arg4[%c0_6, %c0_7] : memref<16x512xbf16, #tpu.memory_space<vmem>>, vector<16x512xbf16>
    tpu.vector_store %arg4[%c0_6, %c0_7], %8 {strides = array<i32>} : memref<16x512xbf16, #tpu.memory_space<vmem>>, vector<16x512xbf16>,
    return
  }
  func.func @transform_0(%arg0: i32) -> (i32, i32) {
    %c0_i32 = arith.constant 0 : i32
    %c0_i32_0 = arith.constant 0 : i32
    %c0_i32_1 = arith.constant 0 : i32
    return %c0_i32, %c0_i32_0 : i32, i32
  }
  func.func @transform_1(%arg0: i32) -> (i32, i32) {
    %c0_i32 = arith.constant 0 : i32
    %c0_i32_0 = arith.constant 0 : i32
    return %c0_i32, %arg0 : i32, i32
  }
  func.func @transform_2(%arg0: i32) -> (i32, i32) {
    %c0_i32 = arith.constant 0 : i32
    %c0_i32_0 = arith.constant 0 : i32
    %c0_i32_1 = arith.constant 0 : i32
    return %c0_i32, %c0_i32_0 : i32, i32
  }
  func.func @transform_3(%arg0: i32) -> (i32, i32) {
    %c0_i32 = arith.constant 0 : i32
    %c0_i32_0 = arith.constant 0 : i32
    return %c0_i32, %arg0 : i32, i32
  }
}

module attributes {stable_mosaic.version = 11 : i64} {
  func.func @_fc_kernel(%arg0: i32, %arg1: i32, %arg2: memref<2x400xbf16, #tpu.memory_space<vmem>>, %arg3: memref<400x2048xi8, #tpu.memory_space<vmem>>, %arg4: memref<1x2048xf32, #tpu.memory_space<vmem>>, %arg5: memref<1x2048xf32, #tpu.memory_space<vmem>>, %arg6: memref<2048x512xi8, #tpu.memory_space<vmem>>, %arg7: memref<1x2x512xf32, #tpu.memory_space<vmem>>) attributes {dimension_semantics = [#tpu.dimension_semantics<parallel>, #tpu.dimension_semantics<arbitrary>], iteration_bounds = array<i64: 2, 2>, scalar_prefetch = 0 : i64, scratch_operands = 0 : i64, tpu.core_type = #tpu.core_type<tc>, window_params = [{pipeline_mode = #tpu.pipeline_mode<synchronous>, transform_indices = @transform_0, window_bounds = array<i64: 2, 400>}, {transform_indices = @transform_1, window_bounds = array<i64: 400, 2048>}, {transform_indices = @transform_2, window_bounds = array<i64: 1, 2048>}, {transform_indices = @transform_3, window_bounds = array<i64: 1, 2048>}, {transform_indices = @transform_4, window_bounds = array<i64: 2048, 512>}, {transform_indices = @transform_5, window_bounds = array<i64: 1, 2, 512>}]} {
    %c0_i32 = arith.constant 0 : i32
    %0 = arith.cmpi eq, %arg1, %c0_i32 : i32
    %1 = arith.extui %0 : i1 to i32
    %c0_i32_0 = arith.constant 0 : i32
    %2 = arith.cmpi ne, %1, %c0_i32_0 : i32
    scf.if %2 {
      %cst_18 = arith.constant 0.000000e+00 : f32
      %23 = vector.broadcast %cst_18 : f32 to vector<1x2x512xf32>
      %c0_19 = arith.constant 0 : index
      %c0_20 = arith.constant 0 : index
      %c0_21 = arith.constant 0 : index
      %24 = vector.load %arg7[%c0_19, %c0_20, %c0_21] : memref<1x2x512xf32, #tpu.memory_space<vmem>>, vector<1x2x512xf32>
      tpu.vector_store %arg7[%c0_19, %c0_20, %c0_21], %23 {strides = array<i32>} : memref<1x2x512xf32, #tpu.memory_space<vmem>>, vector<1x2x512xf32>,
    } else {
    }
    %c0 = arith.constant 0 : index
    %c0_1 = arith.constant 0 : index
    %3 = vector.load %arg3[%c0, %c0_1] : memref<400x2048xi8, #tpu.memory_space<vmem>>, vector<400x2048xi8>
    %4 = arith.sitofp %3 : vector<400x2048xi8> to vector<400x2048xbf16>
    %c0_2 = arith.constant 0 : index
    %c0_3 = arith.constant 0 : index
    %5 = vector.load %arg2[%c0_2, %c0_3] : memref<2x400xbf16, #tpu.memory_space<vmem>>, vector<2x400xbf16>
    %cst = arith.constant dense<0.000000e+00> : vector<2x2048xf32>
    %6 = tpu.matmul %5, %4, %cst {dimension_numbers = #tpu.dot_dimension_numbers<[1], [0], [0], [1], [0, 0, 1, 1], [], []>} : vector<2x400xbf16>, vector<400x2048xbf16>, vector<2x2048xf32> -> vector<2x2048xf32>
    %c0_4 = arith.constant 0 : index
    %c0_5 = arith.constant 0 : index
    %7 = vector.load %arg4[%c0_4, %c0_5] : memref<1x2048xf32, #tpu.memory_space<vmem>>, vector<1x2048xf32>
    %8 = vector.broadcast %7 : vector<1x2048xf32> to vector<2x2048xf32>
    %9 = arith.mulf %6, %8 : vector<2x2048xf32>
    %c0_6 = arith.constant 0 : index
    %c0_7 = arith.constant 0 : index
    %10 = vector.load %arg5[%c0_6, %c0_7] : memref<1x2048xf32, #tpu.memory_space<vmem>>, vector<1x2048xf32>
    %11 = vector.broadcast %10 : vector<1x2048xf32> to vector<2x2048xf32>
    %12 = arith.addf %9, %11 : vector<2x2048xf32>
    %cst_8 = arith.constant 0.000000e+00 : f32
    %13 = vector.broadcast %cst_8 : f32 to vector<2x2048xf32>
    %14 = arith.maximumf %12, %13 : vector<2x2048xf32>
    %15 = arith.truncf %14 : vector<2x2048xf32> to vector<2x2048xbf16>
    %c0_9 = arith.constant 0 : index
    %c0_10 = arith.constant 0 : index
    %16 = vector.load %arg6[%c0_9, %c0_10] : memref<2048x512xi8, #tpu.memory_space<vmem>>, vector<2048x512xi8>
    %17 = arith.sitofp %16 : vector<2048x512xi8> to vector<2048x512xbf16>
    %c0_11 = arith.constant 0 : index
    %c0_12 = arith.constant 0 : index
    %c0_13 = arith.constant 0 : index
    %18 = vector.load %arg7[%c0_11, %c0_12, %c0_13] : memref<1x2x512xf32, #tpu.memory_space<vmem>>, vector<1x2x512xf32>
    %cst_14 = arith.constant dense<0.000000e+00> : vector<2x512xf32>
    %19 = tpu.matmul %15, %17, %cst_14 {dimension_numbers = #tpu.dot_dimension_numbers<[1], [0], [0], [1], [0, 0, 1, 1], [], []>} : vector<2x2048xbf16>, vector<2048x512xbf16>, vector<2x512xf32> -> vector<2x512xf32>
    %20 = vector.shape_cast %19 : vector<2x512xf32> to vector<1x2x512xf32>
    %21 = arith.addf %18, %20 : vector<1x2x512xf32>
    %c0_15 = arith.constant 0 : index
    %c0_16 = arith.constant 0 : index
    %c0_17 = arith.constant 0 : index
    %22 = vector.load %arg7[%c0_15, %c0_16, %c0_17] : memref<1x2x512xf32, #tpu.memory_space<vmem>>, vector<1x2x512xf32>
    tpu.vector_store %arg7[%c0_15, %c0_16, %c0_17], %21 {strides = array<i32>} : memref<1x2x512xf32, #tpu.memory_space<vmem>>, vector<1x2x512xf32>,
    return
  }
  func.func @transform_0(%arg0: i32, %arg1: i32) -> (i32, i32) {
    %c0_i32 = arith.constant 0 : i32
    %c0_i32_0 = arith.constant 0 : i32
    %c0_i32_1 = arith.constant 0 : i32
    return %c0_i32, %c0_i32_0 : i32, i32
  }
  func.func @transform_1(%arg0: i32, %arg1: i32) -> (i32, i32) {
    %c2_i32 = arith.constant 2 : i32
    %0 = arith.muli %arg0, %c2_i32 : i32
    %1 = arith.addi %0, %arg1 : i32
    %c0_i32 = arith.constant 0 : i32
    %c0_i32_0 = arith.constant 0 : i32
    return %c0_i32, %1 : i32, i32
  }
  func.func @transform_2(%arg0: i32, %arg1: i32) -> (i32, i32) {
    %c2_i32 = arith.constant 2 : i32
    %0 = arith.muli %arg0, %c2_i32 : i32
    %1 = arith.addi %0, %arg1 : i32
    %c0_i32 = arith.constant 0 : i32
    %c0_i32_0 = arith.constant 0 : i32
    return %c0_i32, %1 : i32, i32
  }
  func.func @transform_3(%arg0: i32, %arg1: i32) -> (i32, i32) {
    %c2_i32 = arith.constant 2 : i32
    %0 = arith.muli %arg0, %c2_i32 : i32
    %1 = arith.addi %0, %arg1 : i32
    %c0_i32 = arith.constant 0 : i32
    %c0_i32_0 = arith.constant 0 : i32
    return %c0_i32, %1 : i32, i32
  }
  func.func @transform_4(%arg0: i32, %arg1: i32) -> (i32, i32) {
    %c2_i32 = arith.constant 2 : i32
    %0 = arith.muli %arg0, %c2_i32 : i32
    %1 = arith.addi %0, %arg1 : i32
    %c0_i32 = arith.constant 0 : i32
    %c0_i32_0 = arith.constant 0 : i32
    return %1, %c0_i32 : i32, i32
  }
  func.func @transform_5(%arg0: i32, %arg1: i32) -> (i32, i32, i32) {
    %c0_i32 = arith.constant 0 : i32
    %c0_i32_0 = arith.constant 0 : i32
    %c0_i32_1 = arith.constant 0 : i32
    return %arg0, %c0_i32, %c0_i32_0 : i32, i32, i32
  }
}

</mosaic_0001>

<llo_original>
// kernel: lenet_forward.3
$region0: #{lenet_forward.3}
  #allocation0 [shape = 'u32[]', space=smem, size = 0x4, offset = 0x4, fixed_abs, tag = 'smem constant byte address 0x4 - core index']
  #allocation1 [shape = 'u32[72,128]{1,0:T(1,128)}', space=vmem, size = 0x9000, scoped, tag = 'internal scratch']
  %s0 = inlined_call_operand.hbm [shape: bf16[8,16], index: 0, kind: input, shape index: {}]
  %s1 = inlined_call_operand.vmem [shape: bf16[16,2048], index: 1, kind: input, shape index: {}]
  %s2 = inlined_call_operand.vmem [shape: f32[8,1], index: 2, kind: input, shape index: {}]
  %s3 = inlined_call_operand.vmem [shape: bf16[8,2048], index: 3, kind: output, shape index: {}]
  %s4 = sld [smem:[#allocation0]]
  $region72: #{lenet_forward.3} parent=0
    _
  %s6 = ssub.s32 1, %s4
  %s7 = scalar_select 0, %s6, %s4
  $region1: #{lenet_forward.3} parent=0
    #allocation2 [shape = 'u8[2048]{0}', space=vmem, size = 0x800, scoped, tag = 'input window, operand 0, single buffered']
    #allocation3 [shape = 's32[2]{0}', space=sflag, size = 0x8, scoped, tag = 'scoped memory for lenet_forward.3']
    #allocation4 [shape = 'u8[32768]{0}', space=vmem, size = 0x8000, scoped, tag = 'input window, operand 1']
    %8 = vsyncpa [#allocation3], 0
    loop: start=0, step=1, limit=6
    $region2: #{lenet_forward.3} parent=1 // loop_pre_header
      _
    $region3: #{lenet_forward.3} parent=1 // loop_header
      %s10 = sphi 0, %s14
      %p11 = scmp.ge.s32.totalorder %s10, 6
      %s18 = sphi 0, %s18
      %s20 = sphi 0, %s18
      %s21 = sphi 0, %s20
      %s35 = sphi 0, %s21
      %s41 = sphi 0, %s43
      %s44 = sphi 0, %s41
      %s45 = sphi 0, %s44
      %s61 = sphi 0, %s45
      %s65 = sphi 0, %s65
      %s67 = sphi 0, %s65
      %s68 = sphi 0, %s67
      %s82 = sphi 0, %s68
      %s88 = sphi 0, %s90
      %s91 = sphi 0, %s88
      %s92 = sphi 0, %s91
      %s108 = sphi 0, %s92
    $region4: #{lenet_forward.3} parent=1 // loop_header_branch
      %13 = sbr.rel (%p11) target = $region8
    $region5: #{lenet_forward.3} parent=1 // loop_body
      %s15 = ssub.s32 %s10, 1
      %s16 = ssub.s32 %s10, 2
      %s17 = sadd.s32 %s10, 1
      %s19 = sadd.s32 %s18, 1
      %p22 = scmp.eq.s32.totalorder %s10, 3
      %p23 = scmp.ne.s32.totalorder %s18, %s20
      %p24 = scmp.eq.s32.totalorder %s10, 0
      %p25 = por %p23, %p24
      %p26 = scmp.ne.s32.totalorder %s18, %s20
      %p27 = scmp.eq.s32.totalorder %s15, 3
      %p28 = por %p26, %p27
      %p29 = scmp.ne.s32.totalorder %s20, %s21
      %p30 = scmp.eq.s32.totalorder %s15, 0
      %p31 = por %p29, %p30
      %p32 = scmp.ne.s32.totalorder %s20, %s21
      %p33 = scmp.eq.s32.totalorder %s16, 3
      %p34 = por %p32, %p33
      %p36 = scmp.ne.s32.totalorder %s21, %s35
      %p37 = scmp.eq.s32.totalorder %s16, 0
      %p38 = por %p36, %p37
      %s39 = ssub.s32 %s10, %s17
      %p40 = scmp.eq.s32.totalorder %s39, 0
      %s42 = sadd.s32 %s41, 1
      %s43 = scalar_select %p40, %s41, %s42
      %p46 = pneg %p40
      %p47 = scmp.eq.s32.totalorder %s10, 3
      %p48 = por %p46, %p47
      %p49 = scmp.ne.s32.totalorder %s41, %s44
      %p50 = scmp.eq.s32.totalorder %s10, 0
      %p51 = por %p49, %p50
      %p52 = scmp.ne.s32.totalorder %s41, %s44
      %p53 = scmp.eq.s32.totalorder %s15, 3
      %p54 = por %p52, %p53
      %p55 = scmp.ne.s32.totalorder %s44, %s45
      %p56 = scmp.eq.s32.totalorder %s15, 0
      %p57 = por %p55, %p56
      %p58 = scmp.ne.s32.totalorder %s44, %s45
      %p59 = scmp.eq.s32.totalorder %s16, 3
      %p60 = por %p58, %p59
      %p62 = scmp.ne.s32.totalorder %s45, %s61
      %p63 = scmp.eq.s32.totalorder %s16, 0
      %p64 = por %p62, %p63
      %s66 = sadd.s32 %s65, 1
      %p69 = scmp.eq.s32.totalorder %s10, 3
      %p70 = scmp.ne.s32.totalorder %s65, %s67
      %p71 = scmp.eq.s32.totalorder %s10, 0
      %p72 = por %p70, %p71
      %p73 = scmp.ne.s32.totalorder %s65, %s67
      %p74 = scmp.eq.s32.totalorder %s15, 3
      %p75 = por %p73, %p74
      %p76 = scmp.ne.s32.totalorder %s67, %s68
      %p77 = scmp.eq.s32.totalorder %s15, 0
      %p78 = por %p76, %p77
      %p79 = scmp.ne.s32.totalorder %s67, %s68
      %p80 = scmp.eq.s32.totalorder %s16, 3
      %p81 = por %p79, %p80
      %p83 = scmp.ne.s32.totalorder %s68, %s82
      %p84 = scmp.eq.s32.totalorder %s16, 0
      %p85 = por %p83, %p84
      %s86 = ssub.s32 %s10, %s17
      %p87 = scmp.eq.s32.totalorder %s86, 0
      %s89 = sadd.s32 %s88, 1
      %s90 = scalar_select %p87, %s88, %s89
      %p93 = pneg %p87
      %p94 = scmp.eq.s32.totalorder %s10, 3
      %p95 = por %p93, %p94
      %p96 = scmp.ne.s32.totalorder %s88, %s91
      %p97 = scmp.eq.s32.totalorder %s10, 0
      %p98 = por %p96, %p97
      %p99 = scmp.ne.s32.totalorder %s88, %s91
      %p100 = scmp.eq.s32.totalorder %s15, 3
      %p101 = por %p99, %p100
      %p102 = scmp.ne.s32.totalorder %s91, %s92
      %p103 = scmp.eq.s32.totalorder %s15, 0
      %p104 = por %p102, %p103
      %p105 = scmp.ne.s32.totalorder %s91, %s92
      %p106 = scmp.eq.s32.totalorder %s16, 3
      %p107 = por %p105, %p106
      %p109 = scmp.ne.s32.totalorder %s92, %s108
      %p110 = scmp.eq.s32.totalorder %s16, 0
      %p111 = por %p109, %p110
      %p112 = scmp.le.s32.totalorder 1, %s10
      %p113 = scmp.lt.s32.totalorder %s10, 5
      %p114 = pnand %p112, %p113
      %p115 = pneg %p114
      // Predicated region
      $region9: #{lenet_forward.3} parent=5 // pred_check
        _
      $region10: #{lenet_forward.3} parent=5 // pred_check_branch
        %117 = sbr.rel (%p114) target = $region12
      $region11: #{lenet_forward.3} parent=5 // pred_region
        %s118 = ssub.s32 %s10, 1
        // Predicated region
        $region13: #{lenet_forward.3} parent=11 // pred_check
          %p119 = pneg %p31
        $region14: #{lenet_forward.3} parent=11 // pred_check_branch
          %121 = sbr.rel (%p119) target = $region16
        $region15: #{lenet_forward.3} parent=11 // pred_region
          %123 = vsyncadd [#allocation3], 0
          %s125 = sshll.u32 %s0, 4
          %s126 = int_to_ptr.hbm [resolvable:$true] %s125
          %s127 = sshll.u32 [#allocation2], 4
          %s128 = int_to_ptr.vmem [resolvable:$true] %s127
          %130 = dma.hbm_to_vmem [thread:$0]  %s126, 64, %s128, [#allocation3]
        $region16: #{lenet_forward.3} parent=11 // pred_fallthru
          _
        // Predicated region
        $region17: #{lenet_forward.3} parent=11 // pred_check
          %p131 = pneg %p78
        $region18: #{lenet_forward.3} parent=11 // pred_check_branch
          %133 = sbr.rel (%p131) target = $region20
        $region19: #{lenet_forward.3} parent=11 // pred_region
          _
        $region20: #{lenet_forward.3} parent=11 // pred_fallthru
          _
      $region12: #{lenet_forward.3} parent=5 // pred_fallthru
        _
      %p134 = scmp.lt.s32.totalorder %s10, 4
      // Predicated region
      $region21: #{lenet_forward.3} parent=5 // pred_check
        %p135 = pneg %p134
      $region22: #{lenet_forward.3} parent=5 // pred_check_branch
        %137 = sbr.rel (%p135) target = $region24
      $region23: #{lenet_forward.3} parent=5 // pred_region
        // Predicated region
        $region25: #{lenet_forward.3} parent=23 // pred_check
          %p138 = pneg %p51
        $region26: #{lenet_forward.3} parent=23 // pred_check_branch
          %140 = sbr.rel (%p138) target = $region28
        $region27: #{lenet_forward.3} parent=23 // pred_region
          %s141 = sand.u32 %s41, 1
          %s142 = sand.u32 %s41, 1
          %s143 = smul.addr %s142, 32
          %s144 = scalar_lea.vmem [#allocation4], %s143
          %s145 = smul.u32 4, %s10
          %s146 = smul.addr %s145, 4
          %s147 = scalar_lea.vmem %s1, %s146
          // Predicated region
          $region29: #{lenet_forward.3} parent=27 // pred_check
            _
          $region30: #{lenet_forward.3} parent=27 // pred_check_branch
            %149 = sbr.rel (0) target = $region32
          $region31: #{lenet_forward.3} parent=27 // pred_region
            // Predicated region
            $region33: #{lenet_forward.3} parent=31 // pred_check
              _
            $region34: #{lenet_forward.3} parent=31 // pred_check_branch
              %151 = sbr.rel (0) target = $region36
            $region35: #{lenet_forward.3} parent=31 // pred_region
              loop: start=0, step=1, limit=1
              $region37: #{lenet_forward.3} parent=35 // loop_pre_header
                _
              $region38: #{lenet_forward.3} parent=35 // loop_header
                %s153 = sphi 0, %s157
                %p154 = scmp.ge.s32.totalorder %s153, 1
                %s158 = sphi %s147, %s147
                %s159 = sphi %s144, %s144
              $region39: #{lenet_forward.3} parent=35 // loop_header_branch
                %156 = sbr.rel (%p154) target = $region43
              $region40: #{lenet_forward.3} parent=35 // loop_body
                %v160 = vld [vmem:[%s158] sm:$0xff]
                %161 = vst [vmem:[%s159] sm:$0xff] %v160
                %v162 = vld [vmem:[%s158 + $0x8] sm:$0xff]
                %163 = vst [vmem:[%s159 + $0x8] sm:$0xff] %v162
                %v164 = vld [vmem:[%s158 + $0x40] sm:$0xff]
                %165 = vst [vmem:[%s159 + $0x10] sm:$0xff] %v164
                %v166 = vld [vmem:[%s158 + $0x48] sm:$0xff]
                %167 = vst [vmem:[%s159 + $0x18] sm:$0xff] %v166
              $region41: #{lenet_forward.3} parent=35 // loop_footer
                %s157 = sadd.s32 1, %s153
              $region42: #{lenet_forward.3} parent=35 // loop_footer_branch
                %152 = sbr.rel target = $region38
              $region43: #{lenet_forward.3} parent=35 // loop_exit
                _
            $region36: #{lenet_forward.3} parent=31 // pred_fallthru
              _
            // Predicated region
            $region44: #{lenet_forward.3} parent=31 // pred_check
              _
            $region45: #{lenet_forward.3} parent=31 // pred_check_branch
              %169 = sbr.rel target = $region47
            $region46: #{lenet_forward.3} parent=31 // pred_region
              _
            $region47: #{lenet_forward.3} parent=31 // pred_fallthru
              _
          $region32: #{lenet_forward.3} parent=27 // pred_fallthru
            _
          %170 = vnop
        $region28: #{lenet_forward.3} parent=23 // pred_fallthru
          _
      $region24: #{lenet_forward.3} parent=5 // pred_fallthru
        _
      %p171 = scmp.le.s32.totalorder 1, %s10
      %p172 = scmp.lt.s32.totalorder %s10, 5
      %p173 = pnand %p171, %p172
      %p174 = pneg %p173
      // Predicated region
      $region48: #{lenet_forward.3} parent=5 // pred_check
        _
      $region49: #{lenet_forward.3} parent=5 // pred_check_branch
        %176 = sbr.rel (%p173) target = $region51
      $region50: #{lenet_forward.3} parent=5 // pred_region
        %s177 = ssub.s32 %s10, 1
        // Predicated region
        $region52: #{lenet_forward.3} parent=50 // pred_check
          %p178 = pneg %p31
        $region53: #{lenet_forward.3} parent=50 // pred_check_branch
          %180 = sbr.rel (%p178) target = $region55
        $region54: #{lenet_forward.3} parent=50 // pred_region
          %182 = dma.done [#allocation3], 64
        $region55: #{lenet_forward.3} parent=50 // pred_fallthru
          _
        %s183 = sand.u32 %s44, 1
        %s184 = sand.u32 %s44, 1
        %s185 = smul.addr %s184, 32
        %s186 = scalar_lea.vmem [#allocation4], %s185
        // Predicated region
        $region56: #{lenet_forward.3} parent=50 // pred_check
          %p187 = pneg %p57
        $region57: #{lenet_forward.3} parent=50 // pred_check_branch
          %189 = sbr.rel (%p187) target = $region59
        $region58: #{lenet_forward.3} parent=50 // pred_region
          _
        $region59: #{lenet_forward.3} parent=50 // pred_fallthru
          _
        %p190 = pneg %p31
        %p191 = pneg %p28
        %s192 = sand.u32 %s44, 1
        %s193 = sand.u32 %s44, 1
        %s194 = smul.addr %s193, 32
        %s195 = scalar_lea.vmem [#allocation4], %s194
        %p196 = pneg %p57
        %p197 = pneg %p54
        %p198 = pneg %p78
        %p199 = pneg %p75
        %p200 = pneg %p104
        %p201 = pneg %p101
        %s202 = smul.u32 4, %s15
        %p203 = scmp.lt.s32.totalorder %s202, 15
        %s204 = scalar_select %p203, %s202, 15
        %s205 = smul.addr %s204, 4
        %s206 = scalar_lea.vmem %s3, %s205
        %s207 = smul.u32 4, %s15
        %s208 = smul.u32 4, %s15
        %p209 = scmp.lt.s32.totalorder %s208, 15
        %s210 = scalar_select %p209, %s208, 15
        %s211 = smul.addr %s210, 4
        %s212 = scalar_lea.vmem %s3, %s211
        %s213 = smul.u32 4, %s15
        %v215 = vld [vmem:[#allocation2] sm:$0xf]
        %v216 = vld [vmem:[%s186] sm:$0xff]
        %v217 = vld [vmem:[%s186 + $0x8] sm:$0xff]
        %v218 = vld [vmem:[%s186 + $0x10] sm:$0xff]
        %v219 = vld [vmem:[%s186 + $0x18] sm:$0xff]
        %v220 = vld [vmem:[%s2] sm:$0xff]
        %222 = vset.pattern.permute.xlu0 0
        %223 = vperm.xlu0 %222, %v220
        %v224 = vpop.permute.xlu0 %223
        %v230 = vunpack.c.l.b16 %v216
        %v231 = vunpack.c.h.b16 %v216
        %v232 = vunpack.c.l.b16 %v217
        %v233 = vunpack.c.h.b16 %v217
        %v234 = vunpack.c.l.b16 %v218
        %v235 = vunpack.c.h.b16 %v218
        %v236 = vunpack.c.l.b16 %v219
        %v237 = vunpack.c.h.b16 %v219
        %v238 = vpack.c.b16 %v234, %v230
        %v239 = vpack.c.b16 %v235, %v231
        %v240 = vpack.c.b16 %v236, %v232
        %v241 = vpack.c.b16 %v237, %v233
        %vm246 = vcmask 130048
        %v248 = vsel %vm246, %v215, 0
        %250 = vmatpush.bf16.msra.mxu0 0
        %251 = vmatpush.bf16.msra.mxu0 0
        %252 = vmatpush.bf16.msra.mxu0 0
        %253 = vmatpush.bf16.msra.mxu0 0
        %254 = vmatpush.bf16.msra.mxu0 0
        %255 = vmatpush.bf16.msra.mxu0 0
        %256 = vmatpush.bf16.msra.mxu0 0
        %257 = vmatpush.bf16.msra.mxu0 %v238
        %258 = vmatmul.bf16.gmra.mxu0 %v248
        %v259 = vpop.f32.mrf.mxu0
        %v260 = vadd.f32 %v224, %v259
        %v261 = vpop.f32.mrf.mxu0
        %262 = vdwg.mxu0
        %263 = vmatpush.bf16.msra.mxu0 0
        %264 = vmatpush.bf16.msra.mxu0 0
        %265 = vmatpush.bf16.msra.mxu0 0
        %266 = vmatpush.bf16.msra.mxu0 0
        %267 = vmatpush.bf16.msra.mxu0 0
        %268 = vmatpush.bf16.msra.mxu0 0
        %269 = vmatpush.bf16.msra.mxu0 0
        %270 = vmatpush.bf16.msra.mxu0 %v239
        %271 = vmatmul.bf16.gmra.mxu0 %v248
        %v272 = vpop.f32.mrf.mxu0
        %v273 = vadd.f32 %v224, %v272
        %v274 = vpop.f32.mrf.mxu0
        %275 = vdwg.mxu0
        %276 = vmatpush.bf16.msra.mxu0 0
        %277 = vmatpush.bf16.msra.mxu0 0
        %278 = vmatpush.bf16.msra.mxu0 0
        %279 = vmatpush.bf16.msra.mxu0 0
        %280 = vmatpush.bf16.msra.mxu0 0
        %281 = vmatpush.bf16.msra.mxu0 0
        %282 = vmatpush.bf16.msra.mxu0 0
        %283 = vmatpush.bf16.msra.mxu0 %v240
        %284 = vmatmul.bf16.gmra.mxu0 %v248
        %v285 = vpop.f32.mrf.mxu0
        %v286 = vadd.f32 %v224, %v285
        %v287 = vpop.f32.mrf.mxu0
        %288 = vdwg.mxu0
        %289 = vmatpush.bf16.msra.mxu0 0
        %290 = vmatpush.bf16.msra.mxu0 0
        %291 = vmatpush.bf16.msra.mxu0 0
        %292 = vmatpush.bf16.msra.mxu0 0
        %293 = vmatpush.bf16.msra.mxu0 0
        %294 = vmatpush.bf16.msra.mxu0 0
        %295 = vmatpush.bf16.msra.mxu0 0
        %296 = vmatpush.bf16.msra.mxu0 %v241
        %297 = vmatmul.bf16.gmra.mxu0 %v248
        %v298 = vpop.f32.mrf.mxu0
        %v299 = vadd.f32 %v224, %v298
        %v300 = vpop.f32.mrf.mxu0
        %301 = vdwg.mxu0
        %v302 = vmax.f32 %v260, 0.0
        %v303 = vmax.f32 %v273, 0.0
        %v304 = vmax.f32 %v286, 0.0
        %v305 = vmax.f32 %v299, 0.0
        %v306 = vpack.c.bf16 %v303, %v302
        %v307 = vpack.c.bf16 %v305, %v304
        %308 = vst [vmem:[%s212] sm:$0xff] %v306
        %309 = vst [vmem:[%s212 + $0x8] sm:$0xff] %v307
        %s310 = smul.u32 4, %s15
        %p311 = scmp.lt.s32.totalorder %s310, 15
        %s312 = scalar_select %p311, %s310, 15
        %s313 = smul.addr %s312, 4
        %s314 = scalar_lea.vmem %s3, %s313
        // Predicated region
        $region60: #{lenet_forward.3} parent=50 // pred_check
          %p315 = pneg %p101
        $region61: #{lenet_forward.3} parent=50 // pred_check_branch
          %317 = sbr.rel (%p315) target = $region63
        $region62: #{lenet_forward.3} parent=50 // pred_region
          %s318 = smul.u32 4, %s15
        $region63: #{lenet_forward.3} parent=50 // pred_fallthru
          _
      $region51: #{lenet_forward.3} parent=5 // pred_fallthru
        _
      %p319 = scmp.le.s32.totalorder 2, %s10
      // Predicated region
      $region64: #{lenet_forward.3} parent=5 // pred_check
        %p320 = pneg %p319
      $region65: #{lenet_forward.3} parent=5 // pred_check_branch
        %322 = sbr.rel (%p320) target = $region67
      $region66: #{lenet_forward.3} parent=5 // pred_region
        %s323 = ssub.s32 %s10, 2
        // Predicated region
        $region68: #{lenet_forward.3} parent=66 // pred_check
          %p324 = pneg %p107
        $region69: #{lenet_forward.3} parent=66 // pred_check_branch
          %326 = sbr.rel (%p324) target = $region71
        $region70: #{lenet_forward.3} parent=66 // pred_region
          %s327 = smul.u32 4, %s16
          %p328 = scmp.lt.s32.totalorder %s327, 15
          %s329 = scalar_select %p328, %s327, 15
          %s330 = smul.addr %s329, 4
          %s331 = scalar_lea.vmem %s3, %s330
        $region71: #{lenet_forward.3} parent=66 // pred_fallthru
          _
      $region67: #{lenet_forward.3} parent=5 // pred_fallthru
        _
    $region6: #{lenet_forward.3} parent=1 // loop_footer
      %s14 = sadd.s32 1, %s10
    $region7: #{lenet_forward.3} parent=1 // loop_footer_branch
      %9 = sbr.rel target = $region3
    $region8: #{lenet_forward.3} parent=1 // loop_exit
      _
    %332 = vsyncpa [#allocation3], 1
    %s333 = scalar_lea.sflag [#allocation3], 1
    %334 = vsyncpa %s333, 1

// kernel: lenet_forward.4
$region0: #{lenet_forward.4}
  #allocation0 [shape = 'u32[]', space=smem, size = 0x4, offset = 0x4, fixed_abs, tag = 'smem constant byte address 0x4 - core index']
  #allocation1 [shape = 'u32[72,128]{1,0:T(1,128)}', space=vmem, size = 0x9000, scoped, tag = 'internal scratch']
  %s0 = inlined_call_operand.vmem [shape: bf16[16,160], index: 0, kind: input, shape index: {}]
  %s1 = inlined_call_operand.vmem [shape: bf16[160,512], index: 1, kind: input, shape index: {}]
  %s2 = inlined_call_operand.vmem [shape: f32[16,1], index: 2, kind: input, shape index: {}]
  %s3 = inlined_call_operand.vmem [shape: bf16[16,512], index: 3, kind: output, shape index: {}]
  %s4 = sld [smem:[#allocation0]]
  $region22: #{lenet_forward.4} parent=0
    _
  %s6 = ssub.s32 1, %s4
  %s7 = scalar_select 0, %s6, %s4
  // Predicated region
  $region2: #{lenet_forward.4} parent=0 // pred_check
    _
  $region3: #{lenet_forward.4} parent=0 // pred_check_branch
    %9 = sbr.rel (0) target = $region5
  $region4: #{lenet_forward.4} parent=0 // pred_region
    _
  $region5: #{lenet_forward.4} parent=0 // pred_fallthru
    _
  // Predicated region
  $region6: #{lenet_forward.4} parent=0 // pred_check
    _
  $region7: #{lenet_forward.4} parent=0 // pred_check_branch
    %11 = sbr.rel (0) target = $region9
  $region8: #{lenet_forward.4} parent=0 // pred_region
    _
  $region9: #{lenet_forward.4} parent=0 // pred_fallthru
    _
  // Predicated region
  $region10: #{lenet_forward.4} parent=0 // pred_check
    _
  $region11: #{lenet_forward.4} parent=0 // pred_check_branch
    %13 = sbr.rel (0) target = $region13
  $region12: #{lenet_forward.4} parent=0 // pred_region
    _
  $region13: #{lenet_forward.4} parent=0 // pred_fallthru
    _
  %v15 = vld [vmem:[%s0] sm:$0xff]
  %v16 = vld [vmem:[%s0 + $0x8] sm:$0xff]
  %v17 = vld [vmem:[%s1] sm:$0xff]
  %v18 = vld [vmem:[%s1 + $0x8] sm:$0xff]
  %v19 = vld [vmem:[%s1 + $0x10] sm:$0xff]
  %v20 = vld [vmem:[%s1 + $0x18] sm:$0xff]
  %v21 = vld [vmem:[%s1 + $0x20] sm:$0xff]
  %v22 = vld [vmem:[%s1 + $0x28] sm:$0xff]
  %v23 = vld [vmem:[%s1 + $0x30] sm:$0xff]
  %v24 = vld [vmem:[%s1 + $0x38] sm:$0xff]
  %v25 = vld [vmem:[%s1 + $0x40] sm:$0xff]
  %v26 = vld [vmem:[%s1 + $0x48] sm:$0xff]
  %v27 = vld [vmem:[%s1 + $0x50] sm:$0xff]
  %v28 = vld [vmem:[%s1 + $0x58] sm:$0xff]
  %v29 = vld [vmem:[%s1 + $0x60] sm:$0xff]
  %v30 = vld [vmem:[%s1 + $0x68] sm:$0xff]
  %v31 = vld [vmem:[%s1 + $0x70] sm:$0xff]
  %v32 = vld [vmem:[%s1 + $0x78] sm:$0xff]
  %v33 = vld [vmem:[%s1 + $0x80] sm:$0xff]
  %v34 = vld [vmem:[%s1 + $0x88] sm:$0xff]
  %v35 = vld [vmem:[%s1 + $0x90] sm:$0xff]
  %v36 = vld [vmem:[%s1 + $0x98] sm:$0xff]
  %v37 = vld [vmem:[%s1 + $0xa0] sm:$0xff]
  %v38 = vld [vmem:[%s1 + $0xa8] sm:$0xff]
  %v39 = vld [vmem:[%s1 + $0xb0] sm:$0xff]
  %v40 = vld [vmem:[%s1 + $0xb8] sm:$0xff]
  %v41 = vld [vmem:[%s1 + $0xc0] sm:$0xff]
  %v42 = vld [vmem:[%s1 + $0xc8] sm:$0xff]
  %v43 = vld [vmem:[%s1 + $0xd0] sm:$0xff]
  %v44 = vld [vmem:[%s1 + $0xd8] sm:$0xff]
  %v45 = vld [vmem:[%s1 + $0xe0] sm:$0xff]
  %v46 = vld [vmem:[%s1 + $0xe8] sm:$0xff]
  %v47 = vld [vmem:[%s1 + $0xf0] sm:$0xff]
  %v48 = vld [vmem:[%s1 + $0xf8] sm:$0xff]
  %v49 = vld [vmem:[%s1 + $0x100] sm:$0xff]
  %v50 = vld [vmem:[%s1 + $0x108] sm:$0xff]
  %v51 = vld [vmem:[%s1 + $0x110] sm:$0xff]
  %v52 = vld [vmem:[%s1 + $0x118] sm:$0xff]
  %v53 = vld [vmem:[%s1 + $0x120] sm:$0xff]
  %v54 = vld [vmem:[%s1 + $0x128] sm:$0xff]
  %v55 = vld [vmem:[%s1 + $0x130] sm:$0xff]
  %v56 = vld [vmem:[%s1 + $0x138] sm:$0xff]
  %v57 = vld [vmem:[%s2] sm:$0xff]
  %v58 = vld [vmem:[%s2 + $0x8] sm:$0xff]
  %60 = vset.pattern.permute.xlu0 0
  %61 = vperm.xlu0 %60, %v57
  %v62 = vpop.permute.xlu0 %61
  %65 = vset.pattern.permute.xlu0 0
  %66 = vperm.xlu0 %65, %v58
  %v67 = vpop.permute.xlu0 %66
  %v71 = vunpack.c.l.b16 %v15
  %v72 = vunpack.c.h.b16 %v15
  %v73 = vunpack.c.l.b16 %v16
  %v74 = vunpack.c.h.b16 %v16
  %v75 = vpack.c.b16 %v73, %v71
  %v76 = vpack.c.b16 %v74, %v72
  %v118 = vunpack.c.l.b16 %v17
  %v119 = vunpack.c.h.b16 %v17
  %v120 = vunpack.c.l.b16 %v18
  %v121 = vunpack.c.h.b16 %v18
  %v122 = vunpack.c.l.b16 %v19
  %v123 = vunpack.c.h.b16 %v19
  %v124 = vunpack.c.l.b16 %v20
  %v125 = vunpack.c.h.b16 %v20
  %v126 = vunpack.c.l.b16 %v21
  %v127 = vunpack.c.h.b16 %v21
  %v128 = vunpack.c.l.b16 %v22
  %v129 = vunpack.c.h.b16 %v22
  %v130 = vunpack.c.l.b16 %v23
  %v131 = vunpack.c.h.b16 %v23
  %v132 = vunpack.c.l.b16 %v24
  %v133 = vunpack.c.h.b16 %v24
  %v134 = vunpack.c.l.b16 %v25
  %v135 = vunpack.c.h.b16 %v25
  %v136 = vunpack.c.l.b16 %v26
  %v137 = vunpack.c.h.b16 %v26
  %v138 = vunpack.c.l.b16 %v27
  %v139 = vunpack.c.h.b16 %v27
  %v140 = vunpack.c.l.b16 %v28
  %v141 = vunpack.c.h.b16 %v28
  %v142 = vunpack.c.l.b16 %v29
  %v143 = vunpack.c.h.b16 %v29
  %v144 = vunpack.c.l.b16 %v30
  %v145 = vunpack.c.h.b16 %v30
  %v146 = vunpack.c.l.b16 %v31
  %v147 = vunpack.c.h.b16 %v31
  %v148 = vunpack.c.l.b16 %v32
  %v149 = vunpack.c.h.b16 %v32
  %v150 = vunpack.c.l.b16 %v33
  %v151 = vunpack.c.h.b16 %v33
  %v152 = vunpack.c.l.b16 %v34
  %v153 = vunpack.c.h.b16 %v34
  %v154 = vunpack.c.l.b16 %v35
  %v155 = vunpack.c.h.b16 %v35
  %v156 = vunpack.c.l.b16 %v36
  %v157 = vunpack.c.h.b16 %v36
  %v158 = vunpack.c.l.b16 %v37
  %v159 = vunpack.c.h.b16 %v37
  %v160 = vunpack.c.l.b16 %v38
  %v161 = vunpack.c.h.b16 %v38
  %v162 = vunpack.c.l.b16 %v39
  %v163 = vunpack.c.h.b16 %v39
  %v164 = vunpack.c.l.b16 %v40
  %v165 = vunpack.c.h.b16 %v40
  %v166 = vunpack.c.l.b16 %v41
  %v167 = vunpack.c.h.b16 %v41
  %v168 = vunpack.c.l.b16 %v42
  %v169 = vunpack.c.h.b16 %v42
  %v170 = vunpack.c.l.b16 %v43
  %v171 = vunpack.c.h.b16 %v43
  %v172 = vunpack.c.l.b16 %v44
  %v173 = vunpack.c.h.b16 %v44
  %v174 = vunpack.c.l.b16 %v45
  %v175 = vunpack.c.h.b16 %v45
  %v176 = vunpack.c.l.b16 %v46
  %v177 = vunpack.c.h.b16 %v46
  %v178 = vunpack.c.l.b16 %v47
  %v179 = vunpack.c.h.b16 %v47
  %v180 = vunpack.c.l.b16 %v48
  %v181 = vunpack.c.h.b16 %v48
  %v182 = vunpack.c.l.b16 %v49
  %v183 = vunpack.c.h.b16 %v49
  %v184 = vunpack.c.l.b16 %v50
  %v185 = vunpack.c.h.b16 %v50
  %v186 = vunpack.c.l.b16 %v51
  %v187 = vunpack.c.h.b16 %v51
  %v188 = vunpack.c.l.b16 %v52
  %v189 = vunpack.c.h.b16 %v52
  %v190 = vunpack.c.l.b16 %v53
  %v191 = vunpack.c.h.b16 %v53
  %v192 = vunpack.c.l.b16 %v54
  %v193 = vunpack.c.h.b16 %v54
  %v194 = vunpack.c.l.b16 %v55
  %v195 = vunpack.c.h.b16 %v55
  %v196 = vunpack.c.l.b16 %v56
  %v197 = vunpack.c.h.b16 %v56
  %v198 = vpack.c.b16 %v122, %v118
  %v199 = vpack.c.b16 %v123, %v119
  %v200 = vpack.c.b16 %v124, %v120
  %v201 = vpack.c.b16 %v125, %v121
  %v202 = vpack.c.b16 %v130, %v126
  %v203 = vpack.c.b16 %v131, %v127
  %v204 = vpack.c.b16 %v132, %v128
  %v205 = vpack.c.b16 %v133, %v129
  %v206 = vpack.c.b16 %v138, %v134
  %v207 = vpack.c.b16 %v139, %v135
  %v208 = vpack.c.b16 %v140, %v136
  %v209 = vpack.c.b16 %v141, %v137
  %v210 = vpack.c.b16 %v146, %v142
  %v211 = vpack.c.b16 %v147, %v143
  %v212 = vpack.c.b16 %v148, %v144
  %v213 = vpack.c.b16 %v149, %v145
  %v214 = vpack.c.b16 %v154, %v150
  %v215 = vpack.c.b16 %v155, %v151
  %v216 = vpack.c.b16 %v156, %v152
  %v217 = vpack.c.b16 %v157, %v153
  %v218 = vpack.c.b16 %v162, %v158
  %v219 = vpack.c.b16 %v163, %v159
  %v220 = vpack.c.b16 %v164, %v160
  %v221 = vpack.c.b16 %v165, %v161
  %v222 = vpack.c.b16 %v170, %v166
  %v223 = vpack.c.b16 %v171, %v167
  %v224 = vpack.c.b16 %v172, %v168
  %v225 = vpack.c.b16 %v173, %v169
  %v226 = vpack.c.b16 %v178, %v174
  %v227 = vpack.c.b16 %v179, %v175
  %v228 = vpack.c.b16 %v180, %v176
  %v229 = vpack.c.b16 %v181, %v177
  %v230 = vpack.c.b16 %v186, %v182
  %v231 = vpack.c.b16 %v187, %v183
  %v232 = vpack.c.b16 %v188, %v184
  %v233 = vpack.c.b16 %v189, %v185
  %v234 = vpack.c.b16 %v194, %v190
  %v235 = vpack.c.b16 %v195, %v191
  %v236 = vpack.c.b16 %v196, %v192
  %v237 = vpack.c.b16 %v197, %v193
  %vm278 = vcmask 261120
  %v280 = vsel %vm278, %v76, 0
  %282 = vmatpush.bf16.msra.mxu0 %v226
  %283 = vmatpush.bf16.msra.mxu0 %v222
  %284 = vmatpush.bf16.msra.mxu0 %v218
  %285 = vmatpush.bf16.msra.mxu0 %v214
  %286 = vmatpush.bf16.msra.mxu0 %v210
  %287 = vmatpush.bf16.msra.mxu0 %v206
  %288 = vmatpush.bf16.msra.mxu0 %v202
  %289 = vmatpush.bf16.msra.mxu0 %v198
  %290 = vmatmul.bf16.gmra.mxu0 %v75
  %v291 = vpop.f32.mrf.mxu0
  %v292 = vadd.f32 %v62, %v291
  %v293 = vpop.f32.mrf.mxu0
  %v294 = vadd.f32 %v67, %v293
  %295 = vdwg.mxu0
  %296 = vmatpush.bf16.msra.mxu0 0
  %297 = vmatpush.bf16.msra.mxu0 0
  %298 = vmatpush.bf16.msra.mxu0 0
  %299 = vmatpush.bf16.msra.mxu0 0
  %300 = vmatpush.bf16.msra.mxu0 0
  %301 = vmatpush.bf16.msra.mxu0 0
  %302 = vmatpush.bf16.msra.mxu0 %v234
  %303 = vmatpush.bf16.msra.mxu0 %v230
  %304 = vmatmul.bf16.gmra.mxu0 %v280
  %v305 = vpop.f32.mrf.mxu0
  %v306 = vadd.f32 %v292, %v305
  %v307 = vpop.f32.mrf.mxu0
  %v308 = vadd.f32 %v294, %v307
  %309 = vdwg.mxu0
  %310 = vmatpush.bf16.msra.mxu0 %v227
  %311 = vmatpush.bf16.msra.mxu0 %v223
  %312 = vmatpush.bf16.msra.mxu0 %v219
  %313 = vmatpush.bf16.msra.mxu0 %v215
  %314 = vmatpush.bf16.msra.mxu0 %v211
  %315 = vmatpush.bf16.msra.mxu0 %v207
  %316 = vmatpush.bf16.msra.mxu0 %v203
  %317 = vmatpush.bf16.msra.mxu0 %v199
  %318 = vmatmul.bf16.gmra.mxu0 %v75
  %v319 = vpop.f32.mrf.mxu0
  %v320 = vadd.f32 %v62, %v319
  %v321 = vpop.f32.mrf.mxu0
  %v322 = vadd.f32 %v67, %v321
  %323 = vdwg.mxu0
  %324 = vmatpush.bf16.msra.mxu0 0
  %325 = vmatpush.bf16.msra.mxu0 0
  %326 = vmatpush.bf16.msra.mxu0 0
  %327 = vmatpush.bf16.msra.mxu0 0
  %328 = vmatpush.bf16.msra.mxu0 0
  %329 = vmatpush.bf16.msra.mxu0 0
  %330 = vmatpush.bf16.msra.mxu0 %v235
  %331 = vmatpush.bf16.msra.mxu0 %v231
  %332 = vmatmul.bf16.gmra.mxu0 %v280
  %v333 = vpop.f32.mrf.mxu0
  %v334 = vadd.f32 %v320, %v333
  %v335 = vpop.f32.mrf.mxu0
  %v336 = vadd.f32 %v322, %v335
  %337 = vdwg.mxu0
  %338 = vmatpush.bf16.msra.mxu0 %v228
  %339 = vmatpush.bf16.msra.mxu0 %v224
  %340 = vmatpush.bf16.msra.mxu0 %v220
  %341 = vmatpush.bf16.msra.mxu0 %v216
  %342 = vmatpush.bf16.msra.mxu0 %v212
  %343 = vmatpush.bf16.msra.mxu0 %v208
  %344 = vmatpush.bf16.msra.mxu0 %v204
  %345 = vmatpush.bf16.msra.mxu0 %v200
  %346 = vmatmul.bf16.gmra.mxu0 %v75
  %v347 = vpop.f32.mrf.mxu0
  %v348 = vadd.f32 %v62, %v347
  %v349 = vpop.f32.mrf.mxu0
  %v350 = vadd.f32 %v67, %v349
  %351 = vdwg.mxu0
  %352 = vmatpush.bf16.msra.mxu0 0
  %353 = vmatpush.bf16.msra.mxu0 0
  %354 = vmatpush.bf16.msra.mxu0 0
  %355 = vmatpush.bf16.msra.mxu0 0
  %356 = vmatpush.bf16.msra.mxu0 0
  %357 = vmatpush.bf16.msra.mxu0 0
  %358 = vmatpush.bf16.msra.mxu0 %v236
  %359 = vmatpush.bf16.msra.mxu0 %v232
  %360 = vmatmul.bf16.gmra.mxu0 %v280
  %v361 = vpop.f32.mrf.mxu0
  %v362 = vadd.f32 %v348, %v361
  %v363 = vpop.f32.mrf.mxu0
  %v364 = vadd.f32 %v350, %v363
  %365 = vdwg.mxu0
  %366 = vmatpush.bf16.msra.mxu0 %v229
  %367 = vmatpush.bf16.msra.mxu0 %v225
  %368 = vmatpush.bf16.msra.mxu0 %v221
  %369 = vmatpush.bf16.msra.mxu0 %v217
  %370 = vmatpush.bf16.msra.mxu0 %v213
  %371 = vmatpush.bf16.msra.mxu0 %v209
  %372 = vmatpush.bf16.msra.mxu0 %v205
  %373 = vmatpush.bf16.msra.mxu0 %v201
  %374 = vmatmul.bf16.gmra.mxu0 %v75
  %v375 = vpop.f32.mrf.mxu0
  %v376 = vadd.f32 %v62, %v375
  %v377 = vpop.f32.mrf.mxu0
  %v378 = vadd.f32 %v67, %v377
  %379 = vdwg.mxu0
  %380 = vmatpush.bf16.msra.mxu0 0
  %381 = vmatpush.bf16.msra.mxu0 0
  %382 = vmatpush.bf16.msra.mxu0 0
  %383 = vmatpush.bf16.msra.mxu0 0
  %384 = vmatpush.bf16.msra.mxu0 0
  %385 = vmatpush.bf16.msra.mxu0 0
  %386 = vmatpush.bf16.msra.mxu0 %v237
  %387 = vmatpush.bf16.msra.mxu0 %v233
  %388 = vmatmul.bf16.gmra.mxu0 %v280
  %v389 = vpop.f32.mrf.mxu0
  %v390 = vadd.f32 %v376, %v389
  %v391 = vpop.f32.mrf.mxu0
  %v392 = vadd.f32 %v378, %v391
  %393 = vdwg.mxu0
  %v394 = vmax.f32 %v306, 0.0
  %v395 = vmax.f32 %v334, 0.0
  %v396 = vmax.f32 %v362, 0.0
  %v397 = vmax.f32 %v390, 0.0
  %v398 = vmax.f32 %v308, 0.0
  %v399 = vmax.f32 %v336, 0.0
  %v400 = vmax.f32 %v364, 0.0
  %v401 = vmax.f32 %v392, 0.0
  %v402 = vpack.c.bf16 %v395, %v394
  %v403 = vpack.c.bf16 %v397, %v396
  %v404 = vpack.c.bf16 %v399, %v398
  %v405 = vpack.c.bf16 %v401, %v400
  %406 = vst [vmem:[%s3] sm:$0xff] %v402
  %407 = vst [vmem:[%s3 + $0x8] sm:$0xff] %v403
  %408 = vst [vmem:[%s3 + $0x10] sm:$0xff] %v404
  %409 = vst [vmem:[%s3 + $0x18] sm:$0xff] %v405
  // Predicated region
  $region14: #{lenet_forward.4} parent=0 // pred_check
    _
  $region15: #{lenet_forward.4} parent=0 // pred_check_branch
    %411 = sbr.rel (0) target = $region17
  $region16: #{lenet_forward.4} parent=0 // pred_region
    _
  $region17: #{lenet_forward.4} parent=0 // pred_fallthru
    _
  // Predicated region
  $region18: #{lenet_forward.4} parent=0 // pred_check
    _
  $region19: #{lenet_forward.4} parent=0 // pred_check_branch
    %413 = sbr.rel (0) target = $region21
  $region20: #{lenet_forward.4} parent=0 // pred_region
    _
  $region21: #{lenet_forward.4} parent=0 // pred_fallthru
    _

// kernel: lenet_forward.5
$region0: #{lenet_forward.5}
  #allocation0 [shape = 'u32[]', space=smem, size = 0x4, offset = 0x4, fixed_abs, tag = 'smem constant byte address 0x4 - core index']
  #allocation1 [shape = 'u32[72,128]{1,0:T(1,128)}', space=vmem, size = 0x9000, scoped, tag = 'internal scratch']
  %s0 = inlined_call_operand.vmem [shape: bf16[2,400], index: 0, kind: input, shape index: {}]
  %s1 = inlined_call_operand.vmem [shape: s8[400,8192], index: 1, kind: input, shape index: {}]
  %s2 = inlined_call_operand.vmem [shape: f32[1,8192], index: 2, kind: input, shape index: {}]
  %s3 = inlined_call_operand.vmem [shape: f32[1,8192], index: 3, kind: input, shape index: {}]
  %s4 = inlined_call_operand.vmem [shape: s8[8192,512], index: 4, kind: input, shape index: {}]
  %s5 = inlined_call_operand.vmem [shape: f32[2,2,512], index: 5, kind: output, shape index: {}]
  %s6 = sld [smem:[#allocation0]]
  $region80: #{lenet_forward.5} parent=0
    _
  %s8 = ssub.s32 1, %s6
  %s9 = scalar_select 0, %s8, %s6
  $region1: #{lenet_forward.5} parent=0
    #allocation2 [shape = 'u8[1638400]{0}', space=vmem, size = 0x190000, scoped, tag = 'input window, operand 1']
    loop: start=0, step=1, limit=6
    $region2: #{lenet_forward.5} parent=1 // loop_pre_header
      _
    $region3: #{lenet_forward.5} parent=1 // loop_header
      %s11 = sphi 0, %s15
      %p12 = scmp.ge.s32.totalorder %s11, 6
      %s18 = sphi 0, %s30
      %s19 = sphi 0, %s26
      %s20 = sphi 0, %s18
      %s21 = sphi 0, %s19
      %s22 = sphi 0, %s20
      %s23 = sphi 0, %s21
      %s31 = sphi 0, %s31
      %s33 = sphi 0, %s31
      %s34 = sphi 0, %s33
      %s48 = sphi 0, %s34
      %s58 = sphi 0, %s60
      %s61 = sphi 0, %s58
      %s62 = sphi 0, %s61
      %s78 = sphi 0, %s62
      %s88 = sphi 0, %s90
      %s91 = sphi 0, %s88
      %s92 = sphi 0, %s91
      %s108 = sphi 0, %s92
      %s118 = sphi 0, %s120
      %s121 = sphi 0, %s118
      %s122 = sphi 0, %s121
      %s138 = sphi 0, %s122
      %s148 = sphi 0, %s150
      %s151 = sphi 0, %s148
      %s152 = sphi 0, %s151
      %s168 = sphi 0, %s152
      %s174 = sphi 0, %s176
      %s177 = sphi 0, %s174
      %s178 = sphi 0, %s177
      %s194 = sphi 0, %s178
    $region4: #{lenet_forward.5} parent=1 // loop_header_branch
      %14 = sbr.rel (%p12) target = $region8
    $region5: #{lenet_forward.5} parent=1 // loop_body
      %s16 = ssub.s32 %s11, 1
      %s17 = ssub.s32 %s11, 2
      %s24 = sadd.s32 1, %s19
      %p25 = scmp.ge.s32.totalorder %s24, 2
      %s26 = scalar_select %p25, 0, %s24
      %s27 = sadd.s32 1, %s18
      %s28 = scalar_select %p25, %s27, %s18
      %p29 = scmp.ge.s32.totalorder %s28, 2
      %s30 = scalar_select %p29, 0, %s28
      %s32 = sadd.s32 %s31, 1
      %p35 = scmp.eq.s32.totalorder %s11, 3
      %p36 = scmp.ne.s32.totalorder %s31, %s33
      %p37 = scmp.eq.s32.totalorder %s11, 0
      %p38 = por %p36, %p37
      %p39 = scmp.ne.s32.totalorder %s31, %s33
      %p40 = scmp.eq.s32.totalorder %s16, 3
      %p41 = por %p39, %p40
      %p42 = scmp.ne.s32.totalorder %s33, %s34
      %p43 = scmp.eq.s32.totalorder %s16, 0
      %p44 = por %p42, %p43
      %p45 = scmp.ne.s32.totalorder %s33, %s34
      %p46 = scmp.eq.s32.totalorder %s17, 3
      %p47 = por %p45, %p46
      %p49 = scmp.ne.s32.totalorder %s34, %s48
      %p50 = scmp.eq.s32.totalorder %s17, 0
      %p51 = por %p49, %p50
      %s52 = smul.u32 %s18, 2
      %s53 = sadd.s32 %s52, %s19
      %s54 = smul.u32 %s30, 2
      %s55 = sadd.s32 %s54, %s26
      %s56 = ssub.s32 %s53, %s55
      %p57 = scmp.eq.s32.totalorder %s56, 0
      %s59 = sadd.s32 %s58, 1
      %s60 = scalar_select %p57, %s58, %s59
      %p63 = pneg %p57
      %p64 = scmp.eq.s32.totalorder %s11, 3
      %p65 = por %p63, %p64
      %p66 = scmp.ne.s32.totalorder %s58, %s61
      %p67 = scmp.eq.s32.totalorder %s11, 0
      %p68 = por %p66, %p67
      %p69 = scmp.ne.s32.totalorder %s58, %s61
      %p70 = scmp.eq.s32.totalorder %s16, 3
      %p71 = por %p69, %p70
      %p72 = scmp.ne.s32.totalorder %s61, %s62
      %p73 = scmp.eq.s32.totalorder %s16, 0
      %p74 = por %p72, %p73
      %p75 = scmp.ne.s32.totalorder %s61, %s62
      %p76 = scmp.eq.s32.totalorder %s17, 3
      %p77 = por %p75, %p76
      %p79 = scmp.ne.s32.totalorder %s62, %s78
      %p80 = scmp.eq.s32.totalorder %s17, 0
      %p81 = por %p79, %p80
      %s82 = smul.u32 %s18, 2
      %s83 = sadd.s32 %s82, %s19
      %s84 = smul.u32 %s30, 2
      %s85 = sadd.s32 %s84, %s26
      %s86 = ssub.s32 %s83, %s85
      %p87 = scmp.eq.s32.totalorder %s86, 0
      %s89 = sadd.s32 %s88, 1
      %s90 = scalar_select %p87, %s88, %s89
      %p93 = pneg %p87
      %p94 = scmp.eq.s32.totalorder %s11, 3
      %p95 = por %p93, %p94
      %p96 = scmp.ne.s32.totalorder %s88, %s91
      %p97 = scmp.eq.s32.totalorder %s11, 0
      %p98 = por %p96, %p97
      %p99 = scmp.ne.s32.totalorder %s88, %s91
      %p100 = scmp.eq.s32.totalorder %s16, 3
      %p101 = por %p99, %p100
      %p102 = scmp.ne.s32.totalorder %s91, %s92
      %p103 = scmp.eq.s32.totalorder %s16, 0
      %p104 = por %p102, %p103
      %p105 = scmp.ne.s32.totalorder %s91, %s92
      %p106 = scmp.eq.s32.totalorder %s17, 3
      %p107 = por %p105, %p106
      %p109 = scmp.ne.s32.totalorder %s92, %s108
      %p110 = scmp.eq.s32.totalorder %s17, 0
      %p111 = por %p109, %p110
      %s112 = smul.u32 %s18, 2
      %s113 = sadd.s32 %s112, %s19
      %s114 = smul.u32 %s30, 2
      %s115 = sadd.s32 %s114, %s26
      %s116 = ssub.s32 %s113, %s115
      %p117 = scmp.eq.s32.totalorder %s116, 0
      %s119 = sadd.s32 %s118, 1
      %s120 = scalar_select %p117, %s118, %s119
      %p123 = pneg %p117
      %p124 = scmp.eq.s32.totalorder %s11, 3
      %p125 = por %p123, %p124
      %p126 = scmp.ne.s32.totalorder %s118, %s121
      %p127 = scmp.eq.s32.totalorder %s11, 0
      %p128 = por %p126, %p127
      %p129 = scmp.ne.s32.totalorder %s118, %s121
      %p130 = scmp.eq.s32.totalorder %s16, 3
      %p131 = por %p129, %p130
      %p132 = scmp.ne.s32.totalorder %s121, %s122
      %p133 = scmp.eq.s32.totalorder %s16, 0
      %p134 = por %p132, %p133
      %p135 = scmp.ne.s32.totalorder %s121, %s122
      %p136 = scmp.eq.s32.totalorder %s17, 3
      %p137 = por %p135, %p136
      %p139 = scmp.ne.s32.totalorder %s122, %s138
      %p140 = scmp.eq.s32.totalorder %s17, 0
      %p141 = por %p139, %p140
      %s142 = smul.u32 %s18, 2
      %s143 = sadd.s32 %s142, %s19
      %s144 = smul.u32 %s30, 2
      %s145 = sadd.s32 %s144, %s26
      %s146 = ssub.s32 %s143, %s145
      %p147 = scmp.eq.s32.totalorder %s146, 0
      %s149 = sadd.s32 %s148, 1
      %s150 = scalar_select %p147, %s148, %s149
      %p153 = pneg %p147
      %p154 = scmp.eq.s32.totalorder %s11, 3
      %p155 = por %p153, %p154
      %p156 = scmp.ne.s32.totalorder %s148, %s151
      %p157 = scmp.eq.s32.totalorder %s11, 0
      %p158 = por %p156, %p157
      %p159 = scmp.ne.s32.totalorder %s148, %s151
      %p160 = scmp.eq.s32.totalorder %s16, 3
      %p161 = por %p159, %p160
      %p162 = scmp.ne.s32.totalorder %s151, %s152
      %p163 = scmp.eq.s32.totalorder %s16, 0
      %p164 = por %p162, %p163
      %p165 = scmp.ne.s32.totalorder %s151, %s152
      %p166 = scmp.eq.s32.totalorder %s17, 3
      %p167 = por %p165, %p166
      %p169 = scmp.ne.s32.totalorder %s152, %s168
      %p170 = scmp.eq.s32.totalorder %s17, 0
      %p171 = por %p169, %p170
      %s172 = ssub.s32 %s18, %s30
      %p173 = scmp.eq.s32.totalorder %s172, 0
      %s175 = sadd.s32 %s174, 1
      %s176 = scalar_select %p173, %s174, %s175
      %p179 = pneg %p173
      %p180 = scmp.eq.s32.totalorder %s11, 3
      %p181 = por %p179, %p180
      %p182 = scmp.ne.s32.totalorder %s174, %s177
      %p183 = scmp.eq.s32.totalorder %s11, 0
      %p184 = por %p182, %p183
      %p185 = scmp.ne.s32.totalorder %s174, %s177
      %p186 = scmp.eq.s32.totalorder %s16, 3
      %p187 = por %p185, %p186
      %p188 = scmp.ne.s32.totalorder %s177, %s178
      %p189 = scmp.eq.s32.totalorder %s16, 0
      %p190 = por %p188, %p189
      %p191 = scmp.ne.s32.totalorder %s177, %s178
      %p192 = scmp.eq.s32.totalorder %s17, 3
      %p193 = por %p191, %p192
      %p195 = scmp.ne.s32.totalorder %s178, %s194
      %p196 = scmp.eq.s32.totalorder %s17, 0
      %p197 = por %p195, %p196
      %p198 = scmp.le.s32.totalorder 1, %s11
      %p199 = scmp.lt.s32.totalorder %s11, 5
      %p200 = pnand %p198, %p199
      %p201 = pneg %p200
      // Predicated region
      $region9: #{lenet_forward.5} parent=5 // pred_check
        _
      $region10: #{lenet_forward.5} parent=5 // pred_check_branch
        %203 = sbr.rel (%p200) target = $region12
      $region11: #{lenet_forward.5} parent=5 // pred_region
        %s204 = ssub.s32 %s11, 1
        // Predicated region
        $region13: #{lenet_forward.5} parent=11 // pred_check
          %p205 = pneg %p44
        $region14: #{lenet_forward.5} parent=11 // pred_check_branch
          %207 = sbr.rel (%p205) target = $region16
        $region15: #{lenet_forward.5} parent=11 // pred_region
          _
        $region16: #{lenet_forward.5} parent=11 // pred_fallthru
          _
      $region12: #{lenet_forward.5} parent=5 // pred_fallthru
        _
      %p208 = scmp.lt.s32.totalorder %s11, 4
      // Predicated region
      $region17: #{lenet_forward.5} parent=5 // pred_check
        %p209 = pneg %p208
      $region18: #{lenet_forward.5} parent=5 // pred_check_branch
        %211 = sbr.rel (%p209) target = $region20
      $region19: #{lenet_forward.5} parent=5 // pred_region
        // Predicated region
        $region21: #{lenet_forward.5} parent=19 // pred_check
          %p212 = pneg %p68
        $region22: #{lenet_forward.5} parent=19 // pred_check_branch
          %214 = sbr.rel (%p212) target = $region24
        $region23: #{lenet_forward.5} parent=19 // pred_region
          %s215 = sand.u32 %s58, 1
          %s216 = sand.u32 %s58, 1
          %s217 = smul.addr %s216, 1600
          %s218 = scalar_lea.vmem [#allocation2], %s217
          %s219 = smul.u32 %s18, 2
          %s220 = sadd.s32 %s219, %s19
          %s221 = smul.u32 16, %s220
          %s222 = smul.addr %s221, 2
          %s223 = scalar_lea.vmem %s1, %s222
          // Predicated region
          $region25: #{lenet_forward.5} parent=23 // pred_check
            _
          $region26: #{lenet_forward.5} parent=23 // pred_check_branch
            %225 = sbr.rel (0) target = $region28
          $region27: #{lenet_forward.5} parent=23 // pred_region
            // Predicated region
            $region29: #{lenet_forward.5} parent=27 // pred_check
              _
            $region30: #{lenet_forward.5} parent=27 // pred_check_branch
              %227 = sbr.rel (0) target = $region32
            $region31: #{lenet_forward.5} parent=27 // pred_region
              loop: start=0, step=1, limit=1
              $region33: #{lenet_forward.5} parent=31 // loop_pre_header
                _
              $region34: #{lenet_forward.5} parent=31 // loop_header
                %s229 = sphi 0, %s233
                %p230 = scmp.ge.s32.totalorder %s229, 1
                %s234 = sphi %s223, %s223
                %s235 = sphi %s218, %s218
              $region35: #{lenet_forward.5} parent=31 // loop_header_branch
                %232 = sbr.rel (%p230) target = $region39
              $region36: #{lenet_forward.5} parent=31 // loop_body
                %v236 = vld [vmem:[%s234] sm:$0xff]
                %237 = vst [vmem:[%s235] sm:$0xff] %v236
                %v238 = vld [vmem:[%s234 + $0x8] sm:$0xff]
                %239 = vst [vmem:[%s235 + $0x8] sm:$0xff] %v238
                %v240 = vld [vmem:[%s234 + $0x10] sm:$0xff]
                %241 = vst [vmem:[%s235 + $0x10] sm:$0xff] %v240
                %v242 = vld [vmem:[%s234 + $0x18] sm:$0xff]
                %243 = vst [vmem:[%s235 + $0x18] sm:$0xff] %v242
                %v244 = vld [vmem:[%s234 + $0x80] sm:$0xff]
                %245 = vst [vmem:[%s235 + $0x20] sm:$0xff] %v244
                %v246 = vld [vmem:[%s234 + $0x88] sm:$0xff]
                %247 = vst [vmem:[%s235 + $0x28] sm:$0xff] %v246
                %v248 = vld [vmem:[%s234 + $0x90] sm:$0xff]
                %249 = vst [vmem:[%s235 + $0x30] sm:$0xff] %v248
                %v250 = vld [vmem:[%s234 + $0x98] sm:$0xff]
                %251 = vst [vmem:[%s235 + $0x38] sm:$0xff] %v250
                %v252 = vld [vmem:[%s234 + $0x100] sm:$0xff]
                %253 = vst [vmem:[%s235 + $0x40] sm:$0xff] %v252
                %v254 = vld [vmem:[%s234 + $0x108] sm:$0xff]
                %255 = vst [vmem:[%s235 + $0x48] sm:$0xff] %v254
                %v256 = vld [vmem:[%s234 + $0x110] sm:$0xff]
                %257 = vst [vmem:[%s235 + $0x50] sm:$0xff] %v256
                %v258 = vld [vmem:[%s234 + $0x118] sm:$0xff]
                %259 = vst [vmem:[%s235 + $0x58] sm:$0xff] %v258
                %v260 = vld [vmem:[%s234 + $0x180] sm:$0xff]
                %261 = vst [vmem:[%s235 + $0x60] sm:$0xff] %v260
                %v262 = vld [vmem:[%s234 + $0x188] sm:$0xff]
                %263 = vst [vmem:[%s235 + $0x68] sm:$0xff] %v262
                %v264 = vld [vmem:[%s234 + $0x190] sm:$0xff]
                %265 = vst [vmem:[%s235 + $0x70] sm:$0xff] %v264
                %v266 = vld [vmem:[%s234 + $0x198] sm:$0xff]
                %267 = vst [vmem:[%s235 + $0x78] sm:$0xff] %v266
                %v268 = vld [vmem:[%s234 + $0x200] sm:$0xff]
                %269 = vst [vmem:[%s235 + $0x80] sm:$0xff] %v268
                %v270 = vld [vmem:[%s234 + $0x208] sm:$0xff]
                %271 = vst [vmem:[%s235 + $0x88] sm:$0xff] %v270
                %v272 = vld [vmem:[%s234 + $0x210] sm:$0xff]
                %273 = vst [vmem:[%s235 + $0x90] sm:$0xff] %v272
                %v274 = vld [vmem:[%s234 + $0x218] sm:$0xff]
                %275 = vst [vmem:[%s235 + $0x98] sm:$0xff] %v274
                %v276 = vld [vmem:[%s234 + $0x280] sm:$0xff]
                %277 = vst [vmem:[%s235 + $0xa0] sm:$0xff] %v276
                %v278 = vld [vmem:[%s234 + $0x288] sm:$0xff]
                %279 = vst [vmem:[%s235 + $0xa8] sm:$0xff] %v278
                %v280 = vld [vmem:[%s234 + $0x290] sm:$0xff]
                %281 = vst [vmem:[%s235 + $0xb0] sm:$0xff] %v280
                %v282 = vld [vmem:[%s234 + $0x298] sm:$0xff]
                %283 = vst [vmem:[%s235 + $0xb8] sm:$0xff] %v282
                %v284 = vld [vmem:[%s234 + $0x300] sm:$0xff]
                %285 = vst [vmem:[%s235 + $0xc0] sm:$0xff] %v284
                %v286 = vld [vmem:[%s234 + $0x308] sm:$0xff]
                %287 = vst [vmem:[%s235 + $0xc8] sm:$0xff] %v286
                %v288 = vld [vmem:[%s234 + $0x310] sm:$0xff]
                %289 = vst [vmem:[%s235 + $0xd0] sm:$0xff] %v288
                %v290 = vld [vmem:[%s234 + $0x318] sm:$0xff]
                %291 = vst [vmem:[%s235 + $0xd8] sm:$0xff] %v290
                %v292 = vld [vmem:[%s234 + $0x380] sm:$0xff]
                %293 = vst [vmem:[%s235 + $0xe0] sm:$0xff] %v292
                %v294 = vld [vmem:[%s234 + $0x388] sm:$0xff]
                %295 = vst [vmem:[%s235 + $0xe8] sm:$0xff] %v294
                %v296 = vld [vmem:[%s234 + $0x390] sm:$0xff]
                %297 = vst [vmem:[%s235 + $0xf0] sm:$0xff] %v296
                %v298 = vld [vmem:[%s234 + $0x398] sm:$0xff]
                %299 = vst [vmem:[%s235 + $0xf8] sm:$0xff] %v298
                %v300 = vld [vmem:[%s234 + $0x400] sm:$0xff]
                %301 = vst [vmem:[%s235 + $0x100] sm:$0xff] %v300
                %v302 = vld [vmem:[%s234 + $0x408] sm:$0xff]
                %303 = vst [vmem:[%s235 + $0x108] sm:$0xff] %v302
                %v304 = vld [vmem:[%s234 + $0x410] sm:$0xff]
                %305 = vst [vmem:[%s235 + $0x110] sm:$0xff] %v304
                %v306 = vld [vmem:[%s234 + $0x418] sm:$0xff]
                %307 = vst [vmem:[%s235 + $0x118] sm:$0xff] %v306
                %v308 = vld [vmem:[%s234 + $0x480] sm:$0xff]
                %309 = vst [vmem:[%s235 + $0x120] sm:$0xff] %v308
                %v310 = vld [vmem:[%s234 + $0x488] sm:$0xff]
                %311 = vst [vmem:[%s235 + $0x128] sm:$0xff] %v310
                %v312 = vld [vmem:[%s234 + $0x490] sm:$0xff]
                %313 = vst [vmem:[%s235 + $0x130] sm:$0xff] %v312
                %v314 = vld [vmem:[%s234 + $0x498] sm:$0xff]
                %315 = vst [vmem:[%s235 + $0x138] sm:$0xff] %v314
                %v316 = vld [vmem:[%s234 + $0x500] sm:$0xff]
                %317 = vst [vmem:[%s235 + $0x140] sm:$0xff] %v316
                %v318 = vld [vmem:[%s234 + $0x508] sm:$0xff]
                %319 = vst [vmem:[%s235 + $0x148] sm:$0xff] %v318
                %v320 = vld [vmem:[%s234 + $0x510] sm:$0xff]
                %321 = vst [vmem:[%s235 + $0x150] sm:$0xff] %v320
                %v322 = vld [vmem:[%s234 + $0x518] sm:$0xff]
                %323 = vst [vmem:[%s235 + $0x158] sm:$0xff] %v322
                %v324 = vld [vmem:[%s234 + $0x580] sm:$0xff]
                %325 = vst [vmem:[%s235 + $0x160] sm:$0xff] %v324
                %v326 = vld [vmem:[%s234 + $0x588] sm:$0xff]
                %327 = vst [vmem:[%s235 + $0x168] sm:$0xff] %v326
                %v328 = vld [vmem:[%s234 + $0x590] sm:$0xff]
                %329 = vst [vmem:[%s235 + $0x170] sm:$0xff] %v328
                %v330 = vld [vmem:[%s234 + $0x598] sm:$0xff]
                %331 = vst [vmem:[%s235 + $0x178] sm:$0xff] %v330
                %v332 = vld [vmem:[%s234 + $0x600] sm:$0xff]
                %333 = vst [vmem:[%s235 + $0x180] sm:$0xff] %v332
                %v334 = vld [vmem:[%s234 + $0x608] sm:$0xff]
                %335 = vst [vmem:[%s235 + $0x188] sm:$0xff] %v334
                %v336 = vld [vmem:[%s234 + $0x610] sm:$0xff]
                %337 = vst [vmem:[%s235 + $0x190] sm:$0xff] %v336
                %v338 = vld [vmem:[%s234 + $0x618] sm:$0xff]
                %339 = vst [vmem:[%s235 + $0x198] sm:$0xff] %v338
                %v340 = vld [vmem:[%s234 + $0x680] sm:$0xff]
                %341 = vst [vmem:[%s235 + $0x1a0] sm:$0xff] %v340
                %v342 = vld [vmem:[%s234 + $0x688] sm:$0xff]
                %343 = vst [vmem:[%s235 + $0x1a8] sm:$0xff] %v342
                %v344 = vld [vmem:[%s234 + $0x690] sm:$0xff]
                %345 = vst [vmem:[%s235 + $0x1b0] sm:$0xff] %v344
                %v346 = vld [vmem:[%s234 + $0x698] sm:$0xff]
                %347 = vst [vmem:[%s235 + $0x1b8] sm:$0xff] %v346
                %v348 = vld [vmem:[%s234 + $0x700] sm:$0xff]
                %349 = vst [vmem:[%s235 + $0x1c0] sm:$0xff] %v348
                %v350 = vld [vmem:[%s234 + $0x708] sm:$0xff]
                %351 = vst [vmem:[%s235 + $0x1c8] sm:$0xff] %v350
                %v352 = vld [vmem:[%s234 + $0x710] sm:$0xff]
                %353 = vst [vmem:[%s235 + $0x1d0] sm:$0xff] %v352
                %v354 = vld [vmem:[%s234 + $0x718] sm:$0xff]
                %355 = vst [vmem:[%s235 + $0x1d8] sm:$0xff] %v354
                %v356 = vld [vmem:[%s234 + $0x780] sm:$0xff]
                %357 = vst [vmem:[%s235 + $0x1e0] sm:$0xff] %v356
                %v358 = vld [vmem:[%s234 + $0x788] sm:$0xff]
                %359 = vst [vmem:[%s235 + $0x1e8] sm:$0xff] %v358
                %v360 = vld [vmem:[%s234 + $0x790] sm:$0xff]
                %361 = vst [vmem:[%s235 + $0x1f0] sm:$0xff] %v360
                %v362 = vld [vmem:[%s234 + $0x798] sm:$0xff]
                %363 = vst [vmem:[%s235 + $0x1f8] sm:$0xff] %v362
                %v364 = vld [vmem:[%s234 + $0x800] sm:$0xff]
                %365 = vst [vmem:[%s235 + $0x200] sm:$0xff] %v364
                %v366 = vld [vmem:[%s234 + $0x808] sm:$0xff]
                %367 = vst [vmem:[%s235 + $0x208] sm:$0xff] %v366
                %v368 = vld [vmem:[%s234 + $0x810] sm:$0xff]
                %369 = vst [vmem:[%s235 + $0x210] sm:$0xff] %v368
                %v370 = vld [vmem:[%s234 + $0x818] sm:$0xff]
                %371 = vst [vmem:[%s235 + $0x218] sm:$0xff] %v370
                %v372 = vld [vmem:[%s234 + $0x880] sm:$0xff]
                %373 = vst [vmem:[%s235 + $0x220] sm:$0xff] %v372
                %v374 = vld [vmem:[%s234 + $0x888] sm:$0xff]
                %375 = vst [vmem:[%s235 + $0x228] sm:$0xff] %v374
                %v376 = vld [vmem:[%s234 + $0x890] sm:$0xff]
                %377 = vst [vmem:[%s235 + $0x230] sm:$0xff] %v376
                %v378 = vld [vmem:[%s234 + $0x898] sm:$0xff]
                %379 = vst [vmem:[%s235 + $0x238] sm:$0xff] %v378
                %v380 = vld [vmem:[%s234 + $0x900] sm:$0xff]
                %381 = vst [vmem:[%s235 + $0x240] sm:$0xff] %v380
                %v382 = vld [vmem:[%s234 + $0x908] sm:$0xff]
                %383 = vst [vmem:[%s235 + $0x248] sm:$0xff] %v382
                %v384 = vld [vmem:[%s234 + $0x910] sm:$0xff]
                %385 = vst [vmem:[%s235 + $0x250] sm:$0xff] %v384
                %v386 = vld [vmem:[%s234 + $0x918] sm:$0xff]
                %387 = vst [vmem:[%s235 + $0x258] sm:$0xff] %v386
                %v388 = vld [vmem:[%s234 + $0x980] sm:$0xff]
                %389 = vst [vmem:[%s235 + $0x260] sm:$0xff] %v388
                %v390 = vld [vmem:[%s234 + $0x988] sm:$0xff]
                %391 = vst [vmem:[%s235 + $0x268] sm:$0xff] %v390
                %v392 = vld [vmem:[%s234 + $0x990] sm:$0xff]
                %393 = vst [vmem:[%s235 + $0x270] sm:$0xff] %v392
                %v394 = vld [vmem:[%s234 + $0x998] sm:$0xff]
                %395 = vst [vmem:[%s235 + $0x278] sm:$0xff] %v394
                %v396 = vld [vmem:[%s234 + $0xa00] sm:$0xff]
                %397 = vst [vmem:[%s235 + $0x280] sm:$0xff] %v396
                %v398 = vld [vmem:[%s234 + $0xa08] sm:$0xff]
                %399 = vst [vmem:[%s235 + $0x288] sm:$0xff] %v398
                %v400 = vld [vmem:[%s234 + $0xa10] sm:$0xff]
                %401 = vst [vmem:[%s235 + $0x290] sm:$0xff] %v400
                %v402 = vld [vmem:[%s234 + $0xa18] sm:$0xff]
                %403 = vst [vmem:[%s235 + $0x298] sm:$0xff] %v402
                %v404 = vld [vmem:[%s234 + $0xa80] sm:$0xff]
                %405 = vst [vmem:[%s235 + $0x2a0] sm:$0xff] %v404
                %v406 = vld [vmem:[%s234 + $0xa88] sm:$0xff]
                %407 = vst [vmem:[%s235 + $0x2a8] sm:$0xff] %v406
                %v408 = vld [vmem:[%s234 + $0xa90] sm:$0xff]
                %409 = vst [vmem:[%s235 + $0x2b0] sm:$0xff] %v408
                %v410 = vld [vmem:[%s234 + $0xa98] sm:$0xff]
                %411 = vst [vmem:[%s235 + $0x2b8] sm:$0xff] %v410
                %v412 = vld [vmem:[%s234 + $0xb00] sm:$0xff]
                %413 = vst [vmem:[%s235 + $0x2c0] sm:$0xff] %v412
                %v414 = vld [vmem:[%s234 + $0xb08] sm:$0xff]
                %415 = vst [vmem:[%s235 + $0x2c8] sm:$0xff] %v414
                %v416 = vld [vmem:[%s234 + $0xb10] sm:$0xff]
                %417 = vst [vmem:[%s235 + $0x2d0] sm:$0xff] %v416
                %v418 = vld [vmem:[%s234 + $0xb18] sm:$0xff]
                %419 = vst [vmem:[%s235 + $0x2d8] sm:$0xff] %v418
                %v420 = vld [vmem:[%s234 + $0xb80] sm:$0xff]
                %421 = vst [vmem:[%s235 + $0x2e0] sm:$0xff] %v420
                %v422 = vld [vmem:[%s234 + $0xb88] sm:$0xff]
                %423 = vst [vmem:[%s235 + $0x2e8] sm:$0xff] %v422
                %v424 = vld [vmem:[%s234 + $0xb90] sm:$0xff]
                %425 = vst [vmem:[%s235 + $0x2f0] sm:$0xff] %v424
                %v426 = vld [vmem:[%s234 + $0xb98] sm:$0xff]
                %427 = vst [vmem:[%s235 + $0x2f8] sm:$0xff] %v426
                %v428 = vld [vmem:[%s234 + $0xc00] sm:$0xff]
                %429 = vst [vmem:[%s235 + $0x300] sm:$0xff] %v428
                %v430 = vld [vmem:[%s234 + $0xc08] sm:$0xff]
                %431 = vst [vmem:[%s235 + $0x308] sm:$0xff] %v430
                %v432 = vld [vmem:[%s234 + $0xc10] sm:$0xff]
                %433 = vst [vmem:[%s235 + $0x310] sm:$0xff] %v432
                %v434 = vld [vmem:[%s234 + $0xc18] sm:$0xff]
                %435 = vst [vmem:[%s235 + $0x318] sm:$0xff] %v434
                %v436 = vld [vmem:[%s234 + $0xc80] sm:$0xff]
                %437 = vst [vmem:[%s235 + $0x320] sm:$0xff] %v436
                %v438 = vld [vmem:[%s234 + $0xc88] sm:$0xff]
                %439 = vst [vmem:[%s235 + $0x328] sm:$0xff] %v438
                %v440 = vld [vmem:[%s234 + $0xc90] sm:$0xff]
                %441 = vst [vmem:[%s235 + $0x330] sm:$0xff] %v440
                %v442 = vld [vmem:[%s234 + $0xc98] sm:$0xff]
                %443 = vst [vmem:[%s235 + $0x338] sm:$0xff] %v442
                %v444 = vld [vmem:[%s234 + $0xd00] sm:$0xff]
                %445 = vst [vmem:[%s235 + $0x340] sm:$0xff] %v444
                %v446 = vld [vmem:[%s234 + $0xd08] sm:$0xff]
                %447 = vst [vmem:[%s235 + $0x348] sm:$0xff] %v446
                %v448 = vld [vmem:[%s234 + $0xd10] sm:$0xff]
                %449 = vst [vmem:[%s235 + $0x350] sm:$0xff] %v448
                %v450 = vld [vmem:[%s234 + $0xd18] sm:$0xff]
                %451 = vst [vmem:[%s235 + $0x358] sm:$0xff] %v450
                %v452 = vld [vmem:[%s234 + $0xd80] sm:$0xff]
                %453 = vst [vmem:[%s235 + $0x360] sm:$0xff] %v452
                %v454 = vld [vmem:[%s234 + $0xd88] sm:$0xff]
                %455 = vst [vmem:[%s235 + $0x368] sm:$0xff] %v454
                %v456 = vld [vmem:[%s234 + $0xd90] sm:$0xff]
                %457 = vst [vmem:[%s235 + $0x370] sm:$0xff] %v456
                %v458 = vld [vmem:[%s234 + $0xd98] sm:$0xff]
                %459 = vst [vmem:[%s235 + $0x378] sm:$0xff] %v458
                %v460 = vld [vmem:[%s234 + $0xe00] sm:$0xff]
                %461 = vst [vmem:[%s235 + $0x380] sm:$0xff] %v460
                %v462 = vld [vmem:[%s234 + $0xe08] sm:$0xff]
                %463 = vst [vmem:[%s235 + $0x388] sm:$0xff] %v462
                %v464 = vld [vmem:[%s234 + $0xe10] sm:$0xff]
                %465 = vst [vmem:[%s235 + $0x390] sm:$0xff] %v464
                %v466 = vld [vmem:[%s234 + $0xe18] sm:$0xff]
                %467 = vst [vmem:[%s235 + $0x398] sm:$0xff] %v466
                %v468 = vld [vmem:[%s234 + $0xe80] sm:$0xff]
                %469 = vst [vmem:[%s235 + $0x3a0] sm:$0xff] %v468
                %v470 = vld [vmem:[%s234 + $0xe88] sm:$0xff]
                %471 = vst [vmem:[%s235 + $0x3a8] sm:$0xff] %v470
                %v472 = vld [vmem:[%s234 + $0xe90] sm:$0xff]
                %473 = vst [vmem:[%s235 + $0x3b0] sm:$0xff] %v472
                %v474 = vld [vmem:[%s234 + $0xe98] sm:$0xff]
                %475 = vst [vmem:[%s235 + $0x3b8] sm:$0xff] %v474
                %v476 = vld [vmem:[%s234 + $0xf00] sm:$0xff]
                %477 = vst [vmem:[%s235 + $0x3c0] sm:$0xff] %v476
                %v478 = vld [vmem:[%s234 + $0xf08] sm:$0xff]
                %479 = vst [vmem:[%s235 + $0x3c8] sm:$0xff] %v478
                %v480 = vld [vmem:[%s234 + $0xf10] sm:$0xff]
                %481 = vst [vmem:[%s235 + $0x3d0] sm:$0xff] %v480
                %v482 = vld [vmem:[%s234 + $0xf18] sm:$0xff]
                %483 = vst [vmem:[%s235 + $0x3d8] sm:$0xff] %v482
                %v484 = vld [vmem:[%s234 + $0xf80] sm:$0xff]
                %485 = vst [vmem:[%s235 + $0x3e0] sm:$0xff] %v484
                %v486 = vld [vmem:[%s234 + $0xf88] sm:$0xff]
                %487 = vst [vmem:[%s235 + $0x3e8] sm:$0xff] %v486
                %v488 = vld [vmem:[%s234 + $0xf90] sm:$0xff]
                %489 = vst [vmem:[%s235 + $0x3f0] sm:$0xff] %v488
                %v490 = vld [vmem:[%s234 + $0xf98] sm:$0xff]
                %491 = vst [vmem:[%s235 + $0x3f8] sm:$0xff] %v490
                %v492 = vld [vmem:[%s234 + $0x1000] sm:$0xff]
                %493 = vst [vmem:[%s235 + $0x400] sm:$0xff] %v492
                %v494 = vld [vmem:[%s234 + $0x1008] sm:$0xff]
                %495 = vst [vmem:[%s235 + $0x408] sm:$0xff] %v494
                %v496 = vld [vmem:[%s234 + $0x1010] sm:$0xff]
                %497 = vst [vmem:[%s235 + $0x410] sm:$0xff] %v496
                %v498 = vld [vmem:[%s234 + $0x1018] sm:$0xff]
                %499 = vst [vmem:[%s235 + $0x418] sm:$0xff] %v498
                %v500 = vld [vmem:[%s234 + $0x1080] sm:$0xff]
                %501 = vst [vmem:[%s235 + $0x420] sm:$0xff] %v500
                %v502 = vld [vmem:[%s234 + $0x1088] sm:$0xff]
                %503 = vst [vmem:[%s235 + $0x428] sm:$0xff] %v502
                %v504 = vld [vmem:[%s234 + $0x1090] sm:$0xff]
                %505 = vst [vmem:[%s235 + $0x430] sm:$0xff] %v504
                %v506 = vld [vmem:[%s234 + $0x1098] sm:$0xff]
                %507 = vst [vmem:[%s235 + $0x438] sm:$0xff] %v506
                %v508 = vld [vmem:[%s234 + $0x1100] sm:$0xff]
                %509 = vst [vmem:[%s235 + $0x440] sm:$0xff] %v508
                %v510 = vld [vmem:[%s234 + $0x1108] sm:$0xff]
                %511 = vst [vmem:[%s235 + $0x448] sm:$0xff] %v510
                %v512 = vld [vmem:[%s234 + $0x1110] sm:$0xff]
                %513 = vst [vmem:[%s235 + $0x450] sm:$0xff] %v512
                %v514 = vld [vmem:[%s234 + $0x1118] sm:$0xff]
                %515 = vst [vmem:[%s235 + $0x458] sm:$0xff] %v514
                %v516 = vld [vmem:[%s234 + $0x1180] sm:$0xff]
                %517 = vst [vmem:[%s235 + $0x460] sm:$0xff] %v516
                %v518 = vld [vmem:[%s234 + $0x1188] sm:$0xff]
                %519 = vst [vmem:[%s235 + $0x468] sm:$0xff] %v518
                %v520 = vld [vmem:[%s234 + $0x1190] sm:$0xff]
                %521 = vst [vmem:[%s235 + $0x470] sm:$0xff] %v520
                %v522 = vld [vmem:[%s234 + $0x1198] sm:$0xff]
                %523 = vst [vmem:[%s235 + $0x478] sm:$0xff] %v522
                %v524 = vld [vmem:[%s234 + $0x1200] sm:$0xff]
                %525 = vst [vmem:[%s235 + $0x480] sm:$0xff] %v524
                %v526 = vld [vmem:[%s234 + $0x1208] sm:$0xff]
                %527 = vst [vmem:[%s235 + $0x488] sm:$0xff] %v526
                %v528 = vld [vmem:[%s234 + $0x1210] sm:$0xff]
                %529 = vst [vmem:[%s235 + $0x490] sm:$0xff] %v528
                %v530 = vld [vmem:[%s234 + $0x1218] sm:$0xff]
                %531 = vst [vmem:[%s235 + $0x498] sm:$0xff] %v530
                %v532 = vld [vmem:[%s234 + $0x1280] sm:$0xff]
                %533 = vst [vmem:[%s235 + $0x4a0] sm:$0xff] %v532
                %v534 = vld [vmem:[%s234 + $0x1288] sm:$0xff]
                %535 = vst [vmem:[%s235 + $0x4a8] sm:$0xff] %v534
                %v536 = vld [vmem:[%s234 + $0x1290] sm:$0xff]
                %537 = vst [vmem:[%s235 + $0x4b0] sm:$0xff] %v536
                %v538 = vld [vmem:[%s234 + $0x1298] sm:$0xff]
                %539 = vst [vmem:[%s235 + $0x4b8] sm:$0xff] %v538
                %v540 = vld [vmem:[%s234 + $0x1300] sm:$0xff]
                %541 = vst [vmem:[%s235 + $0x4c0] sm:$0xff] %v540
                %v542 = vld [vmem:[%s234 + $0x1308] sm:$0xff]
                %543 = vst [vmem:[%s235 + $0x4c8] sm:$0xff] %v542
                %v544 = vld [vmem:[%s234 + $0x1310] sm:$0xff]
                %545 = vst [vmem:[%s235 + $0x4d0] sm:$0xff] %v544
                %v546 = vld [vmem:[%s234 + $0x1318] sm:$0xff]
                %547 = vst [vmem:[%s235 + $0x4d8] sm:$0xff] %v546
                %v548 = vld [vmem:[%s234 + $0x1380] sm:$0xff]
                %549 = vst [vmem:[%s235 + $0x4e0] sm:$0xff] %v548
                %v550 = vld [vmem:[%s234 + $0x1388] sm:$0xff]
                %551 = vst [vmem:[%s235 + $0x4e8] sm:$0xff] %v550
                %v552 = vld [vmem:[%s234 + $0x1390] sm:$0xff]
                %553 = vst [vmem:[%s235 + $0x4f0] sm:$0xff] %v552
                %v554 = vld [vmem:[%s234 + $0x1398] sm:$0xff]
                %555 = vst [vmem:[%s235 + $0x4f8] sm:$0xff] %v554
                %v556 = vld [vmem:[%s234 + $0x1400] sm:$0xff]
                %557 = vst [vmem:[%s235 + $0x500] sm:$0xff] %v556
                %v558 = vld [vmem:[%s234 + $0x1408] sm:$0xff]
                %559 = vst [vmem:[%s235 + $0x508] sm:$0xff] %v558
                %v560 = vld [vmem:[%s234 + $0x1410] sm:$0xff]
                %561 = vst [vmem:[%s235 + $0x510] sm:$0xff] %v560
                %v562 = vld [vmem:[%s234 + $0x1418] sm:$0xff]
                %563 = vst [vmem:[%s235 + $0x518] sm:$0xff] %v562
                %v564 = vld [vmem:[%s234 + $0x1480] sm:$0xff]
                %565 = vst [vmem:[%s235 + $0x520] sm:$0xff] %v564
                %v566 = vld [vmem:[%s234 + $0x1488] sm:$0xff]
                %567 = vst [vmem:[%s235 + $0x528] sm:$0xff] %v566
                %v568 = vld [vmem:[%s234 + $0x1490] sm:$0xff]
                %569 = vst [vmem:[%s235 + $0x530] sm:$0xff] %v568
                %v570 = vld [vmem:[%s234 + $0x1498] sm:$0xff]
                %571 = vst [vmem:[%s235 + $0x538] sm:$0xff] %v570
                %v572 = vld [vmem:[%s234 + $0x1500] sm:$0xff]
                %573 = vst [vmem:[%s235 + $0x540] sm:$0xff] %v572
                %v574 = vld [vmem:[%s234 + $0x1508] sm:$0xff]
                %575 = vst [vmem:[%s235 + $0x548] sm:$0xff] %v574
                %v576 = vld [vmem:[%s234 + $0x1510] sm:$0xff]
                %577 = vst [vmem:[%s235 + $0x550] sm:$0xff] %v576
                %v578 = vld [vmem:[%s234 + $0x1518] sm:$0xff]
                %579 = vst [vmem:[%s235 + $0x558] sm:$0xff] %v578
                %v580 = vld [vmem:[%s234 + $0x1580] sm:$0xff]
                %581 = vst [vmem:[%s235 + $0x560] sm:$0xff] %v580
                %v582 = vld [vmem:[%s234 + $0x1588] sm:$0xff]
                %583 = vst [vmem:[%s235 + $0x568] sm:$0xff] %v582
                %v584 = vld [vmem:[%s234 + $0x1590] sm:$0xff]
                %585 = vst [vmem:[%s235 + $0x570] sm:$0xff] %v584
                %v586 = vld [vmem:[%s234 + $0x1598] sm:$0xff]
                %587 = vst [vmem:[%s235 + $0x578] sm:$0xff] %v586
                %v588 = vld [vmem:[%s234 + $0x1600] sm:$0xff]
                %589 = vst [vmem:[%s235 + $0x580] sm:$0xff] %v588
                %v590 = vld [vmem:[%s234 + $0x1608] sm:$0xff]
                %591 = vst [vmem:[%s235 + $0x588] sm:$0xff] %v590
                %v592 = vld [vmem:[%s234 + $0x1610] sm:$0xff]
                %593 = vst [vmem:[%s235 + $0x590] sm:$0xff] %v592
                %v594 = vld [vmem:[%s234 + $0x1618] sm:$0xff]
                %595 = vst [vmem:[%s235 + $0x598] sm:$0xff] %v594
                %v596 = vld [vmem:[%s234 + $0x1680] sm:$0xff]
                %597 = vst [vmem:[%s235 + $0x5a0] sm:$0xff] %v596
                %v598 = vld [vmem:[%s234 + $0x1688] sm:$0xff]
                %599 = vst [vmem:[%s235 + $0x5a8] sm:$0xff] %v598
                %v600 = vld [vmem:[%s234 + $0x1690] sm:$0xff]
                %601 = vst [vmem:[%s235 + $0x5b0] sm:$0xff] %v600
                %v602 = vld [vmem:[%s234 + $0x1698] sm:$0xff]
                %603 = vst [vmem:[%s235 + $0x5b8] sm:$0xff] %v602
                %v604 = vld [vmem:[%s234 + $0x1700] sm:$0xff]
                %605 = vst [vmem:[%s235 + $0x5c0] sm:$0xff] %v604
                %v606 = vld [vmem:[%s234 + $0x1708] sm:$0xff]
                %607 = vst [vmem:[%s235 + $0x5c8] sm:$0xff] %v606
                %v608 = vld [vmem:[%s234 + $0x1710] sm:$0xff]
                %609 = vst [vmem:[%s235 + $0x5d0] sm:$0xff] %v608
                %v610 = vld [vmem:[%s234 + $0x1718] sm:$0xff]
                %611 = vst [vmem:[%s235 + $0x5d8] sm:$0xff] %v610
                %v612 = vld [vmem:[%s234 + $0x1780] sm:$0xff]
                %613 = vst [vmem:[%s235 + $0x5e0] sm:$0xff] %v612
                %v614 = vld [vmem:[%s234 + $0x1788] sm:$0xff]
                %615 = vst [vmem:[%s235 + $0x5e8] sm:$0xff] %v614
                %v616 = vld [vmem:[%s234 + $0x1790] sm:$0xff]
                %617 = vst [vmem:[%s235 + $0x5f0] sm:$0xff] %v616
                %v618 = vld [vmem:[%s234 + $0x1798] sm:$0xff]
                %619 = vst [vmem:[%s235 + $0x5f8] sm:$0xff] %v618
                %v620 = vld [vmem:[%s234 + $0x1800] sm:$0xff]
                %621 = vst [vmem:[%s235 + $0x600] sm:$0xff] %v620
                %v622 = vld [vmem:[%s234 + $0x1808] sm:$0xff]
                %623 = vst [vmem:[%s235 + $0x608] sm:$0xff] %v622
                %v624 = vld [vmem:[%s234 + $0x1810] sm:$0xff]
                %625 = vst [vmem:[%s235 + $0x610] sm:$0xff] %v624
                %v626 = vld [vmem:[%s234 + $0x1818] sm:$0xff]
                %627 = vst [vmem:[%s235 + $0x618] sm:$0xff] %v626
                %v628 = vld [vmem:[%s234 + $0x1880] sm:$0xff]
                %629 = vst [vmem:[%s235 + $0x620] sm:$0xff] %v628
                %v630 = vld [vmem:[%s234 + $0x1888] sm:$0xff]
                %631 = vst [vmem:[%s235 + $0x628] sm:$0xff] %v630
                %v632 = vld [vmem:[%s234 + $0x1890] sm:$0xff]
                %633 = vst [vmem:[%s235 + $0x630] sm:$0xff] %v632
                %v634 = vld [vmem:[%s234 + $0x1898] sm:$0xff]
                %635 = vst [vmem:[%s235 + $0x638] sm:$0xff] %v634
              $region37: #{lenet_forward.5} parent=31 // loop_footer
                %s233 = sadd.s32 1, %s229
              $region38: #{lenet_forward.5} parent=31 // loop_footer_branch
                %228 = sbr.rel target = $region34
              $region39: #{lenet_forward.5} parent=31 // loop_exit
                _
            $region32: #{lenet_forward.5} parent=27 // pred_fallthru
              _
            // Predicated region
            $region40: #{lenet_forward.5} parent=27 // pred_check
              _
            $region41: #{lenet_forward.5} parent=27 // pred_check_branch
              %637 = sbr.rel target = $region43
            $region42: #{lenet_forward.5} parent=27 // pred_region
              _
            $region43: #{lenet_forward.5} parent=27 // pred_fallthru
              _
          $region28: #{lenet_forward.5} parent=23 // pred_fallthru
            _
          %638 = vnop
        $region24: #{lenet_forward.5} parent=19 // pred_fallthru
          _
        // Predicated region
        $region44: #{lenet_forward.5} parent=19 // pred_check
          %p639 = pneg %p98
        $region45: #{lenet_forward.5} parent=19 // pred_check_branch
          %641 = sbr.rel (%p639) target = $region47
        $region46: #{lenet_forward.5} parent=19 // pred_region
          %s642 = smul.u32 %s18, 2
          %s643 = sadd.s32 %s642, %s19
          %s644 = smul.u32 16, %s643
          %p645 = scmp.lt.s32.totalorder %s644, 63
          %s646 = scalar_select %p645, %s644, 63
          %s647 = scalar_lea.vmem %s2, %s646
          %s648 = smul.u32 %s18, 2
          %s649 = sadd.s32 %s648, %s19
          %s650 = smul.u32 16, %s649
        $region47: #{lenet_forward.5} parent=19 // pred_fallthru
          _
        // Predicated region
        $region48: #{lenet_forward.5} parent=19 // pred_check
          %p651 = pneg %p128
        $region49: #{lenet_forward.5} parent=19 // pred_check_branch
          %653 = sbr.rel (%p651) target = $region51
        $region50: #{lenet_forward.5} parent=19 // pred_region
          %s654 = smul.u32 %s18, 2
          %s655 = sadd.s32 %s654, %s19
          %s656 = smul.u32 16, %s655
          %p657 = scmp.lt.s32.totalorder %s656, 63
          %s658 = scalar_select %p657, %s656, 63
          %s659 = scalar_lea.vmem %s3, %s658
          %s660 = smul.u32 %s18, 2
          %s661 = sadd.s32 %s660, %s19
          %s662 = smul.u32 16, %s661
        $region51: #{lenet_forward.5} parent=19 // pred_fallthru
          _
        // Predicated region
        $region52: #{lenet_forward.5} parent=19 // pred_check
          %p663 = pneg %p158
        $region53: #{lenet_forward.5} parent=19 // pred_check_branch
          %665 = sbr.rel (%p663) target = $region55
        $region54: #{lenet_forward.5} parent=19 // pred_region
          %s666 = smul.u32 %s18, 2
          %s667 = sadd.s32 %s666, %s19
          %s668 = smul.u32 64, %s667
          %p669 = scmp.lt.s32.totalorder %s668, 255
          %s670 = scalar_select %p669, %s668, 255
          %s671 = smul.addr %s670, 4
          %s672 = smul.addr %s671, 8
          %s673 = scalar_lea.vmem %s4, %s672
          %s674 = smul.u32 %s18, 2
          %s675 = sadd.s32 %s674, %s19
          %s676 = smul.u32 64, %s675
        $region55: #{lenet_forward.5} parent=19 // pred_fallthru
          _
      $region20: #{lenet_forward.5} parent=5 // pred_fallthru
        _
      %p677 = scmp.le.s32.totalorder 1, %s11
      %p678 = scmp.lt.s32.totalorder %s11, 5
      %p679 = pnand %p677, %p678
      %p680 = pneg %p679
      // Predicated region
      $region56: #{lenet_forward.5} parent=5 // pred_check
        _
      $region57: #{lenet_forward.5} parent=5 // pred_check_branch
        %682 = sbr.rel (%p679) target = $region59
      $region58: #{lenet_forward.5} parent=5 // pred_region
        %s683 = ssub.s32 %s11, 1
        %s684 = sand.u32 %s61, 1
        %s685 = sand.u32 %s61, 1
        %s686 = smul.addr %s685, 1600
        %s687 = scalar_lea.vmem [#allocation2], %s686
        // Predicated region
        $region60: #{lenet_forward.5} parent=58 // pred_check
          %p688 = pneg %p74
        $region61: #{lenet_forward.5} parent=58 // pred_check_branch
          %690 = sbr.rel (%p688) target = $region63
        $region62: #{lenet_forward.5} parent=58 // pred_region
          _
        $region63: #{lenet_forward.5} parent=58 // pred_fallthru
          _
        %p691 = pneg %p44
        %p692 = pneg %p41
        %s693 = sand.u32 %s61, 1
        %s694 = sand.u32 %s61, 1
        %s695 = smul.addr %s694, 1600
        %s696 = scalar_lea.vmem [#allocation2], %s695
        %p697 = pneg %p74
        %p698 = pneg %p71
        %s699 = smul.u32 %s20, 2
        %s700 = sadd.s32 %s699, %s21
        %s701 = smul.u32 16, %s700
        %p702 = scmp.lt.s32.totalorder %s701, 63
        %s703 = scalar_select %p702, %s701, 63
        %s704 = scalar_lea.vmem %s2, %s703
        %p705 = pneg %p104
        %p706 = pneg %p101
        %s707 = smul.u32 %s20, 2
        %s708 = sadd.s32 %s707, %s21
        %s709 = smul.u32 16, %s708
        %p710 = scmp.lt.s32.totalorder %s709, 63
        %s711 = scalar_select %p710, %s709, 63
        %s712 = scalar_lea.vmem %s3, %s711
        %p713 = pneg %p134
        %p714 = pneg %p131
        %s715 = smul.u32 %s20, 2
        %s716 = sadd.s32 %s715, %s21
        %s717 = smul.u32 64, %s716
        %p718 = scmp.lt.s32.totalorder %s717, 255
        %s719 = scalar_select %p718, %s717, 255
        %s720 = smul.addr %s719, 4
        %s721 = smul.addr %s720, 8
        %s722 = scalar_lea.vmem %s4, %s721
        %p723 = pneg %p164
        %p724 = pneg %p161
        %p725 = pneg %p190
        %p726 = pneg %p187
        %p727 = scmp.lt.s32.totalorder %s20, 1
        %s728 = scalar_select %p727, %s20, 1
        %s729 = smul.addr %s728, 4
        %s730 = smul.addr %s729, 2
        %s731 = scalar_lea.vmem %s5, %s730
        %s732 = smul.u32 %s20, 2
        %s733 = sadd.s32 %s732, %s21
        %s734 = smul.u32 16, %s733
        %s735 = smul.u32 %s20, 2
        %s736 = sadd.s32 %s735, %s21
        %s737 = smul.u32 16, %s736
        %p738 = scmp.lt.s32.totalorder %s737, 63
        %s739 = scalar_select %p738, %s737, 63
        %s740 = scalar_lea.vmem %s2, %s739
        %s741 = smul.u32 %s20, 2
        %s742 = sadd.s32 %s741, %s21
        %s743 = smul.u32 16, %s742
        %s744 = smul.u32 %s20, 2
        %s745 = sadd.s32 %s744, %s21
        %s746 = smul.u32 16, %s745
        %p747 = scmp.lt.s32.totalorder %s746, 63
        %s748 = scalar_select %p747, %s746, 63
        %s749 = scalar_lea.vmem %s3, %s748
        %s750 = smul.u32 %s20, 2
        %s751 = sadd.s32 %s750, %s21
        %s752 = smul.u32 16, %s751
        %s753 = smul.u32 %s20, 2
        %s754 = sadd.s32 %s753, %s21
        %s755 = smul.u32 64, %s754
        %p756 = scmp.lt.s32.totalorder %s755, 255
        %s757 = scalar_select %p756, %s755, 255
        %s758 = smul.addr %s757, 4
        %s759 = smul.addr %s758, 8
        %s760 = scalar_lea.vmem %s4, %s759
        %s761 = smul.u32 %s20, 2
        %s762 = sadd.s32 %s761, %s21
        %s763 = smul.u32 64, %s762
        %p764 = scmp.lt.s32.totalorder %s20, 1
        %s765 = scalar_select %p764, %s20, 1
        %s766 = smul.addr %s765, 4
        %s767 = smul.addr %s766, 2
        %s768 = scalar_lea.vmem %s5, %s767
        %p770 = scmp.eq.s32.totalorder %s21, 0
        // Predicated region
        $region64: #{lenet_forward.5} parent=58 // pred_check
          %p771 = pneg %p770
        $region65: #{lenet_forward.5} parent=58 // pred_check_branch
          %773 = sbr.rel (%p771) target = $region67
        $region66: #{lenet_forward.5} parent=58 // pred_region
          %774 = vst [vmem:[%s768] sm:$0xff] 0.0
        $region67: #{lenet_forward.5} parent=58 // pred_fallthru
          _
        %v775 = vld [vmem:[%s687] sm:$0xff]
        %v776 = vld [vmem:[%s687 + $0x8] sm:$0xff]
        %v777 = vld [vmem:[%s687 + $0x10] sm:$0xff]
        %v778 = vld [vmem:[%s687 + $0x18] sm:$0xff]
        %v779 = vld [vmem:[%s687 + $0x20] sm:$0xff]
        %v780 = vld [vmem:[%s687 + $0x28] sm:$0xff]
        %v781 = vld [vmem:[%s687 + $0x30] sm:$0xff]
        %v782 = vld [vmem:[%s687 + $0x38] sm:$0xff]
        %v783 = vld [vmem:[%s687 + $0x40] sm:$0xff]
        %v784 = vld [vmem:[%s687 + $0x48] sm:$0xff]
        %v785 = vld [vmem:[%s687 + $0x50] sm:$0xff]
        %v786 = vld [vmem:[%s687 + $0x58] sm:$0xff]
        %v787 = vld [vmem:[%s687 + $0x60] sm:$0xff]
        %v788 = vld [vmem:[%s687 + $0x68] sm:$0xff]
        %v789 = vld [vmem:[%s687 + $0x70] sm:$0xff]
        %v790 = vld [vmem:[%s687 + $0x78] sm:$0xff]
        %v791 = vld [vmem:[%s687 + $0x80] sm:$0xff]
        %v792 = vld [vmem:[%s687 + $0x88] sm:$0xff]
        %v793 = vld [vmem:[%s687 + $0x90] sm:$0xff]
        %v794 = vld [vmem:[%s687 + $0x98] sm:$0xff]
        %v795 = vld [vmem:[%s687 + $0xa0] sm:$0xff]
        %v796 = vld [vmem:[%s687 + $0xa8] sm:$0xff]
        %v797 = vld [vmem:[%s687 + $0xb0] sm:$0xff]
        %v798 = vld [vmem:[%s687 + $0xb8] sm:$0xff]
        %v799 = vld [vmem:[%s687 + $0xc0] sm:$0xff]
        %v800 = vld [vmem:[%s687 + $0xc8] sm:$0xff]
        %v801 = vld [vmem:[%s687 + $0xd0] sm:$0xff]
        %v802 = vld [vmem:[%s687 + $0xd8] sm:$0xff]
        %v803 = vld [vmem:[%s687 + $0xe0] sm:$0xff]
        %v804 = vld [vmem:[%s687 + $0xe8] sm:$0xff]
        %v805 = vld [vmem:[%s687 + $0xf0] sm:$0xff]
        %v806 = vld [vmem:[%s687 + $0xf8] sm:$0xff]
        %v807 = vld [vmem:[%s687 + $0x100] sm:$0xff]
        %v808 = vld [vmem:[%s687 + $0x108] sm:$0xff]
        %v809 = vld [vmem:[%s687 + $0x110] sm:$0xff]
        %v810 = vld [vmem:[%s687 + $0x118] sm:$0xff]
        %v811 = vld [vmem:[%s687 + $0x120] sm:$0xff]
        %v812 = vld [vmem:[%s687 + $0x128] sm:$0xff]
        %v813 = vld [vmem:[%s687 + $0x130] sm:$0xff]
        %v814 = vld [vmem:[%s687 + $0x138] sm:$0xff]
        %v815 = vld [vmem:[%s687 + $0x140] sm:$0xff]
        %v816 = vld [vmem:[%s687 + $0x148] sm:$0xff]
        %v817 = vld [vmem:[%s687 + $0x150] sm:$0xff]
        %v818 = vld [vmem:[%s687 + $0x158] sm:$0xff]
        %v819 = vld [vmem:[%s687 + $0x160] sm:$0xff]
        %v820 = vld [vmem:[%s687 + $0x168] sm:$0xff]
        %v821 = vld [vmem:[%s687 + $0x170] sm:$0xff]
        %v822 = vld [vmem:[%s687 + $0x178] sm:$0xff]
        %v823 = vld [vmem:[%s687 + $0x180] sm:$0xff]
        %v824 = vld [vmem:[%s687 + $0x188] sm:$0xff]
        %v825 = vld [vmem:[%s687 + $0x190] sm:$0xff]
        %v826 = vld [vmem:[%s687 + $0x198] sm:$0xff]
        %v827 = vld [vmem:[%s687 + $0x1a0] sm:$0xff]
        %v828 = vld [vmem:[%s687 + $0x1a8] sm:$0xff]
        %v829 = vld [vmem:[%s687 + $0x1b0] sm:$0xff]
        %v830 = vld [vmem:[%s687 + $0x1b8] sm:$0xff]
        %v831 = vld [vmem:[%s687 + $0x1c0] sm:$0xff]
        %v832 = vld [vmem:[%s687 + $0x1c8] sm:$0xff]
        %v833 = vld [vmem:[%s687 + $0x1d0] sm:$0xff]
        %v834 = vld [vmem:[%s687 + $0x1d8] sm:$0xff]
        %v835 = vld [vmem:[%s687 + $0x1e0] sm:$0xff]
        %v836 = vld [vmem:[%s687 + $0x1e8] sm:$0xff]
        %v837 = vld [vmem:[%s687 + $0x1f0] sm:$0xff]
        %v838 = vld [vmem:[%s687 + $0x1f8] sm:$0xff]
        %v839 = vld [vmem:[%s687 + $0x200] sm:$0xff]
        %v840 = vld [vmem:[%s687 + $0x208] sm:$0xff]
        %v841 = vld [vmem:[%s687 + $0x210] sm:$0xff]
        %v842 = vld [vmem:[%s687 + $0x218] sm:$0xff]
        %v843 = vld [vmem:[%s687 + $0x220] sm:$0xff]
        %v844 = vld [vmem:[%s687 + $0x228] sm:$0xff]
        %v845 = vld [vmem:[%s687 + $0x230] sm:$0xff]
        %v846 = vld [vmem:[%s687 + $0x238] sm:$0xff]
        %v847 = vld [vmem:[%s687 + $0x240] sm:$0xff]
        %v848 = vld [vmem:[%s687 + $0x248] sm:$0xff]
        %v849 = vld [vmem:[%s687 + $0x250] sm:$0xff]
        %v850 = vld [vmem:[%s687 + $0x258] sm:$0xff]
        %v851 = vld [vmem:[%s687 + $0x260] sm:$0xff]
        %v852 = vld [vmem:[%s687 + $0x268] sm:$0xff]
        %v853 = vld [vmem:[%s687 + $0x270] sm:$0xff]
        %v854 = vld [vmem:[%s687 + $0x278] sm:$0xff]
        %v855 = vld [vmem:[%s687 + $0x280] sm:$0xff]
        %v856 = vld [vmem:[%s687 + $0x288] sm:$0xff]
        %v857 = vld [vmem:[%s687 + $0x290] sm:$0xff]
        %v858 = vld [vmem:[%s687 + $0x298] sm:$0xff]
        %v859 = vld [vmem:[%s687 + $0x2a0] sm:$0xff]
        %v860 = vld [vmem:[%s687 + $0x2a8] sm:$0xff]
        %v861 = vld [vmem:[%s687 + $0x2b0] sm:$0xff]
        %v862 = vld [vmem:[%s687 + $0x2b8] sm:$0xff]
        %v863 = vld [vmem:[%s687 + $0x2c0] sm:$0xff]
        %v864 = vld [vmem:[%s687 + $0x2c8] sm:$0xff]
        %v865 = vld [vmem:[%s687 + $0x2d0] sm:$0xff]
        %v866 = vld [vmem:[%s687 + $0x2d8] sm:$0xff]
        %v867 = vld [vmem:[%s687 + $0x2e0] sm:$0xff]
        %v868 = vld [vmem:[%s687 + $0x2e8] sm:$0xff]
        %v869 = vld [vmem:[%s687 + $0x2f0] sm:$0xff]
        %v870 = vld [vmem:[%s687 + $0x2f8] sm:$0xff]
        %v871 = vld [vmem:[%s687 + $0x300] sm:$0xff]
        %v872 = vld [vmem:[%s687 + $0x308] sm:$0xff]
        %v873 = vld [vmem:[%s687 + $0x310] sm:$0xff]
        %v874 = vld [vmem:[%s687 + $0x318] sm:$0xff]
        %v875 = vld [vmem:[%s687 + $0x320] sm:$0xff]
        %v876 = vld [vmem:[%s687 + $0x328] sm:$0xff]
        %v877 = vld [vmem:[%s687 + $0x330] sm:$0xff]
        %v878 = vld [vmem:[%s687 + $0x338] sm:$0xff]
        %v879 = vld [vmem:[%s687 + $0x340] sm:$0xff]
        %v880 = vld [vmem:[%s687 + $0x348] sm:$0xff]
        %v881 = vld [vmem:[%s687 + $0x350] sm:$0xff]
        %v882 = vld [vmem:[%s687 + $0x358] sm:$0xff]
        %v883 = vld [vmem:[%s687 + $0x360] sm:$0xff]
        %v884 = vld [vmem:[%s687 + $0x368] sm:$0xff]
        %v885 = vld [vmem:[%s687 + $0x370] sm:$0xff]
        %v886 = vld [vmem:[%s687 + $0x378] sm:$0xff]
        %v887 = vld [vmem:[%s687 + $0x380] sm:$0xff]
        %v888 = vld [vmem:[%s687 + $0x388] sm:$0xff]
        %v889 = vld [vmem:[%s687 + $0x390] sm:$0xff]
        %v890 = vld [vmem:[%s687 + $0x398] sm:$0xff]
        %v891 = vld [vmem:[%s687 + $0x3a0] sm:$0xff]
        %v892 = vld [vmem:[%s687 + $0x3a8] sm:$0xff]
        %v893 = vld [vmem:[%s687 + $0x3b0] sm:$0xff]
        %v894 = vld [vmem:[%s687 + $0x3b8] sm:$0xff]
        %v895 = vld [vmem:[%s687 + $0x3c0] sm:$0xff]
        %v896 = vld [vmem:[%s687 + $0x3c8] sm:$0xff]
        %v897 = vld [vmem:[%s687 + $0x3d0] sm:$0xff]
        %v898 = vld [vmem:[%s687 + $0x3d8] sm:$0xff]
        %v899 = vld [vmem:[%s687 + $0x3e0] sm:$0xff]
        %v900 = vld [vmem:[%s687 + $0x3e8] sm:$0xff]
        %v901 = vld [vmem:[%s687 + $0x3f0] sm:$0xff]
        %v902 = vld [vmem:[%s687 + $0x3f8] sm:$0xff]
        %v903 = vld [vmem:[%s687 + $0x400] sm:$0xff]
        %v904 = vld [vmem:[%s687 + $0x408] sm:$0xff]
        %v905 = vld [vmem:[%s687 + $0x410] sm:$0xff]
        %v906 = vld [vmem:[%s687 + $0x418] sm:$0xff]
        %v907 = vld [vmem:[%s687 + $0x420] sm:$0xff]
        %v908 = vld [vmem:[%s687 + $0x428] sm:$0xff]
        %v909 = vld [vmem:[%s687 + $0x430] sm:$0xff]
        %v910 = vld [vmem:[%s687 + $0x438] sm:$0xff]
        %v911 = vld [vmem:[%s687 + $0x440] sm:$0xff]
        %v912 = vld [vmem:[%s687 + $0x448] sm:$0xff]
        %v913 = vld [vmem:[%s687 + $0x450] sm:$0xff]
        %v914 = vld [vmem:[%s687 + $0x458] sm:$0xff]
        %v915 = vld [vmem:[%s687 + $0x460] sm:$0xff]
        %v916 = vld [vmem:[%s687 + $0x468] sm:$0xff]
        %v917 = vld [vmem:[%s687 + $0x470] sm:$0xff]
        %v918 = vld [vmem:[%s687 + $0x478] sm:$0xff]
        %v919 = vld [vmem:[%s687 + $0x480] sm:$0xff]
        %v920 = vld [vmem:[%s687 + $0x488] sm:$0xff]
        %v921 = vld [vmem:[%s687 + $0x490] sm:$0xff]
        %v922 = vld [vmem:[%s687 + $0x498] sm:$0xff]
        %v923 = vld [vmem:[%s687 + $0x4a0] sm:$0xff]
        %v924 = vld [vmem:[%s687 + $0x4a8] sm:$0xff]
        %v925 = vld [vmem:[%s687 + $0x4b0] sm:$0xff]
        %v926 = vld [vmem:[%s687 + $0x4b8] sm:$0xff]
        %v927 = vld [vmem:[%s687 + $0x4c0] sm:$0xff]
        %v928 = vld [vmem:[%s687 + $0x4c8] sm:$0xff]
        %v929 = vld [vmem:[%s687 + $0x4d0] sm:$0xff]
        %v930 = vld [vmem:[%s687 + $0x4d8] sm:$0xff]
        %v931 = vld [vmem:[%s687 + $0x4e0] sm:$0xff]
        %v932 = vld [vmem:[%s687 + $0x4e8] sm:$0xff]
        %v933 = vld [vmem:[%s687 + $0x4f0] sm:$0xff]
        %v934 = vld [vmem:[%s687 + $0x4f8] sm:$0xff]
        %v935 = vld [vmem:[%s687 + $0x500] sm:$0xff]
        %v936 = vld [vmem:[%s687 + $0x508] sm:$0xff]
        %v937 = vld [vmem:[%s687 + $0x510] sm:$0xff]
        %v938 = vld [vmem:[%s687 + $0x518] sm:$0xff]
        %v939 = vld [vmem:[%s687 + $0x520] sm:$0xff]
        %v940 = vld [vmem:[%s687 + $0x528] sm:$0xff]
        %v941 = vld [vmem:[%s687 + $0x530] sm:$0xff]
        %v942 = vld [vmem:[%s687 + $0x538] sm:$0xff]
        %v943 = vld [vmem:[%s687 + $0x540] sm:$0xff]
        %v944 = vld [vmem:[%s687 + $0x548] sm:$0xff]
        %v945 = vld [vmem:[%s687 + $0x550] sm:$0xff]
        %v946 = vld [vmem:[%s687 + $0x558] sm:$0xff]
        %v947 = vld [vmem:[%s687 + $0x560] sm:$0xff]
        %v948 = vld [vmem:[%s687 + $0x568] sm:$0xff]
        %v949 = vld [vmem:[%s687 + $0x570] sm:$0xff]
        %v950 = vld [vmem:[%s687 + $0x578] sm:$0xff]
        %v951 = vld [vmem:[%s687 + $0x580] sm:$0xff]
        %v952 = vld [vmem:[%s687 + $0x588] sm:$0xff]
        %v953 = vld [vmem:[%s687 + $0x590] sm:$0xff]
        %v954 = vld [vmem:[%s687 + $0x598] sm:$0xff]
        %v955 = vld [vmem:[%s687 + $0x5a0] sm:$0xff]
        %v956 = vld [vmem:[%s687 + $0x5a8] sm:$0xff]
        %v957 = vld [vmem:[%s687 + $0x5b0] sm:$0xff]
        %v958 = vld [vmem:[%s687 + $0x5b8] sm:$0xff]
        %v959 = vld [vmem:[%s687 + $0x5c0] sm:$0xff]
        %v960 = vld [vmem:[%s687 + $0x5c8] sm:$0xff]
        %v961 = vld [vmem:[%s687 + $0x5d0] sm:$0xff]
        %v962 = vld [vmem:[%s687 + $0x5d8] sm:$0xff]
        %v963 = vld [vmem:[%s687 + $0x5e0] sm:$0xff]
        %v964 = vld [vmem:[%s687 + $0x5e8] sm:$0xff]
        %v965 = vld [vmem:[%s687 + $0x5f0] sm:$0xff]
        %v966 = vld [vmem:[%s687 + $0x5f8] sm:$0xff]
        %v967 = vld [vmem:[%s687 + $0x600] sm:$0xff]
        %v968 = vld [vmem:[%s687 + $0x608] sm:$0xff]
        %v969 = vld [vmem:[%s687 + $0x610] sm:$0xff]
        %v970 = vld [vmem:[%s687 + $0x618] sm:$0xff]
        %v971 = vld [vmem:[%s687 + $0x620] sm:$0xff]
        %v972 = vld [vmem:[%s687 + $0x628] sm:$0xff]
        %v973 = vld [vmem:[%s687 + $0x630] sm:$0xff]
        %v974 = vld [vmem:[%s687 + $0x638] sm:$0xff]
        %v975 = vunpack.c.0.s8 %v775
        %v976 = vunpack.c.1.s8 %v775
        %v977 = vunpack.c.2.s8 %v775
        %v978 = vunpack.c.3.s8 %v775
        %v979 = vunpack.c.0.s8 %v776
        %v980 = vunpack.c.1.s8 %v776
        %v981 = vunpack.c.2.s8 %v776
        %v982 = vunpack.c.3.s8 %v776
        %v983 = vunpack.c.0.s8 %v777
        %v984 = vunpack.c.1.s8 %v777
        %v985 = vunpack.c.2.s8 %v777
        %v986 = vunpack.c.3.s8 %v777
        %v987 = vunpack.c.0.s8 %v778
        %v988 = vunpack.c.1.s8 %v778
        %v989 = vunpack.c.2.s8 %v778
        %v990 = vunpack.c.3.s8 %v778
        %v991 = vunpack.c.0.s8 %v779
        %v992 = vunpack.c.1.s8 %v779
        %v993 = vunpack.c.2.s8 %v779
        %v994 = vunpack.c.3.s8 %v779
        %v995 = vunpack.c.0.s8 %v780
        %v996 = vunpack.c.1.s8 %v780
        %v997 = vunpack.c.2.s8 %v780
        %v998 = vunpack.c.3.s8 %v780
        %v999 = vunpack.c.0.s8 %v781
        %v1000 = vunpack.c.1.s8 %v781
        %v1001 = vunpack.c.2.s8 %v781
        %v1002 = vunpack.c.3.s8 %v781
        %v1003 = vunpack.c.0.s8 %v782
        %v1004 = vunpack.c.1.s8 %v782
        %v1005 = vunpack.c.2.s8 %v782
        %v1006 = vunpack.c.3.s8 %v782
        %v1007 = vunpack.c.0.s8 %v783
        %v1008 = vunpack.c.1.s8 %v783
        %v1009 = vunpack.c.2.s8 %v783
        %v1010 = vunpack.c.3.s8 %v783
        %v1011 = vunpack.c.0.s8 %v784
        %v1012 = vunpack.c.1.s8 %v784
        %v1013 = vunpack.c.2.s8 %v784
        %v1014 = vunpack.c.3.s8 %v784
        %v1015 = vunpack.c.0.s8 %v785
        %v1016 = vunpack.c.1.s8 %v785
        %v1017 = vunpack.c.2.s8 %v785
        %v1018 = vunpack.c.3.s8 %v785
        %v1019 = vunpack.c.0.s8 %v786
        %v1020 = vunpack.c.1.s8 %v786
        %v1021 = vunpack.c.2.s8 %v786
        %v1022 = vunpack.c.3.s8 %v786
        %v1023 = vunpack.c.0.s8 %v787
        %v1024 = vunpack.c.1.s8 %v787
        %v1025 = vunpack.c.2.s8 %v787
        %v1026 = vunpack.c.3.s8 %v787
        %v1027 = vunpack.c.0.s8 %v788
        %v1028 = vunpack.c.1.s8 %v788
        %v1029 = vunpack.c.2.s8 %v788
        %v1030 = vunpack.c.3.s8 %v788
        %v1031 = vunpack.c.0.s8 %v789
        %v1032 = vunpack.c.1.s8 %v789
        %v1033 = vunpack.c.2.s8 %v789
        %v1034 = vunpack.c.3.s8 %v789
        %v1035 = vunpack.c.0.s8 %v790
        %v1036 = vunpack.c.1.s8 %v790
        %v1037 = vunpack.c.2.s8 %v790
        %v1038 = vunpack.c.3.s8 %v790
        %v1039 = vunpack.c.0.s8 %v791
        %v1040 = vunpack.c.1.s8 %v791
        %v1041 = vunpack.c.2.s8 %v791
        %v1042 = vunpack.c.3.s8 %v791
        %v1043 = vunpack.c.0.s8 %v792
        %v1044 = vunpack.c.1.s8 %v792
        %v1045 = vunpack.c.2.s8 %v792
        %v1046 = vunpack.c.3.s8 %v792
        %v1047 = vunpack.c.0.s8 %v793
        %v1048 = vunpack.c.1.s8 %v793
        %v1049 = vunpack.c.2.s8 %v793
        %v1050 = vunpack.c.3.s8 %v793
        %v1051 = vunpack.c.0.s8 %v794
        %v1052 = vunpack.c.1.s8 %v794
        %v1053 = vunpack.c.2.s8 %v794
        %v1054 = vunpack.c.3.s8 %v794
        %v1055 = vunpack.c.0.s8 %v795
        %v1056 = vunpack.c.1.s8 %v795
        %v1057 = vunpack.c.2.s8 %v795
        %v1058 = vunpack.c.3.s8 %v795
        %v1059 = vunpack.c.0.s8 %v796
        %v1060 = vunpack.c.1.s8 %v796
        %v1061 = vunpack.c.2.s8 %v796
        %v1062 = vunpack.c.3.s8 %v796
        %v1063 = vunpack.c.0.s8 %v797
        %v1064 = vunpack.c.1.s8 %v797
        %v1065 = vunpack.c.2.s8 %v797
        %v1066 = vunpack.c.3.s8 %v797
        %v1067 = vunpack.c.0.s8 %v798
        %v1068 = vunpack.c.1.s8 %v798
        %v1069 = vunpack.c.2.s8 %v798
        %v1070 = vunpack.c.3.s8 %v798
        %v1071 = vunpack.c.0.s8 %v799
        %v1072 = vunpack.c.1.s8 %v799
        %v1073 = vunpack.c.2.s8 %v799
        %v1074 = vunpack.c.3.s8 %v799
        %v1075 = vunpack.c.0.s8 %v800
        %v1076 = vunpack.c.1.s8 %v800
        %v1077 = vunpack.c.2.s8 %v800
        %v1078 = vunpack.c.3.s8 %v800
        %v1079 = vunpack.c.0.s8 %v801
        %v1080 = vunpack.c.1.s8 %v801
        %v1081 = vunpack.c.2.s8 %v801
        %v1082 = vunpack.c.3.s8 %v801
        %v1083 = vunpack.c.0.s8 %v802
        %v1084 = vunpack.c.1.s8 %v802
        %v1085 = vunpack.c.2.s8 %v802
        %v1086 = vunpack.c.3.s8 %v802
        %v1087 = vunpack.c.0.s8 %v803
        %v1088 = vunpack.c.1.s8 %v803
        %v1089 = vunpack.c.2.s8 %v803
        %v1090 = vunpack.c.3.s8 %v803
        %v1091 = vunpack.c.0.s8 %v804
        %v1092 = vunpack.c.1.s8 %v804
        %v1093 = vunpack.c.2.s8 %v804
        %v1094 = vunpack.c.3.s8 %v804
        %v1095 = vunpack.c.0.s8 %v805
        %v1096 = vunpack.c.1.s8 %v805
        %v1097 = vunpack.c.2.s8 %v805
        %v1098 = vunpack.c.3.s8 %v805
        %v1099 = vunpack.c.0.s8 %v806
        %v1100 = vunpack.c.1.s8 %v806
        %v1101 = vunpack.c.2.s8 %v806
        %v1102 = vunpack.c.3.s8 %v806
        %v1103 = vunpack.c.0.s8 %v807
        %v1104 = vunpack.c.1.s8 %v807
        %v1105 = vunpack.c.2.s8 %v807
        %v1106 = vunpack.c.3.s8 %v807
        %v1107 = vunpack.c.0.s8 %v808
        %v1108 = vunpack.c.1.s8 %v808
        %v1109 = vunpack.c.2.s8 %v808
        %v1110 = vunpack.c.3.s8 %v808
        %v1111 = vunpack.c.0.s8 %v809
        %v1112 = vunpack.c.1.s8 %v809
        %v1113 = vunpack.c.2.s8 %v809
        %v1114 = vunpack.c.3.s8 %v809
        %v1115 = vunpack.c.0.s8 %v810
        %v1116 = vunpack.c.1.s8 %v810
        %v1117 = vunpack.c.2.s8 %v810
        %v1118 = vunpack.c.3.s8 %v810
        %v1119 = vunpack.c.0.s8 %v811
        %v1120 = vunpack.c.1.s8 %v811
        %v1121 = vunpack.c.2.s8 %v811
        %v1122 = vunpack.c.3.s8 %v811
        %v1123 = vunpack.c.0.s8 %v812
        %v1124 = vunpack.c.1.s8 %v812
        %v1125 = vunpack.c.2.s8 %v812
        %v1126 = vunpack.c.3.s8 %v812
        %v1127 = vunpack.c.0.s8 %v813
        %v1128 = vunpack.c.1.s8 %v813
        %v1129 = vunpack.c.2.s8 %v813
        %v1130 = vunpack.c.3.s8 %v813
        %v1131 = vunpack.c.0.s8 %v814
        %v1132 = vunpack.c.1.s8 %v814
        %v1133 = vunpack.c.2.s8 %v814
        %v1134 = vunpack.c.3.s8 %v814
        %v1135 = vunpack.c.0.s8 %v815
        %v1136 = vunpack.c.1.s8 %v815
        %v1137 = vunpack.c.2.s8 %v815
        %v1138 = vunpack.c.3.s8 %v815
        %v1139 = vunpack.c.0.s8 %v816
        %v1140 = vunpack.c.1.s8 %v816
        %v1141 = vunpack.c.2.s8 %v816
        %v1142 = vunpack.c.3.s8 %v816
        %v1143 = vunpack.c.0.s8 %v817
        %v1144 = vunpack.c.1.s8 %v817
        %v1145 = vunpack.c.2.s8 %v817
        %v1146 = vunpack.c.3.s8 %v817
        %v1147 = vunpack.c.0.s8 %v818
        %v1148 = vunpack.c.1.s8 %v818
        %v1149 = vunpack.c.2.s8 %v818
        %v1150 = vunpack.c.3.s8 %v818
        %v1151 = vunpack.c.0.s8 %v819
        %v1152 = vunpack.c.1.s8 %v819
        %v1153 = vunpack.c.2.s8 %v819
        %v1154 = vunpack.c.3.s8 %v819
        %v1155 = vunpack.c.0.s8 %v820
        %v1156 = vunpack.c.1.s8 %v820
        %v1157 = vunpack.c.2.s8 %v820
        %v1158 = vunpack.c.3.s8 %v820
        %v1159 = vunpack.c.0.s8 %v821
        %v1160 = vunpack.c.1.s8 %v821
        %v1161 = vunpack.c.2.s8 %v821
        %v1162 = vunpack.c.3.s8 %v821
        %v1163 = vunpack.c.0.s8 %v822
        %v1164 = vunpack.c.1.s8 %v822
        %v1165 = vunpack.c.2.s8 %v822
        %v1166 = vunpack.c.3.s8 %v822
        %v1167 = vunpack.c.0.s8 %v823
        %v1168 = vunpack.c.1.s8 %v823
        %v1169 = vunpack.c.2.s8 %v823
        %v1170 = vunpack.c.3.s8 %v823
        %v1171 = vunpack.c.0.s8 %v824
        %v1172 = vunpack.c.1.s8 %v824
        %v1173 = vunpack.c.2.s8 %v824
        %v1174 = vunpack.c.3.s8 %v824
        %v1175 = vunpack.c.0.s8 %v825
        %v1176 = vunpack.c.1.s8 %v825
        %v1177 = vunpack.c.2.s8 %v825
        %v1178 = vunpack.c.3.s8 %v825
        %v1179 = vunpack.c.0.s8 %v826
        %v1180 = vunpack.c.1.s8 %v826
        %v1181 = vunpack.c.2.s8 %v826
        %v1182 = vunpack.c.3.s8 %v826
        %v1183 = vunpack.c.0.s8 %v827
        %v1184 = vunpack.c.1.s8 %v827
        %v1185 = vunpack.c.2.s8 %v827
        %v1186 = vunpack.c.3.s8 %v827
        %v1187 = vunpack.c.0.s8 %v828
        %v1188 = vunpack.c.1.s8 %v828
        %v1189 = vunpack.c.2.s8 %v828
        %v1190 = vunpack.c.3.s8 %v828
        %v1191 = vunpack.c.0.s8 %v829
        %v1192 = vunpack.c.1.s8 %v829
        %v1193 = vunpack.c.2.s8 %v829
        %v1194 = vunpack.c.3.s8 %v829
        %v1195 = vunpack.c.0.s8 %v830
        %v1196 = vunpack.c.1.s8 %v830
        %v1197 = vunpack.c.2.s8 %v830
        %v1198 = vunpack.c.3.s8 %v830
        %v1199 = vunpack.c.0.s8 %v831
        %v1200 = vunpack.c.1.s8 %v831
        %v1201 = vunpack.c.2.s8 %v831
        %v1202 = vunpack.c.3.s8 %v831
        %v1203 = vunpack.c.0.s8 %v832
        %v1204 = vunpack.c.1.s8 %v832
        %v1205 = vunpack.c.2.s8 %v832
        %v1206 = vunpack.c.3.s8 %v832
        %v1207 = vunpack.c.0.s8 %v833
        %v1208 = vunpack.c.1.s8 %v833
        %v1209 = vunpack.c.2.s8 %v833
        %v1210 = vunpack.c.3.s8 %v833
        %v1211 = vunpack.c.0.s8 %v834
        %v1212 = vunpack.c.1.s8 %v834
        %v1213 = vunpack.c.2.s8 %v834
        %v1214 = vunpack.c.3.s8 %v834
        %v1215 = vunpack.c.0.s8 %v835
        %v1216 = vunpack.c.1.s8 %v835
        %v1217 = vunpack.c.2.s8 %v835
        %v1218 = vunpack.c.3.s8 %v835
        %v1219 = vunpack.c.0.s8 %v836
        %v1220 = vunpack.c.1.s8 %v836
        %v1221 = vunpack.c.2.s8 %v836
        %v1222 = vunpack.c.3.s8 %v836
        %v1223 = vunpack.c.0.s8 %v837
        %v1224 = vunpack.c.1.s8 %v837
        %v1225 = vunpack.c.2.s8 %v837
        %v1226 = vunpack.c.3.s8 %v837
        %v1227 = vunpack.c.0.s8 %v838
        %v1228 = vunpack.c.1.s8 %v838
        %v1229 = vunpack.c.2.s8 %v838
        %v1230 = vunpack.c.3.s8 %v838
        %v1231 = vunpack.c.0.s8 %v839
        %v1232 = vunpack.c.1.s8 %v839
        %v1233 = vunpack.c.2.s8 %v839
        %v1234 = vunpack.c.3.s8 %v839
        %v1235 = vunpack.c.0.s8 %v840
        %v1236 = vunpack.c.1.s8 %v840
        %v1237 = vunpack.c.2.s8 %v840
        %v1238 = vunpack.c.3.s8 %v840
        %v1239 = vunpack.c.0.s8 %v841
        %v1240 = vunpack.c.1.s8 %v841
        %v1241 = vunpack.c.2.s8 %v841
        %v1242 = vunpack.c.3.s8 %v841
        %v1243 = vunpack.c.0.s8 %v842
        %v1244 = vunpack.c.1.s8 %v842
        %v1245 = vunpack.c.2.s8 %v842
        %v1246 = vunpack.c.3.s8 %v842
        %v1247 = vunpack.c.0.s8 %v843
        %v1248 = vunpack.c.1.s8 %v843
        %v1249 = vunpack.c.2.s8 %v843
        %v1250 = vunpack.c.3.s8 %v843
        %v1251 = vunpack.c.0.s8 %v844
        %v1252 = vunpack.c.1.s8 %v844
        %v1253 = vunpack.c.2.s8 %v844
        %v1254 = vunpack.c.3.s8 %v844
        %v1255 = vunpack.c.0.s8 %v845
        %v1256 = vunpack.c.1.s8 %v845
        %v1257 = vunpack.c.2.s8 %v845
        %v1258 = vunpack.c.3.s8 %v845
        %v1259 = vunpack.c.0.s8 %v846
        %v1260 = vunpack.c.1.s8 %v846
        %v1261 = vunpack.c.2.s8 %v846
        %v1262 = vunpack.c.3.s8 %v846
        %v1263 = vunpack.c.0.s8 %v847
        %v1264 = vunpack.c.1.s8 %v847
        %v1265 = vunpack.c.2.s8 %v847
        %v1266 = vunpack.c.3.s8 %v847
        %v1267 = vunpack.c.0.s8 %v848
        %v1268 = vunpack.c.1.s8 %v848
        %v1269 = vunpack.c.2.s8 %v848
        %v1270 = vunpack.c.3.s8 %v848
        %v1271 = vunpack.c.0.s8 %v849
        %v1272 = vunpack.c.1.s8 %v849
        %v1273 = vunpack.c.2.s8 %v849
        %v1274 = vunpack.c.3.s8 %v849
        %v1275 = vunpack.c.0.s8 %v850
        %v1276 = vunpack.c.1.s8 %v850
        %v1277 = vunpack.c.2.s8 %v850
        %v1278 = vunpack.c.3.s8 %v850
        %v1279 = vunpack.c.0.s8 %v851
        %v1280 = vunpack.c.1.s8 %v851
        %v1281 = vunpack.c.2.s8 %v851
        %v1282 = vunpack.c.3.s8 %v851
        %v1283 = vunpack.c.0.s8 %v852
        %v1284 = vunpack.c.1.s8 %v852
        %v1285 = vunpack.c.2.s8 %v852
        %v1286 = vunpack.c.3.s8 %v852
        %v1287 = vunpack.c.0.s8 %v853
        %v1288 = vunpack.c.1.s8 %v853
        %v1289 = vunpack.c.2.s8 %v853
        %v1290 = vunpack.c.3.s8 %v853
        %v1291 = vunpack.c.0.s8 %v854
        %v1292 = vunpack.c.1.s8 %v854
        %v1293 = vunpack.c.2.s8 %v854
        %v1294 = vunpack.c.3.s8 %v854
        %v1295 = vunpack.c.0.s8 %v855
        %v1296 = vunpack.c.1.s8 %v855
        %v1297 = vunpack.c.2.s8 %v855
        %v1298 = vunpack.c.3.s8 %v855
        %v1299 = vunpack.c.0.s8 %v856
        %v1300 = vunpack.c.1.s8 %v856
        %v1301 = vunpack.c.2.s8 %v856
        %v1302 = vunpack.c.3.s8 %v856
        %v1303 = vunpack.c.0.s8 %v857
        %v1304 = vunpack.c.1.s8 %v857
        %v1305 = vunpack.c.2.s8 %v857
        %v1306 = vunpack.c.3.s8 %v857
        %v1307 = vunpack.c.0.s8 %v858
        %v1308 = vunpack.c.1.s8 %v858
        %v1309 = vunpack.c.2.s8 %v858
        %v1310 = vunpack.c.3.s8 %v858
        %v1311 = vunpack.c.0.s8 %v859
        %v1312 = vunpack.c.1.s8 %v859
        %v1313 = vunpack.c.2.s8 %v859
        %v1314 = vunpack.c.3.s8 %v859
        %v1315 = vunpack.c.0.s8 %v860
        %v1316 = vunpack.c.1.s8 %v860
        %v1317 = vunpack.c.2.s8 %v860
        %v1318 = vunpack.c.3.s8 %v860
        %v1319 = vunpack.c.0.s8 %v861
        %v1320 = vunpack.c.1.s8 %v861
        %v1321 = vunpack.c.2.s8 %v861
        %v1322 = vunpack.c.3.s8 %v861
        %v1323 = vunpack.c.0.s8 %v862
        %v1324 = vunpack.c.1.s8 %v862
        %v1325 = vunpack.c.2.s8 %v862
        %v1326 = vunpack.c.3.s8 %v862
        %v1327 = vunpack.c.0.s8 %v863
        %v1328 = vunpack.c.1.s8 %v863
        %v1329 = vunpack.c.2.s8 %v863
        %v1330 = vunpack.c.3.s8 %v863
        %v1331 = vunpack.c.0.s8 %v864
        %v1332 = vunpack.c.1.s8 %v864
        %v1333 = vunpack.c.2.s8 %v864
        %v1334 = vunpack.c.3.s8 %v864
        %v1335 = vunpack.c.0.s8 %v865
        %v1336 = vunpack.c.1.s8 %v865
        %v1337 = vunpack.c.2.s8 %v865
        %v1338 = vunpack.c.3.s8 %v865
        %v1339 = vunpack.c.0.s8 %v866
        %v1340 = vunpack.c.1.s8 %v866
        %v1341 = vunpack.c.2.s8 %v866
        %v1342 = vunpack.c.3.s8 %v866
        %v1343 = vunpack.c.0.s8 %v867
        %v1344 = vunpack.c.1.s8 %v867
        %v1345 = vunpack.c.2.s8 %v867
        %v1346 = vunpack.c.3.s8 %v867
        %v1347 = vunpack.c.0.s8 %v868
        %v1348 = vunpack.c.1.s8 %v868
        %v1349 = vunpack.c.2.s8 %v868
        %v1350 = vunpack.c.3.s8 %v868
        %v1351 = vunpack.c.0.s8 %v869
        %v1352 = vunpack.c.1.s8 %v869
        %v1353 = vunpack.c.2.s8 %v869
        %v1354 = vunpack.c.3.s8 %v869
        %v1355 = vunpack.c.0.s8 %v870
        %v1356 = vunpack.c.1.s8 %v870
        %v1357 = vunpack.c.2.s8 %v870
        %v1358 = vunpack.c.3.s8 %v870
        %v1359 = vunpack.c.0.s8 %v871
        %v1360 = vunpack.c.1.s8 %v871
        %v1361 = vunpack.c.2.s8 %v871
        %v1362 = vunpack.c.3.s8 %v871
        %v1363 = vunpack.c.0.s8 %v872
        %v1364 = vunpack.c.1.s8 %v872
        %v1365 = vunpack.c.2.s8 %v872
        %v1366 = vunpack.c.3.s8 %v872
        %v1367 = vunpack.c.0.s8 %v873
        %v1368 = vunpack.c.1.s8 %v873
        %v1369 = vunpack.c.2.s8 %v873
        %v1370 = vunpack.c.3.s8 %v873
        %v1371 = vunpack.c.0.s8 %v874
        %v1372 = vunpack.c.1.s8 %v874
        %v1373 = vunpack.c.2.s8 %v874
        %v1374 = vunpack.c.3.s8 %v874
        %v1375 = vunpack.c.0.s8 %v875
        %v1376 = vunpack.c.1.s8 %v875
        %v1377 = vunpack.c.2.s8 %v875
        %v1378 = vunpack.c.3.s8 %v875
        %v1379 = vunpack.c.0.s8 %v876
        %v1380 = vunpack.c.1.s8 %v876
        %v1381 = vunpack.c.2.s8 %v876
        %v1382 = vunpack.c.3.s8 %v876
        %v1383 = vunpack.c.0.s8 %v877
        %v1384 = vunpack.c.1.s8 %v877
        %v1385 = vunpack.c.2.s8 %v877
        %v1386 = vunpack.c.3.s8 %v877
        %v1387 = vunpack.c.0.s8 %v878
        %v1388 = vunpack.c.1.s8 %v878
        %v1389 = vunpack.c.2.s8 %v878
        %v1390 = vunpack.c.3.s8 %v878
        %v1391 = vunpack.c.0.s8 %v879
        %v1392 = vunpack.c.1.s8 %v879
        %v1393 = vunpack.c.2.s8 %v879
        %v1394 = vunpack.c.3.s8 %v879
        %v1395 = vunpack.c.0.s8 %v880
        %v1396 = vunpack.c.1.s8 %v880
        %v1397 = vunpack.c.2.s8 %v880
        %v1398 = vunpack.c.3.s8 %v880
        %v1399 = vunpack.c.0.s8 %v881
        %v1400 = vunpack.c.1.s8 %v881
        %v1401 = vunpack.c.2.s8 %v881
        %v1402 = vunpack.c.3.s8 %v881
        %v1403 = vunpack.c.0.s8 %v882
        %v1404 = vunpack.c.1.s8 %v882
        %v1405 = vunpack.c.2.s8 %v882
        %v1406 = vunpack.c.3.s8 %v882
        %v1407 = vunpack.c.0.s8 %v883
        %v1408 = vunpack.c.1.s8 %v883
        %v1409 = vunpack.c.2.s8 %v883
        %v1410 = vunpack.c.3.s8 %v883
        %v1411 = vunpack.c.0.s8 %v884
        %v1412 = vunpack.c.1.s8 %v884
        %v1413 = vunpack.c.2.s8 %v884
        %v1414 = vunpack.c.3.s8 %v884
        %v1415 = vunpack.c.0.s8 %v885
        %v1416 = vunpack.c.1.s8 %v885
        %v1417 = vunpack.c.2.s8 %v885
        %v1418 = vunpack.c.3.s8 %v885
        %v1419 = vunpack.c.0.s8 %v886
        %v1420 = vunpack.c.1.s8 %v886
        %v1421 = vunpack.c.2.s8 %v886
        %v1422 = vunpack.c.3.s8 %v886
        %v1423 = vunpack.c.0.s8 %v887
        %v1424 = vunpack.c.1.s8 %v887
        %v1425 = vunpack.c.2.s8 %v887
        %v1426 = vunpack.c.3.s8 %v887
        %v1427 = vunpack.c.0.s8 %v888
        %v1428 = vunpack.c.1.s8 %v888
        %v1429 = vunpack.c.2.s8 %v888
        %v1430 = vunpack.c.3.s8 %v888
        %v1431 = vunpack.c.0.s8 %v889
        %v1432 = vunpack.c.1.s8 %v889
        %v1433 = vunpack.c.2.s8 %v889
        %v1434 = vunpack.c.3.s8 %v889
        %v1435 = vunpack.c.0.s8 %v890
        %v1436 = vunpack.c.1.s8 %v890
        %v1437 = vunpack.c.2.s8 %v890
        %v1438 = vunpack.c.3.s8 %v890
        %v1439 = vunpack.c.0.s8 %v891
        %v1440 = vunpack.c.1.s8 %v891
        %v1441 = vunpack.c.2.s8 %v891
        %v1442 = vunpack.c.3.s8 %v891
        %v1443 = vunpack.c.0.s8 %v892
        %v1444 = vunpack.c.1.s8 %v892
        %v1445 = vunpack.c.2.s8 %v892
        %v1446 = vunpack.c.3.s8 %v892
        %v1447 = vunpack.c.0.s8 %v893
        %v1448 = vunpack.c.1.s8 %v893
        %v1449 = vunpack.c.2.s8 %v893
        %v1450 = vunpack.c.3.s8 %v893
        %v1451 = vunpack.c.0.s8 %v894
        %v1452 = vunpack.c.1.s8 %v894
        %v1453 = vunpack.c.2.s8 %v894
        %v1454 = vunpack.c.3.s8 %v894
        %v1455 = vunpack.c.0.s8 %v895
        %v1456 = vunpack.c.1.s8 %v895
        %v1457 = vunpack.c.2.s8 %v895
        %v1458 = vunpack.c.3.s8 %v895
        %v1459 = vunpack.c.0.s8 %v896
        %v1460 = vunpack.c.1.s8 %v896
        %v1461 = vunpack.c.2.s8 %v896
        %v1462 = vunpack.c.3.s8 %v896
        %v1463 = vunpack.c.0.s8 %v897
        %v1464 = vunpack.c.1.s8 %v897
        %v1465 = vunpack.c.2.s8 %v897
        %v1466 = vunpack.c.3.s8 %v897
        %v1467 = vunpack.c.0.s8 %v898
        %v1468 = vunpack.c.1.s8 %v898
        %v1469 = vunpack.c.2.s8 %v898
        %v1470 = vunpack.c.3.s8 %v898
        %v1471 = vunpack.c.0.s8 %v899
        %v1472 = vunpack.c.1.s8 %v899
        %v1473 = vunpack.c.2.s8 %v899
        %v1474 = vunpack.c.3.s8 %v899
        %v1475 = vunpack.c.0.s8 %v900
        %v1476 = vunpack.c.1.s8 %v900
        %v1477 = vunpack.c.2.s8 %v900
        %v1478 = vunpack.c.3.s8 %v900
        %v1479 = vunpack.c.0.s8 %v901
        %v1480 = vunpack.c.1.s8 %v901
        %v1481 = vunpack.c.2.s8 %v901
        %v1482 = vunpack.c.3.s8 %v901
        %v1483 = vunpack.c.0.s8 %v902
        %v1484 = vunpack.c.1.s8 %v902
        %v1485 = vunpack.c.2.s8 %v902
        %v1486 = vunpack.c.3.s8 %v902
        %v1487 = vunpack.c.0.s8 %v903
        %v1488 = vunpack.c.1.s8 %v903
        %v1489 = vunpack.c.2.s8 %v903
        %v1490 = vunpack.c.3.s8 %v903
        %v1491 = vunpack.c.0.s8 %v904
        %v1492 = vunpack.c.1.s8 %v904
        %v1493 = vunpack.c.2.s8 %v904
        %v1494 = vunpack.c.3.s8 %v904
        %v1495 = vunpack.c.0.s8 %v905
        %v1496 = vunpack.c.1.s8 %v905
        %v1497 = vunpack.c.2.s8 %v905
        %v1498 = vunpack.c.3.s8 %v905
        %v1499 = vunpack.c.0.s8 %v906
        %v1500 = vunpack.c.1.s8 %v906
        %v1501 = vunpack.c.2.s8 %v906
        %v1502 = vunpack.c.3.s8 %v906
        %v1503 = vunpack.c.0.s8 %v907
        %v1504 = vunpack.c.1.s8 %v907
        %v1505 = vunpack.c.2.s8 %v907
        %v1506 = vunpack.c.3.s8 %v907
        %v1507 = vunpack.c.0.s8 %v908
        %v1508 = vunpack.c.1.s8 %v908
        %v1509 = vunpack.c.2.s8 %v908
        %v1510 = vunpack.c.3.s8 %v908
        %v1511 = vunpack.c.0.s8 %v909
        %v1512 = vunpack.c.1.s8 %v909
        %v1513 = vunpack.c.2.s8 %v909
        %v1514 = vunpack.c.3.s8 %v909
        %v1515 = vunpack.c.0.s8 %v910
        %v1516 = vunpack.c.1.s8 %v910
        %v1517 = vunpack.c.2.s8 %v910
        %v1518 = vunpack.c.3.s8 %v910
        %v1519 = vunpack.c.0.s8 %v911
        %v1520 = vunpack.c.1.s8 %v911
        %v1521 = vunpack.c.2.s8 %v911
        %v1522 = vunpack.c.3.s8 %v911
        %v1523 = vunpack.c.0.s8 %v912
        %v1524 = vunpack.c.1.s8 %v912
        %v1525 = vunpack.c.2.s8 %v912
        %v1526 = vunpack.c.3.s8 %v912
        %v1527 = vunpack.c.0.s8 %v913
        %v1528 = vunpack.c.1.s8 %v913
        %v1529 = vunpack.c.2.s8 %v913
        %v1530 = vunpack.c.3.s8 %v913
        %v1531 = vunpack.c.0.s8 %v914
        %v1532 = vunpack.c.1.s8 %v914
        %v1533 = vunpack.c.2.s8 %v914
        %v1534 = vunpack.c.3.s8 %v914
        %v1535 = vunpack.c.0.s8 %v915
        %v1536 = vunpack.c.1.s8 %v915
        %v1537 = vunpack.c.2.s8 %v915
        %v1538 = vunpack.c.3.s8 %v915
        %v1539 = vunpack.c.0.s8 %v916
        %v1540 = vunpack.c.1.s8 %v916
        %v1541 = vunpack.c.2.s8 %v916
        %v1542 = vunpack.c.3.s8 %v916
        %v1543 = vunpack.c.0.s8 %v917
        %v1544 = vunpack.c.1.s8 %v917
        %v1545 = vunpack.c.2.s8 %v917
        %v1546 = vunpack.c.3.s8 %v917
        %v1547 = vunpack.c.0.s8 %v918
        %v1548 = vunpack.c.1.s8 %v918
        %v1549 = vunpack.c.2.s8 %v918
        %v1550 = vunpack.c.3.s8 %v918
        %v1551 = vunpack.c.0.s8 %v919
        %v1552 = vunpack.c.1.s8 %v919
        %v1553 = vunpack.c.2.s8 %v919
        %v1554 = vunpack.c.3.s8 %v919
        %v1555 = vunpack.c.0.s8 %v920
        %v1556 = vunpack.c.1.s8 %v920
        %v1557 = vunpack.c.2.s8 %v920
        %v1558 = vunpack.c.3.s8 %v920
        %v1559 = vunpack.c.0.s8 %v921
        %v1560 = vunpack.c.1.s8 %v921
        %v1561 = vunpack.c.2.s8 %v921
        %v1562 = vunpack.c.3.s8 %v921
        %v1563 = vunpack.c.0.s8 %v922
        %v1564 = vunpack.c.1.s8 %v922
        %v1565 = vunpack.c.2.s8 %v922
        %v1566 = vunpack.c.3.s8 %v922
        %v1567 = vunpack.c.0.s8 %v923
        %v1568 = vunpack.c.1.s8 %v923
        %v1569 = vunpack.c.2.s8 %v923
        %v1570 = vunpack.c.3.s8 %v923
        %v1571 = vunpack.c.0.s8 %v924
        %v1572 = vunpack.c.1.s8 %v924
        %v1573 = vunpack.c.2.s8 %v924
        %v1574 = vunpack.c.3.s8 %v924
        %v1575 = vunpack.c.0.s8 %v925
        %v1576 = vunpack.c.1.s8 %v925
        %v1577 = vunpack.c.2.s8 %v925
        %v1578 = vunpack.c.3.s8 %v925
        %v1579 = vunpack.c.0.s8 %v926
        %v1580 = vunpack.c.1.s8 %v926
        %v1581 = vunpack.c.2.s8 %v926
        %v1582 = vunpack.c.3.s8 %v926
        %v1583 = vunpack.c.0.s8 %v927
        %v1584 = vunpack.c.1.s8 %v927
        %v1585 = vunpack.c.2.s8 %v927
        %v1586 = vunpack.c.3.s8 %v927
        %v1587 = vunpack.c.0.s8 %v928
        %v1588 = vunpack.c.1.s8 %v928
        %v1589 = vunpack.c.2.s8 %v928
        %v1590 = vunpack.c.3.s8 %v928
        %v1591 = vunpack.c.0.s8 %v929
        %v1592 = vunpack.c.1.s8 %v929
        %v1593 = vunpack.c.2.s8 %v929
        %v1594 = vunpack.c.3.s8 %v929
        %v1595 = vunpack.c.0.s8 %v930
        %v1596 = vunpack.c.1.s8 %v930
        %v1597 = vunpack.c.2.s8 %v930
        %v1598 = vunpack.c.3.s8 %v930
        %v1599 = vunpack.c.0.s8 %v931
        %v1600 = vunpack.c.1.s8 %v931
        %v1601 = vunpack.c.2.s8 %v931
        %v1602 = vunpack.c.3.s8 %v931
        %v1603 = vunpack.c.0.s8 %v932
        %v1604 = vunpack.c.1.s8 %v932
        %v1605 = vunpack.c.2.s8 %v932
        %v1606 = vunpack.c.3.s8 %v932
        %v1607 = vunpack.c.0.s8 %v933
        %v1608 = vunpack.c.1.s8 %v933
        %v1609 = vunpack.c.2.s8 %v933
        %v1610 = vunpack.c.3.s8 %v933
        %v1611 = vunpack.c.0.s8 %v934
        %v1612 = vunpack.c.1.s8 %v934
        %v1613 = vunpack.c.2.s8 %v934
        %v1614 = vunpack.c.3.s8 %v934
        %v1615 = vunpack.c.0.s8 %v935
        %v1616 = vunpack.c.1.s8 %v935
        %v1617 = vunpack.c.2.s8 %v935
        %v1618 = vunpack.c.3.s8 %v935
        %v1619 = vunpack.c.0.s8 %v936
        %v1620 = vunpack.c.1.s8 %v936
        %v1621 = vunpack.c.2.s8 %v936
        %v1622 = vunpack.c.3.s8 %v936
        %v1623 = vunpack.c.0.s8 %v937
        %v1624 = vunpack.c.1.s8 %v937
        %v1625 = vunpack.c.2.s8 %v937
        %v1626 = vunpack.c.3.s8 %v937
        %v1627 = vunpack.c.0.s8 %v938
        %v1628 = vunpack.c.1.s8 %v938
        %v1629 = vunpack.c.2.s8 %v938
        %v1630 = vunpack.c.3.s8 %v938
        %v1631 = vunpack.c.0.s8 %v939
        %v1632 = vunpack.c.1.s8 %v939
        %v1633 = vunpack.c.2.s8 %v939
        %v1634 = vunpack.c.3.s8 %v939
        %v1635 = vunpack.c.0.s8 %v940
        %v1636 = vunpack.c.1.s8 %v940
        %v1637 = vunpack.c.2.s8 %v940
        %v1638 = vunpack.c.3.s8 %v940
        %v1639 = vunpack.c.0.s8 %v941
        %v1640 = vunpack.c.1.s8 %v941
        %v1641 = vunpack.c.2.s8 %v941
        %v1642 = vunpack.c.3.s8 %v941
        %v1643 = vunpack.c.0.s8 %v942
        %v1644 = vunpack.c.1.s8 %v942
        %v1645 = vunpack.c.2.s8 %v942
        %v1646 = vunpack.c.3.s8 %v942
        %v1647 = vunpack.c.0.s8 %v943
        %v1648 = vunpack.c.1.s8 %v943
        %v1649 = vunpack.c.2.s8 %v943
        %v1650 = vunpack.c.3.s8 %v943
        %v1651 = vunpack.c.0.s8 %v944
        %v1652 = vunpack.c.1.s8 %v944
        %v1653 = vunpack.c.2.s8 %v944
        %v1654 = vunpack.c.3.s8 %v944
        %v1655 = vunpack.c.0.s8 %v945
        %v1656 = vunpack.c.1.s8 %v945
        %v1657 = vunpack.c.2.s8 %v945
        %v1658 = vunpack.c.3.s8 %v945
        %v1659 = vunpack.c.0.s8 %v946
        %v1660 = vunpack.c.1.s8 %v946
        %v1661 = vunpack.c.2.s8 %v946
        %v1662 = vunpack.c.3.s8 %v946
        %v1663 = vunpack.c.0.s8 %v947
        %v1664 = vunpack.c.1.s8 %v947
        %v1665 = vunpack.c.2.s8 %v947
        %v1666 = vunpack.c.3.s8 %v947
        %v1667 = vunpack.c.0.s8 %v948
        %v1668 = vunpack.c.1.s8 %v948
        %v1669 = vunpack.c.2.s8 %v948
        %v1670 = vunpack.c.3.s8 %v948
        %v1671 = vunpack.c.0.s8 %v949
        %v1672 = vunpack.c.1.s8 %v949
        %v1673 = vunpack.c.2.s8 %v949
        %v1674 = vunpack.c.3.s8 %v949
        %v1675 = vunpack.c.0.s8 %v950
        %v1676 = vunpack.c.1.s8 %v950
        %v1677 = vunpack.c.2.s8 %v950
        %v1678 = vunpack.c.3.s8 %v950
        %v1679 = vunpack.c.0.s8 %v951
        %v1680 = vunpack.c.1.s8 %v951
        %v1681 = vunpack.c.2.s8 %v951
        %v1682 = vunpack.c.3.s8 %v951
        %v1683 = vunpack.c.0.s8 %v952
        %v1684 = vunpack.c.1.s8 %v952
        %v1685 = vunpack.c.2.s8 %v952
        %v1686 = vunpack.c.3.s8 %v952
        %v1687 = vunpack.c.0.s8 %v953
        %v1688 = vunpack.c.1.s8 %v953
        %v1689 = vunpack.c.2.s8 %v953
        %v1690 = vunpack.c.3.s8 %v953
        %v1691 = vunpack.c.0.s8 %v954
        %v1692 = vunpack.c.1.s8 %v954
        %v1693 = vunpack.c.2.s8 %v954
        %v1694 = vunpack.c.3.s8 %v954
        %v1695 = vunpack.c.0.s8 %v955
        %v1696 = vunpack.c.1.s8 %v955
        %v1697 = vunpack.c.2.s8 %v955
        %v1698 = vunpack.c.3.s8 %v955
        %v1699 = vunpack.c.0.s8 %v956
        %v1700 = vunpack.c.1.s8 %v956
        %v1701 = vunpack.c.2.s8 %v956
        %v1702 = vunpack.c.3.s8 %v956
        %v1703 = vunpack.c.0.s8 %v957
        %v1704 = vunpack.c.1.s8 %v957
        %v1705 = vunpack.c.2.s8 %v957
        %v1706 = vunpack.c.3.s8 %v957
        %v1707 = vunpack.c.0.s8 %v958
        %v1708 = vunpack.c.1.s8 %v958
        %v1709 = vunpack.c.2.s8 %v958
        %v1710 = vunpack.c.3.s8 %v958
        %v1711 = vunpack.c.0.s8 %v959
        %v1712 = vunpack.c.1.s8 %v959
        %v1713 = vunpack.c.2.s8 %v959
        %v1714 = vunpack.c.3.s8 %v959
        %v1715 = vunpack.c.0.s8 %v960
        %v1716 = vunpack.c.1.s8 %v960
        %v1717 = vunpack.c.2.s8 %v960
        %v1718 = vunpack.c.3.s8 %v960
        %v1719 = vunpack.c.0.s8 %v961
        %v1720 = vunpack.c.1.s8 %v961
        %v1721 = vunpack.c.2.s8 %v961
        %v1722 = vunpack.c.3.s8 %v961
        %v1723 = vunpack.c.0.s8 %v962
        %v1724 = vunpack.c.1.s8 %v962
        %v1725 = vunpack.c.2.s8 %v962
        %v1726 = vunpack.c.3.s8 %v962
        %v1727 = vunpack.c.0.s8 %v963
        %v1728 = vunpack.c.1.s8 %v963
        %v1729 = vunpack.c.2.s8 %v963
        %v1730 = vunpack.c.3.s8 %v963
        %v1731 = vunpack.c.0.s8 %v964
        %v1732 = vunpack.c.1.s8 %v964
        %v1733 = vunpack.c.2.s8 %v964
        %v1734 = vunpack.c.3.s8 %v964
        %v1735 = vunpack.c.0.s8 %v965
        %v1736 = vunpack.c.1.s8 %v965
        %v1737 = vunpack.c.2.s8 %v965
        %v1738 = vunpack.c.3.s8 %v965
        %v1739 = vunpack.c.0.s8 %v966
        %v1740 = vunpack.c.1.s8 %v966
        %v1741 = vunpack.c.2.s8 %v966
        %v1742 = vunpack.c.3.s8 %v966
        %v1743 = vunpack.c.0.s8 %v967
        %v1744 = vunpack.c.1.s8 %v967
        %v1745 = vunpack.c.2.s8 %v967
        %v1746 = vunpack.c.3.s8 %v967
        %v1747 = vunpack.c.0.s8 %v968
        %v1748 = vunpack.c.1.s8 %v968
        %v1749 = vunpack.c.2.s8 %v968
        %v1750 = vunpack.c.3.s8 %v968
        %v1751 = vunpack.c.0.s8 %v969
        %v1752 = vunpack.c.1.s8 %v969
        %v1753 = vunpack.c.2.s8 %v969
        %v1754 = vunpack.c.3.s8 %v969
        %v1755 = vunpack.c.0.s8 %v970
        %v1756 = vunpack.c.1.s8 %v970
        %v1757 = vunpack.c.2.s8 %v970
        %v1758 = vunpack.c.3.s8 %v970
        %v1759 = vunpack.c.0.s8 %v971
        %v1760 = vunpack.c.1.s8 %v971
        %v1761 = vunpack.c.2.s8 %v971
        %v1762 = vunpack.c.3.s8 %v971
        %v1763 = vunpack.c.0.s8 %v972
        %v1764 = vunpack.c.1.s8 %v972
        %v1765 = vunpack.c.2.s8 %v972
        %v1766 = vunpack.c.3.s8 %v972
        %v1767 = vunpack.c.0.s8 %v973
        %v1768 = vunpack.c.1.s8 %v973
        %v1769 = vunpack.c.2.s8 %v973
        %v1770 = vunpack.c.3.s8 %v973
        %v1771 = vunpack.c.0.s8 %v974
        %v1772 = vunpack.c.1.s8 %v974
        %v1773 = vunpack.c.2.s8 %v974
        %v1774 = vunpack.c.3.s8 %v974
        %v1775 = vcvt.s32.f32 %v975
        %v1776 = vcvt.s32.f32 %v976
        %v1777 = vcvt.s32.f32 %v977
        %v1778 = vcvt.s32.f32 %v978
        %v1779 = vcvt.s32.f32 %v979
        %v1780 = vcvt.s32.f32 %v980
        %v1781 = vcvt.s32.f32 %v981
        %v1782 = vcvt.s32.f32 %v982
        %v1783 = vcvt.s32.f32 %v983
        %v1784 = vcvt.s32.f32 %v984
        %v1785 = vcvt.s32.f32 %v985
        %v1786 = vcvt.s32.f32 %v986
        %v1787 = vcvt.s32.f32 %v987
        %v1788 = vcvt.s32.f32 %v988
        %v1789 = vcvt.s32.f32 %v989
        %v1790 = vcvt.s32.f32 %v990
        %v1791 = vcvt.s32.f32 %v991
        %v1792 = vcvt.s32.f32 %v992
        %v1793 = vcvt.s32.f32 %v993
        %v1794 = vcvt.s32.f32 %v994
        %v1795 = vcvt.s32.f32 %v995
        %v1796 = vcvt.s32.f32 %v996
        %v1797 = vcvt.s32.f32 %v997
        %v1798 = vcvt.s32.f32 %v998
        %v1799 = vcvt.s32.f32 %v999
        %v1800 = vcvt.s32.f32 %v1000
        %v1801 = vcvt.s32.f32 %v1001
        %v1802 = vcvt.s32.f32 %v1002
        %v1803 = vcvt.s32.f32 %v1003
        %v1804 = vcvt.s32.f32 %v1004
        %v1805 = vcvt.s32.f32 %v1005
        %v1806 = vcvt.s32.f32 %v1006
        %v1807 = vcvt.s32.f32 %v1007
        %v1808 = vcvt.s32.f32 %v1008
        %v1809 = vcvt.s32.f32 %v1009
        %v1810 = vcvt.s32.f32 %v1010
        %v1811 = vcvt.s32.f32 %v1011
        %v1812 = vcvt.s32.f32 %v1012
        %v1813 = vcvt.s32.f32 %v1013
        %v1814 = vcvt.s32.f32 %v1014
        %v1815 = vcvt.s32.f32 %v1015
        %v1816 = vcvt.s32.f32 %v1016
        %v1817 = vcvt.s32.f32 %v1017
        %v1818 = vcvt.s32.f32 %v1018
        %v1819 = vcvt.s32.f32 %v1019
        %v1820 = vcvt.s32.f32 %v1020
        %v1821 = vcvt.s32.f32 %v1021
        %v1822 = vcvt.s32.f32 %v1022
        %v1823 = vcvt.s32.f32 %v1023
        %v1824 = vcvt.s32.f32 %v1024
        %v1825 = vcvt.s32.f32 %v1025
        %v1826 = vcvt.s32.f32 %v1026
        %v1827 = vcvt.s32.f32 %v1027
        %v1828 = vcvt.s32.f32 %v1028
        %v1829 = vcvt.s32.f32 %v1029
        %v1830 = vcvt.s32.f32 %v1030
        %v1831 = vcvt.s32.f32 %v1031
        %v1832 = vcvt.s32.f32 %v1032
        %v1833 = vcvt.s32.f32 %v1033
        %v1834 = vcvt.s32.f32 %v1034
        %v1835 = vcvt.s32.f32 %v1035
        %v1836 = vcvt.s32.f32 %v1036
        %v1837 = vcvt.s32.f32 %v1037
        %v1838 = vcvt.s32.f32 %v1038
        %v1839 = vcvt.s32.f32 %v1039
        %v1840 = vcvt.s32.f32 %v1040
        %v1841 = vcvt.s32.f32 %v1041
        %v1842 = vcvt.s32.f32 %v1042
        %v1843 = vcvt.s32.f32 %v1043
        %v1844 = vcvt.s32.f32 %v1044
        %v1845 = vcvt.s32.f32 %v1045
        %v1846 = vcvt.s32.f32 %v1046
        %v1847 = vcvt.s32.f32 %v1047
        %v1848 = vcvt.s32.f32 %v1048
        %v1849 = vcvt.s32.f32 %v1049
        %v1850 = vcvt.s32.f32 %v1050
        %v1851 = vcvt.s32.f32 %v1051
        %v1852 = vcvt.s32.f32 %v1052
        %v1853 = vcvt.s32.f32 %v1053
        %v1854 = vcvt.s32.f32 %v1054
        %v1855 = vcvt.s32.f32 %v1055
        %v1856 = vcvt.s32.f32 %v1056
        %v1857 = vcvt.s32.f32 %v1057
        %v1858 = vcvt.s32.f32 %v1058
        %v1859 = vcvt.s32.f32 %v1059
        %v1860 = vcvt.s32.f32 %v1060
        %v1861 = vcvt.s32.f32 %v1061
        %v1862 = vcvt.s32.f32 %v1062
        %v1863 = vcvt.s32.f32 %v1063
        %v1864 = vcvt.s32.f32 %v1064
        %v1865 = vcvt.s32.f32 %v1065
        %v1866 = vcvt.s32.f32 %v1066
        %v1867 = vcvt.s32.f32 %v1067
        %v1868 = vcvt.s32.f32 %v1068
        %v1869 = vcvt.s32.f32 %v1069
        %v1870 = vcvt.s32.f32 %v1070
        %v1871 = vcvt.s32.f32 %v1071
        %v1872 = vcvt.s32.f32 %v1072
        %v1873 = vcvt.s32.f32 %v1073
        %v1874 = vcvt.s32.f32 %v1074
        %v1875 = vcvt.s32.f32 %v1075
        %v1876 = vcvt.s32.f32 %v1076
        %v1877 = vcvt.s32.f32 %v1077
        %v1878 = vcvt.s32.f32 %v1078
        %v1879 = vcvt.s32.f32 %v1079
        %v1880 = vcvt.s32.f32 %v1080
        %v1881 = vcvt.s32.f32 %v1081
        %v1882 = vcvt.s32.f32 %v1082
        %v1883 = vcvt.s32.f32 %v1083
        %v1884 = vcvt.s32.f32 %v1084
        %v1885 = vcvt.s32.f32 %v1085
        %v1886 = vcvt.s32.f32 %v1086
        %v1887 = vcvt.s32.f32 %v1087
        %v1888 = vcvt.s32.f32 %v1088
        %v1889 = vcvt.s32.f32 %v1089
        %v1890 = vcvt.s32.f32 %v1090
        %v1891 = vcvt.s32.f32 %v1091
        %v1892 = vcvt.s32.f32 %v1092
        %v1893 = vcvt.s32.f32 %v1093
        %v1894 = vcvt.s32.f32 %v1094
        %v1895 = vcvt.s32.f32 %v1095
        %v1896 = vcvt.s32.f32 %v1096
        %v1897 = vcvt.s32.f32 %v1097
        %v1898 = vcvt.s32.f32 %v1098
        %v1899 = vcvt.s32.f32 %v1099
        %v1900 = vcvt.s32.f32 %v1100
        %v1901 = vcvt.s32.f32 %v1101
        %v1902 = vcvt.s32.f32 %v1102
        %v1903 = vcvt.s32.f32 %v1103
        %v1904 = vcvt.s32.f32 %v1104
        %v1905 = vcvt.s32.f32 %v1105
        %v1906 = vcvt.s32.f32 %v1106
        %v1907 = vcvt.s32.f32 %v1107
        %v1908 = vcvt.s32.f32 %v1108
        %v1909 = vcvt.s32.f32 %v1109
        %v1910 = vcvt.s32.f32 %v1110
        %v1911 = vcvt.s32.f32 %v1111
        %v1912 = vcvt.s32.f32 %v1112
        %v1913 = vcvt.s32.f32 %v1113
        %v1914 = vcvt.s32.f32 %v1114
        %v1915 = vcvt.s32.f32 %v1115
        %v1916 = vcvt.s32.f32 %v1116
        %v1917 = vcvt.s32.f32 %v1117
        %v1918 = vcvt.s32.f32 %v1118
        %v1919 = vcvt.s32.f32 %v1119
        %v1920 = vcvt.s32.f32 %v1120
        %v1921 = vcvt.s32.f32 %v1121
        %v1922 = vcvt.s32.f32 %v1122
        %v1923 = vcvt.s32.f32 %v1123
        %v1924 = vcvt.s32.f32 %v1124
        %v1925 = vcvt.s32.f32 %v1125
        %v1926 = vcvt.s32.f32 %v1126
        %v1927 = vcvt.s32.f32 %v1127
        %v1928 = vcvt.s32.f32 %v1128
        %v1929 = vcvt.s32.f32 %v1129
        %v1930 = vcvt.s32.f32 %v1130
        %v1931 = vcvt.s32.f32 %v1131
        %v1932 = vcvt.s32.f32 %v1132
        %v1933 = vcvt.s32.f32 %v1133
        %v1934 = vcvt.s32.f32 %v1134
        %v1935 = vcvt.s32.f32 %v1135
        %v1936 = vcvt.s32.f32 %v1136
        %v1937 = vcvt.s32.f32 %v1137
        %v1938 = vcvt.s32.f32 %v1138
        %v1939 = vcvt.s32.f32 %v1139
        %v1940 = vcvt.s32.f32 %v1140
        %v1941 = vcvt.s32.f32 %v1141
        %v1942 = vcvt.s32.f32 %v1142
        %v1943 = vcvt.s32.f32 %v1143
        %v1944 = vcvt.s32.f32 %v1144
        %v1945 = vcvt.s32.f32 %v1145
        %v1946 = vcvt.s32.f32 %v1146
        %v1947 = vcvt.s32.f32 %v1147
        %v1948 = vcvt.s32.f32 %v1148
        %v1949 = vcvt.s32.f32 %v1149
        %v1950 = vcvt.s32.f32 %v1150
        %v1951 = vcvt.s32.f32 %v1151
        %v1952 = vcvt.s32.f32 %v1152
        %v1953 = vcvt.s32.f32 %v1153
        %v1954 = vcvt.s32.f32 %v1154
        %v1955 = vcvt.s32.f32 %v1155
        %v1956 = vcvt.s32.f32 %v1156
        %v1957 = vcvt.s32.f32 %v1157
        %v1958 = vcvt.s32.f32 %v1158
        %v1959 = vcvt.s32.f32 %v1159
        %v1960 = vcvt.s32.f32 %v1160
        %v1961 = vcvt.s32.f32 %v1161
        %v1962 = vcvt.s32.f32 %v1162
        %v1963 = vcvt.s32.f32 %v1163
        %v1964 = vcvt.s32.f32 %v1164
        %v1965 = vcvt.s32.f32 %v1165
        %v1966 = vcvt.s32.f32 %v1166
        %v1967 = vcvt.s32.f32 %v1167
        %v1968 = vcvt.s32.f32 %v1168
        %v1969 = vcvt.s32.f32 %v1169
        %v1970 = vcvt.s32.f32 %v1170
        %v1971 = vcvt.s32.f32 %v1171
        %v1972 = vcvt.s32.f32 %v1172
        %v1973 = vcvt.s32.f32 %v1173
        %v1974 = vcvt.s32.f32 %v1174
        %v1975 = vcvt.s32.f32 %v1175
        %v1976 = vcvt.s32.f32 %v1176
        %v1977 = vcvt.s32.f32 %v1177
        %v1978 = vcvt.s32.f32 %v1178
        %v1979 = vcvt.s32.f32 %v1179
        %v1980 = vcvt.s32.f32 %v1180
        %v1981 = vcvt.s32.f32 %v1181
        %v1982 = vcvt.s32.f32 %v1182
        %v1983 = vcvt.s32.f32 %v1183
        %v1984 = vcvt.s32.f32 %v1184
        %v1985 = vcvt.s32.f32 %v1185
        %v1986 = vcvt.s32.f32 %v1186
        %v1987 = vcvt.s32.f32 %v1187
        %v1988 = vcvt.s32.f32 %v1188
        %v1989 = vcvt.s32.f32 %v1189
        %v1990 = vcvt.s32.f32 %v1190
        %v1991 = vcvt.s32.f32 %v1191
        %v1992 = vcvt.s32.f32 %v1192
        %v1993 = vcvt.s32.f32 %v1193
        %v1994 = vcvt.s32.f32 %v1194
        %v1995 = vcvt.s32.f32 %v1195
        %v1996 = vcvt.s32.f32 %v1196
        %v1997 = vcvt.s32.f32 %v1197
        %v1998 = vcvt.s32.f32 %v1198
        %v1999 = vcvt.s32.f32 %v1199
        %v2000 = vcvt.s32.f32 %v1200
        %v2001 = vcvt.s32.f32 %v1201
        %v2002 = vcvt.s32.f32 %v1202
        %v2003 = vcvt.s32.f32 %v1203
        %v2004 = vcvt.s32.f32 %v1204
        %v2005 = vcvt.s32.f32 %v1205
        %v2006 = vcvt.s32.f32 %v1206
        %v2007 = vcvt.s32.f32 %v1207
        %v2008 = vcvt.s32.f32 %v1208
        %v2009 = vcvt.s32.f32 %v1209
        %v2010 = vcvt.s32.f32 %v1210
        %v2011 = vcvt.s32.f32 %v1211
        %v2012 = vcvt.s32.f32 %v1212
        %v2013 = vcvt.s32.f32 %v1213
        %v2014 = vcvt.s32.f32 %v1214
        %v2015 = vcvt.s32.f32 %v1215
        %v2016 = vcvt.s32.f32 %v1216
        %v2017 = vcvt.s32.f32 %v1217
        %v2018 = vcvt.s32.f32 %v1218
        %v2019 = vcvt.s32.f32 %v1219
        %v2020 = vcvt.s32.f32 %v1220
        %v2021 = vcvt.s32.f32 %v1221
        %v2022 = vcvt.s32.f32 %v1222
        %v2023 = vcvt.s32.f32 %v1223
        %v2024 = vcvt.s32.f32 %v1224
        %v2025 = vcvt.s32.f32 %v1225
        %v2026 = vcvt.s32.f32 %v1226
        %v2027 = vcvt.s32.f32 %v1227
        %v2028 = vcvt.s32.f32 %v1228
        %v2029 = vcvt.s32.f32 %v1229
        %v2030 = vcvt.s32.f32 %v1230
        %v2031 = vcvt.s32.f32 %v1231
        %v2032 = vcvt.s32.f32 %v1232
        %v2033 = vcvt.s32.f32 %v1233
        %v2034 = vcvt.s32.f32 %v1234
        %v2035 = vcvt.s32.f32 %v1235
        %v2036 = vcvt.s32.f32 %v1236
        %v2037 = vcvt.s32.f32 %v1237
        %v2038 = vcvt.s32.f32 %v1238
        %v2039 = vcvt.s32.f32 %v1239
        %v2040 = vcvt.s32.f32 %v1240
        %v2041 = vcvt.s32.f32 %v1241
        %v2042 = vcvt.s32.f32 %v1242
        %v2043 = vcvt.s32.f32 %v1243
        %v2044 = vcvt.s32.f32 %v1244
        %v2045 = vcvt.s32.f32 %v1245
        %v2046 = vcvt.s32.f32 %v1246
        %v2047 = vcvt.s32.f32 %v1247
        %v2048 = vcvt.s32.f32 %v1248
        %v2049 = vcvt.s32.f32 %v1249
        %v2050 = vcvt.s32.f32 %v1250
        %v2051 = vcvt.s32.f32 %v1251
        %v2052 = vcvt.s32.f32 %v1252
        %v2053 = vcvt.s32.f32 %v1253
        %v2054 = vcvt.s32.f32 %v1254
        %v2055 = vcvt.s32.f32 %v1255
        %v2056 = vcvt.s32.f32 %v1256
        %v2057 = vcvt.s32.f32 %v1257
        %v2058 = vcvt.s32.f32 %v1258
        %v2059 = vcvt.s32.f32 %v1259
        %v2060 = vcvt.s32.f32 %v1260
        %v2061 = vcvt.s32.f32 %v1261
        %v2062 = vcvt.s32.f32 %v1262
        %v2063 = vcvt.s32.f32 %v1263
        %v2064 = vcvt.s32.f32 %v1264
        %v2065 = vcvt.s32.f32 %v1265
        %v2066 = vcvt.s32.f32 %v1266
        %v2067 = vcvt.s32.f32 %v1267
        %v2068 = vcvt.s32.f32 %v1268
        %v2069 = vcvt.s32.f32 %v1269
        %v2070 = vcvt.s32.f32 %v1270
        %v2071 = vcvt.s32.f32 %v1271
        %v2072 = vcvt.s32.f32 %v1272
        %v2073 = vcvt.s32.f32 %v1273
        %v2074 = vcvt.s32.f32 %v1274
        %v2075 = vcvt.s32.f32 %v1275
        %v2076 = vcvt.s32.f32 %v1276
        %v2077 = vcvt.s32.f32 %v1277
        %v2078 = vcvt.s32.f32 %v1278
        %v2079 = vcvt.s32.f32 %v1279
        %v2080 = vcvt.s32.f32 %v1280
        %v2081 = vcvt.s32.f32 %v1281
        %v2082 = vcvt.s32.f32 %v1282
        %v2083 = vcvt.s32.f32 %v1283
        %v2084 = vcvt.s32.f32 %v1284
        %v2085 = vcvt.s32.f32 %v1285
        %v2086 = vcvt.s32.f32 %v1286
        %v2087 = vcvt.s32.f32 %v1287
        %v2088 = vcvt.s32.f32 %v1288
        %v2089 = vcvt.s32.f32 %v1289
        %v2090 = vcvt.s32.f32 %v1290
        %v2091 = vcvt.s32.f32 %v1291
        %v2092 = vcvt.s32.f32 %v1292
        %v2093 = vcvt.s32.f32 %v1293
        %v2094 = vcvt.s32.f32 %v1294
        %v2095 = vcvt.s32.f32 %v1295
        %v2096 = vcvt.s32.f32 %v1296
        %v2097 = vcvt.s32.f32 %v1297
        %v2098 = vcvt.s32.f32 %v1298
        %v2099 = vcvt.s32.f32 %v1299
        %v2100 = vcvt.s32.f32 %v1300
        %v2101 = vcvt.s32.f32 %v1301
        %v2102 = vcvt.s32.f32 %v1302
        %v2103 = vcvt.s32.f32 %v1303
        %v2104 = vcvt.s32.f32 %v1304
        %v2105 = vcvt.s32.f32 %v1305
        %v2106 = vcvt.s32.f32 %v1306
        %v2107 = vcvt.s32.f32 %v1307
        %v2108 = vcvt.s32.f32 %v1308
        %v2109 = vcvt.s32.f32 %v1309
        %v2110 = vcvt.s32.f32 %v1310
        %v2111 = vcvt.s32.f32 %v1311
        %v2112 = vcvt.s32.f32 %v1312
        %v2113 = vcvt.s32.f32 %v1313
        %v2114 = vcvt.s32.f32 %v1314
        %v2115 = vcvt.s32.f32 %v1315
        %v2116 = vcvt.s32.f32 %v1316
        %v2117 = vcvt.s32.f32 %v1317
        %v2118 = vcvt.s32.f32 %v1318
        %v2119 = vcvt.s32.f32 %v1319
        %v2120 = vcvt.s32.f32 %v1320
        %v2121 = vcvt.s32.f32 %v1321
        %v2122 = vcvt.s32.f32 %v1322
        %v2123 = vcvt.s32.f32 %v1323
        %v2124 = vcvt.s32.f32 %v1324
        %v2125 = vcvt.s32.f32 %v1325
        %v2126 = vcvt.s32.f32 %v1326
        %v2127 = vcvt.s32.f32 %v1327
        %v2128 = vcvt.s32.f32 %v1328
        %v2129 = vcvt.s32.f32 %v1329
        %v2130 = vcvt.s32.f32 %v1330
        %v2131 = vcvt.s32.f32 %v1331
        %v2132 = vcvt.s32.f32 %v1332
        %v2133 = vcvt.s32.f32 %v1333
        %v2134 = vcvt.s32.f32 %v1334
        %v2135 = vcvt.s32.f32 %v1335
        %v2136 = vcvt.s32.f32 %v1336
        %v2137 = vcvt.s32.f32 %v1337
        %v2138 = vcvt.s32.f32 %v1338
        %v2139 = vcvt.s32.f32 %v1339
        %v2140 = vcvt.s32.f32 %v1340
        %v2141 = vcvt.s32.f32 %v1341
        %v2142 = vcvt.s32.f32 %v1342
        %v2143 = vcvt.s32.f32 %v1343
        %v2144 = vcvt.s32.f32 %v1344
        %v2145 = vcvt.s32.f32 %v1345
        %v2146 = vcvt.s32.f32 %v1346
        %v2147 = vcvt.s32.f32 %v1347
        %v2148 = vcvt.s32.f32 %v1348
        %v2149 = vcvt.s32.f32 %v1349
        %v2150 = vcvt.s32.f32 %v1350
        %v2151 = vcvt.s32.f32 %v1351
        %v2152 = vcvt.s32.f32 %v1352
        %v2153 = vcvt.s32.f32 %v1353
        %v2154 = vcvt.s32.f32 %v1354
        %v2155 = vcvt.s32.f32 %v1355
        %v2156 = vcvt.s32.f32 %v1356
        %v2157 = vcvt.s32.f32 %v1357
        %v2158 = vcvt.s32.f32 %v1358
        %v2159 = vcvt.s32.f32 %v1359
        %v2160 = vcvt.s32.f32 %v1360
        %v2161 = vcvt.s32.f32 %v1361
        %v2162 = vcvt.s32.f32 %v1362
        %v2163 = vcvt.s32.f32 %v1363
        %v2164 = vcvt.s32.f32 %v1364
        %v2165 = vcvt.s32.f32 %v1365
        %v2166 = vcvt.s32.f32 %v1366
        %v2167 = vcvt.s32.f32 %v1367
        %v2168 = vcvt.s32.f32 %v1368
        %v2169 = vcvt.s32.f32 %v1369
        %v2170 = vcvt.s32.f32 %v1370
        %v2171 = vcvt.s32.f32 %v1371
        %v2172 = vcvt.s32.f32 %v1372
        %v2173 = vcvt.s32.f32 %v1373
        %v2174 = vcvt.s32.f32 %v1374
        %v2175 = vcvt.s32.f32 %v1375
        %v2176 = vcvt.s32.f32 %v1376
        %v2177 = vcvt.s32.f32 %v1377
        %v2178 = vcvt.s32.f32 %v1378
        %v2179 = vcvt.s32.f32 %v1379
        %v2180 = vcvt.s32.f32 %v1380
        %v2181 = vcvt.s32.f32 %v1381
        %v2182 = vcvt.s32.f32 %v1382
        %v2183 = vcvt.s32.f32 %v1383
        %v2184 = vcvt.s32.f32 %v1384
        %v2185 = vcvt.s32.f32 %v1385
        %v2186 = vcvt.s32.f32 %v1386
        %v2187 = vcvt.s32.f32 %v1387
        %v2188 = vcvt.s32.f32 %v1388
        %v2189 = vcvt.s32.f32 %v1389
        %v2190 = vcvt.s32.f32 %v1390
        %v2191 = vcvt.s32.f32 %v1391
        %v2192 = vcvt.s32.f32 %v1392
        %v2193 = vcvt.s32.f32 %v1393
        %v2194 = vcvt.s32.f32 %v1394
        %v2195 = vcvt.s32.f32 %v1395
        %v2196 = vcvt.s32.f32 %v1396
        %v2197 = vcvt.s32.f32 %v1397
        %v2198 = vcvt.s32.f32 %v1398
        %v2199 = vcvt.s32.f32 %v1399
        %v2200 = vcvt.s32.f32 %v1400
        %v2201 = vcvt.s32.f32 %v1401
        %v2202 = vcvt.s32.f32 %v1402
        %v2203 = vcvt.s32.f32 %v1403
        %v2204 = vcvt.s32.f32 %v1404
        %v2205 = vcvt.s32.f32 %v1405
        %v2206 = vcvt.s32.f32 %v1406
        %v2207 = vcvt.s32.f32 %v1407
        %v2208 = vcvt.s32.f32 %v1408
        %v2209 = vcvt.s32.f32 %v1409
        %v2210 = vcvt.s32.f32 %v1410
        %v2211 = vcvt.s32.f32 %v1411
        %v2212 = vcvt.s32.f32 %v1412
        %v2213 = vcvt.s32.f32 %v1413
        %v2214 = vcvt.s32.f32 %v1414
        %v2215 = vcvt.s32.f32 %v1415
        %v2216 = vcvt.s32.f32 %v1416
        %v2217 = vcvt.s32.f32 %v1417
        %v2218 = vcvt.s32.f32 %v1418
        %v2219 = vcvt.s32.f32 %v1419
        %v2220 = vcvt.s32.f32 %v1420
        %v2221 = vcvt.s32.f32 %v1421
        %v2222 = vcvt.s32.f32 %v1422
        %v2223 = vcvt.s32.f32 %v1423
        %v2224 = vcvt.s32.f32 %v1424
        %v2225 = vcvt.s32.f32 %v1425
        %v2226 = vcvt.s32.f32 %v1426
        %v2227 = vcvt.s32.f32 %v1427
        %v2228 = vcvt.s32.f32 %v1428
        %v2229 = vcvt.s32.f32 %v1429
        %v2230 = vcvt.s32.f32 %v1430
        %v2231 = vcvt.s32.f32 %v1431
        %v2232 = vcvt.s32.f32 %v1432
        %v2233 = vcvt.s32.f32 %v1433
        %v2234 = vcvt.s32.f32 %v1434
        %v2235 = vcvt.s32.f32 %v1435
        %v2236 = vcvt.s32.f32 %v1436
        %v2237 = vcvt.s32.f32 %v1437
        %v2238 = vcvt.s32.f32 %v1438
        %v2239 = vcvt.s32.f32 %v1439
        %v2240 = vcvt.s32.f32 %v1440
        %v2241 = vcvt.s32.f32 %v1441
        %v2242 = vcvt.s32.f32 %v1442
        %v2243 = vcvt.s32.f32 %v1443
        %v2244 = vcvt.s32.f32 %v1444
        %v2245 = vcvt.s32.f32 %v1445
        %v2246 = vcvt.s32.f32 %v1446
        %v2247 = vcvt.s32.f32 %v1447
        %v2248 = vcvt.s32.f32 %v1448
        %v2249 = vcvt.s32.f32 %v1449
        %v2250 = vcvt.s32.f32 %v1450
        %v2251 = vcvt.s32.f32 %v1451
        %v2252 = vcvt.s32.f32 %v1452
        %v2253 = vcvt.s32.f32 %v1453
        %v2254 = vcvt.s32.f32 %v1454
        %v2255 = vcvt.s32.f32 %v1455
        %v2256 = vcvt.s32.f32 %v1456
        %v2257 = vcvt.s32.f32 %v1457
        %v2258 = vcvt.s32.f32 %v1458
        %v2259 = vcvt.s32.f32 %v1459
        %v2260 = vcvt.s32.f32 %v1460
        %v2261 = vcvt.s32.f32 %v1461
        %v2262 = vcvt.s32.f32 %v1462
        %v2263 = vcvt.s32.f32 %v1463
        %v2264 = vcvt.s32.f32 %v1464
        %v2265 = vcvt.s32.f32 %v1465
        %v2266 = vcvt.s32.f32 %v1466
        %v2267 = vcvt.s32.f32 %v1467
        %v2268 = vcvt.s32.f32 %v1468
        %v2269 = vcvt.s32.f32 %v1469
        %v2270 = vcvt.s32.f32 %v1470
        %v2271 = vcvt.s32.f32 %v1471
        %v2272 = vcvt.s32.f32 %v1472
        %v2273 = vcvt.s32.f32 %v1473
        %v2274 = vcvt.s32.f32 %v1474
        %v2275 = vcvt.s32.f32 %v1475
        %v2276 = vcvt.s32.f32 %v1476
        %v2277 = vcvt.s32.f32 %v1477
        %v2278 = vcvt.s32.f32 %v1478
        %v2279 = vcvt.s32.f32 %v1479
        %v2280 = vcvt.s32.f32 %v1480
        %v2281 = vcvt.s32.f32 %v1481
        %v2282 = vcvt.s32.f32 %v1482
        %v2283 = vcvt.s32.f32 %v1483
        %v2284 = vcvt.s32.f32 %v1484
        %v2285 = vcvt.s32.f32 %v1485
        %v2286 = vcvt.s32.f32 %v1486
        %v2287 = vcvt.s32.f32 %v1487
        %v2288 = vcvt.s32.f32 %v1488
        %v2289 = vcvt.s32.f32 %v1489
        %v2290 = vcvt.s32.f32 %v1490
        %v2291 = vcvt.s32.f32 %v1491
        %v2292 = vcvt.s32.f32 %v1492
        %v2293 = vcvt.s32.f32 %v1493
        %v2294 = vcvt.s32.f32 %v1494
        %v2295 = vcvt.s32.f32 %v1495
        %v2296 = vcvt.s32.f32 %v1496
        %v2297 = vcvt.s32.f32 %v1497
        %v2298 = vcvt.s32.f32 %v1498
        %v2299 = vcvt.s32.f32 %v1499
        %v2300 = vcvt.s32.f32 %v1500
        %v2301 = vcvt.s32.f32 %v1501
        %v2302 = vcvt.s32.f32 %v1502
        %v2303 = vcvt.s32.f32 %v1503
        %v2304 = vcvt.s32.f32 %v1504
        %v2305 = vcvt.s32.f32 %v1505
        %v2306 = vcvt.s32.f32 %v1506
        %v2307 = vcvt.s32.f32 %v1507
        %v2308 = vcvt.s32.f32 %v1508
        %v2309 = vcvt.s32.f32 %v1509
        %v2310 = vcvt.s32.f32 %v1510
        %v2311 = vcvt.s32.f32 %v1511
        %v2312 = vcvt.s32.f32 %v1512
        %v2313 = vcvt.s32.f32 %v1513
        %v2314 = vcvt.s32.f32 %v1514
        %v2315 = vcvt.s32.f32 %v1515
        %v2316 = vcvt.s32.f32 %v1516
        %v2317 = vcvt.s32.f32 %v1517
        %v2318 = vcvt.s32.f32 %v1518
        %v2319 = vcvt.s32.f32 %v1519
        %v2320 = vcvt.s32.f32 %v1520
        %v2321 = vcvt.s32.f32 %v1521
        %v2322 = vcvt.s32.f32 %v1522
        %v2323 = vcvt.s32.f32 %v1523
        %v2324 = vcvt.s32.f32 %v1524
        %v2325 = vcvt.s32.f32 %v1525
        %v2326 = vcvt.s32.f32 %v1526
        %v2327 = vcvt.s32.f32 %v1527
        %v2328 = vcvt.s32.f32 %v1528
        %v2329 = vcvt.s32.f32 %v1529
        %v2330 = vcvt.s32.f32 %v1530
        %v2331 = vcvt.s32.f32 %v1531
        %v2332 = vcvt.s32.f32 %v1532
        %v2333 = vcvt.s32.f32 %v1533
        %v2334 = vcvt.s32.f32 %v1534
        %v2335 = vcvt.s32.f32 %v1535
        %v2336 = vcvt.s32.f32 %v1536
        %v2337 = vcvt.s32.f32 %v1537
        %v2338 = vcvt.s32.f32 %v1538
        %v2339 = vcvt.s32.f32 %v1539
        %v2340 = vcvt.s32.f32 %v1540
        %v2341 = vcvt.s32.f32 %v1541
        %v2342 = vcvt.s32.f32 %v1542
        %v2343 = vcvt.s32.f32 %v1543
        %v2344 = vcvt.s32.f32 %v1544
        %v2345 = vcvt.s32.f32 %v1545
        %v2346 = vcvt.s32.f32 %v1546
        %v2347 = vcvt.s32.f32 %v1547
        %v2348 = vcvt.s32.f32 %v1548
        %v2349 = vcvt.s32.f32 %v1549
        %v2350 = vcvt.s32.f32 %v1550
        %v2351 = vcvt.s32.f32 %v1551
        %v2352 = vcvt.s32.f32 %v1552
        %v2353 = vcvt.s32.f32 %v1553
        %v2354 = vcvt.s32.f32 %v1554
        %v2355 = vcvt.s32.f32 %v1555
        %v2356 = vcvt.s32.f32 %v1556
        %v2357 = vcvt.s32.f32 %v1557
        %v2358 = vcvt.s32.f32 %v1558
        %v2359 = vcvt.s32.f32 %v1559
        %v2360 = vcvt.s32.f32 %v1560
        %v2361 = vcvt.s32.f32 %v1561
        %v2362 = vcvt.s32.f32 %v1562
        %v2363 = vcvt.s32.f32 %v1563
        %v2364 = vcvt.s32.f32 %v1564
        %v2365 = vcvt.s32.f32 %v1565
        %v2366 = vcvt.s32.f32 %v1566
        %v2367 = vcvt.s32.f32 %v1567
        %v2368 = vcvt.s32.f32 %v1568
        %v2369 = vcvt.s32.f32 %v1569
        %v2370 = vcvt.s32.f32 %v1570
        %v2371 = vcvt.s32.f32 %v1571
        %v2372 = vcvt.s32.f32 %v1572
        %v2373 = vcvt.s32.f32 %v1573
        %v2374 = vcvt.s32.f32 %v1574
        %v2375 = vcvt.s32.f32 %v1575
        %v2376 = vcvt.s32.f32 %v1576
        %v2377 = vcvt.s32.f32 %v1577
        %v2378 = vcvt.s32.f32 %v1578
        %v2379 = vcvt.s32.f32 %v1579
        %v2380 = vcvt.s32.f32 %v1580
        %v2381 = vcvt.s32.f32 %v1581
        %v2382 = vcvt.s32.f32 %v1582
        %v2383 = vcvt.s32.f32 %v1583
        %v2384 = vcvt.s32.f32 %v1584
        %v2385 = vcvt.s32.f32 %v1585
        %v2386 = vcvt.s32.f32 %v1586
        %v2387 = vcvt.s32.f32 %v1587
        %v2388 = vcvt.s32.f32 %v1588
        %v2389 = vcvt.s32.f32 %v1589
        %v2390 = vcvt.s32.f32 %v1590
        %v2391 = vcvt.s32.f32 %v1591
        %v2392 = vcvt.s32.f32 %v1592
        %v2393 = vcvt.s32.f32 %v1593
        %v2394 = vcvt.s32.f32 %v1594
        %v2395 = vcvt.s32.f32 %v1595
        %v2396 = vcvt.s32.f32 %v1596
        %v2397 = vcvt.s32.f32 %v1597
        %v2398 = vcvt.s32.f32 %v1598
        %v2399 = vcvt.s32.f32 %v1599
        %v2400 = vcvt.s32.f32 %v1600
        %v2401 = vcvt.s32.f32 %v1601
        %v2402 = vcvt.s32.f32 %v1602
        %v2403 = vcvt.s32.f32 %v1603
        %v2404 = vcvt.s32.f32 %v1604
        %v2405 = vcvt.s32.f32 %v1605
        %v2406 = vcvt.s32.f32 %v1606
        %v2407 = vcvt.s32.f32 %v1607
        %v2408 = vcvt.s32.f32 %v1608
        %v2409 = vcvt.s32.f32 %v1609
        %v2410 = vcvt.s32.f32 %v1610
        %v2411 = vcvt.s32.f32 %v1611
        %v2412 = vcvt.s32.f32 %v1612
        %v2413 = vcvt.s32.f32 %v1613
        %v2414 = vcvt.s32.f32 %v1614
        %v2415 = vcvt.s32.f32 %v1615
        %v2416 = vcvt.s32.f32 %v1616
        %v2417 = vcvt.s32.f32 %v1617
        %v2418 = vcvt.s32.f32 %v1618
        %v2419 = vcvt.s32.f32 %v1619
        %v2420 = vcvt.s32.f32 %v1620
        %v2421 = vcvt.s32.f32 %v1621
        %v2422 = vcvt.s32.f32 %v1622
        %v2423 = vcvt.s32.f32 %v1623
        %v2424 = vcvt.s32.f32 %v1624
        %v2425 = vcvt.s32.f32 %v1625
        %v2426 = vcvt.s32.f32 %v1626
        %v2427 = vcvt.s32.f32 %v1627
        %v2428 = vcvt.s32.f32 %v1628
        %v2429 = vcvt.s32.f32 %v1629
        %v2430 = vcvt.s32.f32 %v1630
        %v2431 = vcvt.s32.f32 %v1631
        %v2432 = vcvt.s32.f32 %v1632
        %v2433 = vcvt.s32.f32 %v1633
        %v2434 = vcvt.s32.f32 %v1634
        %v2435 = vcvt.s32.f32 %v1635
        %v2436 = vcvt.s32.f32 %v1636
        %v2437 = vcvt.s32.f32 %v1637
        %v2438 = vcvt.s32.f32 %v1638
        %v2439 = vcvt.s32.f32 %v1639
        %v2440 = vcvt.s32.f32 %v1640
        %v2441 = vcvt.s32.f32 %v1641
        %v2442 = vcvt.s32.f32 %v1642
        %v2443 = vcvt.s32.f32 %v1643
        %v2444 = vcvt.s32.f32 %v1644
        %v2445 = vcvt.s32.f32 %v1645
        %v2446 = vcvt.s32.f32 %v1646
        %v2447 = vcvt.s32.f32 %v1647
        %v2448 = vcvt.s32.f32 %v1648
        %v2449 = vcvt.s32.f32 %v1649
        %v2450 = vcvt.s32.f32 %v1650
        %v2451 = vcvt.s32.f32 %v1651
        %v2452 = vcvt.s32.f32 %v1652
        %v2453 = vcvt.s32.f32 %v1653
        %v2454 = vcvt.s32.f32 %v1654
        %v2455 = vcvt.s32.f32 %v1655
        %v2456 = vcvt.s32.f32 %v1656
        %v2457 = vcvt.s32.f32 %v1657
        %v2458 = vcvt.s32.f32 %v1658
        %v2459 = vcvt.s32.f32 %v1659
        %v2460 = vcvt.s32.f32 %v1660
        %v2461 = vcvt.s32.f32 %v1661
        %v2462 = vcvt.s32.f32 %v1662
        %v2463 = vcvt.s32.f32 %v1663
        %v2464 = vcvt.s32.f32 %v1664
        %v2465 = vcvt.s32.f32 %v1665
        %v2466 = vcvt.s32.f32 %v1666
        %v2467 = vcvt.s32.f32 %v1667
        %v2468 = vcvt.s32.f32 %v1668
        %v2469 = vcvt.s32.f32 %v1669
        %v2470 = vcvt.s32.f32 %v1670
        %v2471 = vcvt.s32.f32 %v1671
        %v2472 = vcvt.s32.f32 %v1672
        %v2473 = vcvt.s32.f32 %v1673
        %v2474 = vcvt.s32.f32 %v1674
        %v2475 = vcvt.s32.f32 %v1675
        %v2476 = vcvt.s32.f32 %v1676
        %v2477 = vcvt.s32.f32 %v1677
        %v2478 = vcvt.s32.f32 %v1678
        %v2479 = vcvt.s32.f32 %v1679
        %v2480 = vcvt.s32.f32 %v1680
        %v2481 = vcvt.s32.f32 %v1681
        %v2482 = vcvt.s32.f32 %v1682
        %v2483 = vcvt.s32.f32 %v1683
        %v2484 = vcvt.s32.f32 %v1684
        %v2485 = vcvt.s32.f32 %v1685
        %v2486 = vcvt.s32.f32 %v1686
        %v2487 = vcvt.s32.f32 %v1687
        %v2488 = vcvt.s32.f32 %v1688
        %v2489 = vcvt.s32.f32 %v1689
        %v2490 = vcvt.s32.f32 %v1690
        %v2491 = vcvt.s32.f32 %v1691
        %v2492 = vcvt.s32.f32 %v1692
        %v2493 = vcvt.s32.f32 %v1693
        %v2494 = vcvt.s32.f32 %v1694
        %v2495 = vcvt.s32.f32 %v1695
        %v2496 = vcvt.s32.f32 %v1696
        %v2497 = vcvt.s32.f32 %v1697
        %v2498 = vcvt.s32.f32 %v1698
        %v2499 = vcvt.s32.f32 %v1699
        %v2500 = vcvt.s32.f32 %v1700
        %v2501 = vcvt.s32.f32 %v1701
        %v2502 = vcvt.s32.f32 %v1702
        %v2503 = vcvt.s32.f32 %v1703
        %v2504 = vcvt.s32.f32 %v1704
        %v2505 = vcvt.s32.f32 %v1705
        %v2506 = vcvt.s32.f32 %v1706
        %v2507 = vcvt.s32.f32 %v1707
        %v2508 = vcvt.s32.f32 %v1708
        %v2509 = vcvt.s32.f32 %v1709
        %v2510 = vcvt.s32.f32 %v1710
        %v2511 = vcvt.s32.f32 %v1711
        %v2512 = vcvt.s32.f32 %v1712
        %v2513 = vcvt.s32.f32 %v1713
        %v2514 = vcvt.s32.f32 %v1714
        %v2515 = vcvt.s32.f32 %v1715
        %v2516 = vcvt.s32.f32 %v1716
        %v2517 = vcvt.s32.f32 %v1717
        %v2518 = vcvt.s32.f32 %v1718
        %v2519 = vcvt.s32.f32 %v1719
        %v2520 = vcvt.s32.f32 %v1720
        %v2521 = vcvt.s32.f32 %v1721
        %v2522 = vcvt.s32.f32 %v1722
        %v2523 = vcvt.s32.f32 %v1723
        %v2524 = vcvt.s32.f32 %v1724
        %v2525 = vcvt.s32.f32 %v1725
        %v2526 = vcvt.s32.f32 %v1726
        %v2527 = vcvt.s32.f32 %v1727
        %v2528 = vcvt.s32.f32 %v1728
        %v2529 = vcvt.s32.f32 %v1729
        %v2530 = vcvt.s32.f32 %v1730
        %v2531 = vcvt.s32.f32 %v1731
        %v2532 = vcvt.s32.f32 %v1732
        %v2533 = vcvt.s32.f32 %v1733
        %v2534 = vcvt.s32.f32 %v1734
        %v2535 = vcvt.s32.f32 %v1735
        %v2536 = vcvt.s32.f32 %v1736
        %v2537 = vcvt.s32.f32 %v1737
        %v2538 = vcvt.s32.f32 %v1738
        %v2539 = vcvt.s32.f32 %v1739
        %v2540 = vcvt.s32.f32 %v1740
        %v2541 = vcvt.s32.f32 %v1741
        %v2542 = vcvt.s32.f32 %v1742
        %v2543 = vcvt.s32.f32 %v1743
        %v2544 = vcvt.s32.f32 %v1744
        %v2545 = vcvt.s32.f32 %v1745
        %v2546 = vcvt.s32.f32 %v1746
        %v2547 = vcvt.s32.f32 %v1747
        %v2548 = vcvt.s32.f32 %v1748
        %v2549 = vcvt.s32.f32 %v1749
        %v2550 = vcvt.s32.f32 %v1750
        %v2551 = vcvt.s32.f32 %v1751
        %v2552 = vcvt.s32.f32 %v1752
        %v2553 = vcvt.s32.f32 %v1753
        %v2554 = vcvt.s32.f32 %v1754
        %v2555 = vcvt.s32.f32 %v1755
        %v2556 = vcvt.s32.f32 %v1756
        %v2557 = vcvt.s32.f32 %v1757
        %v2558 = vcvt.s32.f32 %v1758
        %v2559 = vcvt.s32.f32 %v1759
        %v2560 = vcvt.s32.f32 %v1760
        %v2561 = vcvt.s32.f32 %v1761
        %v2562 = vcvt.s32.f32 %v1762
        %v2563 = vcvt.s32.f32 %v1763
        %v2564 = vcvt.s32.f32 %v1764
        %v2565 = vcvt.s32.f32 %v1765
        %v2566 = vcvt.s32.f32 %v1766
        %v2567 = vcvt.s32.f32 %v1767
        %v2568 = vcvt.s32.f32 %v1768
        %v2569 = vcvt.s32.f32 %v1769
        %v2570 = vcvt.s32.f32 %v1770
        %v2571 = vcvt.s32.f32 %v1771
        %v2572 = vcvt.s32.f32 %v1772
        %v2573 = vcvt.s32.f32 %v1773
        %v2574 = vcvt.s32.f32 %v1774
        %v2575 = vpack.c.bf16 %v1791, %v1775
        %v2576 = vpack.c.bf16 %v1792, %v1776
        %v2577 = vpack.c.bf16 %v1793, %v1777
        %v2578 = vpack.c.bf16 %v1794, %v1778
        %v2579 = vpack.c.bf16 %v1795, %v1779
        %v2580 = vpack.c.bf16 %v1796, %v1780
        %v2581 = vpack.c.bf16 %v1797, %v1781
        %v2582 = vpack.c.bf16 %v1798, %v1782
        %v2583 = vpack.c.bf16 %v1799, %v1783
        %v2584 = vpack.c.bf16 %v1800, %v1784
        %v2585 = vpack.c.bf16 %v1801, %v1785
        %v2586 = vpack.c.bf16 %v1802, %v1786
        %v2587 = vpack.c.bf16 %v1803, %v1787
        %v2588 = vpack.c.bf16 %v1804, %v1788
        %v2589 = vpack.c.bf16 %v1805, %v1789
        %v2590 = vpack.c.bf16 %v1806, %v1790
        %v2591 = vpack.c.bf16 %v1823, %v1807
        %v2592 = vpack.c.bf16 %v1824, %v1808
        %v2593 = vpack.c.bf16 %v1825, %v1809
        %v2594 = vpack.c.bf16 %v1826, %v1810
        %v2595 = vpack.c.bf16 %v1827, %v1811
        %v2596 = vpack.c.bf16 %v1828, %v1812
        %v2597 = vpack.c.bf16 %v1829, %v1813
        %v2598 = vpack.c.bf16 %v1830, %v1814
        %v2599 = vpack.c.bf16 %v1831, %v1815
        %v2600 = vpack.c.bf16 %v1832, %v1816
        %v2601 = vpack.c.bf16 %v1833, %v1817
        %v2602 = vpack.c.bf16 %v1834, %v1818
        %v2603 = vpack.c.bf16 %v1835, %v1819
        %v2604 = vpack.c.bf16 %v1836, %v1820
        %v2605 = vpack.c.bf16 %v1837, %v1821
        %v2606 = vpack.c.bf16 %v1838, %v1822
        %v2607 = vpack.c.bf16 %v1855, %v1839
        %v2608 = vpack.c.bf16 %v1856, %v1840
        %v2609 = vpack.c.bf16 %v1857, %v1841
        %v2610 = vpack.c.bf16 %v1858, %v1842
        %v2611 = vpack.c.bf16 %v1859, %v1843
        %v2612 = vpack.c.bf16 %v1860, %v1844
        %v2613 = vpack.c.bf16 %v1861, %v1845
        %v2614 = vpack.c.bf16 %v1862, %v1846
        %v2615 = vpack.c.bf16 %v1863, %v1847
        %v2616 = vpack.c.bf16 %v1864, %v1848
        %v2617 = vpack.c.bf16 %v1865, %v1849
        %v2618 = vpack.c.bf16 %v1866, %v1850
        %v2619 = vpack.c.bf16 %v1867, %v1851
        %v2620 = vpack.c.bf16 %v1868, %v1852
        %v2621 = vpack.c.bf16 %v1869, %v1853
        %v2622 = vpack.c.bf16 %v1870, %v1854
        %v2623 = vpack.c.bf16 %v1887, %v1871
        %v2624 = vpack.c.bf16 %v1888, %v1872
        %v2625 = vpack.c.bf16 %v1889, %v1873
        %v2626 = vpack.c.bf16 %v1890, %v1874
        %v2627 = vpack.c.bf16 %v1891, %v1875
        %v2628 = vpack.c.bf16 %v1892, %v1876
        %v2629 = vpack.c.bf16 %v1893, %v1877
        %v2630 = vpack.c.bf16 %v1894, %v1878
        %v2631 = vpack.c.bf16 %v1895, %v1879
        %v2632 = vpack.c.bf16 %v1896, %v1880
        %v2633 = vpack.c.bf16 %v1897, %v1881
        %v2634 = vpack.c.bf16 %v1898, %v1882
        %v2635 = vpack.c.bf16 %v1899, %v1883
        %v2636 = vpack.c.bf16 %v1900, %v1884
        %v2637 = vpack.c.bf16 %v1901, %v1885
        %v2638 = vpack.c.bf16 %v1902, %v1886
        %v2639 = vpack.c.bf16 %v1919, %v1903
        %v2640 = vpack.c.bf16 %v1920, %v1904
        %v2641 = vpack.c.bf16 %v1921, %v1905
        %v2642 = vpack.c.bf16 %v1922, %v1906
        %v2643 = vpack.c.bf16 %v1923, %v1907
        %v2644 = vpack.c.bf16 %v1924, %v1908
        %v2645 = vpack.c.bf16 %v1925, %v1909
        %v2646 = vpack.c.bf16 %v1926, %v1910
        %v2647 = vpack.c.bf16 %v1927, %v1911
        %v2648 = vpack.c.bf16 %v1928, %v1912
        %v2649 = vpack.c.bf16 %v1929, %v1913
        %v2650 = vpack.c.bf16 %v1930, %v1914
        %v2651 = vpack.c.bf16 %v1931, %v1915
        %v2652 = vpack.c.bf16 %v1932, %v1916
        %v2653 = vpack.c.bf16 %v1933, %v1917
        %v2654 = vpack.c.bf16 %v1934, %v1918
        %v2655 = vpack.c.bf16 %v1951, %v1935
        %v2656 = vpack.c.bf16 %v1952, %v1936
        %v2657 = vpack.c.bf16 %v1953, %v1937
        %v2658 = vpack.c.bf16 %v1954, %v1938
        %v2659 = vpack.c.bf16 %v1955, %v1939
        %v2660 = vpack.c.bf16 %v1956, %v1940
        %v2661 = vpack.c.bf16 %v1957, %v1941
        %v2662 = vpack.c.bf16 %v1958, %v1942
        %v2663 = vpack.c.bf16 %v1959, %v1943
        %v2664 = vpack.c.bf16 %v1960, %v1944
        %v2665 = vpack.c.bf16 %v1961, %v1945
        %v2666 = vpack.c.bf16 %v1962, %v1946
        %v2667 = vpack.c.bf16 %v1963, %v1947
        %v2668 = vpack.c.bf16 %v1964, %v1948
        %v2669 = vpack.c.bf16 %v1965, %v1949
        %v2670 = vpack.c.bf16 %v1966, %v1950
        %v2671 = vpack.c.bf16 %v1983, %v1967
        %v2672 = vpack.c.bf16 %v1984, %v1968
        %v2673 = vpack.c.bf16 %v1985, %v1969
        %v2674 = vpack.c.bf16 %v1986, %v1970
        %v2675 = vpack.c.bf16 %v1987, %v1971
        %v2676 = vpack.c.bf16 %v1988, %v1972
        %v2677 = vpack.c.bf16 %v1989, %v1973
        %v2678 = vpack.c.bf16 %v1990, %v1974
        %v2679 = vpack.c.bf16 %v1991, %v1975
        %v2680 = vpack.c.bf16 %v1992, %v1976
        %v2681 = vpack.c.bf16 %v1993, %v1977
        %v2682 = vpack.c.bf16 %v1994, %v1978
        %v2683 = vpack.c.bf16 %v1995, %v1979
        %v2684 = vpack.c.bf16 %v1996, %v1980
        %v2685 = vpack.c.bf16 %v1997, %v1981
        %v2686 = vpack.c.bf16 %v1998, %v1982
        %v2687 = vpack.c.bf16 %v2015, %v1999
        %v2688 = vpack.c.bf16 %v2016, %v2000
        %v2689 = vpack.c.bf16 %v2017, %v2001
        %v2690 = vpack.c.bf16 %v2018, %v2002
        %v2691 = vpack.c.bf16 %v2019, %v2003
        %v2692 = vpack.c.bf16 %v2020, %v2004
        %v2693 = vpack.c.bf16 %v2021, %v2005
        %v2694 = vpack.c.bf16 %v2022, %v2006
        %v2695 = vpack.c.bf16 %v2023, %v2007
        %v2696 = vpack.c.bf16 %v2024, %v2008
        %v2697 = vpack.c.bf16 %v2025, %v2009
        %v2698 = vpack.c.bf16 %v2026, %v2010
        %v2699 = vpack.c.bf16 %v2027, %v2011
        %v2700 = vpack.c.bf16 %v2028, %v2012
        %v2701 = vpack.c.bf16 %v2029, %v2013
        %v2702 = vpack.c.bf16 %v2030, %v2014
        %v2703 = vpack.c.bf16 %v2047, %v2031
        %v2704 = vpack.c.bf16 %v2048, %v2032
        %v2705 = vpack.c.bf16 %v2049, %v2033
        %v2706 = vpack.c.bf16 %v2050, %v2034
        %v2707 = vpack.c.bf16 %v2051, %v2035
        %v2708 = vpack.c.bf16 %v2052, %v2036
        %v2709 = vpack.c.bf16 %v2053, %v2037
        %v2710 = vpack.c.bf16 %v2054, %v2038
        %v2711 = vpack.c.bf16 %v2055, %v2039
        %v2712 = vpack.c.bf16 %v2056, %v2040
        %v2713 = vpack.c.bf16 %v2057, %v2041
        %v2714 = vpack.c.bf16 %v2058, %v2042
        %v2715 = vpack.c.bf16 %v2059, %v2043
        %v2716 = vpack.c.bf16 %v2060, %v2044
        %v2717 = vpack.c.bf16 %v2061, %v2045
        %v2718 = vpack.c.bf16 %v2062, %v2046
        %v2719 = vpack.c.bf16 %v2079, %v2063
        %v2720 = vpack.c.bf16 %v2080, %v2064
        %v2721 = vpack.c.bf16 %v2081, %v2065
        %v2722 = vpack.c.bf16 %v2082, %v2066
        %v2723 = vpack.c.bf16 %v2083, %v2067
        %v2724 = vpack.c.bf16 %v2084, %v2068
        %v2725 = vpack.c.bf16 %v2085, %v2069
        %v2726 = vpack.c.bf16 %v2086, %v2070
        %v2727 = vpack.c.bf16 %v2087, %v2071
        %v2728 = vpack.c.bf16 %v2088, %v2072
        %v2729 = vpack.c.bf16 %v2089, %v2073
        %v2730 = vpack.c.bf16 %v2090, %v2074
        %v2731 = vpack.c.bf16 %v2091, %v2075
        %v2732 = vpack.c.bf16 %v2092, %v2076
        %v2733 = vpack.c.bf16 %v2093, %v2077
        %v2734 = vpack.c.bf16 %v2094, %v2078
        %v2735 = vpack.c.bf16 %v2111, %v2095
        %v2736 = vpack.c.bf16 %v2112, %v2096
        %v2737 = vpack.c.bf16 %v2113, %v2097
        %v2738 = vpack.c.bf16 %v2114, %v2098
        %v2739 = vpack.c.bf16 %v2115, %v2099
        %v2740 = vpack.c.bf16 %v2116, %v2100
        %v2741 = vpack.c.bf16 %v2117, %v2101
        %v2742 = vpack.c.bf16 %v2118, %v2102
        %v2743 = vpack.c.bf16 %v2119, %v2103
        %v2744 = vpack.c.bf16 %v2120, %v2104
        %v2745 = vpack.c.bf16 %v2121, %v2105
        %v2746 = vpack.c.bf16 %v2122, %v2106
        %v2747 = vpack.c.bf16 %v2123, %v2107
        %v2748 = vpack.c.bf16 %v2124, %v2108
        %v2749 = vpack.c.bf16 %v2125, %v2109
        %v2750 = vpack.c.bf16 %v2126, %v2110
        %v2751 = vpack.c.bf16 %v2143, %v2127
        %v2752 = vpack.c.bf16 %v2144, %v2128
        %v2753 = vpack.c.bf16 %v2145, %v2129
        %v2754 = vpack.c.bf16 %v2146, %v2130
        %v2755 = vpack.c.bf16 %v2147, %v2131
        %v2756 = vpack.c.bf16 %v2148, %v2132
        %v2757 = vpack.c.bf16 %v2149, %v2133
        %v2758 = vpack.c.bf16 %v2150, %v2134
        %v2759 = vpack.c.bf16 %v2151, %v2135
        %v2760 = vpack.c.bf16 %v2152, %v2136
        %v2761 = vpack.c.bf16 %v2153, %v2137
        %v2762 = vpack.c.bf16 %v2154, %v2138
        %v2763 = vpack.c.bf16 %v2155, %v2139
        %v2764 = vpack.c.bf16 %v2156, %v2140
        %v2765 = vpack.c.bf16 %v2157, %v2141
        %v2766 = vpack.c.bf16 %v2158, %v2142
        %v2767 = vpack.c.bf16 %v2175, %v2159
        %v2768 = vpack.c.bf16 %v2176, %v2160
        %v2769 = vpack.c.bf16 %v2177, %v2161
        %v2770 = vpack.c.bf16 %v2178, %v2162
        %v2771 = vpack.c.bf16 %v2179, %v2163
        %v2772 = vpack.c.bf16 %v2180, %v2164
        %v2773 = vpack.c.bf16 %v2181, %v2165
        %v2774 = vpack.c.bf16 %v2182, %v2166
        %v2775 = vpack.c.bf16 %v2183, %v2167
        %v2776 = vpack.c.bf16 %v2184, %v2168
        %v2777 = vpack.c.bf16 %v2185, %v2169
        %v2778 = vpack.c.bf16 %v2186, %v2170
        %v2779 = vpack.c.bf16 %v2187, %v2171
        %v2780 = vpack.c.bf16 %v2188, %v2172
        %v2781 = vpack.c.bf16 %v2189, %v2173
        %v2782 = vpack.c.bf16 %v2190, %v2174
        %v2783 = vpack.c.bf16 %v2207, %v2191
        %v2784 = vpack.c.bf16 %v2208, %v2192
        %v2785 = vpack.c.bf16 %v2209, %v2193
        %v2786 = vpack.c.bf16 %v2210, %v2194
        %v2787 = vpack.c.bf16 %v2211, %v2195
        %v2788 = vpack.c.bf16 %v2212, %v2196
        %v2789 = vpack.c.bf16 %v2213, %v2197
        %v2790 = vpack.c.bf16 %v2214, %v2198
        %v2791 = vpack.c.bf16 %v2215, %v2199
        %v2792 = vpack.c.bf16 %v2216, %v2200
        %v2793 = vpack.c.bf16 %v2217, %v2201
        %v2794 = vpack.c.bf16 %v2218, %v2202
        %v2795 = vpack.c.bf16 %v2219, %v2203
        %v2796 = vpack.c.bf16 %v2220, %v2204
        %v2797 = vpack.c.bf16 %v2221, %v2205
        %v2798 = vpack.c.bf16 %v2222, %v2206
        %v2799 = vpack.c.bf16 %v2239, %v2223
        %v2800 = vpack.c.bf16 %v2240, %v2224
        %v2801 = vpack.c.bf16 %v2241, %v2225
        %v2802 = vpack.c.bf16 %v2242, %v2226
        %v2803 = vpack.c.bf16 %v2243, %v2227
        %v2804 = vpack.c.bf16 %v2244, %v2228
        %v2805 = vpack.c.bf16 %v2245, %v2229
        %v2806 = vpack.c.bf16 %v2246, %v2230
        %v2807 = vpack.c.bf16 %v2247, %v2231
        %v2808 = vpack.c.bf16 %v2248, %v2232
        %v2809 = vpack.c.bf16 %v2249, %v2233
        %v2810 = vpack.c.bf16 %v2250, %v2234
        %v2811 = vpack.c.bf16 %v2251, %v2235
        %v2812 = vpack.c.bf16 %v2252, %v2236
        %v2813 = vpack.c.bf16 %v2253, %v2237
        %v2814 = vpack.c.bf16 %v2254, %v2238
        %v2815 = vpack.c.bf16 %v2271, %v2255
        %v2816 = vpack.c.bf16 %v2272, %v2256
        %v2817 = vpack.c.bf16 %v2273, %v2257
        %v2818 = vpack.c.bf16 %v2274, %v2258
        %v2819 = vpack.c.bf16 %v2275, %v2259
        %v2820 = vpack.c.bf16 %v2276, %v2260
        %v2821 = vpack.c.bf16 %v2277, %v2261
        %v2822 = vpack.c.bf16 %v2278, %v2262
        %v2823 = vpack.c.bf16 %v2279, %v2263
        %v2824 = vpack.c.bf16 %v2280, %v2264
        %v2825 = vpack.c.bf16 %v2281, %v2265
        %v2826 = vpack.c.bf16 %v2282, %v2266
        %v2827 = vpack.c.bf16 %v2283, %v2267
        %v2828 = vpack.c.bf16 %v2284, %v2268
        %v2829 = vpack.c.bf16 %v2285, %v2269
        %v2830 = vpack.c.bf16 %v2286, %v2270
        %v2831 = vpack.c.bf16 %v2303, %v2287
        %v2832 = vpack.c.bf16 %v2304, %v2288
        %v2833 = vpack.c.bf16 %v2305, %v2289
        %v2834 = vpack.c.bf16 %v2306, %v2290
        %v2835 = vpack.c.bf16 %v2307, %v2291
        %v2836 = vpack.c.bf16 %v2308, %v2292
        %v2837 = vpack.c.bf16 %v2309, %v2293
        %v2838 = vpack.c.bf16 %v2310, %v2294
        %v2839 = vpack.c.bf16 %v2311, %v2295
        %v2840 = vpack.c.bf16 %v2312, %v2296
        %v2841 = vpack.c.bf16 %v2313, %v2297
        %v2842 = vpack.c.bf16 %v2314, %v2298
        %v2843 = vpack.c.bf16 %v2315, %v2299
        %v2844 = vpack.c.bf16 %v2316, %v2300
        %v2845 = vpack.c.bf16 %v2317, %v2301
        %v2846 = vpack.c.bf16 %v2318, %v2302
        %v2847 = vpack.c.bf16 %v2335, %v2319
        %v2848 = vpack.c.bf16 %v2336, %v2320
        %v2849 = vpack.c.bf16 %v2337, %v2321
        %v2850 = vpack.c.bf16 %v2338, %v2322
        %v2851 = vpack.c.bf16 %v2339, %v2323
        %v2852 = vpack.c.bf16 %v2340, %v2324
        %v2853 = vpack.c.bf16 %v2341, %v2325
        %v2854 = vpack.c.bf16 %v2342, %v2326
        %v2855 = vpack.c.bf16 %v2343, %v2327
        %v2856 = vpack.c.bf16 %v2344, %v2328
        %v2857 = vpack.c.bf16 %v2345, %v2329
        %v2858 = vpack.c.bf16 %v2346, %v2330
        %v2859 = vpack.c.bf16 %v2347, %v2331
        %v2860 = vpack.c.bf16 %v2348, %v2332
        %v2861 = vpack.c.bf16 %v2349, %v2333
        %v2862 = vpack.c.bf16 %v2350, %v2334
        %v2863 = vpack.c.bf16 %v2367, %v2351
        %v2864 = vpack.c.bf16 %v2368, %v2352
        %v2865 = vpack.c.bf16 %v2369, %v2353
        %v2866 = vpack.c.bf16 %v2370, %v2354
        %v2867 = vpack.c.bf16 %v2371, %v2355
        %v2868 = vpack.c.bf16 %v2372, %v2356
        %v2869 = vpack.c.bf16 %v2373, %v2357
        %v2870 = vpack.c.bf16 %v2374, %v2358
        %v2871 = vpack.c.bf16 %v2375, %v2359
        %v2872 = vpack.c.bf16 %v2376, %v2360
        %v2873 = vpack.c.bf16 %v2377, %v2361
        %v2874 = vpack.c.bf16 %v2378, %v2362
        %v2875 = vpack.c.bf16 %v2379, %v2363
        %v2876 = vpack.c.bf16 %v2380, %v2364
        %v2877 = vpack.c.bf16 %v2381, %v2365
        %v2878 = vpack.c.bf16 %v2382, %v2366
        %v2879 = vpack.c.bf16 %v2399, %v2383
        %v2880 = vpack.c.bf16 %v2400, %v2384
        %v2881 = vpack.c.bf16 %v2401, %v2385
        %v2882 = vpack.c.bf16 %v2402, %v2386
        %v2883 = vpack.c.bf16 %v2403, %v2387
        %v2884 = vpack.c.bf16 %v2404, %v2388
        %v2885 = vpack.c.bf16 %v2405, %v2389
        %v2886 = vpack.c.bf16 %v2406, %v2390
        %v2887 = vpack.c.bf16 %v2407, %v2391
        %v2888 = vpack.c.bf16 %v2408, %v2392
        %v2889 = vpack.c.bf16 %v2409, %v2393
        %v2890 = vpack.c.bf16 %v2410, %v2394
        %v2891 = vpack.c.bf16 %v2411, %v2395
        %v2892 = vpack.c.bf16 %v2412, %v2396
        %v2893 = vpack.c.bf16 %v2413, %v2397
        %v2894 = vpack.c.bf16 %v2414, %v2398
        %v2895 = vpack.c.bf16 %v2431, %v2415
        %v2896 = vpack.c.bf16 %v2432, %v2416
        %v2897 = vpack.c.bf16 %v2433, %v2417
        %v2898 = vpack.c.bf16 %v2434, %v2418
        %v2899 = vpack.c.bf16 %v2435, %v2419
        %v2900 = vpack.c.bf16 %v2436, %v2420
        %v2901 = vpack.c.bf16 %v2437, %v2421
        %v2902 = vpack.c.bf16 %v2438, %v2422
        %v2903 = vpack.c.bf16 %v2439, %v2423
        %v2904 = vpack.c.bf16 %v2440, %v2424
        %v2905 = vpack.c.bf16 %v2441, %v2425
        %v2906 = vpack.c.bf16 %v2442, %v2426
        %v2907 = vpack.c.bf16 %v2443, %v2427
        %v2908 = vpack.c.bf16 %v2444, %v2428
        %v2909 = vpack.c.bf16 %v2445, %v2429
        %v2910 = vpack.c.bf16 %v2446, %v2430
        %v2911 = vpack.c.bf16 %v2463, %v2447
        %v2912 = vpack.c.bf16 %v2464, %v2448
        %v2913 = vpack.c.bf16 %v2465, %v2449
        %v2914 = vpack.c.bf16 %v2466, %v2450
        %v2915 = vpack.c.bf16 %v2467, %v2451
        %v2916 = vpack.c.bf16 %v2468, %v2452
        %v2917 = vpack.c.bf16 %v2469, %v2453
        %v2918 = vpack.c.bf16 %v2470, %v2454
        %v2919 = vpack.c.bf16 %v2471, %v2455
        %v2920 = vpack.c.bf16 %v2472, %v2456
        %v2921 = vpack.c.bf16 %v2473, %v2457
        %v2922 = vpack.c.bf16 %v2474, %v2458
        %v2923 = vpack.c.bf16 %v2475, %v2459
        %v2924 = vpack.c.bf16 %v2476, %v2460
        %v2925 = vpack.c.bf16 %v2477, %v2461
        %v2926 = vpack.c.bf16 %v2478, %v2462
        %v2927 = vpack.c.bf16 %v2495, %v2479
        %v2928 = vpack.c.bf16 %v2496, %v2480
        %v2929 = vpack.c.bf16 %v2497, %v2481
        %v2930 = vpack.c.bf16 %v2498, %v2482
        %v2931 = vpack.c.bf16 %v2499, %v2483
        %v2932 = vpack.c.bf16 %v2500, %v2484
        %v2933 = vpack.c.bf16 %v2501, %v2485
        %v2934 = vpack.c.bf16 %v2502, %v2486
        %v2935 = vpack.c.bf16 %v2503, %v2487
        %v2936 = vpack.c.bf16 %v2504, %v2488
        %v2937 = vpack.c.bf16 %v2505, %v2489
        %v2938 = vpack.c.bf16 %v2506, %v2490
        %v2939 = vpack.c.bf16 %v2507, %v2491
        %v2940 = vpack.c.bf16 %v2508, %v2492
        %v2941 = vpack.c.bf16 %v2509, %v2493
        %v2942 = vpack.c.bf16 %v2510, %v2494
        %v2943 = vpack.c.bf16 %v2527, %v2511
        %v2944 = vpack.c.bf16 %v2528, %v2512
        %v2945 = vpack.c.bf16 %v2529, %v2513
        %v2946 = vpack.c.bf16 %v2530, %v2514
        %v2947 = vpack.c.bf16 %v2531, %v2515
        %v2948 = vpack.c.bf16 %v2532, %v2516
        %v2949 = vpack.c.bf16 %v2533, %v2517
        %v2950 = vpack.c.bf16 %v2534, %v2518
        %v2951 = vpack.c.bf16 %v2535, %v2519
        %v2952 = vpack.c.bf16 %v2536, %v2520
        %v2953 = vpack.c.bf16 %v2537, %v2521
        %v2954 = vpack.c.bf16 %v2538, %v2522
        %v2955 = vpack.c.bf16 %v2539, %v2523
        %v2956 = vpack.c.bf16 %v2540, %v2524
        %v2957 = vpack.c.bf16 %v2541, %v2525
        %v2958 = vpack.c.bf16 %v2542, %v2526
        %v2959 = vpack.c.bf16 %v2559, %v2543
        %v2960 = vpack.c.bf16 %v2560, %v2544
        %v2961 = vpack.c.bf16 %v2561, %v2545
        %v2962 = vpack.c.bf16 %v2562, %v2546
        %v2963 = vpack.c.bf16 %v2563, %v2547
        %v2964 = vpack.c.bf16 %v2564, %v2548
        %v2965 = vpack.c.bf16 %v2565, %v2549
        %v2966 = vpack.c.bf16 %v2566, %v2550
        %v2967 = vpack.c.bf16 %v2567, %v2551
        %v2968 = vpack.c.bf16 %v2568, %v2552
        %v2969 = vpack.c.bf16 %v2569, %v2553
        %v2970 = vpack.c.bf16 %v2570, %v2554
        %v2971 = vpack.c.bf16 %v2571, %v2555
        %v2972 = vpack.c.bf16 %v2572, %v2556
        %v2973 = vpack.c.bf16 %v2573, %v2557
        %v2974 = vpack.c.bf16 %v2574, %v2558
        %v2975 = vld [vmem:[%s0] sm:$0xf]
        %2977 = vst [vmem:[#allocation1] ss:$9 sm:$0xff] %v2975
        %v2978 = vld [vmem:[#allocation1] sm:$0xff]
        %v2979 = vld [vmem:[#allocation1 + $0x9] sm:$0xff]
        %v2980 = vld [vmem:[#allocation1 + $0x12] sm:$0xff]
        %v2981 = vld [vmem:[#allocation1 + $0x1b] sm:$0xff]
        %vm2985 = vcmask 130048
        %v2986 = vsel %vm2985, %v2981, 0
        %2988 = vmatpush.bf16.msra.mxu0 %v2687
        %2989 = vmatpush.bf16.msra.mxu0 %v2671
        %2990 = vmatpush.bf16.msra.mxu0 %v2655
        %2991 = vmatpush.bf16.msra.mxu0 %v2639
        %2992 = vmatpush.bf16.msra.mxu0 %v2623
        %2993 = vmatpush.bf16.msra.mxu0 %v2607
        %2994 = vmatpush.bf16.msra.mxu0 %v2591
        %2995 = vmatpush.bf16.msra.mxu0 %v2575
        %2996 = vmatmul.bf16.gmra.mxu0 %v2978
        %v2997 = vpop.f32.mrf.mxu0
        %v2998 = vadd.f32 0.0, %v2997
        %v2999 = vpop.f32.mrf.mxu0
        %3000 = vdwg.mxu0
        %3001 = vmatpush.bf16.msra.mxu0 %v2815
        %3002 = vmatpush.bf16.msra.mxu0 %v2799
        %3003 = vmatpush.bf16.msra.mxu0 %v2783
        %3004 = vmatpush.bf16.msra.mxu0 %v2767
        %3005 = vmatpush.bf16.msra.mxu0 %v2751
        %3006 = vmatpush.bf16.msra.mxu0 %v2735
        %3007 = vmatpush.bf16.msra.mxu0 %v2719
        %3008 = vmatpush.bf16.msra.mxu0 %v2703
        %3009 = vmatmul.bf16.gmra.mxu0 %v2979
        %v3010 = vpop.f32.mrf.mxu0
        %v3011 = vadd.f32 %v2998, %v3010
        %v3012 = vpop.f32.mrf.mxu0
        %3013 = vdwg.mxu0
        %3014 = vmatpush.bf16.msra.mxu0 %v2943
        %3015 = vmatpush.bf16.msra.mxu0 %v2927
        %3016 = vmatpush.bf16.msra.mxu0 %v2911
        %3017 = vmatpush.bf16.msra.mxu0 %v2895
        %3018 = vmatpush.bf16.msra.mxu0 %v2879
        %3019 = vmatpush.bf16.msra.mxu0 %v2863
        %3020 = vmatpush.bf16.msra.mxu0 %v2847
        %3021 = vmatpush.bf16.msra.mxu0 %v2831
        %3022 = vmatmul.bf16.gmra.mxu0 %v2980
        %v3023 = vpop.f32.mrf.mxu0
        %v3024 = vadd.f32 %v3011, %v3023
        %v3025 = vpop.f32.mrf.mxu0
        %3026 = vdwg.mxu0
        %3027 = vmatpush.bf16.msra.mxu0 0
        %3028 = vmatpush.bf16.msra.mxu0 0
        %3029 = vmatpush.bf16.msra.mxu0 0
        %3030 = vmatpush.bf16.msra.mxu0 0
        %3031 = vmatpush.bf16.msra.mxu0 0
        %3032 = vmatpush.bf16.msra.mxu0 0
        %3033 = vmatpush.bf16.msra.mxu0 0
        %3034 = vmatpush.bf16.msra.mxu0 %v2959
        %3035 = vmatmul.bf16.gmra.mxu0 %v2986
        %v3036 = vpop.f32.mrf.mxu0
        %v3037 = vadd.f32 %v3024, %v3036
        %v3038 = vpop.f32.mrf.mxu0
        %3039 = vdwg.mxu0
        %3040 = vmatpush.bf16.msra.mxu0 %v2688
        %3041 = vmatpush.bf16.msra.mxu0 %v2672
        %3042 = vmatpush.bf16.msra.mxu0 %v2656
        %3043 = vmatpush.bf16.msra.mxu0 %v2640
        %3044 = vmatpush.bf16.msra.mxu0 %v2624
        %3045 = vmatpush.bf16.msra.mxu0 %v2608
        %3046 = vmatpush.bf16.msra.mxu0 %v2592
        %3047 = vmatpush.bf16.msra.mxu0 %v2576
        %3048 = vmatmul.bf16.gmra.mxu0 %v2978
        %v3049 = vpop.f32.mrf.mxu0
        %v3050 = vadd.f32 0.0, %v3049
        %v3051 = vpop.f32.mrf.mxu0
        %3052 = vdwg.mxu0
        %3053 = vmatpush.bf16.msra.mxu0 %v2816
        %3054 = vmatpush.bf16.msra.mxu0 %v2800
        %3055 = vmatpush.bf16.msra.mxu0 %v2784
        %3056 = vmatpush.bf16.msra.mxu0 %v2768
        %3057 = vmatpush.bf16.msra.mxu0 %v2752
        %3058 = vmatpush.bf16.msra.mxu0 %v2736
        %3059 = vmatpush.bf16.msra.mxu0 %v2720
        %3060 = vmatpush.bf16.msra.mxu0 %v2704
        %3061 = vmatmul.bf16.gmra.mxu0 %v2979
        %v3062 = vpop.f32.mrf.mxu0
        %v3063 = vadd.f32 %v3050, %v3062
        %v3064 = vpop.f32.mrf.mxu0
        %3065 = vdwg.mxu0
        %3066 = vmatpush.bf16.msra.mxu0 %v2944
        %3067 = vmatpush.bf16.msra.mxu0 %v2928
        %3068 = vmatpush.bf16.msra.mxu0 %v2912
        %3069 = vmatpush.bf16.msra.mxu0 %v2896
        %3070 = vmatpush.bf16.msra.mxu0 %v2880
        %3071 = vmatpush.bf16.msra.mxu0 %v2864
        %3072 = vmatpush.bf16.msra.mxu0 %v2848
        %3073 = vmatpush.bf16.msra.mxu0 %v2832
        %3074 = vmatmul.bf16.gmra.mxu0 %v2980
        %v3075 = vpop.f32.mrf.mxu0
        %v3076 = vadd.f32 %v3063, %v3075
        %v3077 = vpop.f32.mrf.mxu0
        %3078 = vdwg.mxu0
        %3079 = vmatpush.bf16.msra.mxu0 0
        %3080 = vmatpush.bf16.msra.mxu0 0
        %3081 = vmatpush.bf16.msra.mxu0 0
        %3082 = vmatpush.bf16.msra.mxu0 0
        %3083 = vmatpush.bf16.msra.mxu0 0
        %3084 = vmatpush.bf16.msra.mxu0 0
        %3085 = vmatpush.bf16.msra.mxu0 0
        %3086 = vmatpush.bf16.msra.mxu0 %v2960
        %3087 = vmatmul.bf16.gmra.mxu0 %v2986
        %v3088 = vpop.f32.mrf.mxu0
        %v3089 = vadd.f32 %v3076, %v3088
        %v3090 = vpop.f32.mrf.mxu0
        %3091 = vdwg.mxu0
        %3092 = vmatpush.bf16.msra.mxu0 %v2689
        %3093 = vmatpush.bf16.msra.mxu0 %v2673
        %3094 = vmatpush.bf16.msra.mxu0 %v2657
        %3095 = vmatpush.bf16.msra.mxu0 %v2641
        %3096 = vmatpush.bf16.msra.mxu0 %v2625
        %3097 = vmatpush.bf16.msra.mxu0 %v2609
        %3098 = vmatpush.bf16.msra.mxu0 %v2593
        %3099 = vmatpush.bf16.msra.mxu0 %v2577
        %3100 = vmatmul.bf16.gmra.mxu0 %v2978
        %v3101 = vpop.f32.mrf.mxu0
        %v3102 = vadd.f32 0.0, %v3101
        %v3103 = vpop.f32.mrf.mxu0
        %3104 = vdwg.mxu0
        %3105 = vmatpush.bf16.msra.mxu0 %v2817
        %3106 = vmatpush.bf16.msra.mxu0 %v2801
        %3107 = vmatpush.bf16.msra.mxu0 %v2785
        %3108 = vmatpush.bf16.msra.mxu0 %v2769
        %3109 = vmatpush.bf16.msra.mxu0 %v2753
        %3110 = vmatpush.bf16.msra.mxu0 %v2737
        %3111 = vmatpush.bf16.msra.mxu0 %v2721
        %3112 = vmatpush.bf16.msra.mxu0 %v2705
        %3113 = vmatmul.bf16.gmra.mxu0 %v2979
        %v3114 = vpop.f32.mrf.mxu0
        %v3115 = vadd.f32 %v3102, %v3114
        %v3116 = vpop.f32.mrf.mxu0
        %3117 = vdwg.mxu0
        %3118 = vmatpush.bf16.msra.mxu0 %v2945
        %3119 = vmatpush.bf16.msra.mxu0 %v2929
        %3120 = vmatpush.bf16.msra.mxu0 %v2913
        %3121 = vmatpush.bf16.msra.mxu0 %v2897
        %3122 = vmatpush.bf16.msra.mxu0 %v2881
        %3123 = vmatpush.bf16.msra.mxu0 %v2865
        %3124 = vmatpush.bf16.msra.mxu0 %v2849
        %3125 = vmatpush.bf16.msra.mxu0 %v2833
        %3126 = vmatmul.bf16.gmra.mxu0 %v2980
        %v3127 = vpop.f32.mrf.mxu0
        %v3128 = vadd.f32 %v3115, %v3127
        %v3129 = vpop.f32.mrf.mxu0
        %3130 = vdwg.mxu0
        %3131 = vmatpush.bf16.msra.mxu0 0
        %3132 = vmatpush.bf16.msra.mxu0 0
        %3133 = vmatpush.bf16.msra.mxu0 0
        %3134 = vmatpush.bf16.msra.mxu0 0
        %3135 = vmatpush.bf16.msra.mxu0 0
        %3136 = vmatpush.bf16.msra.mxu0 0
        %3137 = vmatpush.bf16.msra.mxu0 0
        %3138 = vmatpush.bf16.msra.mxu0 %v2961
        %3139 = vmatmul.bf16.gmra.mxu0 %v2986
        %v3140 = vpop.f32.mrf.mxu0
        %v3141 = vadd.f32 %v3128, %v3140
        %v3142 = vpop.f32.mrf.mxu0
        %3143 = vdwg.mxu0
        %3144 = vmatpush.bf16.msra.mxu0 %v2690
        %3145 = vmatpush.bf16.msra.mxu0 %v2674
        %3146 = vmatpush.bf16.msra.mxu0 %v2658
        %3147 = vmatpush.bf16.msra.mxu0 %v2642
        %3148 = vmatpush.bf16.msra.mxu0 %v2626
        %3149 = vmatpush.bf16.msra.mxu0 %v2610
        %3150 = vmatpush.bf16.msra.mxu0 %v2594
        %3151 = vmatpush.bf16.msra.mxu0 %v2578
        %3152 = vmatmul.bf16.gmra.mxu0 %v2978
        %v3153 = vpop.f32.mrf.mxu0
        %v3154 = vadd.f32 0.0, %v3153
        %v3155 = vpop.f32.mrf.mxu0
        %3156 = vdwg.mxu0
        %3157 = vmatpush.bf16.msra.mxu0 %v2818
        %3158 = vmatpush.bf16.msra.mxu0 %v2802
        %3159 = vmatpush.bf16.msra.mxu0 %v2786
        %3160 = vmatpush.bf16.msra.mxu0 %v2770
        %3161 = vmatpush.bf16.msra.mxu0 %v2754
        %3162 = vmatpush.bf16.msra.mxu0 %v2738
        %3163 = vmatpush.bf16.msra.mxu0 %v2722
        %3164 = vmatpush.bf16.msra.mxu0 %v2706
        %3165 = vmatmul.bf16.gmra.mxu0 %v2979
        %v3166 = vpop.f32.mrf.mxu0
        %v3167 = vadd.f32 %v3154, %v3166
        %v3168 = vpop.f32.mrf.mxu0
        %3169 = vdwg.mxu0
        %3170 = vmatpush.bf16.msra.mxu0 %v2946
        %3171 = vmatpush.bf16.msra.mxu0 %v2930
        %3172 = vmatpush.bf16.msra.mxu0 %v2914
        %3173 = vmatpush.bf16.msra.mxu0 %v2898
        %3174 = vmatpush.bf16.msra.mxu0 %v2882
        %3175 = vmatpush.bf16.msra.mxu0 %v2866
        %3176 = vmatpush.bf16.msra.mxu0 %v2850
        %3177 = vmatpush.bf16.msra.mxu0 %v2834
        %3178 = vmatmul.bf16.gmra.mxu0 %v2980
        %v3179 = vpop.f32.mrf.mxu0
        %v3180 = vadd.f32 %v3167, %v3179
        %v3181 = vpop.f32.mrf.mxu0
        %3182 = vdwg.mxu0
        %3183 = vmatpush.bf16.msra.mxu0 0
        %3184 = vmatpush.bf16.msra.mxu0 0
        %3185 = vmatpush.bf16.msra.mxu0 0
        %3186 = vmatpush.bf16.msra.mxu0 0
        %3187 = vmatpush.bf16.msra.mxu0 0
        %3188 = vmatpush.bf16.msra.mxu0 0
        %3189 = vmatpush.bf16.msra.mxu0 0
        %3190 = vmatpush.bf16.msra.mxu0 %v2962
        %3191 = vmatmul.bf16.gmra.mxu0 %v2986
        %v3192 = vpop.f32.mrf.mxu0
        %v3193 = vadd.f32 %v3180, %v3192
        %v3194 = vpop.f32.mrf.mxu0
        %3195 = vdwg.mxu0
        %3196 = vmatpush.bf16.msra.mxu0 %v2691
        %3197 = vmatpush.bf16.msra.mxu0 %v2675
        %3198 = vmatpush.bf16.msra.mxu0 %v2659
        %3199 = vmatpush.bf16.msra.mxu0 %v2643
        %3200 = vmatpush.bf16.msra.mxu0 %v2627
        %3201 = vmatpush.bf16.msra.mxu0 %v2611
        %3202 = vmatpush.bf16.msra.mxu0 %v2595
        %3203 = vmatpush.bf16.msra.mxu0 %v2579
        %3204 = vmatmul.bf16.gmra.mxu0 %v2978
        %v3205 = vpop.f32.mrf.mxu0
        %v3206 = vadd.f32 0.0, %v3205
        %v3207 = vpop.f32.mrf.mxu0
        %3208 = vdwg.mxu0
        %3209 = vmatpush.bf16.msra.mxu0 %v2819
        %3210 = vmatpush.bf16.msra.mxu0 %v2803
        %3211 = vmatpush.bf16.msra.mxu0 %v2787
        %3212 = vmatpush.bf16.msra.mxu0 %v2771
        %3213 = vmatpush.bf16.msra.mxu0 %v2755
        %3214 = vmatpush.bf16.msra.mxu0 %v2739
        %3215 = vmatpush.bf16.msra.mxu0 %v2723
        %3216 = vmatpush.bf16.msra.mxu0 %v2707
        %3217 = vmatmul.bf16.gmra.mxu0 %v2979
        %v3218 = vpop.f32.mrf.mxu0
        %v3219 = vadd.f32 %v3206, %v3218
        %v3220 = vpop.f32.mrf.mxu0
        %3221 = vdwg.mxu0
        %3222 = vmatpush.bf16.msra.mxu0 %v2947
        %3223 = vmatpush.bf16.msra.mxu0 %v2931
        %3224 = vmatpush.bf16.msra.mxu0 %v2915
        %3225 = vmatpush.bf16.msra.mxu0 %v2899
        %3226 = vmatpush.bf16.msra.mxu0 %v2883
        %3227 = vmatpush.bf16.msra.mxu0 %v2867
        %3228 = vmatpush.bf16.msra.mxu0 %v2851
        %3229 = vmatpush.bf16.msra.mxu0 %v2835
        %3230 = vmatmul.bf16.gmra.mxu0 %v2980
        %v3231 = vpop.f32.mrf.mxu0
        %v3232 = vadd.f32 %v3219, %v3231
        %v3233 = vpop.f32.mrf.mxu0
        %3234 = vdwg.mxu0
        %3235 = vmatpush.bf16.msra.mxu0 0
        %3236 = vmatpush.bf16.msra.mxu0 0
        %3237 = vmatpush.bf16.msra.mxu0 0
        %3238 = vmatpush.bf16.msra.mxu0 0
        %3239 = vmatpush.bf16.msra.mxu0 0
        %3240 = vmatpush.bf16.msra.mxu0 0
        %3241 = vmatpush.bf16.msra.mxu0 0
        %3242 = vmatpush.bf16.msra.mxu0 %v2963
        %3243 = vmatmul.bf16.gmra.mxu0 %v2986
        %v3244 = vpop.f32.mrf.mxu0
        %v3245 = vadd.f32 %v3232, %v3244
        %v3246 = vpop.f32.mrf.mxu0
        %3247 = vdwg.mxu0
        %3248 = vmatpush.bf16.msra.mxu0 %v2692
        %3249 = vmatpush.bf16.msra.mxu0 %v2676
        %3250 = vmatpush.bf16.msra.mxu0 %v2660
        %3251 = vmatpush.bf16.msra.mxu0 %v2644
        %3252 = vmatpush.bf16.msra.mxu0 %v2628
        %3253 = vmatpush.bf16.msra.mxu0 %v2612
        %3254 = vmatpush.bf16.msra.mxu0 %v2596
        %3255 = vmatpush.bf16.msra.mxu0 %v2580
        %3256 = vmatmul.bf16.gmra.mxu0 %v2978
        %v3257 = vpop.f32.mrf.mxu0
        %v3258 = vadd.f32 0.0, %v3257
        %v3259 = vpop.f32.mrf.mxu0
        %3260 = vdwg.mxu0
        %3261 = vmatpush.bf16.msra.mxu0 %v2820
        %3262 = vmatpush.bf16.msra.mxu0 %v2804
        %3263 = vmatpush.bf16.msra.mxu0 %v2788
        %3264 = vmatpush.bf16.msra.mxu0 %v2772
        %3265 = vmatpush.bf16.msra.mxu0 %v2756
        %3266 = vmatpush.bf16.msra.mxu0 %v2740
        %3267 = vmatpush.bf16.msra.mxu0 %v2724
        %3268 = vmatpush.bf16.msra.mxu0 %v2708
        %3269 = vmatmul.bf16.gmra.mxu0 %v2979
        %v3270 = vpop.f32.mrf.mxu0
        %v3271 = vadd.f32 %v3258, %v3270
        %v3272 = vpop.f32.mrf.mxu0
        %3273 = vdwg.mxu0
        %3274 = vmatpush.bf16.msra.mxu0 %v2948
        %3275 = vmatpush.bf16.msra.mxu0 %v2932
        %3276 = vmatpush.bf16.msra.mxu0 %v2916
        %3277 = vmatpush.bf16.msra.mxu0 %v2900
        %3278 = vmatpush.bf16.msra.mxu0 %v2884
        %3279 = vmatpush.bf16.msra.mxu0 %v2868
        %3280 = vmatpush.bf16.msra.mxu0 %v2852
        %3281 = vmatpush.bf16.msra.mxu0 %v2836
        %3282 = vmatmul.bf16.gmra.mxu0 %v2980
        %v3283 = vpop.f32.mrf.mxu0
        %v3284 = vadd.f32 %v3271, %v3283
        %v3285 = vpop.f32.mrf.mxu0
        %3286 = vdwg.mxu0
        %3287 = vmatpush.bf16.msra.mxu0 0
        %3288 = vmatpush.bf16.msra.mxu0 0
        %3289 = vmatpush.bf16.msra.mxu0 0
        %3290 = vmatpush.bf16.msra.mxu0 0
        %3291 = vmatpush.bf16.msra.mxu0 0
        %3292 = vmatpush.bf16.msra.mxu0 0
        %3293 = vmatpush.bf16.msra.mxu0 0
        %3294 = vmatpush.bf16.msra.mxu0 %v2964
        %3295 = vmatmul.bf16.gmra.mxu0 %v2986
        %v3296 = vpop.f32.mrf.mxu0
        %v3297 = vadd.f32 %v3284, %v3296
        %v3298 = vpop.f32.mrf.mxu0
        %3299 = vdwg.mxu0
        %3300 = vmatpush.bf16.msra.mxu0 %v2693
        %3301 = vmatpush.bf16.msra.mxu0 %v2677
        %3302 = vmatpush.bf16.msra.mxu0 %v2661
        %3303 = vmatpush.bf16.msra.mxu0 %v2645
        %3304 = vmatpush.bf16.msra.mxu0 %v2629
        %3305 = vmatpush.bf16.msra.mxu0 %v2613
        %3306 = vmatpush.bf16.msra.mxu0 %v2597
        %3307 = vmatpush.bf16.msra.mxu0 %v2581
        %3308 = vmatmul.bf16.gmra.mxu0 %v2978
        %v3309 = vpop.f32.mrf.mxu0
        %v3310 = vadd.f32 0.0, %v3309
        %v3311 = vpop.f32.mrf.mxu0
        %3312 = vdwg.mxu0
        %3313 = vmatpush.bf16.msra.mxu0 %v2821
        %3314 = vmatpush.bf16.msra.mxu0 %v2805
        %3315 = vmatpush.bf16.msra.mxu0 %v2789
        %3316 = vmatpush.bf16.msra.mxu0 %v2773
        %3317 = vmatpush.bf16.msra.mxu0 %v2757
        %3318 = vmatpush.bf16.msra.mxu0 %v2741
        %3319 = vmatpush.bf16.msra.mxu0 %v2725
        %3320 = vmatpush.bf16.msra.mxu0 %v2709
        %3321 = vmatmul.bf16.gmra.mxu0 %v2979
        %v3322 = vpop.f32.mrf.mxu0
        %v3323 = vadd.f32 %v3310, %v3322
        %v3324 = vpop.f32.mrf.mxu0
        %3325 = vdwg.mxu0
        %3326 = vmatpush.bf16.msra.mxu0 %v2949
        %3327 = vmatpush.bf16.msra.mxu0 %v2933
        %3328 = vmatpush.bf16.msra.mxu0 %v2917
        %3329 = vmatpush.bf16.msra.mxu0 %v2901
        %3330 = vmatpush.bf16.msra.mxu0 %v2885
        %3331 = vmatpush.bf16.msra.mxu0 %v2869
        %3332 = vmatpush.bf16.msra.mxu0 %v2853
        %3333 = vmatpush.bf16.msra.mxu0 %v2837
        %3334 = vmatmul.bf16.gmra.mxu0 %v2980
        %v3335 = vpop.f32.mrf.mxu0
        %v3336 = vadd.f32 %v3323, %v3335
        %v3337 = vpop.f32.mrf.mxu0
        %3338 = vdwg.mxu0
        %3339 = vmatpush.bf16.msra.mxu0 0
        %3340 = vmatpush.bf16.msra.mxu0 0
        %3341 = vmatpush.bf16.msra.mxu0 0
        %3342 = vmatpush.bf16.msra.mxu0 0
        %3343 = vmatpush.bf16.msra.mxu0 0
        %3344 = vmatpush.bf16.msra.mxu0 0
        %3345 = vmatpush.bf16.msra.mxu0 0
        %3346 = vmatpush.bf16.msra.mxu0 %v2965
        %3347 = vmatmul.bf16.gmra.mxu0 %v2986
        %v3348 = vpop.f32.mrf.mxu0
        %v3349 = vadd.f32 %v3336, %v3348
        %v3350 = vpop.f32.mrf.mxu0
        %3351 = vdwg.mxu0
        %3352 = vmatpush.bf16.msra.mxu0 %v2694
        %3353 = vmatpush.bf16.msra.mxu0 %v2678
        %3354 = vmatpush.bf16.msra.mxu0 %v2662
        %3355 = vmatpush.bf16.msra.mxu0 %v2646
        %3356 = vmatpush.bf16.msra.mxu0 %v2630
        %3357 = vmatpush.bf16.msra.mxu0 %v2614
        %3358 = vmatpush.bf16.msra.mxu0 %v2598
        %3359 = vmatpush.bf16.msra.mxu0 %v2582
        %3360 = vmatmul.bf16.gmra.mxu0 %v2978
        %v3361 = vpop.f32.mrf.mxu0
        %v3362 = vadd.f32 0.0, %v3361
        %v3363 = vpop.f32.mrf.mxu0
        %3364 = vdwg.mxu0
        %3365 = vmatpush.bf16.msra.mxu0 %v2822
        %3366 = vmatpush.bf16.msra.mxu0 %v2806
        %3367 = vmatpush.bf16.msra.mxu0 %v2790
        %3368 = vmatpush.bf16.msra.mxu0 %v2774
        %3369 = vmatpush.bf16.msra.mxu0 %v2758
        %3370 = vmatpush.bf16.msra.mxu0 %v2742
        %3371 = vmatpush.bf16.msra.mxu0 %v2726
        %3372 = vmatpush.bf16.msra.mxu0 %v2710
        %3373 = vmatmul.bf16.gmra.mxu0 %v2979
        %v3374 = vpop.f32.mrf.mxu0
        %v3375 = vadd.f32 %v3362, %v3374
        %v3376 = vpop.f32.mrf.mxu0
        %3377 = vdwg.mxu0
        %3378 = vmatpush.bf16.msra.mxu0 %v2950
        %3379 = vmatpush.bf16.msra.mxu0 %v2934
        %3380 = vmatpush.bf16.msra.mxu0 %v2918
        %3381 = vmatpush.bf16.msra.mxu0 %v2902
        %3382 = vmatpush.bf16.msra.mxu0 %v2886
        %3383 = vmatpush.bf16.msra.mxu0 %v2870
        %3384 = vmatpush.bf16.msra.mxu0 %v2854
        %3385 = vmatpush.bf16.msra.mxu0 %v2838
        %3386 = vmatmul.bf16.gmra.mxu0 %v2980
        %v3387 = vpop.f32.mrf.mxu0
        %v3388 = vadd.f32 %v3375, %v3387
        %v3389 = vpop.f32.mrf.mxu0
        %3390 = vdwg.mxu0
        %3391 = vmatpush.bf16.msra.mxu0 0
        %3392 = vmatpush.bf16.msra.mxu0 0
        %3393 = vmatpush.bf16.msra.mxu0 0
        %3394 = vmatpush.bf16.msra.mxu0 0
        %3395 = vmatpush.bf16.msra.mxu0 0
        %3396 = vmatpush.bf16.msra.mxu0 0
        %3397 = vmatpush.bf16.msra.mxu0 0
        %3398 = vmatpush.bf16.msra.mxu0 %v2966
        %3399 = vmatmul.bf16.gmra.mxu0 %v2986
        %v3400 = vpop.f32.mrf.mxu0
        %v3401 = vadd.f32 %v3388, %v3400
        %v3402 = vpop.f32.mrf.mxu0
        %3403 = vdwg.mxu0
        %3404 = vmatpush.bf16.msra.mxu0 %v2695
        %3405 = vmatpush.bf16.msra.mxu0 %v2679
        %3406 = vmatpush.bf16.msra.mxu0 %v2663
        %3407 = vmatpush.bf16.msra.mxu0 %v2647
        %3408 = vmatpush.bf16.msra.mxu0 %v2631
        %3409 = vmatpush.bf16.msra.mxu0 %v2615
        %3410 = vmatpush.bf16.msra.mxu0 %v2599
        %3411 = vmatpush.bf16.msra.mxu0 %v2583
        %3412 = vmatmul.bf16.gmra.mxu0 %v2978
        %v3413 = vpop.f32.mrf.mxu0
        %v3414 = vadd.f32 0.0, %v3413
        %v3415 = vpop.f32.mrf.mxu0
        %3416 = vdwg.mxu0
        %3417 = vmatpush.bf16.msra.mxu0 %v2823
        %3418 = vmatpush.bf16.msra.mxu0 %v2807
        %3419 = vmatpush.bf16.msra.mxu0 %v2791
        %3420 = vmatpush.bf16.msra.mxu0 %v2775
        %3421 = vmatpush.bf16.msra.mxu0 %v2759
        %3422 = vmatpush.bf16.msra.mxu0 %v2743
        %3423 = vmatpush.bf16.msra.mxu0 %v2727
        %3424 = vmatpush.bf16.msra.mxu0 %v2711
        %3425 = vmatmul.bf16.gmra.mxu0 %v2979
        %v3426 = vpop.f32.mrf.mxu0
        %v3427 = vadd.f32 %v3414, %v3426
        %v3428 = vpop.f32.mrf.mxu0
        %3429 = vdwg.mxu0
        %3430 = vmatpush.bf16.msra.mxu0 %v2951
        %3431 = vmatpush.bf16.msra.mxu0 %v2935
        %3432 = vmatpush.bf16.msra.mxu0 %v2919
        %3433 = vmatpush.bf16.msra.mxu0 %v2903
        %3434 = vmatpush.bf16.msra.mxu0 %v2887
        %3435 = vmatpush.bf16.msra.mxu0 %v2871
        %3436 = vmatpush.bf16.msra.mxu0 %v2855
        %3437 = vmatpush.bf16.msra.mxu0 %v2839
        %3438 = vmatmul.bf16.gmra.mxu0 %v2980
        %v3439 = vpop.f32.mrf.mxu0
        %v3440 = vadd.f32 %v3427, %v3439
        %v3441 = vpop.f32.mrf.mxu0
        %3442 = vdwg.mxu0
        %3443 = vmatpush.bf16.msra.mxu0 0
        %3444 = vmatpush.bf16.msra.mxu0 0
        %3445 = vmatpush.bf16.msra.mxu0 0
        %3446 = vmatpush.bf16.msra.mxu0 0
        %3447 = vmatpush.bf16.msra.mxu0 0
        %3448 = vmatpush.bf16.msra.mxu0 0
        %3449 = vmatpush.bf16.msra.mxu0 0
        %3450 = vmatpush.bf16.msra.mxu0 %v2967
        %3451 = vmatmul.bf16.gmra.mxu0 %v2986
        %v3452 = vpop.f32.mrf.mxu0
        %v3453 = vadd.f32 %v3440, %v3452
        %v3454 = vpop.f32.mrf.mxu0
        %3455 = vdwg.mxu0
        %3456 = vmatpush.bf16.msra.mxu0 %v2696
        %3457 = vmatpush.bf16.msra.mxu0 %v2680
        %3458 = vmatpush.bf16.msra.mxu0 %v2664
        %3459 = vmatpush.bf16.msra.mxu0 %v2648
        %3460 = vmatpush.bf16.msra.mxu0 %v2632
        %3461 = vmatpush.bf16.msra.mxu0 %v2616
        %3462 = vmatpush.bf16.msra.mxu0 %v2600
        %3463 = vmatpush.bf16.msra.mxu0 %v2584
        %3464 = vmatmul.bf16.gmra.mxu0 %v2978
        %v3465 = vpop.f32.mrf.mxu0
        %v3466 = vadd.f32 0.0, %v3465
        %v3467 = vpop.f32.mrf.mxu0
        %3468 = vdwg.mxu0
        %3469 = vmatpush.bf16.msra.mxu0 %v2824
        %3470 = vmatpush.bf16.msra.mxu0 %v2808
        %3471 = vmatpush.bf16.msra.mxu0 %v2792
        %3472 = vmatpush.bf16.msra.mxu0 %v2776
        %3473 = vmatpush.bf16.msra.mxu0 %v2760
        %3474 = vmatpush.bf16.msra.mxu0 %v2744
        %3475 = vmatpush.bf16.msra.mxu0 %v2728
        %3476 = vmatpush.bf16.msra.mxu0 %v2712
        %3477 = vmatmul.bf16.gmra.mxu0 %v2979
        %v3478 = vpop.f32.mrf.mxu0
        %v3479 = vadd.f32 %v3466, %v3478
        %v3480 = vpop.f32.mrf.mxu0
        %3481 = vdwg.mxu0
        %3482 = vmatpush.bf16.msra.mxu0 %v2952
        %3483 = vmatpush.bf16.msra.mxu0 %v2936
        %3484 = vmatpush.bf16.msra.mxu0 %v2920
        %3485 = vmatpush.bf16.msra.mxu0 %v2904
        %3486 = vmatpush.bf16.msra.mxu0 %v2888
        %3487 = vmatpush.bf16.msra.mxu0 %v2872
        %3488 = vmatpush.bf16.msra.mxu0 %v2856
        %3489 = vmatpush.bf16.msra.mxu0 %v2840
        %3490 = vmatmul.bf16.gmra.mxu0 %v2980
        %v3491 = vpop.f32.mrf.mxu0
        %v3492 = vadd.f32 %v3479, %v3491
        %v3493 = vpop.f32.mrf.mxu0
        %3494 = vdwg.mxu0
        %3495 = vmatpush.bf16.msra.mxu0 0
        %3496 = vmatpush.bf16.msra.mxu0 0
        %3497 = vmatpush.bf16.msra.mxu0 0
        %3498 = vmatpush.bf16.msra.mxu0 0
        %3499 = vmatpush.bf16.msra.mxu0 0
        %3500 = vmatpush.bf16.msra.mxu0 0
        %3501 = vmatpush.bf16.msra.mxu0 0
        %3502 = vmatpush.bf16.msra.mxu0 %v2968
        %3503 = vmatmul.bf16.gmra.mxu0 %v2986
        %v3504 = vpop.f32.mrf.mxu0
        %v3505 = vadd.f32 %v3492, %v3504
        %v3506 = vpop.f32.mrf.mxu0
        %3507 = vdwg.mxu0
        %3508 = vmatpush.bf16.msra.mxu0 %v2697
        %3509 = vmatpush.bf16.msra.mxu0 %v2681
        %3510 = vmatpush.bf16.msra.mxu0 %v2665
        %3511 = vmatpush.bf16.msra.mxu0 %v2649
        %3512 = vmatpush.bf16.msra.mxu0 %v2633
        %3513 = vmatpush.bf16.msra.mxu0 %v2617
        %3514 = vmatpush.bf16.msra.mxu0 %v2601
        %3515 = vmatpush.bf16.msra.mxu0 %v2585
        %3516 = vmatmul.bf16.gmra.mxu0 %v2978
        %v3517 = vpop.f32.mrf.mxu0
        %v3518 = vadd.f32 0.0, %v3517
        %v3519 = vpop.f32.mrf.mxu0
        %3520 = vdwg.mxu0
        %3521 = vmatpush.bf16.msra.mxu0 %v2825
        %3522 = vmatpush.bf16.msra.mxu0 %v2809
        %3523 = vmatpush.bf16.msra.mxu0 %v2793
        %3524 = vmatpush.bf16.msra.mxu0 %v2777
        %3525 = vmatpush.bf16.msra.mxu0 %v2761
        %3526 = vmatpush.bf16.msra.mxu0 %v2745
        %3527 = vmatpush.bf16.msra.mxu0 %v2729
        %3528 = vmatpush.bf16.msra.mxu0 %v2713
        %3529 = vmatmul.bf16.gmra.mxu0 %v2979
        %v3530 = vpop.f32.mrf.mxu0
        %v3531 = vadd.f32 %v3518, %v3530
        %v3532 = vpop.f32.mrf.mxu0
        %3533 = vdwg.mxu0
        %3534 = vmatpush.bf16.msra.mxu0 %v2953
        %3535 = vmatpush.bf16.msra.mxu0 %v2937
        %3536 = vmatpush.bf16.msra.mxu0 %v2921
        %3537 = vmatpush.bf16.msra.mxu0 %v2905
        %3538 = vmatpush.bf16.msra.mxu0 %v2889
        %3539 = vmatpush.bf16.msra.mxu0 %v2873
        %3540 = vmatpush.bf16.msra.mxu0 %v2857
        %3541 = vmatpush.bf16.msra.mxu0 %v2841
        %3542 = vmatmul.bf16.gmra.mxu0 %v2980
        %v3543 = vpop.f32.mrf.mxu0
        %v3544 = vadd.f32 %v3531, %v3543
        %v3545 = vpop.f32.mrf.mxu0
        %3546 = vdwg.mxu0
        %3547 = vmatpush.bf16.msra.mxu0 0
        %3548 = vmatpush.bf16.msra.mxu0 0
        %3549 = vmatpush.bf16.msra.mxu0 0
        %3550 = vmatpush.bf16.msra.mxu0 0
        %3551 = vmatpush.bf16.msra.mxu0 0
        %3552 = vmatpush.bf16.msra.mxu0 0
        %3553 = vmatpush.bf16.msra.mxu0 0
        %3554 = vmatpush.bf16.msra.mxu0 %v2969
        %3555 = vmatmul.bf16.gmra.mxu0 %v2986
        %v3556 = vpop.f32.mrf.mxu0
        %v3557 = vadd.f32 %v3544, %v3556
        %v3558 = vpop.f32.mrf.mxu0
        %3559 = vdwg.mxu0
        %3560 = vmatpush.bf16.msra.mxu0 %v2698
        %3561 = vmatpush.bf16.msra.mxu0 %v2682
        %3562 = vmatpush.bf16.msra.mxu0 %v2666
        %3563 = vmatpush.bf16.msra.mxu0 %v2650
        %3564 = vmatpush.bf16.msra.mxu0 %v2634
        %3565 = vmatpush.bf16.msra.mxu0 %v2618
        %3566 = vmatpush.bf16.msra.mxu0 %v2602
        %3567 = vmatpush.bf16.msra.mxu0 %v2586
        %3568 = vmatmul.bf16.gmra.mxu0 %v2978
        %v3569 = vpop.f32.mrf.mxu0
        %v3570 = vadd.f32 0.0, %v3569
        %v3571 = vpop.f32.mrf.mxu0
        %3572 = vdwg.mxu0
        %3573 = vmatpush.bf16.msra.mxu0 %v2826
        %3574 = vmatpush.bf16.msra.mxu0 %v2810
        %3575 = vmatpush.bf16.msra.mxu0 %v2794
        %3576 = vmatpush.bf16.msra.mxu0 %v2778
        %3577 = vmatpush.bf16.msra.mxu0 %v2762
        %3578 = vmatpush.bf16.msra.mxu0 %v2746
        %3579 = vmatpush.bf16.msra.mxu0 %v2730
        %3580 = vmatpush.bf16.msra.mxu0 %v2714
        %3581 = vmatmul.bf16.gmra.mxu0 %v2979
        %v3582 = vpop.f32.mrf.mxu0
        %v3583 = vadd.f32 %v3570, %v3582
        %v3584 = vpop.f32.mrf.mxu0
        %3585 = vdwg.mxu0
        %3586 = vmatpush.bf16.msra.mxu0 %v2954
        %3587 = vmatpush.bf16.msra.mxu0 %v2938
        %3588 = vmatpush.bf16.msra.mxu0 %v2922
        %3589 = vmatpush.bf16.msra.mxu0 %v2906
        %3590 = vmatpush.bf16.msra.mxu0 %v2890
        %3591 = vmatpush.bf16.msra.mxu0 %v2874
        %3592 = vmatpush.bf16.msra.mxu0 %v2858
        %3593 = vmatpush.bf16.msra.mxu0 %v2842
        %3594 = vmatmul.bf16.gmra.mxu0 %v2980
        %v3595 = vpop.f32.mrf.mxu0
        %v3596 = vadd.f32 %v3583, %v3595
        %v3597 = vpop.f32.mrf.mxu0
        %3598 = vdwg.mxu0
        %3599 = vmatpush.bf16.msra.mxu0 0
        %3600 = vmatpush.bf16.msra.mxu0 0
        %3601 = vmatpush.bf16.msra.mxu0 0
        %3602 = vmatpush.bf16.msra.mxu0 0
        %3603 = vmatpush.bf16.msra.mxu0 0
        %3604 = vmatpush.bf16.msra.mxu0 0
        %3605 = vmatpush.bf16.msra.mxu0 0
        %3606 = vmatpush.bf16.msra.mxu0 %v2970
        %3607 = vmatmul.bf16.gmra.mxu0 %v2986
        %v3608 = vpop.f32.mrf.mxu0
        %v3609 = vadd.f32 %v3596, %v3608
        %v3610 = vpop.f32.mrf.mxu0
        %3611 = vdwg.mxu0
        %3612 = vmatpush.bf16.msra.mxu0 %v2699
        %3613 = vmatpush.bf16.msra.mxu0 %v2683
        %3614 = vmatpush.bf16.msra.mxu0 %v2667
        %3615 = vmatpush.bf16.msra.mxu0 %v2651
        %3616 = vmatpush.bf16.msra.mxu0 %v2635
        %3617 = vmatpush.bf16.msra.mxu0 %v2619
        %3618 = vmatpush.bf16.msra.mxu0 %v2603
        %3619 = vmatpush.bf16.msra.mxu0 %v2587
        %3620 = vmatmul.bf16.gmra.mxu0 %v2978
        %v3621 = vpop.f32.mrf.mxu0
        %v3622 = vadd.f32 0.0, %v3621
        %v3623 = vpop.f32.mrf.mxu0
        %3624 = vdwg.mxu0
        %3625 = vmatpush.bf16.msra.mxu0 %v2827
        %3626 = vmatpush.bf16.msra.mxu0 %v2811
        %3627 = vmatpush.bf16.msra.mxu0 %v2795
        %3628 = vmatpush.bf16.msra.mxu0 %v2779
        %3629 = vmatpush.bf16.msra.mxu0 %v2763
        %3630 = vmatpush.bf16.msra.mxu0 %v2747
        %3631 = vmatpush.bf16.msra.mxu0 %v2731
        %3632 = vmatpush.bf16.msra.mxu0 %v2715
        %3633 = vmatmul.bf16.gmra.mxu0 %v2979
        %v3634 = vpop.f32.mrf.mxu0
        %v3635 = vadd.f32 %v3622, %v3634
        %v3636 = vpop.f32.mrf.mxu0
        %3637 = vdwg.mxu0
        %3638 = vmatpush.bf16.msra.mxu0 %v2955
        %3639 = vmatpush.bf16.msra.mxu0 %v2939
        %3640 = vmatpush.bf16.msra.mxu0 %v2923
        %3641 = vmatpush.bf16.msra.mxu0 %v2907
        %3642 = vmatpush.bf16.msra.mxu0 %v2891
        %3643 = vmatpush.bf16.msra.mxu0 %v2875
        %3644 = vmatpush.bf16.msra.mxu0 %v2859
        %3645 = vmatpush.bf16.msra.mxu0 %v2843
        %3646 = vmatmul.bf16.gmra.mxu0 %v2980
        %v3647 = vpop.f32.mrf.mxu0
        %v3648 = vadd.f32 %v3635, %v3647
        %v3649 = vpop.f32.mrf.mxu0
        %3650 = vdwg.mxu0
        %3651 = vmatpush.bf16.msra.mxu0 0
        %3652 = vmatpush.bf16.msra.mxu0 0
        %3653 = vmatpush.bf16.msra.mxu0 0
        %3654 = vmatpush.bf16.msra.mxu0 0
        %3655 = vmatpush.bf16.msra.mxu0 0
        %3656 = vmatpush.bf16.msra.mxu0 0
        %3657 = vmatpush.bf16.msra.mxu0 0
        %3658 = vmatpush.bf16.msra.mxu0 %v2971
        %3659 = vmatmul.bf16.gmra.mxu0 %v2986
        %v3660 = vpop.f32.mrf.mxu0
        %v3661 = vadd.f32 %v3648, %v3660
        %v3662 = vpop.f32.mrf.mxu0
        %3663 = vdwg.mxu0
        %3664 = vmatpush.bf16.msra.mxu0 %v2700
        %3665 = vmatpush.bf16.msra.mxu0 %v2684
        %3666 = vmatpush.bf16.msra.mxu0 %v2668
        %3667 = vmatpush.bf16.msra.mxu0 %v2652
        %3668 = vmatpush.bf16.msra.mxu0 %v2636
        %3669 = vmatpush.bf16.msra.mxu0 %v2620
        %3670 = vmatpush.bf16.msra.mxu0 %v2604
        %3671 = vmatpush.bf16.msra.mxu0 %v2588
        %3672 = vmatmul.bf16.gmra.mxu0 %v2978
        %v3673 = vpop.f32.mrf.mxu0
        %v3674 = vadd.f32 0.0, %v3673
        %v3675 = vpop.f32.mrf.mxu0
        %3676 = vdwg.mxu0
        %3677 = vmatpush.bf16.msra.mxu0 %v2828
        %3678 = vmatpush.bf16.msra.mxu0 %v2812
        %3679 = vmatpush.bf16.msra.mxu0 %v2796
        %3680 = vmatpush.bf16.msra.mxu0 %v2780
        %3681 = vmatpush.bf16.msra.mxu0 %v2764
        %3682 = vmatpush.bf16.msra.mxu0 %v2748
        %3683 = vmatpush.bf16.msra.mxu0 %v2732
        %3684 = vmatpush.bf16.msra.mxu0 %v2716
        %3685 = vmatmul.bf16.gmra.mxu0 %v2979
        %v3686 = vpop.f32.mrf.mxu0
        %v3687 = vadd.f32 %v3674, %v3686
        %v3688 = vpop.f32.mrf.mxu0
        %3689 = vdwg.mxu0
        %3690 = vmatpush.bf16.msra.mxu0 %v2956
        %3691 = vmatpush.bf16.msra.mxu0 %v2940
        %3692 = vmatpush.bf16.msra.mxu0 %v2924
        %3693 = vmatpush.bf16.msra.mxu0 %v2908
        %3694 = vmatpush.bf16.msra.mxu0 %v2892
        %3695 = vmatpush.bf16.msra.mxu0 %v2876
        %3696 = vmatpush.bf16.msra.mxu0 %v2860
        %3697 = vmatpush.bf16.msra.mxu0 %v2844
        %3698 = vmatmul.bf16.gmra.mxu0 %v2980
        %v3699 = vpop.f32.mrf.mxu0
        %v3700 = vadd.f32 %v3687, %v3699
        %v3701 = vpop.f32.mrf.mxu0
        %3702 = vdwg.mxu0
        %3703 = vmatpush.bf16.msra.mxu0 0
        %3704 = vmatpush.bf16.msra.mxu0 0
        %3705 = vmatpush.bf16.msra.mxu0 0
        %3706 = vmatpush.bf16.msra.mxu0 0
        %3707 = vmatpush.bf16.msra.mxu0 0
        %3708 = vmatpush.bf16.msra.mxu0 0
        %3709 = vmatpush.bf16.msra.mxu0 0
        %3710 = vmatpush.bf16.msra.mxu0 %v2972
        %3711 = vmatmul.bf16.gmra.mxu0 %v2986
        %v3712 = vpop.f32.mrf.mxu0
        %v3713 = vadd.f32 %v3700, %v3712
        %v3714 = vpop.f32.mrf.mxu0
        %3715 = vdwg.mxu0
        %3716 = vmatpush.bf16.msra.mxu0 %v2701
        %3717 = vmatpush.bf16.msra.mxu0 %v2685
        %3718 = vmatpush.bf16.msra.mxu0 %v2669
        %3719 = vmatpush.bf16.msra.mxu0 %v2653
        %3720 = vmatpush.bf16.msra.mxu0 %v2637
        %3721 = vmatpush.bf16.msra.mxu0 %v2621
        %3722 = vmatpush.bf16.msra.mxu0 %v2605
        %3723 = vmatpush.bf16.msra.mxu0 %v2589
        %3724 = vmatmul.bf16.gmra.mxu0 %v2978
        %v3725 = vpop.f32.mrf.mxu0
        %v3726 = vadd.f32 0.0, %v3725
        %v3727 = vpop.f32.mrf.mxu0
        %3728 = vdwg.mxu0
        %3729 = vmatpush.bf16.msra.mxu0 %v2829
        %3730 = vmatpush.bf16.msra.mxu0 %v2813
        %3731 = vmatpush.bf16.msra.mxu0 %v2797
        %3732 = vmatpush.bf16.msra.mxu0 %v2781
        %3733 = vmatpush.bf16.msra.mxu0 %v2765
        %3734 = vmatpush.bf16.msra.mxu0 %v2749
        %3735 = vmatpush.bf16.msra.mxu0 %v2733
        %3736 = vmatpush.bf16.msra.mxu0 %v2717
        %3737 = vmatmul.bf16.gmra.mxu0 %v2979
        %v3738 = vpop.f32.mrf.mxu0
        %v3739 = vadd.f32 %v3726, %v3738
        %v3740 = vpop.f32.mrf.mxu0
        %3741 = vdwg.mxu0
        %3742 = vmatpush.bf16.msra.mxu0 %v2957
        %3743 = vmatpush.bf16.msra.mxu0 %v2941
        %3744 = vmatpush.bf16.msra.mxu0 %v2925
        %3745 = vmatpush.bf16.msra.mxu0 %v2909
        %3746 = vmatpush.bf16.msra.mxu0 %v2893
        %3747 = vmatpush.bf16.msra.mxu0 %v2877
        %3748 = vmatpush.bf16.msra.mxu0 %v2861
        %3749 = vmatpush.bf16.msra.mxu0 %v2845
        %3750 = vmatmul.bf16.gmra.mxu0 %v2980
        %v3751 = vpop.f32.mrf.mxu0
        %v3752 = vadd.f32 %v3739, %v3751
        %v3753 = vpop.f32.mrf.mxu0
        %3754 = vdwg.mxu0
        %3755 = vmatpush.bf16.msra.mxu0 0
        %3756 = vmatpush.bf16.msra.mxu0 0
        %3757 = vmatpush.bf16.msra.mxu0 0
        %3758 = vmatpush.bf16.msra.mxu0 0
        %3759 = vmatpush.bf16.msra.mxu0 0
        %3760 = vmatpush.bf16.msra.mxu0 0
        %3761 = vmatpush.bf16.msra.mxu0 0
        %3762 = vmatpush.bf16.msra.mxu0 %v2973
        %3763 = vmatmul.bf16.gmra.mxu0 %v2986
        %v3764 = vpop.f32.mrf.mxu0
        %v3765 = vadd.f32 %v3752, %v3764
        %v3766 = vpop.f32.mrf.mxu0
        %3767 = vdwg.mxu0
        %3768 = vmatpush.bf16.msra.mxu0 %v2702
        %3769 = vmatpush.bf16.msra.mxu0 %v2686
        %3770 = vmatpush.bf16.msra.mxu0 %v2670
        %3771 = vmatpush.bf16.msra.mxu0 %v2654
        %3772 = vmatpush.bf16.msra.mxu0 %v2638
        %3773 = vmatpush.bf16.msra.mxu0 %v2622
        %3774 = vmatpush.bf16.msra.mxu0 %v2606
        %3775 = vmatpush.bf16.msra.mxu0 %v2590
        %3776 = vmatmul.bf16.gmra.mxu0 %v2978
        %v3777 = vpop.f32.mrf.mxu0
        %v3778 = vadd.f32 0.0, %v3777
        %v3779 = vpop.f32.mrf.mxu0
        %3780 = vdwg.mxu0
        %3781 = vmatpush.bf16.msra.mxu0 %v2830
        %3782 = vmatpush.bf16.msra.mxu0 %v2814
        %3783 = vmatpush.bf16.msra.mxu0 %v2798
        %3784 = vmatpush.bf16.msra.mxu0 %v2782
        %3785 = vmatpush.bf16.msra.mxu0 %v2766
        %3786 = vmatpush.bf16.msra.mxu0 %v2750
        %3787 = vmatpush.bf16.msra.mxu0 %v2734
        %3788 = vmatpush.bf16.msra.mxu0 %v2718
        %3789 = vmatmul.bf16.gmra.mxu0 %v2979
        %v3790 = vpop.f32.mrf.mxu0
        %v3791 = vadd.f32 %v3778, %v3790
        %v3792 = vpop.f32.mrf.mxu0
        %3793 = vdwg.mxu0
        %3794 = vmatpush.bf16.msra.mxu0 %v2958
        %3795 = vmatpush.bf16.msra.mxu0 %v2942
        %3796 = vmatpush.bf16.msra.mxu0 %v2926
        %3797 = vmatpush.bf16.msra.mxu0 %v2910
        %3798 = vmatpush.bf16.msra.mxu0 %v2894
        %3799 = vmatpush.bf16.msra.mxu0 %v2878
        %3800 = vmatpush.bf16.msra.mxu0 %v2862
        %3801 = vmatpush.bf16.msra.mxu0 %v2846
        %3802 = vmatmul.bf16.gmra.mxu0 %v2980
        %v3803 = vpop.f32.mrf.mxu0
        %v3804 = vadd.f32 %v3791, %v3803
        %v3805 = vpop.f32.mrf.mxu0
        %3806 = vdwg.mxu0
        %3807 = vmatpush.bf16.msra.mxu0 0
        %3808 = vmatpush.bf16.msra.mxu0 0
        %3809 = vmatpush.bf16.msra.mxu0 0
        %3810 = vmatpush.bf16.msra.mxu0 0
        %3811 = vmatpush.bf16.msra.mxu0 0
        %3812 = vmatpush.bf16.msra.mxu0 0
        %3813 = vmatpush.bf16.msra.mxu0 0
        %3814 = vmatpush.bf16.msra.mxu0 %v2974
        %3815 = vmatmul.bf16.gmra.mxu0 %v2986
        %v3816 = vpop.f32.mrf.mxu0
        %v3817 = vadd.f32 %v3804, %v3816
        %v3818 = vpop.f32.mrf.mxu0
        %3819 = vdwg.mxu0
        %v3820 = vld [vmem:[%s740] sm:$0xff]
        %v3821 = vld [vmem:[%s740 + $0x8] sm:$0xff]
        %v3824 = vperm.slane %v3820, 0
        %v3825 = vperm.slane %v3820, 1
        %v3826 = vperm.slane %v3820, 2
        %v3827 = vperm.slane %v3820, 3
        %v3828 = vperm.slane %v3820, 4
        %v3829 = vperm.slane %v3820, 5
        %v3830 = vperm.slane %v3820, 6
        %v3831 = vperm.slane %v3820, 7
        %v3832 = vperm.slane %v3821, 0
        %v3833 = vperm.slane %v3821, 1
        %v3834 = vperm.slane %v3821, 2
        %v3835 = vperm.slane %v3821, 3
        %v3836 = vperm.slane %v3821, 4
        %v3837 = vperm.slane %v3821, 5
        %v3838 = vperm.slane %v3821, 6
        %v3839 = vperm.slane %v3821, 7
        %v3856 = vmul.f32 %v3037, %v3824
        %v3857 = vmul.f32 %v3089, %v3825
        %v3858 = vmul.f32 %v3141, %v3826
        %v3859 = vmul.f32 %v3193, %v3827
        %v3860 = vmul.f32 %v3245, %v3828
        %v3861 = vmul.f32 %v3297, %v3829
        %v3862 = vmul.f32 %v3349, %v3830
        %v3863 = vmul.f32 %v3401, %v3831
        %v3864 = vmul.f32 %v3453, %v3832
        %v3865 = vmul.f32 %v3505, %v3833
        %v3866 = vmul.f32 %v3557, %v3834
        %v3867 = vmul.f32 %v3609, %v3835
        %v3868 = vmul.f32 %v3661, %v3836
        %v3869 = vmul.f32 %v3713, %v3837
        %v3870 = vmul.f32 %v3765, %v3838
        %v3871 = vmul.f32 %v3817, %v3839
        %v3872 = vld [vmem:[%s749] sm:$0xff]
        %v3873 = vld [vmem:[%s749 + $0x8] sm:$0xff]
        %v3876 = vperm.slane %v3872, 0
        %v3877 = vperm.slane %v3872, 1
        %v3878 = vperm.slane %v3872, 2
        %v3879 = vperm.slane %v3872, 3
        %v3880 = vperm.slane %v3872, 4
        %v3881 = vperm.slane %v3872, 5
        %v3882 = vperm.slane %v3872, 6
        %v3883 = vperm.slane %v3872, 7
        %v3884 = vperm.slane %v3873, 0
        %v3885 = vperm.slane %v3873, 1
        %v3886 = vperm.slane %v3873, 2
        %v3887 = vperm.slane %v3873, 3
        %v3888 = vperm.slane %v3873, 4
        %v3889 = vperm.slane %v3873, 5
        %v3890 = vperm.slane %v3873, 6
        %v3891 = vperm.slane %v3873, 7
        %v3908 = vadd.f32 %v3856, %v3876
        %v3909 = vadd.f32 %v3857, %v3877
        %v3910 = vadd.f32 %v3858, %v3878
        %v3911 = vadd.f32 %v3859, %v3879
        %v3912 = vadd.f32 %v3860, %v3880
        %v3913 = vadd.f32 %v3861, %v3881
        %v3914 = vadd.f32 %v3862, %v3882
        %v3915 = vadd.f32 %v3863, %v3883
        %v3916 = vadd.f32 %v3864, %v3884
        %v3917 = vadd.f32 %v3865, %v3885
        %v3918 = vadd.f32 %v3866, %v3886
        %v3919 = vadd.f32 %v3867, %v3887
        %v3920 = vadd.f32 %v3868, %v3888
        %v3921 = vadd.f32 %v3869, %v3889
        %v3922 = vadd.f32 %v3870, %v3890
        %v3923 = vadd.f32 %v3871, %v3891
        %v3924 = vmax.f32 %v3908, 0.0
        %v3925 = vmax.f32 %v3909, 0.0
        %v3926 = vmax.f32 %v3910, 0.0
        %v3927 = vmax.f32 %v3911, 0.0
        %v3928 = vmax.f32 %v3912, 0.0
        %v3929 = vmax.f32 %v3913, 0.0
        %v3930 = vmax.f32 %v3914, 0.0
        %v3931 = vmax.f32 %v3915, 0.0
        %v3932 = vmax.f32 %v3916, 0.0
        %v3933 = vmax.f32 %v3917, 0.0
        %v3934 = vmax.f32 %v3918, 0.0
        %v3935 = vmax.f32 %v3919, 0.0
        %v3936 = vmax.f32 %v3920, 0.0
        %v3937 = vmax.f32 %v3921, 0.0
        %v3938 = vmax.f32 %v3922, 0.0
        %v3939 = vmax.f32 %v3923, 0.0
        %v3940 = vpack.c.bf16 %v3924, %v3924
        %v3941 = vpack.c.bf16 %v3925, %v3925
        %v3942 = vpack.c.bf16 %v3926, %v3926
        %v3943 = vpack.c.bf16 %v3927, %v3927
        %v3944 = vpack.c.bf16 %v3928, %v3928
        %v3945 = vpack.c.bf16 %v3929, %v3929
        %v3946 = vpack.c.bf16 %v3930, %v3930
        %v3947 = vpack.c.bf16 %v3931, %v3931
        %v3948 = vpack.c.bf16 %v3932, %v3932
        %v3949 = vpack.c.bf16 %v3933, %v3933
        %v3950 = vpack.c.bf16 %v3934, %v3934
        %v3951 = vpack.c.bf16 %v3935, %v3935
        %v3952 = vpack.c.bf16 %v3936, %v3936
        %v3953 = vpack.c.bf16 %v3937, %v3937
        %v3954 = vpack.c.bf16 %v3938, %v3938
        %v3955 = vpack.c.bf16 %v3939, %v3939
        %v3956 = vld [vmem:[%s760] sm:$0xff]
        %v3957 = vld [vmem:[%s760 + $0x8] sm:$0xff]
        %v3958 = vld [vmem:[%s760 + $0x10] sm:$0xff]
        %v3959 = vld [vmem:[%s760 + $0x18] sm:$0xff]
        %v3960 = vld [vmem:[%s760 + $0x20] sm:$0xff]
        %v3961 = vld [vmem:[%s760 + $0x28] sm:$0xff]
        %v3962 = vld [vmem:[%s760 + $0x30] sm:$0xff]
        %v3963 = vld [vmem:[%s760 + $0x38] sm:$0xff]
        %v3964 = vld [vmem:[%s760 + $0x40] sm:$0xff]
        %v3965 = vld [vmem:[%s760 + $0x48] sm:$0xff]
        %v3966 = vld [vmem:[%s760 + $0x50] sm:$0xff]
        %v3967 = vld [vmem:[%s760 + $0x58] sm:$0xff]
        %v3968 = vld [vmem:[%s760 + $0x60] sm:$0xff]
        %v3969 = vld [vmem:[%s760 + $0x68] sm:$0xff]
        %v3970 = vld [vmem:[%s760 + $0x70] sm:$0xff]
        %v3971 = vld [vmem:[%s760 + $0x78] sm:$0xff]
        %v3972 = vld [vmem:[%s760 + $0x80] sm:$0xff]
        %v3973 = vld [vmem:[%s760 + $0x88] sm:$0xff]
        %v3974 = vld [vmem:[%s760 + $0x90] sm:$0xff]
        %v3975 = vld [vmem:[%s760 + $0x98] sm:$0xff]
        %v3976 = vld [vmem:[%s760 + $0xa0] sm:$0xff]
        %v3977 = vld [vmem:[%s760 + $0xa8] sm:$0xff]
        %v3978 = vld [vmem:[%s760 + $0xb0] sm:$0xff]
        %v3979 = vld [vmem:[%s760 + $0xb8] sm:$0xff]
        %v3980 = vld [vmem:[%s760 + $0xc0] sm:$0xff]
        %v3981 = vld [vmem:[%s760 + $0xc8] sm:$0xff]
        %v3982 = vld [vmem:[%s760 + $0xd0] sm:$0xff]
        %v3983 = vld [vmem:[%s760 + $0xd8] sm:$0xff]
        %v3984 = vld [vmem:[%s760 + $0xe0] sm:$0xff]
        %v3985 = vld [vmem:[%s760 + $0xe8] sm:$0xff]
        %v3986 = vld [vmem:[%s760 + $0xf0] sm:$0xff]
        %v3987 = vld [vmem:[%s760 + $0xf8] sm:$0xff]
        %v3988 = vld [vmem:[%s760 + $0x100] sm:$0xff]
        %v3989 = vld [vmem:[%s760 + $0x108] sm:$0xff]
        %v3990 = vld [vmem:[%s760 + $0x110] sm:$0xff]
        %v3991 = vld [vmem:[%s760 + $0x118] sm:$0xff]
        %v3992 = vld [vmem:[%s760 + $0x120] sm:$0xff]
        %v3993 = vld [vmem:[%s760 + $0x128] sm:$0xff]
        %v3994 = vld [vmem:[%s760 + $0x130] sm:$0xff]
        %v3995 = vld [vmem:[%s760 + $0x138] sm:$0xff]
        %v3996 = vld [vmem:[%s760 + $0x140] sm:$0xff]
        %v3997 = vld [vmem:[%s760 + $0x148] sm:$0xff]
        %v3998 = vld [vmem:[%s760 + $0x150] sm:$0xff]
        %v3999 = vld [vmem:[%s760 + $0x158] sm:$0xff]
        %v4000 = vld [vmem:[%s760 + $0x160] sm:$0xff]
        %v4001 = vld [vmem:[%s760 + $0x168] sm:$0xff]
        %v4002 = vld [vmem:[%s760 + $0x170] sm:$0xff]
        %v4003 = vld [vmem:[%s760 + $0x178] sm:$0xff]
        %v4004 = vld [vmem:[%s760 + $0x180] sm:$0xff]
        %v4005 = vld [vmem:[%s760 + $0x188] sm:$0xff]
        %v4006 = vld [vmem:[%s760 + $0x190] sm:$0xff]
        %v4007 = vld [vmem:[%s760 + $0x198] sm:$0xff]
        %v4008 = vld [vmem:[%s760 + $0x1a0] sm:$0xff]
        %v4009 = vld [vmem:[%s760 + $0x1a8] sm:$0xff]
        %v4010 = vld [vmem:[%s760 + $0x1b0] sm:$0xff]
        %v4011 = vld [vmem:[%s760 + $0x1b8] sm:$0xff]
        %v4012 = vld [vmem:[%s760 + $0x1c0] sm:$0xff]
        %v4013 = vld [vmem:[%s760 + $0x1c8] sm:$0xff]
        %v4014 = vld [vmem:[%s760 + $0x1d0] sm:$0xff]
        %v4015 = vld [vmem:[%s760 + $0x1d8] sm:$0xff]
        %v4016 = vld [vmem:[%s760 + $0x1e0] sm:$0xff]
        %v4017 = vld [vmem:[%s760 + $0x1e8] sm:$0xff]
        %v4018 = vld [vmem:[%s760 + $0x1f0] sm:$0xff]
        %v4019 = vld [vmem:[%s760 + $0x1f8] sm:$0xff]
        %v4020 = vld [vmem:[%s760 + $0x200] sm:$0xff]
        %v4021 = vld [vmem:[%s760 + $0x208] sm:$0xff]
        %v4022 = vld [vmem:[%s760 + $0x210] sm:$0xff]
        %v4023 = vld [vmem:[%s760 + $0x218] sm:$0xff]
        %v4024 = vld [vmem:[%s760 + $0x220] sm:$0xff]
        %v4025 = vld [vmem:[%s760 + $0x228] sm:$0xff]
        %v4026 = vld [vmem:[%s760 + $0x230] sm:$0xff]
        %v4027 = vld [vmem:[%s760 + $0x238] sm:$0xff]
        %v4028 = vld [vmem:[%s760 + $0x240] sm:$0xff]
        %v4029 = vld [vmem:[%s760 + $0x248] sm:$0xff]
        %v4030 = vld [vmem:[%s760 + $0x250] sm:$0xff]
        %v4031 = vld [vmem:[%s760 + $0x258] sm:$0xff]
        %v4032 = vld [vmem:[%s760 + $0x260] sm:$0xff]
        %v4033 = vld [vmem:[%s760 + $0x268] sm:$0xff]
        %v4034 = vld [vmem:[%s760 + $0x270] sm:$0xff]
        %v4035 = vld [vmem:[%s760 + $0x278] sm:$0xff]
        %v4036 = vld [vmem:[%s760 + $0x280] sm:$0xff]
        %v4037 = vld [vmem:[%s760 + $0x288] sm:$0xff]
        %v4038 = vld [vmem:[%s760 + $0x290] sm:$0xff]
        %v4039 = vld [vmem:[%s760 + $0x298] sm:$0xff]
        %v4040 = vld [vmem:[%s760 + $0x2a0] sm:$0xff]
        %v4041 = vld [vmem:[%s760 + $0x2a8] sm:$0xff]
        %v4042 = vld [vmem:[%s760 + $0x2b0] sm:$0xff]
        %v4043 = vld [vmem:[%s760 + $0x2b8] sm:$0xff]
        %v4044 = vld [vmem:[%s760 + $0x2c0] sm:$0xff]
        %v4045 = vld [vmem:[%s760 + $0x2c8] sm:$0xff]
        %v4046 = vld [vmem:[%s760 + $0x2d0] sm:$0xff]
        %v4047 = vld [vmem:[%s760 + $0x2d8] sm:$0xff]
        %v4048 = vld [vmem:[%s760 + $0x2e0] sm:$0xff]
        %v4049 = vld [vmem:[%s760 + $0x2e8] sm:$0xff]
        %v4050 = vld [vmem:[%s760 + $0x2f0] sm:$0xff]
        %v4051 = vld [vmem:[%s760 + $0x2f8] sm:$0xff]
        %v4052 = vld [vmem:[%s760 + $0x300] sm:$0xff]
        %v4053 = vld [vmem:[%s760 + $0x308] sm:$0xff]
        %v4054 = vld [vmem:[%s760 + $0x310] sm:$0xff]
        %v4055 = vld [vmem:[%s760 + $0x318] sm:$0xff]
        %v4056 = vld [vmem:[%s760 + $0x320] sm:$0xff]
        %v4057 = vld [vmem:[%s760 + $0x328] sm:$0xff]
        %v4058 = vld [vmem:[%s760 + $0x330] sm:$0xff]
        %v4059 = vld [vmem:[%s760 + $0x338] sm:$0xff]
        %v4060 = vld [vmem:[%s760 + $0x340] sm:$0xff]
        %v4061 = vld [vmem:[%s760 + $0x348] sm:$0xff]
        %v4062 = vld [vmem:[%s760 + $0x350] sm:$0xff]
        %v4063 = vld [vmem:[%s760 + $0x358] sm:$0xff]
        %v4064 = vld [vmem:[%s760 + $0x360] sm:$0xff]
        %v4065 = vld [vmem:[%s760 + $0x368] sm:$0xff]
        %v4066 = vld [vmem:[%s760 + $0x370] sm:$0xff]
        %v4067 = vld [vmem:[%s760 + $0x378] sm:$0xff]
        %v4068 = vld [vmem:[%s760 + $0x380] sm:$0xff]
        %v4069 = vld [vmem:[%s760 + $0x388] sm:$0xff]
        %v4070 = vld [vmem:[%s760 + $0x390] sm:$0xff]
        %v4071 = vld [vmem:[%s760 + $0x398] sm:$0xff]
        %v4072 = vld [vmem:[%s760 + $0x3a0] sm:$0xff]
        %v4073 = vld [vmem:[%s760 + $0x3a8] sm:$0xff]
        %v4074 = vld [vmem:[%s760 + $0x3b0] sm:$0xff]
        %v4075 = vld [vmem:[%s760 + $0x3b8] sm:$0xff]
        %v4076 = vld [vmem:[%s760 + $0x3c0] sm:$0xff]
        %v4077 = vld [vmem:[%s760 + $0x3c8] sm:$0xff]
        %v4078 = vld [vmem:[%s760 + $0x3d0] sm:$0xff]
        %v4079 = vld [vmem:[%s760 + $0x3d8] sm:$0xff]
        %v4080 = vld [vmem:[%s760 + $0x3e0] sm:$0xff]
        %v4081 = vld [vmem:[%s760 + $0x3e8] sm:$0xff]
        %v4082 = vld [vmem:[%s760 + $0x3f0] sm:$0xff]
        %v4083 = vld [vmem:[%s760 + $0x3f8] sm:$0xff]
        %v4084 = vld [vmem:[%s760 + $0x400] sm:$0xff]
        %v4085 = vld [vmem:[%s760 + $0x408] sm:$0xff]
        %v4086 = vld [vmem:[%s760 + $0x410] sm:$0xff]
        %v4087 = vld [vmem:[%s760 + $0x418] sm:$0xff]
        %v4088 = vld [vmem:[%s760 + $0x420] sm:$0xff]
        %v4089 = vld [vmem:[%s760 + $0x428] sm:$0xff]
        %v4090 = vld [vmem:[%s760 + $0x430] sm:$0xff]
        %v4091 = vld [vmem:[%s760 + $0x438] sm:$0xff]
        %v4092 = vld [vmem:[%s760 + $0x440] sm:$0xff]
        %v4093 = vld [vmem:[%s760 + $0x448] sm:$0xff]
        %v4094 = vld [vmem:[%s760 + $0x450] sm:$0xff]
        %v4095 = vld [vmem:[%s760 + $0x458] sm:$0xff]
        %v4096 = vld [vmem:[%s760 + $0x460] sm:$0xff]
        %v4097 = vld [vmem:[%s760 + $0x468] sm:$0xff]
        %v4098 = vld [vmem:[%s760 + $0x470] sm:$0xff]
        %v4099 = vld [vmem:[%s760 + $0x478] sm:$0xff]
        %v4100 = vld [vmem:[%s760 + $0x480] sm:$0xff]
        %v4101 = vld [vmem:[%s760 + $0x488] sm:$0xff]
        %v4102 = vld [vmem:[%s760 + $0x490] sm:$0xff]
        %v4103 = vld [vmem:[%s760 + $0x498] sm:$0xff]
        %v4104 = vld [vmem:[%s760 + $0x4a0] sm:$0xff]
        %v4105 = vld [vmem:[%s760 + $0x4a8] sm:$0xff]
        %v4106 = vld [vmem:[%s760 + $0x4b0] sm:$0xff]
        %v4107 = vld [vmem:[%s760 + $0x4b8] sm:$0xff]
        %v4108 = vld [vmem:[%s760 + $0x4c0] sm:$0xff]
        %v4109 = vld [vmem:[%s760 + $0x4c8] sm:$0xff]
        %v4110 = vld [vmem:[%s760 + $0x4d0] sm:$0xff]
        %v4111 = vld [vmem:[%s760 + $0x4d8] sm:$0xff]
        %v4112 = vld [vmem:[%s760 + $0x4e0] sm:$0xff]
        %v4113 = vld [vmem:[%s760 + $0x4e8] sm:$0xff]
        %v4114 = vld [vmem:[%s760 + $0x4f0] sm:$0xff]
        %v4115 = vld [vmem:[%s760 + $0x4f8] sm:$0xff]
        %v4116 = vld [vmem:[%s760 + $0x500] sm:$0xff]
        %v4117 = vld [vmem:[%s760 + $0x508] sm:$0xff]
        %v4118 = vld [vmem:[%s760 + $0x510] sm:$0xff]
        %v4119 = vld [vmem:[%s760 + $0x518] sm:$0xff]
        %v4120 = vld [vmem:[%s760 + $0x520] sm:$0xff]
        %v4121 = vld [vmem:[%s760 + $0x528] sm:$0xff]
        %v4122 = vld [vmem:[%s760 + $0x530] sm:$0xff]
        %v4123 = vld [vmem:[%s760 + $0x538] sm:$0xff]
        %v4124 = vld [vmem:[%s760 + $0x540] sm:$0xff]
        %v4125 = vld [vmem:[%s760 + $0x548] sm:$0xff]
        %v4126 = vld [vmem:[%s760 + $0x550] sm:$0xff]
        %v4127 = vld [vmem:[%s760 + $0x558] sm:$0xff]
        %v4128 = vld [vmem:[%s760 + $0x560] sm:$0xff]
        %v4129 = vld [vmem:[%s760 + $0x568] sm:$0xff]
        %v4130 = vld [vmem:[%s760 + $0x570] sm:$0xff]
        %v4131 = vld [vmem:[%s760 + $0x578] sm:$0xff]
        %v4132 = vld [vmem:[%s760 + $0x580] sm:$0xff]
        %v4133 = vld [vmem:[%s760 + $0x588] sm:$0xff]
        %v4134 = vld [vmem:[%s760 + $0x590] sm:$0xff]
        %v4135 = vld [vmem:[%s760 + $0x598] sm:$0xff]
        %v4136 = vld [vmem:[%s760 + $0x5a0] sm:$0xff]
        %v4137 = vld [vmem:[%s760 + $0x5a8] sm:$0xff]
        %v4138 = vld [vmem:[%s760 + $0x5b0] sm:$0xff]
        %v4139 = vld [vmem:[%s760 + $0x5b8] sm:$0xff]
        %v4140 = vld [vmem:[%s760 + $0x5c0] sm:$0xff]
        %v4141 = vld [vmem:[%s760 + $0x5c8] sm:$0xff]
        %v4142 = vld [vmem:[%s760 + $0x5d0] sm:$0xff]
        %v4143 = vld [vmem:[%s760 + $0x5d8] sm:$0xff]
        %v4144 = vld [vmem:[%s760 + $0x5e0] sm:$0xff]
        %v4145 = vld [vmem:[%s760 + $0x5e8] sm:$0xff]
        %v4146 = vld [vmem:[%s760 + $0x5f0] sm:$0xff]
        %v4147 = vld [vmem:[%s760 + $0x5f8] sm:$0xff]
        %v4148 = vld [vmem:[%s760 + $0x600] sm:$0xff]
        %v4149 = vld [vmem:[%s760 + $0x608] sm:$0xff]
        %v4150 = vld [vmem:[%s760 + $0x610] sm:$0xff]
        %v4151 = vld [vmem:[%s760 + $0x618] sm:$0xff]
        %v4152 = vld [vmem:[%s760 + $0x620] sm:$0xff]
        %v4153 = vld [vmem:[%s760 + $0x628] sm:$0xff]
        %v4154 = vld [vmem:[%s760 + $0x630] sm:$0xff]
        %v4155 = vld [vmem:[%s760 + $0x638] sm:$0xff]
        %v4156 = vld [vmem:[%s760 + $0x640] sm:$0xff]
        %v4157 = vld [vmem:[%s760 + $0x648] sm:$0xff]
        %v4158 = vld [vmem:[%s760 + $0x650] sm:$0xff]
        %v4159 = vld [vmem:[%s760 + $0x658] sm:$0xff]
        %v4160 = vld [vmem:[%s760 + $0x660] sm:$0xff]
        %v4161 = vld [vmem:[%s760 + $0x668] sm:$0xff]
        %v4162 = vld [vmem:[%s760 + $0x670] sm:$0xff]
        %v4163 = vld [vmem:[%s760 + $0x678] sm:$0xff]
        %v4164 = vld [vmem:[%s760 + $0x680] sm:$0xff]
        %v4165 = vld [vmem:[%s760 + $0x688] sm:$0xff]
        %v4166 = vld [vmem:[%s760 + $0x690] sm:$0xff]
        %v4167 = vld [vmem:[%s760 + $0x698] sm:$0xff]
        %v4168 = vld [vmem:[%s760 + $0x6a0] sm:$0xff]
        %v4169 = vld [vmem:[%s760 + $0x6a8] sm:$0xff]
        %v4170 = vld [vmem:[%s760 + $0x6b0] sm:$0xff]
        %v4171 = vld [vmem:[%s760 + $0x6b8] sm:$0xff]
        %v4172 = vld [vmem:[%s760 + $0x6c0] sm:$0xff]
        %v4173 = vld [vmem:[%s760 + $0x6c8] sm:$0xff]
        %v4174 = vld [vmem:[%s760 + $0x6d0] sm:$0xff]
        %v4175 = vld [vmem:[%s760 + $0x6d8] sm:$0xff]
        %v4176 = vld [vmem:[%s760 + $0x6e0] sm:$0xff]
        %v4177 = vld [vmem:[%s760 + $0x6e8] sm:$0xff]
        %v4178 = vld [vmem:[%s760 + $0x6f0] sm:$0xff]
        %v4179 = vld [vmem:[%s760 + $0x6f8] sm:$0xff]
        %v4180 = vld [vmem:[%s760 + $0x700] sm:$0xff]
        %v4181 = vld [vmem:[%s760 + $0x708] sm:$0xff]
        %v4182 = vld [vmem:[%s760 + $0x710] sm:$0xff]
        %v4183 = vld [vmem:[%s760 + $0x718] sm:$0xff]
        %v4184 = vld [vmem:[%s760 + $0x720] sm:$0xff]
        %v4185 = vld [vmem:[%s760 + $0x728] sm:$0xff]
        %v4186 = vld [vmem:[%s760 + $0x730] sm:$0xff]
        %v4187 = vld [vmem:[%s760 + $0x738] sm:$0xff]
        %v4188 = vld [vmem:[%s760 + $0x740] sm:$0xff]
        %v4189 = vld [vmem:[%s760 + $0x748] sm:$0xff]
        %v4190 = vld [vmem:[%s760 + $0x750] sm:$0xff]
        %v4191 = vld [vmem:[%s760 + $0x758] sm:$0xff]
        %v4192 = vld [vmem:[%s760 + $0x760] sm:$0xff]
        %v4193 = vld [vmem:[%s760 + $0x768] sm:$0xff]
        %v4194 = vld [vmem:[%s760 + $0x770] sm:$0xff]
        %v4195 = vld [vmem:[%s760 + $0x778] sm:$0xff]
        %v4196 = vld [vmem:[%s760 + $0x780] sm:$0xff]
        %v4197 = vld [vmem:[%s760 + $0x788] sm:$0xff]
        %v4198 = vld [vmem:[%s760 + $0x790] sm:$0xff]
        %v4199 = vld [vmem:[%s760 + $0x798] sm:$0xff]
        %v4200 = vld [vmem:[%s760 + $0x7a0] sm:$0xff]
        %v4201 = vld [vmem:[%s760 + $0x7a8] sm:$0xff]
        %v4202 = vld [vmem:[%s760 + $0x7b0] sm:$0xff]
        %v4203 = vld [vmem:[%s760 + $0x7b8] sm:$0xff]
        %v4204 = vld [vmem:[%s760 + $0x7c0] sm:$0xff]
        %v4205 = vld [vmem:[%s760 + $0x7c8] sm:$0xff]
        %v4206 = vld [vmem:[%s760 + $0x7d0] sm:$0xff]
        %v4207 = vld [vmem:[%s760 + $0x7d8] sm:$0xff]
        %v4208 = vld [vmem:[%s760 + $0x7e0] sm:$0xff]
        %v4209 = vld [vmem:[%s760 + $0x7e8] sm:$0xff]
        %v4210 = vld [vmem:[%s760 + $0x7f0] sm:$0xff]
        %v4211 = vld [vmem:[%s760 + $0x7f8] sm:$0xff]
        %v4212 = vunpack.c.0.s8 %v3956
        %v4213 = vunpack.c.0.s8 %v3957
        %v4214 = vunpack.c.0.s8 %v3958
        %v4215 = vunpack.c.0.s8 %v3959
        %v4216 = vunpack.c.1.s8 %v3956
        %v4217 = vunpack.c.1.s8 %v3957
        %v4218 = vunpack.c.1.s8 %v3958
        %v4219 = vunpack.c.1.s8 %v3959
        %v4220 = vunpack.c.2.s8 %v3956
        %v4221 = vunpack.c.2.s8 %v3957
        %v4222 = vunpack.c.2.s8 %v3958
        %v4223 = vunpack.c.2.s8 %v3959
        %v4224 = vunpack.c.3.s8 %v3956
        %v4225 = vunpack.c.3.s8 %v3957
        %v4226 = vunpack.c.3.s8 %v3958
        %v4227 = vunpack.c.3.s8 %v3959
        %v4228 = vunpack.c.0.s8 %v3960
        %v4229 = vunpack.c.0.s8 %v3961
        %v4230 = vunpack.c.0.s8 %v3962
        %v4231 = vunpack.c.0.s8 %v3963
        %v4232 = vunpack.c.1.s8 %v3960
        %v4233 = vunpack.c.1.s8 %v3961
        %v4234 = vunpack.c.1.s8 %v3962
        %v4235 = vunpack.c.1.s8 %v3963
        %v4236 = vunpack.c.2.s8 %v3960
        %v4237 = vunpack.c.2.s8 %v3961
        %v4238 = vunpack.c.2.s8 %v3962
        %v4239 = vunpack.c.2.s8 %v3963
        %v4240 = vunpack.c.3.s8 %v3960
        %v4241 = vunpack.c.3.s8 %v3961
        %v4242 = vunpack.c.3.s8 %v3962
        %v4243 = vunpack.c.3.s8 %v3963
        %v4244 = vunpack.c.0.s8 %v3964
        %v4245 = vunpack.c.0.s8 %v3965
        %v4246 = vunpack.c.0.s8 %v3966
        %v4247 = vunpack.c.0.s8 %v3967
        %v4248 = vunpack.c.1.s8 %v3964
        %v4249 = vunpack.c.1.s8 %v3965
        %v4250 = vunpack.c.1.s8 %v3966
        %v4251 = vunpack.c.1.s8 %v3967
        %v4252 = vunpack.c.2.s8 %v3964
        %v4253 = vunpack.c.2.s8 %v3965
        %v4254 = vunpack.c.2.s8 %v3966
        %v4255 = vunpack.c.2.s8 %v3967
        %v4256 = vunpack.c.3.s8 %v3964
        %v4257 = vunpack.c.3.s8 %v3965
        %v4258 = vunpack.c.3.s8 %v3966
        %v4259 = vunpack.c.3.s8 %v3967
        %v4260 = vunpack.c.0.s8 %v3968
        %v4261 = vunpack.c.0.s8 %v3969
        %v4262 = vunpack.c.0.s8 %v3970
        %v4263 = vunpack.c.0.s8 %v3971
        %v4264 = vunpack.c.1.s8 %v3968
        %v4265 = vunpack.c.1.s8 %v3969
        %v4266 = vunpack.c.1.s8 %v3970
        %v4267 = vunpack.c.1.s8 %v3971
        %v4268 = vunpack.c.2.s8 %v3968
        %v4269 = vunpack.c.2.s8 %v3969
        %v4270 = vunpack.c.2.s8 %v3970
        %v4271 = vunpack.c.2.s8 %v3971
        %v4272 = vunpack.c.3.s8 %v3968
        %v4273 = vunpack.c.3.s8 %v3969
        %v4274 = vunpack.c.3.s8 %v3970
        %v4275 = vunpack.c.3.s8 %v3971
        %v4276 = vunpack.c.0.s8 %v3972
        %v4277 = vunpack.c.0.s8 %v3973
        %v4278 = vunpack.c.0.s8 %v3974
        %v4279 = vunpack.c.0.s8 %v3975
        %v4280 = vunpack.c.1.s8 %v3972
        %v4281 = vunpack.c.1.s8 %v3973
        %v4282 = vunpack.c.1.s8 %v3974
        %v4283 = vunpack.c.1.s8 %v3975
        %v4284 = vunpack.c.2.s8 %v3972
        %v4285 = vunpack.c.2.s8 %v3973
        %v4286 = vunpack.c.2.s8 %v3974
        %v4287 = vunpack.c.2.s8 %v3975
        %v4288 = vunpack.c.3.s8 %v3972
        %v4289 = vunpack.c.3.s8 %v3973
        %v4290 = vunpack.c.3.s8 %v3974
        %v4291 = vunpack.c.3.s8 %v3975
        %v4292 = vunpack.c.0.s8 %v3976
        %v4293 = vunpack.c.0.s8 %v3977
        %v4294 = vunpack.c.0.s8 %v3978
        %v4295 = vunpack.c.0.s8 %v3979
        %v4296 = vunpack.c.1.s8 %v3976
        %v4297 = vunpack.c.1.s8 %v3977
        %v4298 = vunpack.c.1.s8 %v3978
        %v4299 = vunpack.c.1.s8 %v3979
        %v4300 = vunpack.c.2.s8 %v3976
        %v4301 = vunpack.c.2.s8 %v3977
        %v4302 = vunpack.c.2.s8 %v3978
        %v4303 = vunpack.c.2.s8 %v3979
        %v4304 = vunpack.c.3.s8 %v3976
        %v4305 = vunpack.c.3.s8 %v3977
        %v4306 = vunpack.c.3.s8 %v3978
        %v4307 = vunpack.c.3.s8 %v3979
        %v4308 = vunpack.c.0.s8 %v3980
        %v4309 = vunpack.c.0.s8 %v3981
        %v4310 = vunpack.c.0.s8 %v3982
        %v4311 = vunpack.c.0.s8 %v3983
        %v4312 = vunpack.c.1.s8 %v3980
        %v4313 = vunpack.c.1.s8 %v3981
        %v4314 = vunpack.c.1.s8 %v3982
        %v4315 = vunpack.c.1.s8 %v3983
        %v4316 = vunpack.c.2.s8 %v3980
        %v4317 = vunpack.c.2.s8 %v3981
        %v4318 = vunpack.c.2.s8 %v3982
        %v4319 = vunpack.c.2.s8 %v3983
        %v4320 = vunpack.c.3.s8 %v3980
        %v4321 = vunpack.c.3.s8 %v3981
        %v4322 = vunpack.c.3.s8 %v3982
        %v4323 = vunpack.c.3.s8 %v3983
        %v4324 = vunpack.c.0.s8 %v3984
        %v4325 = vunpack.c.0.s8 %v3985
        %v4326 = vunpack.c.0.s8 %v3986
        %v4327 = vunpack.c.0.s8 %v3987
        %v4328 = vunpack.c.1.s8 %v3984
        %v4329 = vunpack.c.1.s8 %v3985
        %v4330 = vunpack.c.1.s8 %v3986
        %v4331 = vunpack.c.1.s8 %v3987
        %v4332 = vunpack.c.2.s8 %v3984
        %v4333 = vunpack.c.2.s8 %v3985
        %v4334 = vunpack.c.2.s8 %v3986
        %v4335 = vunpack.c.2.s8 %v3987
        %v4336 = vunpack.c.3.s8 %v3984
        %v4337 = vunpack.c.3.s8 %v3985
        %v4338 = vunpack.c.3.s8 %v3986
        %v4339 = vunpack.c.3.s8 %v3987
        %v4340 = vunpack.c.0.s8 %v3988
        %v4341 = vunpack.c.0.s8 %v3989
        %v4342 = vunpack.c.0.s8 %v3990
        %v4343 = vunpack.c.0.s8 %v3991
        %v4344 = vunpack.c.1.s8 %v3988
        %v4345 = vunpack.c.1.s8 %v3989
        %v4346 = vunpack.c.1.s8 %v3990
        %v4347 = vunpack.c.1.s8 %v3991
        %v4348 = vunpack.c.2.s8 %v3988
        %v4349 = vunpack.c.2.s8 %v3989
        %v4350 = vunpack.c.2.s8 %v3990
        %v4351 = vunpack.c.2.s8 %v3991
        %v4352 = vunpack.c.3.s8 %v3988
        %v4353 = vunpack.c.3.s8 %v3989
        %v4354 = vunpack.c.3.s8 %v3990
        %v4355 = vunpack.c.3.s8 %v3991
        %v4356 = vunpack.c.0.s8 %v3992
        %v4357 = vunpack.c.0.s8 %v3993
        %v4358 = vunpack.c.0.s8 %v3994
        %v4359 = vunpack.c.0.s8 %v3995
        %v4360 = vunpack.c.1.s8 %v3992
        %v4361 = vunpack.c.1.s8 %v3993
        %v4362 = vunpack.c.1.s8 %v3994
        %v4363 = vunpack.c.1.s8 %v3995
        %v4364 = vunpack.c.2.s8 %v3992
        %v4365 = vunpack.c.2.s8 %v3993
        %v4366 = vunpack.c.2.s8 %v3994
        %v4367 = vunpack.c.2.s8 %v3995
        %v4368 = vunpack.c.3.s8 %v3992
        %v4369 = vunpack.c.3.s8 %v3993
        %v4370 = vunpack.c.3.s8 %v3994
        %v4371 = vunpack.c.3.s8 %v3995
        %v4372 = vunpack.c.0.s8 %v3996
        %v4373 = vunpack.c.0.s8 %v3997
        %v4374 = vunpack.c.0.s8 %v3998
        %v4375 = vunpack.c.0.s8 %v3999
        %v4376 = vunpack.c.1.s8 %v3996
        %v4377 = vunpack.c.1.s8 %v3997
        %v4378 = vunpack.c.1.s8 %v3998
        %v4379 = vunpack.c.1.s8 %v3999
        %v4380 = vunpack.c.2.s8 %v3996
        %v4381 = vunpack.c.2.s8 %v3997
        %v4382 = vunpack.c.2.s8 %v3998
        %v4383 = vunpack.c.2.s8 %v3999
        %v4384 = vunpack.c.3.s8 %v3996
        %v4385 = vunpack.c.3.s8 %v3997
        %v4386 = vunpack.c.3.s8 %v3998
        %v4387 = vunpack.c.3.s8 %v3999
        %v4388 = vunpack.c.0.s8 %v4000
        %v4389 = vunpack.c.0.s8 %v4001
        %v4390 = vunpack.c.0.s8 %v4002
        %v4391 = vunpack.c.0.s8 %v4003
        %v4392 = vunpack.c.1.s8 %v4000
        %v4393 = vunpack.c.1.s8 %v4001
        %v4394 = vunpack.c.1.s8 %v4002
        %v4395 = vunpack.c.1.s8 %v4003
        %v4396 = vunpack.c.2.s8 %v4000
        %v4397 = vunpack.c.2.s8 %v4001
        %v4398 = vunpack.c.2.s8 %v4002
        %v4399 = vunpack.c.2.s8 %v4003
        %v4400 = vunpack.c.3.s8 %v4000
        %v4401 = vunpack.c.3.s8 %v4001
        %v4402 = vunpack.c.3.s8 %v4002
        %v4403 = vunpack.c.3.s8 %v4003
        %v4404 = vunpack.c.0.s8 %v4004
        %v4405 = vunpack.c.0.s8 %v4005
        %v4406 = vunpack.c.0.s8 %v4006
        %v4407 = vunpack.c.0.s8 %v4007
        %v4408 = vunpack.c.1.s8 %v4004
        %v4409 = vunpack.c.1.s8 %v4005
        %v4410 = vunpack.c.1.s8 %v4006
        %v4411 = vunpack.c.1.s8 %v4007
        %v4412 = vunpack.c.2.s8 %v4004
        %v4413 = vunpack.c.2.s8 %v4005
        %v4414 = vunpack.c.2.s8 %v4006
        %v4415 = vunpack.c.2.s8 %v4007
        %v4416 = vunpack.c.3.s8 %v4004
        %v4417 = vunpack.c.3.s8 %v4005
        %v4418 = vunpack.c.3.s8 %v4006
        %v4419 = vunpack.c.3.s8 %v4007
        %v4420 = vunpack.c.0.s8 %v4008
        %v4421 = vunpack.c.0.s8 %v4009
        %v4422 = vunpack.c.0.s8 %v4010
        %v4423 = vunpack.c.0.s8 %v4011
        %v4424 = vunpack.c.1.s8 %v4008
        %v4425 = vunpack.c.1.s8 %v4009
        %v4426 = vunpack.c.1.s8 %v4010
        %v4427 = vunpack.c.1.s8 %v4011
        %v4428 = vunpack.c.2.s8 %v4008
        %v4429 = vunpack.c.2.s8 %v4009
        %v4430 = vunpack.c.2.s8 %v4010
        %v4431 = vunpack.c.2.s8 %v4011
        %v4432 = vunpack.c.3.s8 %v4008
        %v4433 = vunpack.c.3.s8 %v4009
        %v4434 = vunpack.c.3.s8 %v4010
        %v4435 = vunpack.c.3.s8 %v4011
        %v4436 = vunpack.c.0.s8 %v4012
        %v4437 = vunpack.c.0.s8 %v4013
        %v4438 = vunpack.c.0.s8 %v4014
        %v4439 = vunpack.c.0.s8 %v4015
        %v4440 = vunpack.c.1.s8 %v4012
        %v4441 = vunpack.c.1.s8 %v4013
        %v4442 = vunpack.c.1.s8 %v4014
        %v4443 = vunpack.c.1.s8 %v4015
        %v4444 = vunpack.c.2.s8 %v4012
        %v4445 = vunpack.c.2.s8 %v4013
        %v4446 = vunpack.c.2.s8 %v4014
        %v4447 = vunpack.c.2.s8 %v4015
        %v4448 = vunpack.c.3.s8 %v4012
        %v4449 = vunpack.c.3.s8 %v4013
        %v4450 = vunpack.c.3.s8 %v4014
        %v4451 = vunpack.c.3.s8 %v4015
        %v4452 = vunpack.c.0.s8 %v4016
        %v4453 = vunpack.c.0.s8 %v4017
        %v4454 = vunpack.c.0.s8 %v4018
        %v4455 = vunpack.c.0.s8 %v4019
        %v4456 = vunpack.c.1.s8 %v4016
        %v4457 = vunpack.c.1.s8 %v4017
        %v4458 = vunpack.c.1.s8 %v4018
        %v4459 = vunpack.c.1.s8 %v4019
        %v4460 = vunpack.c.2.s8 %v4016
        %v4461 = vunpack.c.2.s8 %v4017
        %v4462 = vunpack.c.2.s8 %v4018
        %v4463 = vunpack.c.2.s8 %v4019
        %v4464 = vunpack.c.3.s8 %v4016
        %v4465 = vunpack.c.3.s8 %v4017
        %v4466 = vunpack.c.3.s8 %v4018
        %v4467 = vunpack.c.3.s8 %v4019
        %v4468 = vunpack.c.0.s8 %v4020
        %v4469 = vunpack.c.0.s8 %v4021
        %v4470 = vunpack.c.0.s8 %v4022
        %v4471 = vunpack.c.0.s8 %v4023
        %v4472 = vunpack.c.1.s8 %v4020
        %v4473 = vunpack.c.1.s8 %v4021
        %v4474 = vunpack.c.1.s8 %v4022
        %v4475 = vunpack.c.1.s8 %v4023
        %v4476 = vunpack.c.2.s8 %v4020
        %v4477 = vunpack.c.2.s8 %v4021
        %v4478 = vunpack.c.2.s8 %v4022
        %v4479 = vunpack.c.2.s8 %v4023
        %v4480 = vunpack.c.3.s8 %v4020
        %v4481 = vunpack.c.3.s8 %v4021
        %v4482 = vunpack.c.3.s8 %v4022
        %v4483 = vunpack.c.3.s8 %v4023
        %v4484 = vunpack.c.0.s8 %v4024
        %v4485 = vunpack.c.0.s8 %v4025
        %v4486 = vunpack.c.0.s8 %v4026
        %v4487 = vunpack.c.0.s8 %v4027
        %v4488 = vunpack.c.1.s8 %v4024
        %v4489 = vunpack.c.1.s8 %v4025
        %v4490 = vunpack.c.1.s8 %v4026
        %v4491 = vunpack.c.1.s8 %v4027
        %v4492 = vunpack.c.2.s8 %v4024
        %v4493 = vunpack.c.2.s8 %v4025
        %v4494 = vunpack.c.2.s8 %v4026
        %v4495 = vunpack.c.2.s8 %v4027
        %v4496 = vunpack.c.3.s8 %v4024
        %v4497 = vunpack.c.3.s8 %v4025
        %v4498 = vunpack.c.3.s8 %v4026
        %v4499 = vunpack.c.3.s8 %v4027
        %v4500 = vunpack.c.0.s8 %v4028
        %v4501 = vunpack.c.0.s8 %v4029
        %v4502 = vunpack.c.0.s8 %v4030
        %v4503 = vunpack.c.0.s8 %v4031
        %v4504 = vunpack.c.1.s8 %v4028
        %v4505 = vunpack.c.1.s8 %v4029
        %v4506 = vunpack.c.1.s8 %v4030
        %v4507 = vunpack.c.1.s8 %v4031
        %v4508 = vunpack.c.2.s8 %v4028
        %v4509 = vunpack.c.2.s8 %v4029
        %v4510 = vunpack.c.2.s8 %v4030
        %v4511 = vunpack.c.2.s8 %v4031
        %v4512 = vunpack.c.3.s8 %v4028
        %v4513 = vunpack.c.3.s8 %v4029
        %v4514 = vunpack.c.3.s8 %v4030
        %v4515 = vunpack.c.3.s8 %v4031
        %v4516 = vunpack.c.0.s8 %v4032
        %v4517 = vunpack.c.0.s8 %v4033
        %v4518 = vunpack.c.0.s8 %v4034
        %v4519 = vunpack.c.0.s8 %v4035
        %v4520 = vunpack.c.1.s8 %v4032
        %v4521 = vunpack.c.1.s8 %v4033
        %v4522 = vunpack.c.1.s8 %v4034
        %v4523 = vunpack.c.1.s8 %v4035
        %v4524 = vunpack.c.2.s8 %v4032
        %v4525 = vunpack.c.2.s8 %v4033
        %v4526 = vunpack.c.2.s8 %v4034
        %v4527 = vunpack.c.2.s8 %v4035
        %v4528 = vunpack.c.3.s8 %v4032
        %v4529 = vunpack.c.3.s8 %v4033
        %v4530 = vunpack.c.3.s8 %v4034
        %v4531 = vunpack.c.3.s8 %v4035
        %v4532 = vunpack.c.0.s8 %v4036
        %v4533 = vunpack.c.0.s8 %v4037
        %v4534 = vunpack.c.0.s8 %v4038
        %v4535 = vunpack.c.0.s8 %v4039
        %v4536 = vunpack.c.1.s8 %v4036
        %v4537 = vunpack.c.1.s8 %v4037
        %v4538 = vunpack.c.1.s8 %v4038
        %v4539 = vunpack.c.1.s8 %v4039
        %v4540 = vunpack.c.2.s8 %v4036
        %v4541 = vunpack.c.2.s8 %v4037
        %v4542 = vunpack.c.2.s8 %v4038
        %v4543 = vunpack.c.2.s8 %v4039
        %v4544 = vunpack.c.3.s8 %v4036
        %v4545 = vunpack.c.3.s8 %v4037
        %v4546 = vunpack.c.3.s8 %v4038
        %v4547 = vunpack.c.3.s8 %v4039
        %v4548 = vunpack.c.0.s8 %v4040
        %v4549 = vunpack.c.0.s8 %v4041
        %v4550 = vunpack.c.0.s8 %v4042
        %v4551 = vunpack.c.0.s8 %v4043
        %v4552 = vunpack.c.1.s8 %v4040
        %v4553 = vunpack.c.1.s8 %v4041
        %v4554 = vunpack.c.1.s8 %v4042
        %v4555 = vunpack.c.1.s8 %v4043
        %v4556 = vunpack.c.2.s8 %v4040
        %v4557 = vunpack.c.2.s8 %v4041
        %v4558 = vunpack.c.2.s8 %v4042
        %v4559 = vunpack.c.2.s8 %v4043
        %v4560 = vunpack.c.3.s8 %v4040
        %v4561 = vunpack.c.3.s8 %v4041
        %v4562 = vunpack.c.3.s8 %v4042
        %v4563 = vunpack.c.3.s8 %v4043
        %v4564 = vunpack.c.0.s8 %v4044
        %v4565 = vunpack.c.0.s8 %v4045
        %v4566 = vunpack.c.0.s8 %v4046
        %v4567 = vunpack.c.0.s8 %v4047
        %v4568 = vunpack.c.1.s8 %v4044
        %v4569 = vunpack.c.1.s8 %v4045
        %v4570 = vunpack.c.1.s8 %v4046
        %v4571 = vunpack.c.1.s8 %v4047
        %v4572 = vunpack.c.2.s8 %v4044
        %v4573 = vunpack.c.2.s8 %v4045
        %v4574 = vunpack.c.2.s8 %v4046
        %v4575 = vunpack.c.2.s8 %v4047
        %v4576 = vunpack.c.3.s8 %v4044
        %v4577 = vunpack.c.3.s8 %v4045
        %v4578 = vunpack.c.3.s8 %v4046
        %v4579 = vunpack.c.3.s8 %v4047
        %v4580 = vunpack.c.0.s8 %v4048
        %v4581 = vunpack.c.0.s8 %v4049
        %v4582 = vunpack.c.0.s8 %v4050
        %v4583 = vunpack.c.0.s8 %v4051
        %v4584 = vunpack.c.1.s8 %v4048
        %v4585 = vunpack.c.1.s8 %v4049
        %v4586 = vunpack.c.1.s8 %v4050
        %v4587 = vunpack.c.1.s8 %v4051
        %v4588 = vunpack.c.2.s8 %v4048
        %v4589 = vunpack.c.2.s8 %v4049
        %v4590 = vunpack.c.2.s8 %v4050
        %v4591 = vunpack.c.2.s8 %v4051
        %v4592 = vunpack.c.3.s8 %v4048
        %v4593 = vunpack.c.3.s8 %v4049
        %v4594 = vunpack.c.3.s8 %v4050
        %v4595 = vunpack.c.3.s8 %v4051
        %v4596 = vunpack.c.0.s8 %v4052
        %v4597 = vunpack.c.0.s8 %v4053
        %v4598 = vunpack.c.0.s8 %v4054
        %v4599 = vunpack.c.0.s8 %v4055
        %v4600 = vunpack.c.1.s8 %v4052
        %v4601 = vunpack.c.1.s8 %v4053
        %v4602 = vunpack.c.1.s8 %v4054
        %v4603 = vunpack.c.1.s8 %v4055
        %v4604 = vunpack.c.2.s8 %v4052
        %v4605 = vunpack.c.2.s8 %v4053
        %v4606 = vunpack.c.2.s8 %v4054
        %v4607 = vunpack.c.2.s8 %v4055
        %v4608 = vunpack.c.3.s8 %v4052
        %v4609 = vunpack.c.3.s8 %v4053
        %v4610 = vunpack.c.3.s8 %v4054
        %v4611 = vunpack.c.3.s8 %v4055
        %v4612 = vunpack.c.0.s8 %v4056
        %v4613 = vunpack.c.0.s8 %v4057
        %v4614 = vunpack.c.0.s8 %v4058
        %v4615 = vunpack.c.0.s8 %v4059
        %v4616 = vunpack.c.1.s8 %v4056
        %v4617 = vunpack.c.1.s8 %v4057
        %v4618 = vunpack.c.1.s8 %v4058
        %v4619 = vunpack.c.1.s8 %v4059
        %v4620 = vunpack.c.2.s8 %v4056
        %v4621 = vunpack.c.2.s8 %v4057
        %v4622 = vunpack.c.2.s8 %v4058
        %v4623 = vunpack.c.2.s8 %v4059
        %v4624 = vunpack.c.3.s8 %v4056
        %v4625 = vunpack.c.3.s8 %v4057
        %v4626 = vunpack.c.3.s8 %v4058
        %v4627 = vunpack.c.3.s8 %v4059
        %v4628 = vunpack.c.0.s8 %v4060
        %v4629 = vunpack.c.0.s8 %v4061
        %v4630 = vunpack.c.0.s8 %v4062
        %v4631 = vunpack.c.0.s8 %v4063
        %v4632 = vunpack.c.1.s8 %v4060
        %v4633 = vunpack.c.1.s8 %v4061
        %v4634 = vunpack.c.1.s8 %v4062
        %v4635 = vunpack.c.1.s8 %v4063
        %v4636 = vunpack.c.2.s8 %v4060
        %v4637 = vunpack.c.2.s8 %v4061
        %v4638 = vunpack.c.2.s8 %v4062
        %v4639 = vunpack.c.2.s8 %v4063
        %v4640 = vunpack.c.3.s8 %v4060
        %v4641 = vunpack.c.3.s8 %v4061
        %v4642 = vunpack.c.3.s8 %v4062
        %v4643 = vunpack.c.3.s8 %v4063
        %v4644 = vunpack.c.0.s8 %v4064
        %v4645 = vunpack.c.0.s8 %v4065
        %v4646 = vunpack.c.0.s8 %v4066
        %v4647 = vunpack.c.0.s8 %v4067
        %v4648 = vunpack.c.1.s8 %v4064
        %v4649 = vunpack.c.1.s8 %v4065
        %v4650 = vunpack.c.1.s8 %v4066
        %v4651 = vunpack.c.1.s8 %v4067
        %v4652 = vunpack.c.2.s8 %v4064
        %v4653 = vunpack.c.2.s8 %v4065
        %v4654 = vunpack.c.2.s8 %v4066
        %v4655 = vunpack.c.2.s8 %v4067
        %v4656 = vunpack.c.3.s8 %v4064
        %v4657 = vunpack.c.3.s8 %v4065
        %v4658 = vunpack.c.3.s8 %v4066
        %v4659 = vunpack.c.3.s8 %v4067
        %v4660 = vunpack.c.0.s8 %v4068
        %v4661 = vunpack.c.0.s8 %v4069
        %v4662 = vunpack.c.0.s8 %v4070
        %v4663 = vunpack.c.0.s8 %v4071
        %v4664 = vunpack.c.1.s8 %v4068
        %v4665 = vunpack.c.1.s8 %v4069
        %v4666 = vunpack.c.1.s8 %v4070
        %v4667 = vunpack.c.1.s8 %v4071
        %v4668 = vunpack.c.2.s8 %v4068
        %v4669 = vunpack.c.2.s8 %v4069
        %v4670 = vunpack.c.2.s8 %v4070
        %v4671 = vunpack.c.2.s8 %v4071
        %v4672 = vunpack.c.3.s8 %v4068
        %v4673 = vunpack.c.3.s8 %v4069
        %v4674 = vunpack.c.3.s8 %v4070
        %v4675 = vunpack.c.3.s8 %v4071
        %v4676 = vunpack.c.0.s8 %v4072
        %v4677 = vunpack.c.0.s8 %v4073
        %v4678 = vunpack.c.0.s8 %v4074
        %v4679 = vunpack.c.0.s8 %v4075
        %v4680 = vunpack.c.1.s8 %v4072
        %v4681 = vunpack.c.1.s8 %v4073
        %v4682 = vunpack.c.1.s8 %v4074
        %v4683 = vunpack.c.1.s8 %v4075
        %v4684 = vunpack.c.2.s8 %v4072
        %v4685 = vunpack.c.2.s8 %v4073
        %v4686 = vunpack.c.2.s8 %v4074
        %v4687 = vunpack.c.2.s8 %v4075
        %v4688 = vunpack.c.3.s8 %v4072
        %v4689 = vunpack.c.3.s8 %v4073
        %v4690 = vunpack.c.3.s8 %v4074
        %v4691 = vunpack.c.3.s8 %v4075
        %v4692 = vunpack.c.0.s8 %v4076
        %v4693 = vunpack.c.0.s8 %v4077
        %v4694 = vunpack.c.0.s8 %v4078
        %v4695 = vunpack.c.0.s8 %v4079
        %v4696 = vunpack.c.1.s8 %v4076
        %v4697 = vunpack.c.1.s8 %v4077
        %v4698 = vunpack.c.1.s8 %v4078
        %v4699 = vunpack.c.1.s8 %v4079
        %v4700 = vunpack.c.2.s8 %v4076
        %v4701 = vunpack.c.2.s8 %v4077
        %v4702 = vunpack.c.2.s8 %v4078
        %v4703 = vunpack.c.2.s8 %v4079
        %v4704 = vunpack.c.3.s8 %v4076
        %v4705 = vunpack.c.3.s8 %v4077
        %v4706 = vunpack.c.3.s8 %v4078
        %v4707 = vunpack.c.3.s8 %v4079
        %v4708 = vunpack.c.0.s8 %v4080
        %v4709 = vunpack.c.0.s8 %v4081
        %v4710 = vunpack.c.0.s8 %v4082
        %v4711 = vunpack.c.0.s8 %v4083
        %v4712 = vunpack.c.1.s8 %v4080
        %v4713 = vunpack.c.1.s8 %v4081
        %v4714 = vunpack.c.1.s8 %v4082
        %v4715 = vunpack.c.1.s8 %v4083
        %v4716 = vunpack.c.2.s8 %v4080
        %v4717 = vunpack.c.2.s8 %v4081
        %v4718 = vunpack.c.2.s8 %v4082
        %v4719 = vunpack.c.2.s8 %v4083
        %v4720 = vunpack.c.3.s8 %v4080
        %v4721 = vunpack.c.3.s8 %v4081
        %v4722 = vunpack.c.3.s8 %v4082
        %v4723 = vunpack.c.3.s8 %v4083
        %v4724 = vunpack.c.0.s8 %v4084
        %v4725 = vunpack.c.0.s8 %v4085
        %v4726 = vunpack.c.0.s8 %v4086
        %v4727 = vunpack.c.0.s8 %v4087
        %v4728 = vunpack.c.1.s8 %v4084
        %v4729 = vunpack.c.1.s8 %v4085
        %v4730 = vunpack.c.1.s8 %v4086
        %v4731 = vunpack.c.1.s8 %v4087
        %v4732 = vunpack.c.2.s8 %v4084
        %v4733 = vunpack.c.2.s8 %v4085
        %v4734 = vunpack.c.2.s8 %v4086
        %v4735 = vunpack.c.2.s8 %v4087
        %v4736 = vunpack.c.3.s8 %v4084
        %v4737 = vunpack.c.3.s8 %v4085
        %v4738 = vunpack.c.3.s8 %v4086
        %v4739 = vunpack.c.3.s8 %v4087
        %v4740 = vunpack.c.0.s8 %v4088
        %v4741 = vunpack.c.0.s8 %v4089
        %v4742 = vunpack.c.0.s8 %v4090
        %v4743 = vunpack.c.0.s8 %v4091
        %v4744 = vunpack.c.1.s8 %v4088
        %v4745 = vunpack.c.1.s8 %v4089
        %v4746 = vunpack.c.1.s8 %v4090
        %v4747 = vunpack.c.1.s8 %v4091
        %v4748 = vunpack.c.2.s8 %v4088
        %v4749 = vunpack.c.2.s8 %v4089
        %v4750 = vunpack.c.2.s8 %v4090
        %v4751 = vunpack.c.2.s8 %v4091
        %v4752 = vunpack.c.3.s8 %v4088
        %v4753 = vunpack.c.3.s8 %v4089
        %v4754 = vunpack.c.3.s8 %v4090
        %v4755 = vunpack.c.3.s8 %v4091
        %v4756 = vunpack.c.0.s8 %v4092
        %v4757 = vunpack.c.0.s8 %v4093
        %v4758 = vunpack.c.0.s8 %v4094
        %v4759 = vunpack.c.0.s8 %v4095
        %v4760 = vunpack.c.1.s8 %v4092
        %v4761 = vunpack.c.1.s8 %v4093
        %v4762 = vunpack.c.1.s8 %v4094
        %v4763 = vunpack.c.1.s8 %v4095
        %v4764 = vunpack.c.2.s8 %v4092
        %v4765 = vunpack.c.2.s8 %v4093
        %v4766 = vunpack.c.2.s8 %v4094
        %v4767 = vunpack.c.2.s8 %v4095
        %v4768 = vunpack.c.3.s8 %v4092
        %v4769 = vunpack.c.3.s8 %v4093
        %v4770 = vunpack.c.3.s8 %v4094
        %v4771 = vunpack.c.3.s8 %v4095
        %v4772 = vunpack.c.0.s8 %v4096
        %v4773 = vunpack.c.0.s8 %v4097
        %v4774 = vunpack.c.0.s8 %v4098
        %v4775 = vunpack.c.0.s8 %v4099
        %v4776 = vunpack.c.1.s8 %v4096
        %v4777 = vunpack.c.1.s8 %v4097
        %v4778 = vunpack.c.1.s8 %v4098
        %v4779 = vunpack.c.1.s8 %v4099
        %v4780 = vunpack.c.2.s8 %v4096
        %v4781 = vunpack.c.2.s8 %v4097
        %v4782 = vunpack.c.2.s8 %v4098
        %v4783 = vunpack.c.2.s8 %v4099
        %v4784 = vunpack.c.3.s8 %v4096
        %v4785 = vunpack.c.3.s8 %v4097
        %v4786 = vunpack.c.3.s8 %v4098
        %v4787 = vunpack.c.3.s8 %v4099
        %v4788 = vunpack.c.0.s8 %v4100
        %v4789 = vunpack.c.0.s8 %v4101
        %v4790 = vunpack.c.0.s8 %v4102
        %v4791 = vunpack.c.0.s8 %v4103
        %v4792 = vunpack.c.1.s8 %v4100
        %v4793 = vunpack.c.1.s8 %v4101
        %v4794 = vunpack.c.1.s8 %v4102
        %v4795 = vunpack.c.1.s8 %v4103
        %v4796 = vunpack.c.2.s8 %v4100
        %v4797 = vunpack.c.2.s8 %v4101
        %v4798 = vunpack.c.2.s8 %v4102
        %v4799 = vunpack.c.2.s8 %v4103
        %v4800 = vunpack.c.3.s8 %v4100
        %v4801 = vunpack.c.3.s8 %v4101
        %v4802 = vunpack.c.3.s8 %v4102
        %v4803 = vunpack.c.3.s8 %v4103
        %v4804 = vunpack.c.0.s8 %v4104
        %v4805 = vunpack.c.0.s8 %v4105
        %v4806 = vunpack.c.0.s8 %v4106
        %v4807 = vunpack.c.0.s8 %v4107
        %v4808 = vunpack.c.1.s8 %v4104
        %v4809 = vunpack.c.1.s8 %v4105
        %v4810 = vunpack.c.1.s8 %v4106
        %v4811 = vunpack.c.1.s8 %v4107
        %v4812 = vunpack.c.2.s8 %v4104
        %v4813 = vunpack.c.2.s8 %v4105
        %v4814 = vunpack.c.2.s8 %v4106
        %v4815 = vunpack.c.2.s8 %v4107
        %v4816 = vunpack.c.3.s8 %v4104
        %v4817 = vunpack.c.3.s8 %v4105
        %v4818 = vunpack.c.3.s8 %v4106
        %v4819 = vunpack.c.3.s8 %v4107
        %v4820 = vunpack.c.0.s8 %v4108
        %v4821 = vunpack.c.0.s8 %v4109
        %v4822 = vunpack.c.0.s8 %v4110
        %v4823 = vunpack.c.0.s8 %v4111
        %v4824 = vunpack.c.1.s8 %v4108
        %v4825 = vunpack.c.1.s8 %v4109
        %v4826 = vunpack.c.1.s8 %v4110
        %v4827 = vunpack.c.1.s8 %v4111
        %v4828 = vunpack.c.2.s8 %v4108
        %v4829 = vunpack.c.2.s8 %v4109
        %v4830 = vunpack.c.2.s8 %v4110
        %v4831 = vunpack.c.2.s8 %v4111
        %v4832 = vunpack.c.3.s8 %v4108
        %v4833 = vunpack.c.3.s8 %v4109
        %v4834 = vunpack.c.3.s8 %v4110
        %v4835 = vunpack.c.3.s8 %v4111
        %v4836 = vunpack.c.0.s8 %v4112
        %v4837 = vunpack.c.0.s8 %v4113
        %v4838 = vunpack.c.0.s8 %v4114
        %v4839 = vunpack.c.0.s8 %v4115
        %v4840 = vunpack.c.1.s8 %v4112
        %v4841 = vunpack.c.1.s8 %v4113
        %v4842 = vunpack.c.1.s8 %v4114
        %v4843 = vunpack.c.1.s8 %v4115
        %v4844 = vunpack.c.2.s8 %v4112
        %v4845 = vunpack.c.2.s8 %v4113
        %v4846 = vunpack.c.2.s8 %v4114
        %v4847 = vunpack.c.2.s8 %v4115
        %v4848 = vunpack.c.3.s8 %v4112
        %v4849 = vunpack.c.3.s8 %v4113
        %v4850 = vunpack.c.3.s8 %v4114
        %v4851 = vunpack.c.3.s8 %v4115
        %v4852 = vunpack.c.0.s8 %v4116
        %v4853 = vunpack.c.0.s8 %v4117
        %v4854 = vunpack.c.0.s8 %v4118
        %v4855 = vunpack.c.0.s8 %v4119
        %v4856 = vunpack.c.1.s8 %v4116
        %v4857 = vunpack.c.1.s8 %v4117
        %v4858 = vunpack.c.1.s8 %v4118
        %v4859 = vunpack.c.1.s8 %v4119
        %v4860 = vunpack.c.2.s8 %v4116
        %v4861 = vunpack.c.2.s8 %v4117
        %v4862 = vunpack.c.2.s8 %v4118
        %v4863 = vunpack.c.2.s8 %v4119
        %v4864 = vunpack.c.3.s8 %v4116
        %v4865 = vunpack.c.3.s8 %v4117
        %v4866 = vunpack.c.3.s8 %v4118
        %v4867 = vunpack.c.3.s8 %v4119
        %v4868 = vunpack.c.0.s8 %v4120
        %v4869 = vunpack.c.0.s8 %v4121
        %v4870 = vunpack.c.0.s8 %v4122
        %v4871 = vunpack.c.0.s8 %v4123
        %v4872 = vunpack.c.1.s8 %v4120
        %v4873 = vunpack.c.1.s8 %v4121
        %v4874 = vunpack.c.1.s8 %v4122
        %v4875 = vunpack.c.1.s8 %v4123
        %v4876 = vunpack.c.2.s8 %v4120
        %v4877 = vunpack.c.2.s8 %v4121
        %v4878 = vunpack.c.2.s8 %v4122
        %v4879 = vunpack.c.2.s8 %v4123
        %v4880 = vunpack.c.3.s8 %v4120
        %v4881 = vunpack.c.3.s8 %v4121
        %v4882 = vunpack.c.3.s8 %v4122
        %v4883 = vunpack.c.3.s8 %v4123
        %v4884 = vunpack.c.0.s8 %v4124
        %v4885 = vunpack.c.0.s8 %v4125
        %v4886 = vunpack.c.0.s8 %v4126
        %v4887 = vunpack.c.0.s8 %v4127
        %v4888 = vunpack.c.1.s8 %v4124
        %v4889 = vunpack.c.1.s8 %v4125
        %v4890 = vunpack.c.1.s8 %v4126
        %v4891 = vunpack.c.1.s8 %v4127
        %v4892 = vunpack.c.2.s8 %v4124
        %v4893 = vunpack.c.2.s8 %v4125
        %v4894 = vunpack.c.2.s8 %v4126
        %v4895 = vunpack.c.2.s8 %v4127
        %v4896 = vunpack.c.3.s8 %v4124
        %v4897 = vunpack.c.3.s8 %v4125
        %v4898 = vunpack.c.3.s8 %v4126
        %v4899 = vunpack.c.3.s8 %v4127
        %v4900 = vunpack.c.0.s8 %v4128
        %v4901 = vunpack.c.0.s8 %v4129
        %v4902 = vunpack.c.0.s8 %v4130
        %v4903 = vunpack.c.0.s8 %v4131
        %v4904 = vunpack.c.1.s8 %v4128
        %v4905 = vunpack.c.1.s8 %v4129
        %v4906 = vunpack.c.1.s8 %v4130
        %v4907 = vunpack.c.1.s8 %v4131
        %v4908 = vunpack.c.2.s8 %v4128
        %v4909 = vunpack.c.2.s8 %v4129
        %v4910 = vunpack.c.2.s8 %v4130
        %v4911 = vunpack.c.2.s8 %v4131
        %v4912 = vunpack.c.3.s8 %v4128
        %v4913 = vunpack.c.3.s8 %v4129
        %v4914 = vunpack.c.3.s8 %v4130
        %v4915 = vunpack.c.3.s8 %v4131
        %v4916 = vunpack.c.0.s8 %v4132
        %v4917 = vunpack.c.0.s8 %v4133
        %v4918 = vunpack.c.0.s8 %v4134
        %v4919 = vunpack.c.0.s8 %v4135
        %v4920 = vunpack.c.1.s8 %v4132
        %v4921 = vunpack.c.1.s8 %v4133
        %v4922 = vunpack.c.1.s8 %v4134
        %v4923 = vunpack.c.1.s8 %v4135
        %v4924 = vunpack.c.2.s8 %v4132
        %v4925 = vunpack.c.2.s8 %v4133
        %v4926 = vunpack.c.2.s8 %v4134
        %v4927 = vunpack.c.2.s8 %v4135
        %v4928 = vunpack.c.3.s8 %v4132
        %v4929 = vunpack.c.3.s8 %v4133
        %v4930 = vunpack.c.3.s8 %v4134
        %v4931 = vunpack.c.3.s8 %v4135
        %v4932 = vunpack.c.0.s8 %v4136
        %v4933 = vunpack.c.0.s8 %v4137
        %v4934 = vunpack.c.0.s8 %v4138
        %v4935 = vunpack.c.0.s8 %v4139
        %v4936 = vunpack.c.1.s8 %v4136
        %v4937 = vunpack.c.1.s8 %v4137
        %v4938 = vunpack.c.1.s8 %v4138
        %v4939 = vunpack.c.1.s8 %v4139
        %v4940 = vunpack.c.2.s8 %v4136
        %v4941 = vunpack.c.2.s8 %v4137
        %v4942 = vunpack.c.2.s8 %v4138
        %v4943 = vunpack.c.2.s8 %v4139
        %v4944 = vunpack.c.3.s8 %v4136
        %v4945 = vunpack.c.3.s8 %v4137
        %v4946 = vunpack.c.3.s8 %v4138
        %v4947 = vunpack.c.3.s8 %v4139
        %v4948 = vunpack.c.0.s8 %v4140
        %v4949 = vunpack.c.0.s8 %v4141
        %v4950 = vunpack.c.0.s8 %v4142
        %v4951 = vunpack.c.0.s8 %v4143
        %v4952 = vunpack.c.1.s8 %v4140
        %v4953 = vunpack.c.1.s8 %v4141
        %v4954 = vunpack.c.1.s8 %v4142
        %v4955 = vunpack.c.1.s8 %v4143
        %v4956 = vunpack.c.2.s8 %v4140
        %v4957 = vunpack.c.2.s8 %v4141
        %v4958 = vunpack.c.2.s8 %v4142
        %v4959 = vunpack.c.2.s8 %v4143
        %v4960 = vunpack.c.3.s8 %v4140
        %v4961 = vunpack.c.3.s8 %v4141
        %v4962 = vunpack.c.3.s8 %v4142
        %v4963 = vunpack.c.3.s8 %v4143
        %v4964 = vunpack.c.0.s8 %v4144
        %v4965 = vunpack.c.0.s8 %v4145
        %v4966 = vunpack.c.0.s8 %v4146
        %v4967 = vunpack.c.0.s8 %v4147
        %v4968 = vunpack.c.1.s8 %v4144
        %v4969 = vunpack.c.1.s8 %v4145
        %v4970 = vunpack.c.1.s8 %v4146
        %v4971 = vunpack.c.1.s8 %v4147
        %v4972 = vunpack.c.2.s8 %v4144
        %v4973 = vunpack.c.2.s8 %v4145
        %v4974 = vunpack.c.2.s8 %v4146
        %v4975 = vunpack.c.2.s8 %v4147
        %v4976 = vunpack.c.3.s8 %v4144
        %v4977 = vunpack.c.3.s8 %v4145
        %v4978 = vunpack.c.3.s8 %v4146
        %v4979 = vunpack.c.3.s8 %v4147
        %v4980 = vunpack.c.0.s8 %v4148
        %v4981 = vunpack.c.0.s8 %v4149
        %v4982 = vunpack.c.0.s8 %v4150
        %v4983 = vunpack.c.0.s8 %v4151
        %v4984 = vunpack.c.1.s8 %v4148
        %v4985 = vunpack.c.1.s8 %v4149
        %v4986 = vunpack.c.1.s8 %v4150
        %v4987 = vunpack.c.1.s8 %v4151
        %v4988 = vunpack.c.2.s8 %v4148
        %v4989 = vunpack.c.2.s8 %v4149
        %v4990 = vunpack.c.2.s8 %v4150
        %v4991 = vunpack.c.2.s8 %v4151
        %v4992 = vunpack.c.3.s8 %v4148
        %v4993 = vunpack.c.3.s8 %v4149
        %v4994 = vunpack.c.3.s8 %v4150
        %v4995 = vunpack.c.3.s8 %v4151
        %v4996 = vunpack.c.0.s8 %v4152
        %v4997 = vunpack.c.0.s8 %v4153
        %v4998 = vunpack.c.0.s8 %v4154
        %v4999 = vunpack.c.0.s8 %v4155
        %v5000 = vunpack.c.1.s8 %v4152
        %v5001 = vunpack.c.1.s8 %v4153
        %v5002 = vunpack.c.1.s8 %v4154
        %v5003 = vunpack.c.1.s8 %v4155
        %v5004 = vunpack.c.2.s8 %v4152
        %v5005 = vunpack.c.2.s8 %v4153
        %v5006 = vunpack.c.2.s8 %v4154
        %v5007 = vunpack.c.2.s8 %v4155
        %v5008 = vunpack.c.3.s8 %v4152
        %v5009 = vunpack.c.3.s8 %v4153
        %v5010 = vunpack.c.3.s8 %v4154
        %v5011 = vunpack.c.3.s8 %v4155
        %v5012 = vunpack.c.0.s8 %v4156
        %v5013 = vunpack.c.0.s8 %v4157
        %v5014 = vunpack.c.0.s8 %v4158
        %v5015 = vunpack.c.0.s8 %v4159
        %v5016 = vunpack.c.1.s8 %v4156
        %v5017 = vunpack.c.1.s8 %v4157
        %v5018 = vunpack.c.1.s8 %v4158
        %v5019 = vunpack.c.1.s8 %v4159
        %v5020 = vunpack.c.2.s8 %v4156
        %v5021 = vunpack.c.2.s8 %v4157
        %v5022 = vunpack.c.2.s8 %v4158
        %v5023 = vunpack.c.2.s8 %v4159
        %v5024 = vunpack.c.3.s8 %v4156
        %v5025 = vunpack.c.3.s8 %v4157
        %v5026 = vunpack.c.3.s8 %v4158
        %v5027 = vunpack.c.3.s8 %v4159
        %v5028 = vunpack.c.0.s8 %v4160
        %v5029 = vunpack.c.0.s8 %v4161
        %v5030 = vunpack.c.0.s8 %v4162
        %v5031 = vunpack.c.0.s8 %v4163
        %v5032 = vunpack.c.1.s8 %v4160
        %v5033 = vunpack.c.1.s8 %v4161
        %v5034 = vunpack.c.1.s8 %v4162
        %v5035 = vunpack.c.1.s8 %v4163
        %v5036 = vunpack.c.2.s8 %v4160
        %v5037 = vunpack.c.2.s8 %v4161
        %v5038 = vunpack.c.2.s8 %v4162
        %v5039 = vunpack.c.2.s8 %v4163
        %v5040 = vunpack.c.3.s8 %v4160
        %v5041 = vunpack.c.3.s8 %v4161
        %v5042 = vunpack.c.3.s8 %v4162
        %v5043 = vunpack.c.3.s8 %v4163
        %v5044 = vunpack.c.0.s8 %v4164
        %v5045 = vunpack.c.0.s8 %v4165
        %v5046 = vunpack.c.0.s8 %v4166
        %v5047 = vunpack.c.0.s8 %v4167
        %v5048 = vunpack.c.1.s8 %v4164
        %v5049 = vunpack.c.1.s8 %v4165
        %v5050 = vunpack.c.1.s8 %v4166
        %v5051 = vunpack.c.1.s8 %v4167
        %v5052 = vunpack.c.2.s8 %v4164
        %v5053 = vunpack.c.2.s8 %v4165
        %v5054 = vunpack.c.2.s8 %v4166
        %v5055 = vunpack.c.2.s8 %v4167
        %v5056 = vunpack.c.3.s8 %v4164
        %v5057 = vunpack.c.3.s8 %v4165
        %v5058 = vunpack.c.3.s8 %v4166
        %v5059 = vunpack.c.3.s8 %v4167
        %v5060 = vunpack.c.0.s8 %v4168
        %v5061 = vunpack.c.0.s8 %v4169
        %v5062 = vunpack.c.0.s8 %v4170
        %v5063 = vunpack.c.0.s8 %v4171
        %v5064 = vunpack.c.1.s8 %v4168
        %v5065 = vunpack.c.1.s8 %v4169
        %v5066 = vunpack.c.1.s8 %v4170
        %v5067 = vunpack.c.1.s8 %v4171
        %v5068 = vunpack.c.2.s8 %v4168
        %v5069 = vunpack.c.2.s8 %v4169
        %v5070 = vunpack.c.2.s8 %v4170
        %v5071 = vunpack.c.2.s8 %v4171
        %v5072 = vunpack.c.3.s8 %v4168
        %v5073 = vunpack.c.3.s8 %v4169
        %v5074 = vunpack.c.3.s8 %v4170
        %v5075 = vunpack.c.3.s8 %v4171
        %v5076 = vunpack.c.0.s8 %v4172
        %v5077 = vunpack.c.0.s8 %v4173
        %v5078 = vunpack.c.0.s8 %v4174
        %v5079 = vunpack.c.0.s8 %v4175
        %v5080 = vunpack.c.1.s8 %v4172
        %v5081 = vunpack.c.1.s8 %v4173
        %v5082 = vunpack.c.1.s8 %v4174
        %v5083 = vunpack.c.1.s8 %v4175
        %v5084 = vunpack.c.2.s8 %v4172
        %v5085 = vunpack.c.2.s8 %v4173
        %v5086 = vunpack.c.2.s8 %v4174
        %v5087 = vunpack.c.2.s8 %v4175
        %v5088 = vunpack.c.3.s8 %v4172
        %v5089 = vunpack.c.3.s8 %v4173
        %v5090 = vunpack.c.3.s8 %v4174
        %v5091 = vunpack.c.3.s8 %v4175
        %v5092 = vunpack.c.0.s8 %v4176
        %v5093 = vunpack.c.0.s8 %v4177
        %v5094 = vunpack.c.0.s8 %v4178
        %v5095 = vunpack.c.0.s8 %v4179
        %v5096 = vunpack.c.1.s8 %v4176
        %v5097 = vunpack.c.1.s8 %v4177
        %v5098 = vunpack.c.1.s8 %v4178
        %v5099 = vunpack.c.1.s8 %v4179
        %v5100 = vunpack.c.2.s8 %v4176
        %v5101 = vunpack.c.2.s8 %v4177
        %v5102 = vunpack.c.2.s8 %v4178
        %v5103 = vunpack.c.2.s8 %v4179
        %v5104 = vunpack.c.3.s8 %v4176
        %v5105 = vunpack.c.3.s8 %v4177
        %v5106 = vunpack.c.3.s8 %v4178
        %v5107 = vunpack.c.3.s8 %v4179
        %v5108 = vunpack.c.0.s8 %v4180
        %v5109 = vunpack.c.0.s8 %v4181
        %v5110 = vunpack.c.0.s8 %v4182
        %v5111 = vunpack.c.0.s8 %v4183
        %v5112 = vunpack.c.1.s8 %v4180
        %v5113 = vunpack.c.1.s8 %v4181
        %v5114 = vunpack.c.1.s8 %v4182
        %v5115 = vunpack.c.1.s8 %v4183
        %v5116 = vunpack.c.2.s8 %v4180
        %v5117 = vunpack.c.2.s8 %v4181
        %v5118 = vunpack.c.2.s8 %v4182
        %v5119 = vunpack.c.2.s8 %v4183
        %v5120 = vunpack.c.3.s8 %v4180
        %v5121 = vunpack.c.3.s8 %v4181
        %v5122 = vunpack.c.3.s8 %v4182
        %v5123 = vunpack.c.3.s8 %v4183
        %v5124 = vunpack.c.0.s8 %v4184
        %v5125 = vunpack.c.0.s8 %v4185
        %v5126 = vunpack.c.0.s8 %v4186
        %v5127 = vunpack.c.0.s8 %v4187
        %v5128 = vunpack.c.1.s8 %v4184
        %v5129 = vunpack.c.1.s8 %v4185
        %v5130 = vunpack.c.1.s8 %v4186
        %v5131 = vunpack.c.1.s8 %v4187
        %v5132 = vunpack.c.2.s8 %v4184
        %v5133 = vunpack.c.2.s8 %v4185
        %v5134 = vunpack.c.2.s8 %v4186
        %v5135 = vunpack.c.2.s8 %v4187
        %v5136 = vunpack.c.3.s8 %v4184
        %v5137 = vunpack.c.3.s8 %v4185
        %v5138 = vunpack.c.3.s8 %v4186
        %v5139 = vunpack.c.3.s8 %v4187
        %v5140 = vunpack.c.0.s8 %v4188
        %v5141 = vunpack.c.0.s8 %v4189
        %v5142 = vunpack.c.0.s8 %v4190
        %v5143 = vunpack.c.0.s8 %v4191
        %v5144 = vunpack.c.1.s8 %v4188
        %v5145 = vunpack.c.1.s8 %v4189
        %v5146 = vunpack.c.1.s8 %v4190
        %v5147 = vunpack.c.1.s8 %v4191
        %v5148 = vunpack.c.2.s8 %v4188
        %v5149 = vunpack.c.2.s8 %v4189
        %v5150 = vunpack.c.2.s8 %v4190
        %v5151 = vunpack.c.2.s8 %v4191
        %v5152 = vunpack.c.3.s8 %v4188
        %v5153 = vunpack.c.3.s8 %v4189
        %v5154 = vunpack.c.3.s8 %v4190
        %v5155 = vunpack.c.3.s8 %v4191
        %v5156 = vunpack.c.0.s8 %v4192
        %v5157 = vunpack.c.0.s8 %v4193
        %v5158 = vunpack.c.0.s8 %v4194
        %v5159 = vunpack.c.0.s8 %v4195
        %v5160 = vunpack.c.1.s8 %v4192
        %v5161 = vunpack.c.1.s8 %v4193
        %v5162 = vunpack.c.1.s8 %v4194
        %v5163 = vunpack.c.1.s8 %v4195
        %v5164 = vunpack.c.2.s8 %v4192
        %v5165 = vunpack.c.2.s8 %v4193
        %v5166 = vunpack.c.2.s8 %v4194
        %v5167 = vunpack.c.2.s8 %v4195
        %v5168 = vunpack.c.3.s8 %v4192
        %v5169 = vunpack.c.3.s8 %v4193
        %v5170 = vunpack.c.3.s8 %v4194
        %v5171 = vunpack.c.3.s8 %v4195
        %v5172 = vunpack.c.0.s8 %v4196
        %v5173 = vunpack.c.0.s8 %v4197
        %v5174 = vunpack.c.0.s8 %v4198
        %v5175 = vunpack.c.0.s8 %v4199
        %v5176 = vunpack.c.1.s8 %v4196
        %v5177 = vunpack.c.1.s8 %v4197
        %v5178 = vunpack.c.1.s8 %v4198
        %v5179 = vunpack.c.1.s8 %v4199
        %v5180 = vunpack.c.2.s8 %v4196
        %v5181 = vunpack.c.2.s8 %v4197
        %v5182 = vunpack.c.2.s8 %v4198
        %v5183 = vunpack.c.2.s8 %v4199
        %v5184 = vunpack.c.3.s8 %v4196
        %v5185 = vunpack.c.3.s8 %v4197
        %v5186 = vunpack.c.3.s8 %v4198
        %v5187 = vunpack.c.3.s8 %v4199
        %v5188 = vunpack.c.0.s8 %v4200
        %v5189 = vunpack.c.0.s8 %v4201
        %v5190 = vunpack.c.0.s8 %v4202
        %v5191 = vunpack.c.0.s8 %v4203
        %v5192 = vunpack.c.1.s8 %v4200
        %v5193 = vunpack.c.1.s8 %v4201
        %v5194 = vunpack.c.1.s8 %v4202
        %v5195 = vunpack.c.1.s8 %v4203
        %v5196 = vunpack.c.2.s8 %v4200
        %v5197 = vunpack.c.2.s8 %v4201
        %v5198 = vunpack.c.2.s8 %v4202
        %v5199 = vunpack.c.2.s8 %v4203
        %v5200 = vunpack.c.3.s8 %v4200
        %v5201 = vunpack.c.3.s8 %v4201
        %v5202 = vunpack.c.3.s8 %v4202
        %v5203 = vunpack.c.3.s8 %v4203
        %v5204 = vunpack.c.0.s8 %v4204
        %v5205 = vunpack.c.0.s8 %v4205
        %v5206 = vunpack.c.0.s8 %v4206
        %v5207 = vunpack.c.0.s8 %v4207
        %v5208 = vunpack.c.1.s8 %v4204
        %v5209 = vunpack.c.1.s8 %v4205
        %v5210 = vunpack.c.1.s8 %v4206
        %v5211 = vunpack.c.1.s8 %v4207
        %v5212 = vunpack.c.2.s8 %v4204
        %v5213 = vunpack.c.2.s8 %v4205
        %v5214 = vunpack.c.2.s8 %v4206
        %v5215 = vunpack.c.2.s8 %v4207
        %v5216 = vunpack.c.3.s8 %v4204
        %v5217 = vunpack.c.3.s8 %v4205
        %v5218 = vunpack.c.3.s8 %v4206
        %v5219 = vunpack.c.3.s8 %v4207
        %v5220 = vunpack.c.0.s8 %v4208
        %v5221 = vunpack.c.0.s8 %v4209
        %v5222 = vunpack.c.0.s8 %v4210
        %v5223 = vunpack.c.0.s8 %v4211
        %v5224 = vunpack.c.1.s8 %v4208
        %v5225 = vunpack.c.1.s8 %v4209
        %v5226 = vunpack.c.1.s8 %v4210
        %v5227 = vunpack.c.1.s8 %v4211
        %v5228 = vunpack.c.2.s8 %v4208
        %v5229 = vunpack.c.2.s8 %v4209
        %v5230 = vunpack.c.2.s8 %v4210
        %v5231 = vunpack.c.2.s8 %v4211
        %v5232 = vunpack.c.3.s8 %v4208
        %v5233 = vunpack.c.3.s8 %v4209
        %v5234 = vunpack.c.3.s8 %v4210
        %v5235 = vunpack.c.3.s8 %v4211
        %v5236 = vcvt.s32.f32 %v4212
        %v5237 = vcvt.s32.f32 %v4213
        %v5238 = vcvt.s32.f32 %v4214
        %v5239 = vcvt.s32.f32 %v4215
        %v5240 = vcvt.s32.f32 %v4216
        %v5241 = vcvt.s32.f32 %v4217
        %v5242 = vcvt.s32.f32 %v4218
        %v5243 = vcvt.s32.f32 %v4219
        %v5244 = vcvt.s32.f32 %v4220
        %v5245 = vcvt.s32.f32 %v4221
        %v5246 = vcvt.s32.f32 %v4222
        %v5247 = vcvt.s32.f32 %v4223
        %v5248 = vcvt.s32.f32 %v4224
        %v5249 = vcvt.s32.f32 %v4225
        %v5250 = vcvt.s32.f32 %v4226
        %v5251 = vcvt.s32.f32 %v4227
        %v5252 = vcvt.s32.f32 %v4228
        %v5253 = vcvt.s32.f32 %v4229
        %v5254 = vcvt.s32.f32 %v4230
        %v5255 = vcvt.s32.f32 %v4231
        %v5256 = vcvt.s32.f32 %v4232
        %v5257 = vcvt.s32.f32 %v4233
        %v5258 = vcvt.s32.f32 %v4234
        %v5259 = vcvt.s32.f32 %v4235
        %v5260 = vcvt.s32.f32 %v4236
        %v5261 = vcvt.s32.f32 %v4237
        %v5262 = vcvt.s32.f32 %v4238
        %v5263 = vcvt.s32.f32 %v4239
        %v5264 = vcvt.s32.f32 %v4240
        %v5265 = vcvt.s32.f32 %v4241
        %v5266 = vcvt.s32.f32 %v4242
        %v5267 = vcvt.s32.f32 %v4243
        %v5268 = vcvt.s32.f32 %v4244
        %v5269 = vcvt.s32.f32 %v4245
        %v5270 = vcvt.s32.f32 %v4246
        %v5271 = vcvt.s32.f32 %v4247
        %v5272 = vcvt.s32.f32 %v4248
        %v5273 = vcvt.s32.f32 %v4249
        %v5274 = vcvt.s32.f32 %v4250
        %v5275 = vcvt.s32.f32 %v4251
        %v5276 = vcvt.s32.f32 %v4252
        %v5277 = vcvt.s32.f32 %v4253
        %v5278 = vcvt.s32.f32 %v4254
        %v5279 = vcvt.s32.f32 %v4255
        %v5280 = vcvt.s32.f32 %v4256
        %v5281 = vcvt.s32.f32 %v4257
        %v5282 = vcvt.s32.f32 %v4258
        %v5283 = vcvt.s32.f32 %v4259
        %v5284 = vcvt.s32.f32 %v4260
        %v5285 = vcvt.s32.f32 %v4261
        %v5286 = vcvt.s32.f32 %v4262
        %v5287 = vcvt.s32.f32 %v4263
        %v5288 = vcvt.s32.f32 %v4264
        %v5289 = vcvt.s32.f32 %v4265
        %v5290 = vcvt.s32.f32 %v4266
        %v5291 = vcvt.s32.f32 %v4267
        %v5292 = vcvt.s32.f32 %v4268
        %v5293 = vcvt.s32.f32 %v4269
        %v5294 = vcvt.s32.f32 %v4270
        %v5295 = vcvt.s32.f32 %v4271
        %v5296 = vcvt.s32.f32 %v4272
        %v5297 = vcvt.s32.f32 %v4273
        %v5298 = vcvt.s32.f32 %v4274
        %v5299 = vcvt.s32.f32 %v4275
        %v5300 = vcvt.s32.f32 %v4276
        %v5301 = vcvt.s32.f32 %v4277
        %v5302 = vcvt.s32.f32 %v4278
        %v5303 = vcvt.s32.f32 %v4279
        %v5304 = vcvt.s32.f32 %v4280
        %v5305 = vcvt.s32.f32 %v4281
        %v5306 = vcvt.s32.f32 %v4282
        %v5307 = vcvt.s32.f32 %v4283
        %v5308 = vcvt.s32.f32 %v4284
        %v5309 = vcvt.s32.f32 %v4285
        %v5310 = vcvt.s32.f32 %v4286
        %v5311 = vcvt.s32.f32 %v4287
        %v5312 = vcvt.s32.f32 %v4288
        %v5313 = vcvt.s32.f32 %v4289
        %v5314 = vcvt.s32.f32 %v4290
        %v5315 = vcvt.s32.f32 %v4291
        %v5316 = vcvt.s32.f32 %v4292
        %v5317 = vcvt.s32.f32 %v4293
        %v5318 = vcvt.s32.f32 %v4294
        %v5319 = vcvt.s32.f32 %v4295
        %v5320 = vcvt.s32.f32 %v4296
        %v5321 = vcvt.s32.f32 %v4297
        %v5322 = vcvt.s32.f32 %v4298
        %v5323 = vcvt.s32.f32 %v4299
        %v5324 = vcvt.s32.f32 %v4300
        %v5325 = vcvt.s32.f32 %v4301
        %v5326 = vcvt.s32.f32 %v4302
        %v5327 = vcvt.s32.f32 %v4303
        %v5328 = vcvt.s32.f32 %v4304
        %v5329 = vcvt.s32.f32 %v4305
        %v5330 = vcvt.s32.f32 %v4306
        %v5331 = vcvt.s32.f32 %v4307
        %v5332 = vcvt.s32.f32 %v4308
        %v5333 = vcvt.s32.f32 %v4309
        %v5334 = vcvt.s32.f32 %v4310
        %v5335 = vcvt.s32.f32 %v4311
        %v5336 = vcvt.s32.f32 %v4312
        %v5337 = vcvt.s32.f32 %v4313
        %v5338 = vcvt.s32.f32 %v4314
        %v5339 = vcvt.s32.f32 %v4315
        %v5340 = vcvt.s32.f32 %v4316
        %v5341 = vcvt.s32.f32 %v4317
        %v5342 = vcvt.s32.f32 %v4318
        %v5343 = vcvt.s32.f32 %v4319
        %v5344 = vcvt.s32.f32 %v4320
        %v5345 = vcvt.s32.f32 %v4321
        %v5346 = vcvt.s32.f32 %v4322
        %v5347 = vcvt.s32.f32 %v4323
        %v5348 = vcvt.s32.f32 %v4324
        %v5349 = vcvt.s32.f32 %v4325
        %v5350 = vcvt.s32.f32 %v4326
        %v5351 = vcvt.s32.f32 %v4327
        %v5352 = vcvt.s32.f32 %v4328
        %v5353 = vcvt.s32.f32 %v4329
        %v5354 = vcvt.s32.f32 %v4330
        %v5355 = vcvt.s32.f32 %v4331
        %v5356 = vcvt.s32.f32 %v4332
        %v5357 = vcvt.s32.f32 %v4333
        %v5358 = vcvt.s32.f32 %v4334
        %v5359 = vcvt.s32.f32 %v4335
        %v5360 = vcvt.s32.f32 %v4336
        %v5361 = vcvt.s32.f32 %v4337
        %v5362 = vcvt.s32.f32 %v4338
        %v5363 = vcvt.s32.f32 %v4339
        %v5364 = vcvt.s32.f32 %v4340
        %v5365 = vcvt.s32.f32 %v4341
        %v5366 = vcvt.s32.f32 %v4342
        %v5367 = vcvt.s32.f32 %v4343
        %v5368 = vcvt.s32.f32 %v4344
        %v5369 = vcvt.s32.f32 %v4345
        %v5370 = vcvt.s32.f32 %v4346
        %v5371 = vcvt.s32.f32 %v4347
        %v5372 = vcvt.s32.f32 %v4348
        %v5373 = vcvt.s32.f32 %v4349
        %v5374 = vcvt.s32.f32 %v4350
        %v5375 = vcvt.s32.f32 %v4351
        %v5376 = vcvt.s32.f32 %v4352
        %v5377 = vcvt.s32.f32 %v4353
        %v5378 = vcvt.s32.f32 %v4354
        %v5379 = vcvt.s32.f32 %v4355
        %v5380 = vcvt.s32.f32 %v4356
        %v5381 = vcvt.s32.f32 %v4357
        %v5382 = vcvt.s32.f32 %v4358
        %v5383 = vcvt.s32.f32 %v4359
        %v5384 = vcvt.s32.f32 %v4360
        %v5385 = vcvt.s32.f32 %v4361
        %v5386 = vcvt.s32.f32 %v4362
        %v5387 = vcvt.s32.f32 %v4363
        %v5388 = vcvt.s32.f32 %v4364
        %v5389 = vcvt.s32.f32 %v4365
        %v5390 = vcvt.s32.f32 %v4366
        %v5391 = vcvt.s32.f32 %v4367
        %v5392 = vcvt.s32.f32 %v4368
        %v5393 = vcvt.s32.f32 %v4369
        %v5394 = vcvt.s32.f32 %v4370
        %v5395 = vcvt.s32.f32 %v4371
        %v5396 = vcvt.s32.f32 %v4372
        %v5397 = vcvt.s32.f32 %v4373
        %v5398 = vcvt.s32.f32 %v4374
        %v5399 = vcvt.s32.f32 %v4375
        %v5400 = vcvt.s32.f32 %v4376
        %v5401 = vcvt.s32.f32 %v4377
        %v5402 = vcvt.s32.f32 %v4378
        %v5403 = vcvt.s32.f32 %v4379
        %v5404 = vcvt.s32.f32 %v4380
        %v5405 = vcvt.s32.f32 %v4381
        %v5406 = vcvt.s32.f32 %v4382
        %v5407 = vcvt.s32.f32 %v4383
        %v5408 = vcvt.s32.f32 %v4384
        %v5409 = vcvt.s32.f32 %v4385
        %v5410 = vcvt.s32.f32 %v4386
        %v5411 = vcvt.s32.f32 %v4387
        %v5412 = vcvt.s32.f32 %v4388
        %v5413 = vcvt.s32.f32 %v4389
        %v5414 = vcvt.s32.f32 %v4390
        %v5415 = vcvt.s32.f32 %v4391
        %v5416 = vcvt.s32.f32 %v4392
        %v5417 = vcvt.s32.f32 %v4393
        %v5418 = vcvt.s32.f32 %v4394
        %v5419 = vcvt.s32.f32 %v4395
        %v5420 = vcvt.s32.f32 %v4396
        %v5421 = vcvt.s32.f32 %v4397
        %v5422 = vcvt.s32.f32 %v4398
        %v5423 = vcvt.s32.f32 %v4399
        %v5424 = vcvt.s32.f32 %v4400
        %v5425 = vcvt.s32.f32 %v4401
        %v5426 = vcvt.s32.f32 %v4402
        %v5427 = vcvt.s32.f32 %v4403
        %v5428 = vcvt.s32.f32 %v4404
        %v5429 = vcvt.s32.f32 %v4405
        %v5430 = vcvt.s32.f32 %v4406
        %v5431 = vcvt.s32.f32 %v4407
        %v5432 = vcvt.s32.f32 %v4408
        %v5433 = vcvt.s32.f32 %v4409
        %v5434 = vcvt.s32.f32 %v4410
        %v5435 = vcvt.s32.f32 %v4411
        %v5436 = vcvt.s32.f32 %v4412
        %v5437 = vcvt.s32.f32 %v4413
        %v5438 = vcvt.s32.f32 %v4414
        %v5439 = vcvt.s32.f32 %v4415
        %v5440 = vcvt.s32.f32 %v4416
        %v5441 = vcvt.s32.f32 %v4417
        %v5442 = vcvt.s32.f32 %v4418
        %v5443 = vcvt.s32.f32 %v4419
        %v5444 = vcvt.s32.f32 %v4420
        %v5445 = vcvt.s32.f32 %v4421
        %v5446 = vcvt.s32.f32 %v4422
        %v5447 = vcvt.s32.f32 %v4423
        %v5448 = vcvt.s32.f32 %v4424
        %v5449 = vcvt.s32.f32 %v4425
        %v5450 = vcvt.s32.f32 %v4426
        %v5451 = vcvt.s32.f32 %v4427
        %v5452 = vcvt.s32.f32 %v4428
        %v5453 = vcvt.s32.f32 %v4429
        %v5454 = vcvt.s32.f32 %v4430
        %v5455 = vcvt.s32.f32 %v4431
        %v5456 = vcvt.s32.f32 %v4432
        %v5457 = vcvt.s32.f32 %v4433
        %v5458 = vcvt.s32.f32 %v4434
        %v5459 = vcvt.s32.f32 %v4435
        %v5460 = vcvt.s32.f32 %v4436
        %v5461 = vcvt.s32.f32 %v4437
        %v5462 = vcvt.s32.f32 %v4438
        %v5463 = vcvt.s32.f32 %v4439
        %v5464 = vcvt.s32.f32 %v4440
        %v5465 = vcvt.s32.f32 %v4441
        %v5466 = vcvt.s32.f32 %v4442
        %v5467 = vcvt.s32.f32 %v4443
        %v5468 = vcvt.s32.f32 %v4444
        %v5469 = vcvt.s32.f32 %v4445
        %v5470 = vcvt.s32.f32 %v4446
        %v5471 = vcvt.s32.f32 %v4447
        %v5472 = vcvt.s32.f32 %v4448
        %v5473 = vcvt.s32.f32 %v4449
        %v5474 = vcvt.s32.f32 %v4450
        %v5475 = vcvt.s32.f32 %v4451
        %v5476 = vcvt.s32.f32 %v4452
        %v5477 = vcvt.s32.f32 %v4453
        %v5478 = vcvt.s32.f32 %v4454
        %v5479 = vcvt.s32.f32 %v4455
        %v5480 = vcvt.s32.f32 %v4456
        %v5481 = vcvt.s32.f32 %v4457
        %v5482 = vcvt.s32.f32 %v4458
        %v5483 = vcvt.s32.f32 %v4459
        %v5484 = vcvt.s32.f32 %v4460
        %v5485 = vcvt.s32.f32 %v4461
        %v5486 = vcvt.s32.f32 %v4462
        %v5487 = vcvt.s32.f32 %v4463
        %v5488 = vcvt.s32.f32 %v4464
        %v5489 = vcvt.s32.f32 %v4465
        %v5490 = vcvt.s32.f32 %v4466
        %v5491 = vcvt.s32.f32 %v4467
        %v5492 = vcvt.s32.f32 %v4468
        %v5493 = vcvt.s32.f32 %v4469
        %v5494 = vcvt.s32.f32 %v4470
        %v5495 = vcvt.s32.f32 %v4471
        %v5496 = vcvt.s32.f32 %v4472
        %v5497 = vcvt.s32.f32 %v4473
        %v5498 = vcvt.s32.f32 %v4474
        %v5499 = vcvt.s32.f32 %v4475
        %v5500 = vcvt.s32.f32 %v4476
        %v5501 = vcvt.s32.f32 %v4477
        %v5502 = vcvt.s32.f32 %v4478
        %v5503 = vcvt.s32.f32 %v4479
        %v5504 = vcvt.s32.f32 %v4480
        %v5505 = vcvt.s32.f32 %v4481
        %v5506 = vcvt.s32.f32 %v4482
        %v5507 = vcvt.s32.f32 %v4483
        %v5508 = vcvt.s32.f32 %v4484
        %v5509 = vcvt.s32.f32 %v4485
        %v5510 = vcvt.s32.f32 %v4486
        %v5511 = vcvt.s32.f32 %v4487
        %v5512 = vcvt.s32.f32 %v4488
        %v5513 = vcvt.s32.f32 %v4489
        %v5514 = vcvt.s32.f32 %v4490
        %v5515 = vcvt.s32.f32 %v4491
        %v5516 = vcvt.s32.f32 %v4492
        %v5517 = vcvt.s32.f32 %v4493
        %v5518 = vcvt.s32.f32 %v4494
        %v5519 = vcvt.s32.f32 %v4495
        %v5520 = vcvt.s32.f32 %v4496
        %v5521 = vcvt.s32.f32 %v4497
        %v5522 = vcvt.s32.f32 %v4498
        %v5523 = vcvt.s32.f32 %v4499
        %v5524 = vcvt.s32.f32 %v4500
        %v5525 = vcvt.s32.f32 %v4501
        %v5526 = vcvt.s32.f32 %v4502
        %v5527 = vcvt.s32.f32 %v4503
        %v5528 = vcvt.s32.f32 %v4504
        %v5529 = vcvt.s32.f32 %v4505
        %v5530 = vcvt.s32.f32 %v4506
        %v5531 = vcvt.s32.f32 %v4507
        %v5532 = vcvt.s32.f32 %v4508
        %v5533 = vcvt.s32.f32 %v4509
        %v5534 = vcvt.s32.f32 %v4510
        %v5535 = vcvt.s32.f32 %v4511
        %v5536 = vcvt.s32.f32 %v4512
        %v5537 = vcvt.s32.f32 %v4513
        %v5538 = vcvt.s32.f32 %v4514
        %v5539 = vcvt.s32.f32 %v4515
        %v5540 = vcvt.s32.f32 %v4516
        %v5541 = vcvt.s32.f32 %v4517
        %v5542 = vcvt.s32.f32 %v4518
        %v5543 = vcvt.s32.f32 %v4519
        %v5544 = vcvt.s32.f32 %v4520
        %v5545 = vcvt.s32.f32 %v4521
        %v5546 = vcvt.s32.f32 %v4522
        %v5547 = vcvt.s32.f32 %v4523
        %v5548 = vcvt.s32.f32 %v4524
        %v5549 = vcvt.s32.f32 %v4525
        %v5550 = vcvt.s32.f32 %v4526
        %v5551 = vcvt.s32.f32 %v4527
        %v5552 = vcvt.s32.f32 %v4528
        %v5553 = vcvt.s32.f32 %v4529
        %v5554 = vcvt.s32.f32 %v4530
        %v5555 = vcvt.s32.f32 %v4531
        %v5556 = vcvt.s32.f32 %v4532
        %v5557 = vcvt.s32.f32 %v4533
        %v5558 = vcvt.s32.f32 %v4534
        %v5559 = vcvt.s32.f32 %v4535
        %v5560 = vcvt.s32.f32 %v4536
        %v5561 = vcvt.s32.f32 %v4537
        %v5562 = vcvt.s32.f32 %v4538
        %v5563 = vcvt.s32.f32 %v4539
        %v5564 = vcvt.s32.f32 %v4540
        %v5565 = vcvt.s32.f32 %v4541
        %v5566 = vcvt.s32.f32 %v4542
        %v5567 = vcvt.s32.f32 %v4543
        %v5568 = vcvt.s32.f32 %v4544
        %v5569 = vcvt.s32.f32 %v4545
        %v5570 = vcvt.s32.f32 %v4546
        %v5571 = vcvt.s32.f32 %v4547
        %v5572 = vcvt.s32.f32 %v4548
        %v5573 = vcvt.s32.f32 %v4549
        %v5574 = vcvt.s32.f32 %v4550
        %v5575 = vcvt.s32.f32 %v4551
        %v5576 = vcvt.s32.f32 %v4552
        %v5577 = vcvt.s32.f32 %v4553
        %v5578 = vcvt.s32.f32 %v4554
        %v5579 = vcvt.s32.f32 %v4555
        %v5580 = vcvt.s32.f32 %v4556
        %v5581 = vcvt.s32.f32 %v4557
        %v5582 = vcvt.s32.f32 %v4558
        %v5583 = vcvt.s32.f32 %v4559
        %v5584 = vcvt.s32.f32 %v4560
        %v5585 = vcvt.s32.f32 %v4561
        %v5586 = vcvt.s32.f32 %v4562
        %v5587 = vcvt.s32.f32 %v4563
        %v5588 = vcvt.s32.f32 %v4564
        %v5589 = vcvt.s32.f32 %v4565
        %v5590 = vcvt.s32.f32 %v4566
        %v5591 = vcvt.s32.f32 %v4567
        %v5592 = vcvt.s32.f32 %v4568
        %v5593 = vcvt.s32.f32 %v4569
        %v5594 = vcvt.s32.f32 %v4570
        %v5595 = vcvt.s32.f32 %v4571
        %v5596 = vcvt.s32.f32 %v4572
        %v5597 = vcvt.s32.f32 %v4573
        %v5598 = vcvt.s32.f32 %v4574
        %v5599 = vcvt.s32.f32 %v4575
        %v5600 = vcvt.s32.f32 %v4576
        %v5601 = vcvt.s32.f32 %v4577
        %v5602 = vcvt.s32.f32 %v4578
        %v5603 = vcvt.s32.f32 %v4579
        %v5604 = vcvt.s32.f32 %v4580
        %v5605 = vcvt.s32.f32 %v4581
        %v5606 = vcvt.s32.f32 %v4582
        %v5607 = vcvt.s32.f32 %v4583
        %v5608 = vcvt.s32.f32 %v4584
        %v5609 = vcvt.s32.f32 %v4585
        %v5610 = vcvt.s32.f32 %v4586
        %v5611 = vcvt.s32.f32 %v4587
        %v5612 = vcvt.s32.f32 %v4588
        %v5613 = vcvt.s32.f32 %v4589
        %v5614 = vcvt.s32.f32 %v4590
        %v5615 = vcvt.s32.f32 %v4591
        %v5616 = vcvt.s32.f32 %v4592
        %v5617 = vcvt.s32.f32 %v4593
        %v5618 = vcvt.s32.f32 %v4594
        %v5619 = vcvt.s32.f32 %v4595
        %v5620 = vcvt.s32.f32 %v4596
        %v5621 = vcvt.s32.f32 %v4597
        %v5622 = vcvt.s32.f32 %v4598
        %v5623 = vcvt.s32.f32 %v4599
        %v5624 = vcvt.s32.f32 %v4600
        %v5625 = vcvt.s32.f32 %v4601
        %v5626 = vcvt.s32.f32 %v4602
        %v5627 = vcvt.s32.f32 %v4603
        %v5628 = vcvt.s32.f32 %v4604
        %v5629 = vcvt.s32.f32 %v4605
        %v5630 = vcvt.s32.f32 %v4606
        %v5631 = vcvt.s32.f32 %v4607
        %v5632 = vcvt.s32.f32 %v4608
        %v5633 = vcvt.s32.f32 %v4609
        %v5634 = vcvt.s32.f32 %v4610
        %v5635 = vcvt.s32.f32 %v4611
        %v5636 = vcvt.s32.f32 %v4612
        %v5637 = vcvt.s32.f32 %v4613
        %v5638 = vcvt.s32.f32 %v4614
        %v5639 = vcvt.s32.f32 %v4615
        %v5640 = vcvt.s32.f32 %v4616
        %v5641 = vcvt.s32.f32 %v4617
        %v5642 = vcvt.s32.f32 %v4618
        %v5643 = vcvt.s32.f32 %v4619
        %v5644 = vcvt.s32.f32 %v4620
        %v5645 = vcvt.s32.f32 %v4621
        %v5646 = vcvt.s32.f32 %v4622
        %v5647 = vcvt.s32.f32 %v4623
        %v5648 = vcvt.s32.f32 %v4624
        %v5649 = vcvt.s32.f32 %v4625
        %v5650 = vcvt.s32.f32 %v4626
        %v5651 = vcvt.s32.f32 %v4627
        %v5652 = vcvt.s32.f32 %v4628
        %v5653 = vcvt.s32.f32 %v4629
        %v5654 = vcvt.s32.f32 %v4630
        %v5655 = vcvt.s32.f32 %v4631
        %v5656 = vcvt.s32.f32 %v4632
        %v5657 = vcvt.s32.f32 %v4633
        %v5658 = vcvt.s32.f32 %v4634
        %v5659 = vcvt.s32.f32 %v4635
        %v5660 = vcvt.s32.f32 %v4636
        %v5661 = vcvt.s32.f32 %v4637
        %v5662 = vcvt.s32.f32 %v4638
        %v5663 = vcvt.s32.f32 %v4639
        %v5664 = vcvt.s32.f32 %v4640
        %v5665 = vcvt.s32.f32 %v4641
        %v5666 = vcvt.s32.f32 %v4642
        %v5667 = vcvt.s32.f32 %v4643
        %v5668 = vcvt.s32.f32 %v4644
        %v5669 = vcvt.s32.f32 %v4645
        %v5670 = vcvt.s32.f32 %v4646
        %v5671 = vcvt.s32.f32 %v4647
        %v5672 = vcvt.s32.f32 %v4648
        %v5673 = vcvt.s32.f32 %v4649
        %v5674 = vcvt.s32.f32 %v4650
        %v5675 = vcvt.s32.f32 %v4651
        %v5676 = vcvt.s32.f32 %v4652
        %v5677 = vcvt.s32.f32 %v4653
        %v5678 = vcvt.s32.f32 %v4654
        %v5679 = vcvt.s32.f32 %v4655
        %v5680 = vcvt.s32.f32 %v4656
        %v5681 = vcvt.s32.f32 %v4657
        %v5682 = vcvt.s32.f32 %v4658
        %v5683 = vcvt.s32.f32 %v4659
        %v5684 = vcvt.s32.f32 %v4660
        %v5685 = vcvt.s32.f32 %v4661
        %v5686 = vcvt.s32.f32 %v4662
        %v5687 = vcvt.s32.f32 %v4663
        %v5688 = vcvt.s32.f32 %v4664
        %v5689 = vcvt.s32.f32 %v4665
        %v5690 = vcvt.s32.f32 %v4666
        %v5691 = vcvt.s32.f32 %v4667
        %v5692 = vcvt.s32.f32 %v4668
        %v5693 = vcvt.s32.f32 %v4669
        %v5694 = vcvt.s32.f32 %v4670
        %v5695 = vcvt.s32.f32 %v4671
        %v5696 = vcvt.s32.f32 %v4672
        %v5697 = vcvt.s32.f32 %v4673
        %v5698 = vcvt.s32.f32 %v4674
        %v5699 = vcvt.s32.f32 %v4675
        %v5700 = vcvt.s32.f32 %v4676
        %v5701 = vcvt.s32.f32 %v4677
        %v5702 = vcvt.s32.f32 %v4678
        %v5703 = vcvt.s32.f32 %v4679
        %v5704 = vcvt.s32.f32 %v4680
        %v5705 = vcvt.s32.f32 %v4681
        %v5706 = vcvt.s32.f32 %v4682
        %v5707 = vcvt.s32.f32 %v4683
        %v5708 = vcvt.s32.f32 %v4684
        %v5709 = vcvt.s32.f32 %v4685
        %v5710 = vcvt.s32.f32 %v4686
        %v5711 = vcvt.s32.f32 %v4687
        %v5712 = vcvt.s32.f32 %v4688
        %v5713 = vcvt.s32.f32 %v4689
        %v5714 = vcvt.s32.f32 %v4690
        %v5715 = vcvt.s32.f32 %v4691
        %v5716 = vcvt.s32.f32 %v4692
        %v5717 = vcvt.s32.f32 %v4693
        %v5718 = vcvt.s32.f32 %v4694
        %v5719 = vcvt.s32.f32 %v4695
        %v5720 = vcvt.s32.f32 %v4696
        %v5721 = vcvt.s32.f32 %v4697
        %v5722 = vcvt.s32.f32 %v4698
        %v5723 = vcvt.s32.f32 %v4699
        %v5724 = vcvt.s32.f32 %v4700
        %v5725 = vcvt.s32.f32 %v4701
        %v5726 = vcvt.s32.f32 %v4702
        %v5727 = vcvt.s32.f32 %v4703
        %v5728 = vcvt.s32.f32 %v4704
        %v5729 = vcvt.s32.f32 %v4705
        %v5730 = vcvt.s32.f32 %v4706
        %v5731 = vcvt.s32.f32 %v4707
        %v5732 = vcvt.s32.f32 %v4708
        %v5733 = vcvt.s32.f32 %v4709
        %v5734 = vcvt.s32.f32 %v4710
        %v5735 = vcvt.s32.f32 %v4711
        %v5736 = vcvt.s32.f32 %v4712
        %v5737 = vcvt.s32.f32 %v4713
        %v5738 = vcvt.s32.f32 %v4714
        %v5739 = vcvt.s32.f32 %v4715
        %v5740 = vcvt.s32.f32 %v4716
        %v5741 = vcvt.s32.f32 %v4717
        %v5742 = vcvt.s32.f32 %v4718
        %v5743 = vcvt.s32.f32 %v4719
        %v5744 = vcvt.s32.f32 %v4720
        %v5745 = vcvt.s32.f32 %v4721
        %v5746 = vcvt.s32.f32 %v4722
        %v5747 = vcvt.s32.f32 %v4723
        %v5748 = vcvt.s32.f32 %v4724
        %v5749 = vcvt.s32.f32 %v4725
        %v5750 = vcvt.s32.f32 %v4726
        %v5751 = vcvt.s32.f32 %v4727
        %v5752 = vcvt.s32.f32 %v4728
        %v5753 = vcvt.s32.f32 %v4729
        %v5754 = vcvt.s32.f32 %v4730
        %v5755 = vcvt.s32.f32 %v4731
        %v5756 = vcvt.s32.f32 %v4732
        %v5757 = vcvt.s32.f32 %v4733
        %v5758 = vcvt.s32.f32 %v4734
        %v5759 = vcvt.s32.f32 %v4735
        %v5760 = vcvt.s32.f32 %v4736
        %v5761 = vcvt.s32.f32 %v4737
        %v5762 = vcvt.s32.f32 %v4738
        %v5763 = vcvt.s32.f32 %v4739
        %v5764 = vcvt.s32.f32 %v4740
        %v5765 = vcvt.s32.f32 %v4741
        %v5766 = vcvt.s32.f32 %v4742
        %v5767 = vcvt.s32.f32 %v4743
        %v5768 = vcvt.s32.f32 %v4744
        %v5769 = vcvt.s32.f32 %v4745
        %v5770 = vcvt.s32.f32 %v4746
        %v5771 = vcvt.s32.f32 %v4747
        %v5772 = vcvt.s32.f32 %v4748
        %v5773 = vcvt.s32.f32 %v4749
        %v5774 = vcvt.s32.f32 %v4750
        %v5775 = vcvt.s32.f32 %v4751
        %v5776 = vcvt.s32.f32 %v4752
        %v5777 = vcvt.s32.f32 %v4753
        %v5778 = vcvt.s32.f32 %v4754
        %v5779 = vcvt.s32.f32 %v4755
        %v5780 = vcvt.s32.f32 %v4756
        %v5781 = vcvt.s32.f32 %v4757
        %v5782 = vcvt.s32.f32 %v4758
        %v5783 = vcvt.s32.f32 %v4759
        %v5784 = vcvt.s32.f32 %v4760
        %v5785 = vcvt.s32.f32 %v4761
        %v5786 = vcvt.s32.f32 %v4762
        %v5787 = vcvt.s32.f32 %v4763
        %v5788 = vcvt.s32.f32 %v4764
        %v5789 = vcvt.s32.f32 %v4765
        %v5790 = vcvt.s32.f32 %v4766
        %v5791 = vcvt.s32.f32 %v4767
        %v5792 = vcvt.s32.f32 %v4768
        %v5793 = vcvt.s32.f32 %v4769
        %v5794 = vcvt.s32.f32 %v4770
        %v5795 = vcvt.s32.f32 %v4771
        %v5796 = vcvt.s32.f32 %v4772
        %v5797 = vcvt.s32.f32 %v4773
        %v5798 = vcvt.s32.f32 %v4774
        %v5799 = vcvt.s32.f32 %v4775
        %v5800 = vcvt.s32.f32 %v4776
        %v5801 = vcvt.s32.f32 %v4777
        %v5802 = vcvt.s32.f32 %v4778
        %v5803 = vcvt.s32.f32 %v4779
        %v5804 = vcvt.s32.f32 %v4780
        %v5805 = vcvt.s32.f32 %v4781
        %v5806 = vcvt.s32.f32 %v4782
        %v5807 = vcvt.s32.f32 %v4783
        %v5808 = vcvt.s32.f32 %v4784
        %v5809 = vcvt.s32.f32 %v4785
        %v5810 = vcvt.s32.f32 %v4786
        %v5811 = vcvt.s32.f32 %v4787
        %v5812 = vcvt.s32.f32 %v4788
        %v5813 = vcvt.s32.f32 %v4789
        %v5814 = vcvt.s32.f32 %v4790
        %v5815 = vcvt.s32.f32 %v4791
        %v5816 = vcvt.s32.f32 %v4792
        %v5817 = vcvt.s32.f32 %v4793
        %v5818 = vcvt.s32.f32 %v4794
        %v5819 = vcvt.s32.f32 %v4795
        %v5820 = vcvt.s32.f32 %v4796
        %v5821 = vcvt.s32.f32 %v4797
        %v5822 = vcvt.s32.f32 %v4798
        %v5823 = vcvt.s32.f32 %v4799
        %v5824 = vcvt.s32.f32 %v4800
        %v5825 = vcvt.s32.f32 %v4801
        %v5826 = vcvt.s32.f32 %v4802
        %v5827 = vcvt.s32.f32 %v4803
        %v5828 = vcvt.s32.f32 %v4804
        %v5829 = vcvt.s32.f32 %v4805
        %v5830 = vcvt.s32.f32 %v4806
        %v5831 = vcvt.s32.f32 %v4807
        %v5832 = vcvt.s32.f32 %v4808
        %v5833 = vcvt.s32.f32 %v4809
        %v5834 = vcvt.s32.f32 %v4810
        %v5835 = vcvt.s32.f32 %v4811
        %v5836 = vcvt.s32.f32 %v4812
        %v5837 = vcvt.s32.f32 %v4813
        %v5838 = vcvt.s32.f32 %v4814
        %v5839 = vcvt.s32.f32 %v4815
        %v5840 = vcvt.s32.f32 %v4816
        %v5841 = vcvt.s32.f32 %v4817
        %v5842 = vcvt.s32.f32 %v4818
        %v5843 = vcvt.s32.f32 %v4819
        %v5844 = vcvt.s32.f32 %v4820
        %v5845 = vcvt.s32.f32 %v4821
        %v5846 = vcvt.s32.f32 %v4822
        %v5847 = vcvt.s32.f32 %v4823
        %v5848 = vcvt.s32.f32 %v4824
        %v5849 = vcvt.s32.f32 %v4825
        %v5850 = vcvt.s32.f32 %v4826
        %v5851 = vcvt.s32.f32 %v4827
        %v5852 = vcvt.s32.f32 %v4828
        %v5853 = vcvt.s32.f32 %v4829
        %v5854 = vcvt.s32.f32 %v4830
        %v5855 = vcvt.s32.f32 %v4831
        %v5856 = vcvt.s32.f32 %v4832
        %v5857 = vcvt.s32.f32 %v4833
        %v5858 = vcvt.s32.f32 %v4834
        %v5859 = vcvt.s32.f32 %v4835
        %v5860 = vcvt.s32.f32 %v4836
        %v5861 = vcvt.s32.f32 %v4837
        %v5862 = vcvt.s32.f32 %v4838
        %v5863 = vcvt.s32.f32 %v4839
        %v5864 = vcvt.s32.f32 %v4840
        %v5865 = vcvt.s32.f32 %v4841
        %v5866 = vcvt.s32.f32 %v4842
        %v5867 = vcvt.s32.f32 %v4843
        %v5868 = vcvt.s32.f32 %v4844
        %v5869 = vcvt.s32.f32 %v4845
        %v5870 = vcvt.s32.f32 %v4846
        %v5871 = vcvt.s32.f32 %v4847
        %v5872 = vcvt.s32.f32 %v4848
        %v5873 = vcvt.s32.f32 %v4849
        %v5874 = vcvt.s32.f32 %v4850
        %v5875 = vcvt.s32.f32 %v4851
        %v5876 = vcvt.s32.f32 %v4852
        %v5877 = vcvt.s32.f32 %v4853
        %v5878 = vcvt.s32.f32 %v4854
        %v5879 = vcvt.s32.f32 %v4855
        %v5880 = vcvt.s32.f32 %v4856
        %v5881 = vcvt.s32.f32 %v4857
        %v5882 = vcvt.s32.f32 %v4858
        %v5883 = vcvt.s32.f32 %v4859
        %v5884 = vcvt.s32.f32 %v4860
        %v5885 = vcvt.s32.f32 %v4861
        %v5886 = vcvt.s32.f32 %v4862
        %v5887 = vcvt.s32.f32 %v4863
        %v5888 = vcvt.s32.f32 %v4864
        %v5889 = vcvt.s32.f32 %v4865
        %v5890 = vcvt.s32.f32 %v4866
        %v5891 = vcvt.s32.f32 %v4867
        %v5892 = vcvt.s32.f32 %v4868
        %v5893 = vcvt.s32.f32 %v4869
        %v5894 = vcvt.s32.f32 %v4870
        %v5895 = vcvt.s32.f32 %v4871
        %v5896 = vcvt.s32.f32 %v4872
        %v5897 = vcvt.s32.f32 %v4873
        %v5898 = vcvt.s32.f32 %v4874
        %v5899 = vcvt.s32.f32 %v4875
        %v5900 = vcvt.s32.f32 %v4876
        %v5901 = vcvt.s32.f32 %v4877
        %v5902 = vcvt.s32.f32 %v4878
        %v5903 = vcvt.s32.f32 %v4879
        %v5904 = vcvt.s32.f32 %v4880
        %v5905 = vcvt.s32.f32 %v4881
        %v5906 = vcvt.s32.f32 %v4882
        %v5907 = vcvt.s32.f32 %v4883
        %v5908 = vcvt.s32.f32 %v4884
        %v5909 = vcvt.s32.f32 %v4885
        %v5910 = vcvt.s32.f32 %v4886
        %v5911 = vcvt.s32.f32 %v4887
        %v5912 = vcvt.s32.f32 %v4888
        %v5913 = vcvt.s32.f32 %v4889
        %v5914 = vcvt.s32.f32 %v4890
        %v5915 = vcvt.s32.f32 %v4891
        %v5916 = vcvt.s32.f32 %v4892
        %v5917 = vcvt.s32.f32 %v4893
        %v5918 = vcvt.s32.f32 %v4894
        %v5919 = vcvt.s32.f32 %v4895
        %v5920 = vcvt.s32.f32 %v4896
        %v5921 = vcvt.s32.f32 %v4897
        %v5922 = vcvt.s32.f32 %v4898
        %v5923 = vcvt.s32.f32 %v4899
        %v5924 = vcvt.s32.f32 %v4900
        %v5925 = vcvt.s32.f32 %v4901
        %v5926 = vcvt.s32.f32 %v4902
        %v5927 = vcvt.s32.f32 %v4903
        %v5928 = vcvt.s32.f32 %v4904
        %v5929 = vcvt.s32.f32 %v4905
        %v5930 = vcvt.s32.f32 %v4906
        %v5931 = vcvt.s32.f32 %v4907
        %v5932 = vcvt.s32.f32 %v4908
        %v5933 = vcvt.s32.f32 %v4909
        %v5934 = vcvt.s32.f32 %v4910
        %v5935 = vcvt.s32.f32 %v4911
        %v5936 = vcvt.s32.f32 %v4912
        %v5937 = vcvt.s32.f32 %v4913
        %v5938 = vcvt.s32.f32 %v4914
        %v5939 = vcvt.s32.f32 %v4915
        %v5940 = vcvt.s32.f32 %v4916
        %v5941 = vcvt.s32.f32 %v4917
        %v5942 = vcvt.s32.f32 %v4918
        %v5943 = vcvt.s32.f32 %v4919
        %v5944 = vcvt.s32.f32 %v4920
        %v5945 = vcvt.s32.f32 %v4921
        %v5946 = vcvt.s32.f32 %v4922
        %v5947 = vcvt.s32.f32 %v4923
        %v5948 = vcvt.s32.f32 %v4924
        %v5949 = vcvt.s32.f32 %v4925
        %v5950 = vcvt.s32.f32 %v4926
        %v5951 = vcvt.s32.f32 %v4927
        %v5952 = vcvt.s32.f32 %v4928
        %v5953 = vcvt.s32.f32 %v4929
        %v5954 = vcvt.s32.f32 %v4930
        %v5955 = vcvt.s32.f32 %v4931
        %v5956 = vcvt.s32.f32 %v4932
        %v5957 = vcvt.s32.f32 %v4933
        %v5958 = vcvt.s32.f32 %v4934
        %v5959 = vcvt.s32.f32 %v4935
        %v5960 = vcvt.s32.f32 %v4936
        %v5961 = vcvt.s32.f32 %v4937
        %v5962 = vcvt.s32.f32 %v4938
        %v5963 = vcvt.s32.f32 %v4939
        %v5964 = vcvt.s32.f32 %v4940
        %v5965 = vcvt.s32.f32 %v4941
        %v5966 = vcvt.s32.f32 %v4942
        %v5967 = vcvt.s32.f32 %v4943
        %v5968 = vcvt.s32.f32 %v4944
        %v5969 = vcvt.s32.f32 %v4945
        %v5970 = vcvt.s32.f32 %v4946
        %v5971 = vcvt.s32.f32 %v4947
        %v5972 = vcvt.s32.f32 %v4948
        %v5973 = vcvt.s32.f32 %v4949
        %v5974 = vcvt.s32.f32 %v4950
        %v5975 = vcvt.s32.f32 %v4951
        %v5976 = vcvt.s32.f32 %v4952
        %v5977 = vcvt.s32.f32 %v4953
        %v5978 = vcvt.s32.f32 %v4954
        %v5979 = vcvt.s32.f32 %v4955
        %v5980 = vcvt.s32.f32 %v4956
        %v5981 = vcvt.s32.f32 %v4957
        %v5982 = vcvt.s32.f32 %v4958
        %v5983 = vcvt.s32.f32 %v4959
        %v5984 = vcvt.s32.f32 %v4960
        %v5985 = vcvt.s32.f32 %v4961
        %v5986 = vcvt.s32.f32 %v4962
        %v5987 = vcvt.s32.f32 %v4963
        %v5988 = vcvt.s32.f32 %v4964
        %v5989 = vcvt.s32.f32 %v4965
        %v5990 = vcvt.s32.f32 %v4966
        %v5991 = vcvt.s32.f32 %v4967
        %v5992 = vcvt.s32.f32 %v4968
        %v5993 = vcvt.s32.f32 %v4969
        %v5994 = vcvt.s32.f32 %v4970
        %v5995 = vcvt.s32.f32 %v4971
        %v5996 = vcvt.s32.f32 %v4972
        %v5997 = vcvt.s32.f32 %v4973
        %v5998 = vcvt.s32.f32 %v4974
        %v5999 = vcvt.s32.f32 %v4975
        %v6000 = vcvt.s32.f32 %v4976
        %v6001 = vcvt.s32.f32 %v4977
        %v6002 = vcvt.s32.f32 %v4978
        %v6003 = vcvt.s32.f32 %v4979
        %v6004 = vcvt.s32.f32 %v4980
        %v6005 = vcvt.s32.f32 %v4981
        %v6006 = vcvt.s32.f32 %v4982
        %v6007 = vcvt.s32.f32 %v4983
        %v6008 = vcvt.s32.f32 %v4984
        %v6009 = vcvt.s32.f32 %v4985
        %v6010 = vcvt.s32.f32 %v4986
        %v6011 = vcvt.s32.f32 %v4987
        %v6012 = vcvt.s32.f32 %v4988
        %v6013 = vcvt.s32.f32 %v4989
        %v6014 = vcvt.s32.f32 %v4990
        %v6015 = vcvt.s32.f32 %v4991
        %v6016 = vcvt.s32.f32 %v4992
        %v6017 = vcvt.s32.f32 %v4993
        %v6018 = vcvt.s32.f32 %v4994
        %v6019 = vcvt.s32.f32 %v4995
        %v6020 = vcvt.s32.f32 %v4996
        %v6021 = vcvt.s32.f32 %v4997
        %v6022 = vcvt.s32.f32 %v4998
        %v6023 = vcvt.s32.f32 %v4999
        %v6024 = vcvt.s32.f32 %v5000
        %v6025 = vcvt.s32.f32 %v5001
        %v6026 = vcvt.s32.f32 %v5002
        %v6027 = vcvt.s32.f32 %v5003
        %v6028 = vcvt.s32.f32 %v5004
        %v6029 = vcvt.s32.f32 %v5005
        %v6030 = vcvt.s32.f32 %v5006
        %v6031 = vcvt.s32.f32 %v5007
        %v6032 = vcvt.s32.f32 %v5008
        %v6033 = vcvt.s32.f32 %v5009
        %v6034 = vcvt.s32.f32 %v5010
        %v6035 = vcvt.s32.f32 %v5011
        %v6036 = vcvt.s32.f32 %v5012
        %v6037 = vcvt.s32.f32 %v5013
        %v6038 = vcvt.s32.f32 %v5014
        %v6039 = vcvt.s32.f32 %v5015
        %v6040 = vcvt.s32.f32 %v5016
        %v6041 = vcvt.s32.f32 %v5017
        %v6042 = vcvt.s32.f32 %v5018
        %v6043 = vcvt.s32.f32 %v5019
        %v6044 = vcvt.s32.f32 %v5020
        %v6045 = vcvt.s32.f32 %v5021
        %v6046 = vcvt.s32.f32 %v5022
        %v6047 = vcvt.s32.f32 %v5023
        %v6048 = vcvt.s32.f32 %v5024
        %v6049 = vcvt.s32.f32 %v5025
        %v6050 = vcvt.s32.f32 %v5026
        %v6051 = vcvt.s32.f32 %v5027
        %v6052 = vcvt.s32.f32 %v5028
        %v6053 = vcvt.s32.f32 %v5029
        %v6054 = vcvt.s32.f32 %v5030
        %v6055 = vcvt.s32.f32 %v5031
        %v6056 = vcvt.s32.f32 %v5032
        %v6057 = vcvt.s32.f32 %v5033
        %v6058 = vcvt.s32.f32 %v5034
        %v6059 = vcvt.s32.f32 %v5035
        %v6060 = vcvt.s32.f32 %v5036
        %v6061 = vcvt.s32.f32 %v5037
        %v6062 = vcvt.s32.f32 %v5038
        %v6063 = vcvt.s32.f32 %v5039
        %v6064 = vcvt.s32.f32 %v5040
        %v6065 = vcvt.s32.f32 %v5041
        %v6066 = vcvt.s32.f32 %v5042
        %v6067 = vcvt.s32.f32 %v5043
        %v6068 = vcvt.s32.f32 %v5044
        %v6069 = vcvt.s32.f32 %v5045
        %v6070 = vcvt.s32.f32 %v5046
        %v6071 = vcvt.s32.f32 %v5047
        %v6072 = vcvt.s32.f32 %v5048
        %v6073 = vcvt.s32.f32 %v5049
        %v6074 = vcvt.s32.f32 %v5050
        %v6075 = vcvt.s32.f32 %v5051
        %v6076 = vcvt.s32.f32 %v5052
        %v6077 = vcvt.s32.f32 %v5053
        %v6078 = vcvt.s32.f32 %v5054
        %v6079 = vcvt.s32.f32 %v5055
        %v6080 = vcvt.s32.f32 %v5056
        %v6081 = vcvt.s32.f32 %v5057
        %v6082 = vcvt.s32.f32 %v5058
        %v6083 = vcvt.s32.f32 %v5059
        %v6084 = vcvt.s32.f32 %v5060
        %v6085 = vcvt.s32.f32 %v5061
        %v6086 = vcvt.s32.f32 %v5062
        %v6087 = vcvt.s32.f32 %v5063
        %v6088 = vcvt.s32.f32 %v5064
        %v6089 = vcvt.s32.f32 %v5065
        %v6090 = vcvt.s32.f32 %v5066
        %v6091 = vcvt.s32.f32 %v5067
        %v6092 = vcvt.s32.f32 %v5068
        %v6093 = vcvt.s32.f32 %v5069
        %v6094 = vcvt.s32.f32 %v5070
        %v6095 = vcvt.s32.f32 %v5071
        %v6096 = vcvt.s32.f32 %v5072
        %v6097 = vcvt.s32.f32 %v5073
        %v6098 = vcvt.s32.f32 %v5074
        %v6099 = vcvt.s32.f32 %v5075
        %v6100 = vcvt.s32.f32 %v5076
        %v6101 = vcvt.s32.f32 %v5077
        %v6102 = vcvt.s32.f32 %v5078
        %v6103 = vcvt.s32.f32 %v5079
        %v6104 = vcvt.s32.f32 %v5080
        %v6105 = vcvt.s32.f32 %v5081
        %v6106 = vcvt.s32.f32 %v5082
        %v6107 = vcvt.s32.f32 %v5083
        %v6108 = vcvt.s32.f32 %v5084
        %v6109 = vcvt.s32.f32 %v5085
        %v6110 = vcvt.s32.f32 %v5086
        %v6111 = vcvt.s32.f32 %v5087
        %v6112 = vcvt.s32.f32 %v5088
        %v6113 = vcvt.s32.f32 %v5089
        %v6114 = vcvt.s32.f32 %v5090
        %v6115 = vcvt.s32.f32 %v5091
        %v6116 = vcvt.s32.f32 %v5092
        %v6117 = vcvt.s32.f32 %v5093
        %v6118 = vcvt.s32.f32 %v5094
        %v6119 = vcvt.s32.f32 %v5095
        %v6120 = vcvt.s32.f32 %v5096
        %v6121 = vcvt.s32.f32 %v5097
        %v6122 = vcvt.s32.f32 %v5098
        %v6123 = vcvt.s32.f32 %v5099
        %v6124 = vcvt.s32.f32 %v5100
        %v6125 = vcvt.s32.f32 %v5101
        %v6126 = vcvt.s32.f32 %v5102
        %v6127 = vcvt.s32.f32 %v5103
        %v6128 = vcvt.s32.f32 %v5104
        %v6129 = vcvt.s32.f32 %v5105
        %v6130 = vcvt.s32.f32 %v5106
        %v6131 = vcvt.s32.f32 %v5107
        %v6132 = vcvt.s32.f32 %v5108
        %v6133 = vcvt.s32.f32 %v5109
        %v6134 = vcvt.s32.f32 %v5110
        %v6135 = vcvt.s32.f32 %v5111
        %v6136 = vcvt.s32.f32 %v5112
        %v6137 = vcvt.s32.f32 %v5113
        %v6138 = vcvt.s32.f32 %v5114
        %v6139 = vcvt.s32.f32 %v5115
        %v6140 = vcvt.s32.f32 %v5116
        %v6141 = vcvt.s32.f32 %v5117
        %v6142 = vcvt.s32.f32 %v5118
        %v6143 = vcvt.s32.f32 %v5119
        %v6144 = vcvt.s32.f32 %v5120
        %v6145 = vcvt.s32.f32 %v5121
        %v6146 = vcvt.s32.f32 %v5122
        %v6147 = vcvt.s32.f32 %v5123
        %v6148 = vcvt.s32.f32 %v5124
        %v6149 = vcvt.s32.f32 %v5125
        %v6150 = vcvt.s32.f32 %v5126
        %v6151 = vcvt.s32.f32 %v5127
        %v6152 = vcvt.s32.f32 %v5128
        %v6153 = vcvt.s32.f32 %v5129
        %v6154 = vcvt.s32.f32 %v5130
        %v6155 = vcvt.s32.f32 %v5131
        %v6156 = vcvt.s32.f32 %v5132
        %v6157 = vcvt.s32.f32 %v5133
        %v6158 = vcvt.s32.f32 %v5134
        %v6159 = vcvt.s32.f32 %v5135
        %v6160 = vcvt.s32.f32 %v5136
        %v6161 = vcvt.s32.f32 %v5137
        %v6162 = vcvt.s32.f32 %v5138
        %v6163 = vcvt.s32.f32 %v5139
        %v6164 = vcvt.s32.f32 %v5140
        %v6165 = vcvt.s32.f32 %v5141
        %v6166 = vcvt.s32.f32 %v5142
        %v6167 = vcvt.s32.f32 %v5143
        %v6168 = vcvt.s32.f32 %v5144
        %v6169 = vcvt.s32.f32 %v5145
        %v6170 = vcvt.s32.f32 %v5146
        %v6171 = vcvt.s32.f32 %v5147
        %v6172 = vcvt.s32.f32 %v5148
        %v6173 = vcvt.s32.f32 %v5149
        %v6174 = vcvt.s32.f32 %v5150
        %v6175 = vcvt.s32.f32 %v5151
        %v6176 = vcvt.s32.f32 %v5152
        %v6177 = vcvt.s32.f32 %v5153
        %v6178 = vcvt.s32.f32 %v5154
        %v6179 = vcvt.s32.f32 %v5155
        %v6180 = vcvt.s32.f32 %v5156
        %v6181 = vcvt.s32.f32 %v5157
        %v6182 = vcvt.s32.f32 %v5158
        %v6183 = vcvt.s32.f32 %v5159
        %v6184 = vcvt.s32.f32 %v5160
        %v6185 = vcvt.s32.f32 %v5161
        %v6186 = vcvt.s32.f32 %v5162
        %v6187 = vcvt.s32.f32 %v5163
        %v6188 = vcvt.s32.f32 %v5164
        %v6189 = vcvt.s32.f32 %v5165
        %v6190 = vcvt.s32.f32 %v5166
        %v6191 = vcvt.s32.f32 %v5167
        %v6192 = vcvt.s32.f32 %v5168
        %v6193 = vcvt.s32.f32 %v5169
        %v6194 = vcvt.s32.f32 %v5170
        %v6195 = vcvt.s32.f32 %v5171
        %v6196 = vcvt.s32.f32 %v5172
        %v6197 = vcvt.s32.f32 %v5173
        %v6198 = vcvt.s32.f32 %v5174
        %v6199 = vcvt.s32.f32 %v5175
        %v6200 = vcvt.s32.f32 %v5176
        %v6201 = vcvt.s32.f32 %v5177
        %v6202 = vcvt.s32.f32 %v5178
        %v6203 = vcvt.s32.f32 %v5179
        %v6204 = vcvt.s32.f32 %v5180
        %v6205 = vcvt.s32.f32 %v5181
        %v6206 = vcvt.s32.f32 %v5182
        %v6207 = vcvt.s32.f32 %v5183
        %v6208 = vcvt.s32.f32 %v5184
        %v6209 = vcvt.s32.f32 %v5185
        %v6210 = vcvt.s32.f32 %v5186
        %v6211 = vcvt.s32.f32 %v5187
        %v6212 = vcvt.s32.f32 %v5188
        %v6213 = vcvt.s32.f32 %v5189
        %v6214 = vcvt.s32.f32 %v5190
        %v6215 = vcvt.s32.f32 %v5191
        %v6216 = vcvt.s32.f32 %v5192
        %v6217 = vcvt.s32.f32 %v5193
        %v6218 = vcvt.s32.f32 %v5194
        %v6219 = vcvt.s32.f32 %v5195
        %v6220 = vcvt.s32.f32 %v5196
        %v6221 = vcvt.s32.f32 %v5197
        %v6222 = vcvt.s32.f32 %v5198
        %v6223 = vcvt.s32.f32 %v5199
        %v6224 = vcvt.s32.f32 %v5200
        %v6225 = vcvt.s32.f32 %v5201
        %v6226 = vcvt.s32.f32 %v5202
        %v6227 = vcvt.s32.f32 %v5203
        %v6228 = vcvt.s32.f32 %v5204
        %v6229 = vcvt.s32.f32 %v5205
        %v6230 = vcvt.s32.f32 %v5206
        %v6231 = vcvt.s32.f32 %v5207
        %v6232 = vcvt.s32.f32 %v5208
        %v6233 = vcvt.s32.f32 %v5209
        %v6234 = vcvt.s32.f32 %v5210
        %v6235 = vcvt.s32.f32 %v5211
        %v6236 = vcvt.s32.f32 %v5212
        %v6237 = vcvt.s32.f32 %v5213
        %v6238 = vcvt.s32.f32 %v5214
        %v6239 = vcvt.s32.f32 %v5215
        %v6240 = vcvt.s32.f32 %v5216
        %v6241 = vcvt.s32.f32 %v5217
        %v6242 = vcvt.s32.f32 %v5218
        %v6243 = vcvt.s32.f32 %v5219
        %v6244 = vcvt.s32.f32 %v5220
        %v6245 = vcvt.s32.f32 %v5221
        %v6246 = vcvt.s32.f32 %v5222
        %v6247 = vcvt.s32.f32 %v5223
        %v6248 = vcvt.s32.f32 %v5224
        %v6249 = vcvt.s32.f32 %v5225
        %v6250 = vcvt.s32.f32 %v5226
        %v6251 = vcvt.s32.f32 %v5227
        %v6252 = vcvt.s32.f32 %v5228
        %v6253 = vcvt.s32.f32 %v5229
        %v6254 = vcvt.s32.f32 %v5230
        %v6255 = vcvt.s32.f32 %v5231
        %v6256 = vcvt.s32.f32 %v5232
        %v6257 = vcvt.s32.f32 %v5233
        %v6258 = vcvt.s32.f32 %v5234
        %v6259 = vcvt.s32.f32 %v5235
        %v6260 = vpack.c.bf16 %v5240, %v5236
        %v6261 = vpack.c.bf16 %v5241, %v5237
        %v6262 = vpack.c.bf16 %v5242, %v5238
        %v6263 = vpack.c.bf16 %v5243, %v5239
        %v6264 = vpack.c.bf16 %v5248, %v5244
        %v6265 = vpack.c.bf16 %v5249, %v5245
        %v6266 = vpack.c.bf16 %v5250, %v5246
        %v6267 = vpack.c.bf16 %v5251, %v5247
        %v6268 = vpack.c.bf16 %v5256, %v5252
        %v6269 = vpack.c.bf16 %v5257, %v5253
        %v6270 = vpack.c.bf16 %v5258, %v5254
        %v6271 = vpack.c.bf16 %v5259, %v5255
        %v6272 = vpack.c.bf16 %v5264, %v5260
        %v6273 = vpack.c.bf16 %v5265, %v5261
        %v6274 = vpack.c.bf16 %v5266, %v5262
        %v6275 = vpack.c.bf16 %v5267, %v5263
        %v6276 = vpack.c.bf16 %v5272, %v5268
        %v6277 = vpack.c.bf16 %v5273, %v5269
        %v6278 = vpack.c.bf16 %v5274, %v5270
        %v6279 = vpack.c.bf16 %v5275, %v5271
        %v6280 = vpack.c.bf16 %v5280, %v5276
        %v6281 = vpack.c.bf16 %v5281, %v5277
        %v6282 = vpack.c.bf16 %v5282, %v5278
        %v6283 = vpack.c.bf16 %v5283, %v5279
        %v6284 = vpack.c.bf16 %v5288, %v5284
        %v6285 = vpack.c.bf16 %v5289, %v5285
        %v6286 = vpack.c.bf16 %v5290, %v5286
        %v6287 = vpack.c.bf16 %v5291, %v5287
        %v6288 = vpack.c.bf16 %v5296, %v5292
        %v6289 = vpack.c.bf16 %v5297, %v5293
        %v6290 = vpack.c.bf16 %v5298, %v5294
        %v6291 = vpack.c.bf16 %v5299, %v5295
        %v6292 = vpack.c.bf16 %v5304, %v5300
        %v6293 = vpack.c.bf16 %v5305, %v5301
        %v6294 = vpack.c.bf16 %v5306, %v5302
        %v6295 = vpack.c.bf16 %v5307, %v5303
        %v6296 = vpack.c.bf16 %v5312, %v5308
        %v6297 = vpack.c.bf16 %v5313, %v5309
        %v6298 = vpack.c.bf16 %v5314, %v5310
        %v6299 = vpack.c.bf16 %v5315, %v5311
        %v6300 = vpack.c.bf16 %v5320, %v5316
        %v6301 = vpack.c.bf16 %v5321, %v5317
        %v6302 = vpack.c.bf16 %v5322, %v5318
        %v6303 = vpack.c.bf16 %v5323, %v5319
        %v6304 = vpack.c.bf16 %v5328, %v5324
        %v6305 = vpack.c.bf16 %v5329, %v5325
        %v6306 = vpack.c.bf16 %v5330, %v5326
        %v6307 = vpack.c.bf16 %v5331, %v5327
        %v6308 = vpack.c.bf16 %v5336, %v5332
        %v6309 = vpack.c.bf16 %v5337, %v5333
        %v6310 = vpack.c.bf16 %v5338, %v5334
        %v6311 = vpack.c.bf16 %v5339, %v5335
        %v6312 = vpack.c.bf16 %v5344, %v5340
        %v6313 = vpack.c.bf16 %v5345, %v5341
        %v6314 = vpack.c.bf16 %v5346, %v5342
        %v6315 = vpack.c.bf16 %v5347, %v5343
        %v6316 = vpack.c.bf16 %v5352, %v5348
        %v6317 = vpack.c.bf16 %v5353, %v5349
        %v6318 = vpack.c.bf16 %v5354, %v5350
        %v6319 = vpack.c.bf16 %v5355, %v5351
        %v6320 = vpack.c.bf16 %v5360, %v5356
        %v6321 = vpack.c.bf16 %v5361, %v5357
        %v6322 = vpack.c.bf16 %v5362, %v5358
        %v6323 = vpack.c.bf16 %v5363, %v5359
        %v6324 = vpack.c.bf16 %v5368, %v5364
        %v6325 = vpack.c.bf16 %v5369, %v5365
        %v6326 = vpack.c.bf16 %v5370, %v5366
        %v6327 = vpack.c.bf16 %v5371, %v5367
        %v6328 = vpack.c.bf16 %v5376, %v5372
        %v6329 = vpack.c.bf16 %v5377, %v5373
        %v6330 = vpack.c.bf16 %v5378, %v5374
        %v6331 = vpack.c.bf16 %v5379, %v5375
        %v6332 = vpack.c.bf16 %v5384, %v5380
        %v6333 = vpack.c.bf16 %v5385, %v5381
        %v6334 = vpack.c.bf16 %v5386, %v5382
        %v6335 = vpack.c.bf16 %v5387, %v5383
        %v6336 = vpack.c.bf16 %v5392, %v5388
        %v6337 = vpack.c.bf16 %v5393, %v5389
        %v6338 = vpack.c.bf16 %v5394, %v5390
        %v6339 = vpack.c.bf16 %v5395, %v5391
        %v6340 = vpack.c.bf16 %v5400, %v5396
        %v6341 = vpack.c.bf16 %v5401, %v5397
        %v6342 = vpack.c.bf16 %v5402, %v5398
        %v6343 = vpack.c.bf16 %v5403, %v5399
        %v6344 = vpack.c.bf16 %v5408, %v5404
        %v6345 = vpack.c.bf16 %v5409, %v5405
        %v6346 = vpack.c.bf16 %v5410, %v5406
        %v6347 = vpack.c.bf16 %v5411, %v5407
        %v6348 = vpack.c.bf16 %v5416, %v5412
        %v6349 = vpack.c.bf16 %v5417, %v5413
        %v6350 = vpack.c.bf16 %v5418, %v5414
        %v6351 = vpack.c.bf16 %v5419, %v5415
        %v6352 = vpack.c.bf16 %v5424, %v5420
        %v6353 = vpack.c.bf16 %v5425, %v5421
        %v6354 = vpack.c.bf16 %v5426, %v5422
        %v6355 = vpack.c.bf16 %v5427, %v5423
        %v6356 = vpack.c.bf16 %v5432, %v5428
        %v6357 = vpack.c.bf16 %v5433, %v5429
        %v6358 = vpack.c.bf16 %v5434, %v5430
        %v6359 = vpack.c.bf16 %v5435, %v5431
        %v6360 = vpack.c.bf16 %v5440, %v5436
        %v6361 = vpack.c.bf16 %v5441, %v5437
        %v6362 = vpack.c.bf16 %v5442, %v5438
        %v6363 = vpack.c.bf16 %v5443, %v5439
        %v6364 = vpack.c.bf16 %v5448, %v5444
        %v6365 = vpack.c.bf16 %v5449, %v5445
        %v6366 = vpack.c.bf16 %v5450, %v5446
        %v6367 = vpack.c.bf16 %v5451, %v5447
        %v6368 = vpack.c.bf16 %v5456, %v5452
        %v6369 = vpack.c.bf16 %v5457, %v5453
        %v6370 = vpack.c.bf16 %v5458, %v5454
        %v6371 = vpack.c.bf16 %v5459, %v5455
        %v6372 = vpack.c.bf16 %v5464, %v5460
        %v6373 = vpack.c.bf16 %v5465, %v5461
        %v6374 = vpack.c.bf16 %v5466, %v5462
        %v6375 = vpack.c.bf16 %v5467, %v5463
        %v6376 = vpack.c.bf16 %v5472, %v5468
        %v6377 = vpack.c.bf16 %v5473, %v5469
        %v6378 = vpack.c.bf16 %v5474, %v5470
        %v6379 = vpack.c.bf16 %v5475, %v5471
        %v6380 = vpack.c.bf16 %v5480, %v5476
        %v6381 = vpack.c.bf16 %v5481, %v5477
        %v6382 = vpack.c.bf16 %v5482, %v5478
        %v6383 = vpack.c.bf16 %v5483, %v5479
        %v6384 = vpack.c.bf16 %v5488, %v5484
        %v6385 = vpack.c.bf16 %v5489, %v5485
        %v6386 = vpack.c.bf16 %v5490, %v5486
        %v6387 = vpack.c.bf16 %v5491, %v5487
        %v6388 = vpack.c.bf16 %v5496, %v5492
        %v6389 = vpack.c.bf16 %v5497, %v5493
        %v6390 = vpack.c.bf16 %v5498, %v5494
        %v6391 = vpack.c.bf16 %v5499, %v5495
        %v6392 = vpack.c.bf16 %v5504, %v5500
        %v6393 = vpack.c.bf16 %v5505, %v5501
        %v6394 = vpack.c.bf16 %v5506, %v5502
        %v6395 = vpack.c.bf16 %v5507, %v5503
        %v6396 = vpack.c.bf16 %v5512, %v5508
        %v6397 = vpack.c.bf16 %v5513, %v5509
        %v6398 = vpack.c.bf16 %v5514, %v5510
        %v6399 = vpack.c.bf16 %v5515, %v5511
        %v6400 = vpack.c.bf16 %v5520, %v5516
        %v6401 = vpack.c.bf16 %v5521, %v5517
        %v6402 = vpack.c.bf16 %v5522, %v5518
        %v6403 = vpack.c.bf16 %v5523, %v5519
        %v6404 = vpack.c.bf16 %v5528, %v5524
        %v6405 = vpack.c.bf16 %v5529, %v5525
        %v6406 = vpack.c.bf16 %v5530, %v5526
        %v6407 = vpack.c.bf16 %v5531, %v5527
        %v6408 = vpack.c.bf16 %v5536, %v5532
        %v6409 = vpack.c.bf16 %v5537, %v5533
        %v6410 = vpack.c.bf16 %v5538, %v5534
        %v6411 = vpack.c.bf16 %v5539, %v5535
        %v6412 = vpack.c.bf16 %v5544, %v5540
        %v6413 = vpack.c.bf16 %v5545, %v5541
        %v6414 = vpack.c.bf16 %v5546, %v5542
        %v6415 = vpack.c.bf16 %v5547, %v5543
        %v6416 = vpack.c.bf16 %v5552, %v5548
        %v6417 = vpack.c.bf16 %v5553, %v5549
        %v6418 = vpack.c.bf16 %v5554, %v5550
        %v6419 = vpack.c.bf16 %v5555, %v5551
        %v6420 = vpack.c.bf16 %v5560, %v5556
        %v6421 = vpack.c.bf16 %v5561, %v5557
        %v6422 = vpack.c.bf16 %v5562, %v5558
        %v6423 = vpack.c.bf16 %v5563, %v5559
        %v6424 = vpack.c.bf16 %v5568, %v5564
        %v6425 = vpack.c.bf16 %v5569, %v5565
        %v6426 = vpack.c.bf16 %v5570, %v5566
        %v6427 = vpack.c.bf16 %v5571, %v5567
        %v6428 = vpack.c.bf16 %v5576, %v5572
        %v6429 = vpack.c.bf16 %v5577, %v5573
        %v6430 = vpack.c.bf16 %v5578, %v5574
        %v6431 = vpack.c.bf16 %v5579, %v5575
        %v6432 = vpack.c.bf16 %v5584, %v5580
        %v6433 = vpack.c.bf16 %v5585, %v5581
        %v6434 = vpack.c.bf16 %v5586, %v5582
        %v6435 = vpack.c.bf16 %v5587, %v5583
        %v6436 = vpack.c.bf16 %v5592, %v5588
        %v6437 = vpack.c.bf16 %v5593, %v5589
        %v6438 = vpack.c.bf16 %v5594, %v5590
        %v6439 = vpack.c.bf16 %v5595, %v5591
        %v6440 = vpack.c.bf16 %v5600, %v5596
        %v6441 = vpack.c.bf16 %v5601, %v5597
        %v6442 = vpack.c.bf16 %v5602, %v5598
        %v6443 = vpack.c.bf16 %v5603, %v5599
        %v6444 = vpack.c.bf16 %v5608, %v5604
        %v6445 = vpack.c.bf16 %v5609, %v5605
        %v6446 = vpack.c.bf16 %v5610, %v5606
        %v6447 = vpack.c.bf16 %v5611, %v5607
        %v6448 = vpack.c.bf16 %v5616, %v5612
        %v6449 = vpack.c.bf16 %v5617, %v5613
        %v6450 = vpack.c.bf16 %v5618, %v5614
        %v6451 = vpack.c.bf16 %v5619, %v5615
        %v6452 = vpack.c.bf16 %v5624, %v5620
        %v6453 = vpack.c.bf16 %v5625, %v5621
        %v6454 = vpack.c.bf16 %v5626, %v5622
        %v6455 = vpack.c.bf16 %v5627, %v5623
        %v6456 = vpack.c.bf16 %v5632, %v5628
        %v6457 = vpack.c.bf16 %v5633, %v5629
        %v6458 = vpack.c.bf16 %v5634, %v5630
        %v6459 = vpack.c.bf16 %v5635, %v5631
        %v6460 = vpack.c.bf16 %v5640, %v5636
        %v6461 = vpack.c.bf16 %v5641, %v5637
        %v6462 = vpack.c.bf16 %v5642, %v5638
        %v6463 = vpack.c.bf16 %v5643, %v5639
        %v6464 = vpack.c.bf16 %v5648, %v5644
        %v6465 = vpack.c.bf16 %v5649, %v5645
        %v6466 = vpack.c.bf16 %v5650, %v5646
        %v6467 = vpack.c.bf16 %v5651, %v5647
        %v6468 = vpack.c.bf16 %v5656, %v5652
        %v6469 = vpack.c.bf16 %v5657, %v5653
        %v6470 = vpack.c.bf16 %v5658, %v5654
        %v6471 = vpack.c.bf16 %v5659, %v5655
        %v6472 = vpack.c.bf16 %v5664, %v5660
        %v6473 = vpack.c.bf16 %v5665, %v5661
        %v6474 = vpack.c.bf16 %v5666, %v5662
        %v6475 = vpack.c.bf16 %v5667, %v5663
        %v6476 = vpack.c.bf16 %v5672, %v5668
        %v6477 = vpack.c.bf16 %v5673, %v5669
        %v6478 = vpack.c.bf16 %v5674, %v5670
        %v6479 = vpack.c.bf16 %v5675, %v5671
        %v6480 = vpack.c.bf16 %v5680, %v5676
        %v6481 = vpack.c.bf16 %v5681, %v5677
        %v6482 = vpack.c.bf16 %v5682, %v5678
        %v6483 = vpack.c.bf16 %v5683, %v5679
        %v6484 = vpack.c.bf16 %v5688, %v5684
        %v6485 = vpack.c.bf16 %v5689, %v5685
        %v6486 = vpack.c.bf16 %v5690, %v5686
        %v6487 = vpack.c.bf16 %v5691, %v5687
        %v6488 = vpack.c.bf16 %v5696, %v5692
        %v6489 = vpack.c.bf16 %v5697, %v5693
        %v6490 = vpack.c.bf16 %v5698, %v5694
        %v6491 = vpack.c.bf16 %v5699, %v5695
        %v6492 = vpack.c.bf16 %v5704, %v5700
        %v6493 = vpack.c.bf16 %v5705, %v5701
        %v6494 = vpack.c.bf16 %v5706, %v5702
        %v6495 = vpack.c.bf16 %v5707, %v5703
        %v6496 = vpack.c.bf16 %v5712, %v5708
        %v6497 = vpack.c.bf16 %v5713, %v5709
        %v6498 = vpack.c.bf16 %v5714, %v5710
        %v6499 = vpack.c.bf16 %v5715, %v5711
        %v6500 = vpack.c.bf16 %v5720, %v5716
        %v6501 = vpack.c.bf16 %v5721, %v5717
        %v6502 = vpack.c.bf16 %v5722, %v5718
        %v6503 = vpack.c.bf16 %v5723, %v5719
        %v6504 = vpack.c.bf16 %v5728, %v5724
        %v6505 = vpack.c.bf16 %v5729, %v5725
        %v6506 = vpack.c.bf16 %v5730, %v5726
        %v6507 = vpack.c.bf16 %v5731, %v5727
        %v6508 = vpack.c.bf16 %v5736, %v5732
        %v6509 = vpack.c.bf16 %v5737, %v5733
        %v6510 = vpack.c.bf16 %v5738, %v5734
        %v6511 = vpack.c.bf16 %v5739, %v5735
        %v6512 = vpack.c.bf16 %v5744, %v5740
        %v6513 = vpack.c.bf16 %v5745, %v5741
        %v6514 = vpack.c.bf16 %v5746, %v5742
        %v6515 = vpack.c.bf16 %v5747, %v5743
        %v6516 = vpack.c.bf16 %v5752, %v5748
        %v6517 = vpack.c.bf16 %v5753, %v5749
        %v6518 = vpack.c.bf16 %v5754, %v5750
        %v6519 = vpack.c.bf16 %v5755, %v5751
        %v6520 = vpack.c.bf16 %v5760, %v5756
        %v6521 = vpack.c.bf16 %v5761, %v5757
        %v6522 = vpack.c.bf16 %v5762, %v5758
        %v6523 = vpack.c.bf16 %v5763, %v5759
        %v6524 = vpack.c.bf16 %v5768, %v5764
        %v6525 = vpack.c.bf16 %v5769, %v5765
        %v6526 = vpack.c.bf16 %v5770, %v5766
        %v6527 = vpack.c.bf16 %v5771, %v5767
        %v6528 = vpack.c.bf16 %v5776, %v5772
        %v6529 = vpack.c.bf16 %v5777, %v5773
        %v6530 = vpack.c.bf16 %v5778, %v5774
        %v6531 = vpack.c.bf16 %v5779, %v5775
        %v6532 = vpack.c.bf16 %v5784, %v5780
        %v6533 = vpack.c.bf16 %v5785, %v5781
        %v6534 = vpack.c.bf16 %v5786, %v5782
        %v6535 = vpack.c.bf16 %v5787, %v5783
        %v6536 = vpack.c.bf16 %v5792, %v5788
        %v6537 = vpack.c.bf16 %v5793, %v5789
        %v6538 = vpack.c.bf16 %v5794, %v5790
        %v6539 = vpack.c.bf16 %v5795, %v5791
        %v6540 = vpack.c.bf16 %v5800, %v5796
        %v6541 = vpack.c.bf16 %v5801, %v5797
        %v6542 = vpack.c.bf16 %v5802, %v5798
        %v6543 = vpack.c.bf16 %v5803, %v5799
        %v6544 = vpack.c.bf16 %v5808, %v5804
        %v6545 = vpack.c.bf16 %v5809, %v5805
        %v6546 = vpack.c.bf16 %v5810, %v5806
        %v6547 = vpack.c.bf16 %v5811, %v5807
        %v6548 = vpack.c.bf16 %v5816, %v5812
        %v6549 = vpack.c.bf16 %v5817, %v5813
        %v6550 = vpack.c.bf16 %v5818, %v5814
        %v6551 = vpack.c.bf16 %v5819, %v5815
        %v6552 = vpack.c.bf16 %v5824, %v5820
        %v6553 = vpack.c.bf16 %v5825, %v5821
        %v6554 = vpack.c.bf16 %v5826, %v5822
        %v6555 = vpack.c.bf16 %v5827, %v5823
        %v6556 = vpack.c.bf16 %v5832, %v5828
        %v6557 = vpack.c.bf16 %v5833, %v5829
        %v6558 = vpack.c.bf16 %v5834, %v5830
        %v6559 = vpack.c.bf16 %v5835, %v5831
        %v6560 = vpack.c.bf16 %v5840, %v5836
        %v6561 = vpack.c.bf16 %v5841, %v5837
        %v6562 = vpack.c.bf16 %v5842, %v5838
        %v6563 = vpack.c.bf16 %v5843, %v5839
        %v6564 = vpack.c.bf16 %v5848, %v5844
        %v6565 = vpack.c.bf16 %v5849, %v5845
        %v6566 = vpack.c.bf16 %v5850, %v5846
        %v6567 = vpack.c.bf16 %v5851, %v5847
        %v6568 = vpack.c.bf16 %v5856, %v5852
        %v6569 = vpack.c.bf16 %v5857, %v5853
        %v6570 = vpack.c.bf16 %v5858, %v5854
        %v6571 = vpack.c.bf16 %v5859, %v5855
        %v6572 = vpack.c.bf16 %v5864, %v5860
        %v6573 = vpack.c.bf16 %v5865, %v5861
        %v6574 = vpack.c.bf16 %v5866, %v5862
        %v6575 = vpack.c.bf16 %v5867, %v5863
        %v6576 = vpack.c.bf16 %v5872, %v5868
        %v6577 = vpack.c.bf16 %v5873, %v5869
        %v6578 = vpack.c.bf16 %v5874, %v5870
        %v6579 = vpack.c.bf16 %v5875, %v5871
        %v6580 = vpack.c.bf16 %v5880, %v5876
        %v6581 = vpack.c.bf16 %v5881, %v5877
        %v6582 = vpack.c.bf16 %v5882, %v5878
        %v6583 = vpack.c.bf16 %v5883, %v5879
        %v6584 = vpack.c.bf16 %v5888, %v5884
        %v6585 = vpack.c.bf16 %v5889, %v5885
        %v6586 = vpack.c.bf16 %v5890, %v5886
        %v6587 = vpack.c.bf16 %v5891, %v5887
        %v6588 = vpack.c.bf16 %v5896, %v5892
        %v6589 = vpack.c.bf16 %v5897, %v5893
        %v6590 = vpack.c.bf16 %v5898, %v5894
        %v6591 = vpack.c.bf16 %v5899, %v5895
        %v6592 = vpack.c.bf16 %v5904, %v5900
        %v6593 = vpack.c.bf16 %v5905, %v5901
        %v6594 = vpack.c.bf16 %v5906, %v5902
        %v6595 = vpack.c.bf16 %v5907, %v5903
        %v6596 = vpack.c.bf16 %v5912, %v5908
        %v6597 = vpack.c.bf16 %v5913, %v5909
        %v6598 = vpack.c.bf16 %v5914, %v5910
        %v6599 = vpack.c.bf16 %v5915, %v5911
        %v6600 = vpack.c.bf16 %v5920, %v5916
        %v6601 = vpack.c.bf16 %v5921, %v5917
        %v6602 = vpack.c.bf16 %v5922, %v5918
        %v6603 = vpack.c.bf16 %v5923, %v5919
        %v6604 = vpack.c.bf16 %v5928, %v5924
        %v6605 = vpack.c.bf16 %v5929, %v5925
        %v6606 = vpack.c.bf16 %v5930, %v5926
        %v6607 = vpack.c.bf16 %v5931, %v5927
        %v6608 = vpack.c.bf16 %v5936, %v5932
        %v6609 = vpack.c.bf16 %v5937, %v5933
        %v6610 = vpack.c.bf16 %v5938, %v5934
        %v6611 = vpack.c.bf16 %v5939, %v5935
        %v6612 = vpack.c.bf16 %v5944, %v5940
        %v6613 = vpack.c.bf16 %v5945, %v5941
        %v6614 = vpack.c.bf16 %v5946, %v5942
        %v6615 = vpack.c.bf16 %v5947, %v5943
        %v6616 = vpack.c.bf16 %v5952, %v5948
        %v6617 = vpack.c.bf16 %v5953, %v5949
        %v6618 = vpack.c.bf16 %v5954, %v5950
        %v6619 = vpack.c.bf16 %v5955, %v5951
        %v6620 = vpack.c.bf16 %v5960, %v5956
        %v6621 = vpack.c.bf16 %v5961, %v5957
        %v6622 = vpack.c.bf16 %v5962, %v5958
        %v6623 = vpack.c.bf16 %v5963, %v5959
        %v6624 = vpack.c.bf16 %v5968, %v5964
        %v6625 = vpack.c.bf16 %v5969, %v5965
        %v6626 = vpack.c.bf16 %v5970, %v5966
        %v6627 = vpack.c.bf16 %v5971, %v5967
        %v6628 = vpack.c.bf16 %v5976, %v5972
        %v6629 = vpack.c.bf16 %v5977, %v5973
        %v6630 = vpack.c.bf16 %v5978, %v5974
        %v6631 = vpack.c.bf16 %v5979, %v5975
        %v6632 = vpack.c.bf16 %v5984, %v5980
        %v6633 = vpack.c.bf16 %v5985, %v5981
        %v6634 = vpack.c.bf16 %v5986, %v5982
        %v6635 = vpack.c.bf16 %v5987, %v5983
        %v6636 = vpack.c.bf16 %v5992, %v5988
        %v6637 = vpack.c.bf16 %v5993, %v5989
        %v6638 = vpack.c.bf16 %v5994, %v5990
        %v6639 = vpack.c.bf16 %v5995, %v5991
        %v6640 = vpack.c.bf16 %v6000, %v5996
        %v6641 = vpack.c.bf16 %v6001, %v5997
        %v6642 = vpack.c.bf16 %v6002, %v5998
        %v6643 = vpack.c.bf16 %v6003, %v5999
        %v6644 = vpack.c.bf16 %v6008, %v6004
        %v6645 = vpack.c.bf16 %v6009, %v6005
        %v6646 = vpack.c.bf16 %v6010, %v6006
        %v6647 = vpack.c.bf16 %v6011, %v6007
        %v6648 = vpack.c.bf16 %v6016, %v6012
        %v6649 = vpack.c.bf16 %v6017, %v6013
        %v6650 = vpack.c.bf16 %v6018, %v6014
        %v6651 = vpack.c.bf16 %v6019, %v6015
        %v6652 = vpack.c.bf16 %v6024, %v6020
        %v6653 = vpack.c.bf16 %v6025, %v6021
        %v6654 = vpack.c.bf16 %v6026, %v6022
        %v6655 = vpack.c.bf16 %v6027, %v6023
        %v6656 = vpack.c.bf16 %v6032, %v6028
        %v6657 = vpack.c.bf16 %v6033, %v6029
        %v6658 = vpack.c.bf16 %v6034, %v6030
        %v6659 = vpack.c.bf16 %v6035, %v6031
        %v6660 = vpack.c.bf16 %v6040, %v6036
        %v6661 = vpack.c.bf16 %v6041, %v6037
        %v6662 = vpack.c.bf16 %v6042, %v6038
        %v6663 = vpack.c.bf16 %v6043, %v6039
        %v6664 = vpack.c.bf16 %v6048, %v6044
        %v6665 = vpack.c.bf16 %v6049, %v6045
        %v6666 = vpack.c.bf16 %v6050, %v6046
        %v6667 = vpack.c.bf16 %v6051, %v6047
        %v6668 = vpack.c.bf16 %v6056, %v6052
        %v6669 = vpack.c.bf16 %v6057, %v6053
        %v6670 = vpack.c.bf16 %v6058, %v6054
        %v6671 = vpack.c.bf16 %v6059, %v6055
        %v6672 = vpack.c.bf16 %v6064, %v6060
        %v6673 = vpack.c.bf16 %v6065, %v6061
        %v6674 = vpack.c.bf16 %v6066, %v6062
        %v6675 = vpack.c.bf16 %v6067, %v6063
        %v6676 = vpack.c.bf16 %v6072, %v6068
        %v6677 = vpack.c.bf16 %v6073, %v6069
        %v6678 = vpack.c.bf16 %v6074, %v6070
        %v6679 = vpack.c.bf16 %v6075, %v6071
        %v6680 = vpack.c.bf16 %v6080, %v6076
        %v6681 = vpack.c.bf16 %v6081, %v6077
        %v6682 = vpack.c.bf16 %v6082, %v6078
        %v6683 = vpack.c.bf16 %v6083, %v6079
        %v6684 = vpack.c.bf16 %v6088, %v6084
        %v6685 = vpack.c.bf16 %v6089, %v6085
        %v6686 = vpack.c.bf16 %v6090, %v6086
        %v6687 = vpack.c.bf16 %v6091, %v6087
        %v6688 = vpack.c.bf16 %v6096, %v6092
        %v6689 = vpack.c.bf16 %v6097, %v6093
        %v6690 = vpack.c.bf16 %v6098, %v6094
        %v6691 = vpack.c.bf16 %v6099, %v6095
        %v6692 = vpack.c.bf16 %v6104, %v6100
        %v6693 = vpack.c.bf16 %v6105, %v6101
        %v6694 = vpack.c.bf16 %v6106, %v6102
        %v6695 = vpack.c.bf16 %v6107, %v6103
        %v6696 = vpack.c.bf16 %v6112, %v6108
        %v6697 = vpack.c.bf16 %v6113, %v6109
        %v6698 = vpack.c.bf16 %v6114, %v6110
        %v6699 = vpack.c.bf16 %v6115, %v6111
        %v6700 = vpack.c.bf16 %v6120, %v6116
        %v6701 = vpack.c.bf16 %v6121, %v6117
        %v6702 = vpack.c.bf16 %v6122, %v6118
        %v6703 = vpack.c.bf16 %v6123, %v6119
        %v6704 = vpack.c.bf16 %v6128, %v6124
        %v6705 = vpack.c.bf16 %v6129, %v6125
        %v6706 = vpack.c.bf16 %v6130, %v6126
        %v6707 = vpack.c.bf16 %v6131, %v6127
        %v6708 = vpack.c.bf16 %v6136, %v6132
        %v6709 = vpack.c.bf16 %v6137, %v6133
        %v6710 = vpack.c.bf16 %v6138, %v6134
        %v6711 = vpack.c.bf16 %v6139, %v6135
        %v6712 = vpack.c.bf16 %v6144, %v6140
        %v6713 = vpack.c.bf16 %v6145, %v6141
        %v6714 = vpack.c.bf16 %v6146, %v6142
        %v6715 = vpack.c.bf16 %v6147, %v6143
        %v6716 = vpack.c.bf16 %v6152, %v6148
        %v6717 = vpack.c.bf16 %v6153, %v6149
        %v6718 = vpack.c.bf16 %v6154, %v6150
        %v6719 = vpack.c.bf16 %v6155, %v6151
        %v6720 = vpack.c.bf16 %v6160, %v6156
        %v6721 = vpack.c.bf16 %v6161, %v6157
        %v6722 = vpack.c.bf16 %v6162, %v6158
        %v6723 = vpack.c.bf16 %v6163, %v6159
        %v6724 = vpack.c.bf16 %v6168, %v6164
        %v6725 = vpack.c.bf16 %v6169, %v6165
        %v6726 = vpack.c.bf16 %v6170, %v6166
        %v6727 = vpack.c.bf16 %v6171, %v6167
        %v6728 = vpack.c.bf16 %v6176, %v6172
        %v6729 = vpack.c.bf16 %v6177, %v6173
        %v6730 = vpack.c.bf16 %v6178, %v6174
        %v6731 = vpack.c.bf16 %v6179, %v6175
        %v6732 = vpack.c.bf16 %v6184, %v6180
        %v6733 = vpack.c.bf16 %v6185, %v6181
        %v6734 = vpack.c.bf16 %v6186, %v6182
        %v6735 = vpack.c.bf16 %v6187, %v6183
        %v6736 = vpack.c.bf16 %v6192, %v6188
        %v6737 = vpack.c.bf16 %v6193, %v6189
        %v6738 = vpack.c.bf16 %v6194, %v6190
        %v6739 = vpack.c.bf16 %v6195, %v6191
        %v6740 = vpack.c.bf16 %v6200, %v6196
        %v6741 = vpack.c.bf16 %v6201, %v6197
        %v6742 = vpack.c.bf16 %v6202, %v6198
        %v6743 = vpack.c.bf16 %v6203, %v6199
        %v6744 = vpack.c.bf16 %v6208, %v6204
        %v6745 = vpack.c.bf16 %v6209, %v6205
        %v6746 = vpack.c.bf16 %v6210, %v6206
        %v6747 = vpack.c.bf16 %v6211, %v6207
        %v6748 = vpack.c.bf16 %v6216, %v6212
        %v6749 = vpack.c.bf16 %v6217, %v6213
        %v6750 = vpack.c.bf16 %v6218, %v6214
        %v6751 = vpack.c.bf16 %v6219, %v6215
        %v6752 = vpack.c.bf16 %v6224, %v6220
        %v6753 = vpack.c.bf16 %v6225, %v6221
        %v6754 = vpack.c.bf16 %v6226, %v6222
        %v6755 = vpack.c.bf16 %v6227, %v6223
        %v6756 = vpack.c.bf16 %v6232, %v6228
        %v6757 = vpack.c.bf16 %v6233, %v6229
        %v6758 = vpack.c.bf16 %v6234, %v6230
        %v6759 = vpack.c.bf16 %v6235, %v6231
        %v6760 = vpack.c.bf16 %v6240, %v6236
        %v6761 = vpack.c.bf16 %v6241, %v6237
        %v6762 = vpack.c.bf16 %v6242, %v6238
        %v6763 = vpack.c.bf16 %v6243, %v6239
        %v6764 = vpack.c.bf16 %v6248, %v6244
        %v6765 = vpack.c.bf16 %v6249, %v6245
        %v6766 = vpack.c.bf16 %v6250, %v6246
        %v6767 = vpack.c.bf16 %v6251, %v6247
        %v6768 = vpack.c.bf16 %v6256, %v6252
        %v6769 = vpack.c.bf16 %v6257, %v6253
        %v6770 = vpack.c.bf16 %v6258, %v6254
        %v6771 = vpack.c.bf16 %v6259, %v6255
        %v6772 = vld [vmem:[%s768] sm:$0xff]
        %6773 = vmatpush.bf16.msra.mxu0 %v6288
        %6774 = vmatpush.bf16.msra.mxu0 %v6284
        %6775 = vmatpush.bf16.msra.mxu0 %v6280
        %6776 = vmatpush.bf16.msra.mxu0 %v6276
        %6777 = vmatpush.bf16.msra.mxu0 %v6272
        %6778 = vmatpush.bf16.msra.mxu0 %v6268
        %6779 = vmatpush.bf16.msra.mxu0 %v6264
        %6780 = vmatpush.bf16.msra.mxu0 %v6260
        %6781 = vmatmul.bf16.gmra.mxu0 %v3940
        %v6782 = vpop.f32.mrf.mxu0
        %v6783 = vadd.f32 0.0, %v6782
        %v6784 = vpop.f32.mrf.mxu0
        %6785 = vdwg.mxu0
        %6786 = vmatpush.bf16.msra.mxu0 %v6320
        %6787 = vmatpush.bf16.msra.mxu0 %v6316
        %6788 = vmatpush.bf16.msra.mxu0 %v6312
        %6789 = vmatpush.bf16.msra.mxu0 %v6308
        %6790 = vmatpush.bf16.msra.mxu0 %v6304
        %6791 = vmatpush.bf16.msra.mxu0 %v6300
        %6792 = vmatpush.bf16.msra.mxu0 %v6296
        %6793 = vmatpush.bf16.msra.mxu0 %v6292
        %6794 = vmatmul.bf16.gmra.mxu0 %v3941
        %v6795 = vpop.f32.mrf.mxu0
        %v6796 = vadd.f32 %v6783, %v6795
        %v6797 = vpop.f32.mrf.mxu0
        %6798 = vdwg.mxu0
        %6799 = vmatpush.bf16.msra.mxu0 %v6352
        %6800 = vmatpush.bf16.msra.mxu0 %v6348
        %6801 = vmatpush.bf16.msra.mxu0 %v6344
        %6802 = vmatpush.bf16.msra.mxu0 %v6340
        %6803 = vmatpush.bf16.msra.mxu0 %v6336
        %6804 = vmatpush.bf16.msra.mxu0 %v6332
        %6805 = vmatpush.bf16.msra.mxu0 %v6328
        %6806 = vmatpush.bf16.msra.mxu0 %v6324
        %6807 = vmatmul.bf16.gmra.mxu0 %v3942
        %v6808 = vpop.f32.mrf.mxu0
        %v6809 = vadd.f32 %v6796, %v6808
        %v6810 = vpop.f32.mrf.mxu0
        %6811 = vdwg.mxu0
        %6812 = vmatpush.bf16.msra.mxu0 %v6384
        %6813 = vmatpush.bf16.msra.mxu0 %v6380
        %6814 = vmatpush.bf16.msra.mxu0 %v6376
        %6815 = vmatpush.bf16.msra.mxu0 %v6372
        %6816 = vmatpush.bf16.msra.mxu0 %v6368
        %6817 = vmatpush.bf16.msra.mxu0 %v6364
        %6818 = vmatpush.bf16.msra.mxu0 %v6360
        %6819 = vmatpush.bf16.msra.mxu0 %v6356
        %6820 = vmatmul.bf16.gmra.mxu0 %v3943
        %v6821 = vpop.f32.mrf.mxu0
        %v6822 = vadd.f32 %v6809, %v6821
        %v6823 = vpop.f32.mrf.mxu0
        %6824 = vdwg.mxu0
        %6825 = vmatpush.bf16.msra.mxu0 %v6416
        %6826 = vmatpush.bf16.msra.mxu0 %v6412
        %6827 = vmatpush.bf16.msra.mxu0 %v6408
        %6828 = vmatpush.bf16.msra.mxu0 %v6404
        %6829 = vmatpush.bf16.msra.mxu0 %v6400
        %6830 = vmatpush.bf16.msra.mxu0 %v6396
        %6831 = vmatpush.bf16.msra.mxu0 %v6392
        %6832 = vmatpush.bf16.msra.mxu0 %v6388
        %6833 = vmatmul.bf16.gmra.mxu0 %v3944
        %v6834 = vpop.f32.mrf.mxu0
        %v6835 = vadd.f32 %v6822, %v6834
        %v6836 = vpop.f32.mrf.mxu0
        %6837 = vdwg.mxu0
        %6838 = vmatpush.bf16.msra.mxu0 %v6448
        %6839 = vmatpush.bf16.msra.mxu0 %v6444
        %6840 = vmatpush.bf16.msra.mxu0 %v6440
        %6841 = vmatpush.bf16.msra.mxu0 %v6436
        %6842 = vmatpush.bf16.msra.mxu0 %v6432
        %6843 = vmatpush.bf16.msra.mxu0 %v6428
        %6844 = vmatpush.bf16.msra.mxu0 %v6424
        %6845 = vmatpush.bf16.msra.mxu0 %v6420
        %6846 = vmatmul.bf16.gmra.mxu0 %v3945
        %v6847 = vpop.f32.mrf.mxu0
        %v6848 = vadd.f32 %v6835, %v6847
        %v6849 = vpop.f32.mrf.mxu0
        %6850 = vdwg.mxu0
        %6851 = vmatpush.bf16.msra.mxu0 %v6480
        %6852 = vmatpush.bf16.msra.mxu0 %v6476
        %6853 = vmatpush.bf16.msra.mxu0 %v6472
        %6854 = vmatpush.bf16.msra.mxu0 %v6468
        %6855 = vmatpush.bf16.msra.mxu0 %v6464
        %6856 = vmatpush.bf16.msra.mxu0 %v6460
        %6857 = vmatpush.bf16.msra.mxu0 %v6456
        %6858 = vmatpush.bf16.msra.mxu0 %v6452
        %6859 = vmatmul.bf16.gmra.mxu0 %v3946
        %v6860 = vpop.f32.mrf.mxu0
        %v6861 = vadd.f32 %v6848, %v6860
        %v6862 = vpop.f32.mrf.mxu0
        %6863 = vdwg.mxu0
        %6864 = vmatpush.bf16.msra.mxu0 %v6512
        %6865 = vmatpush.bf16.msra.mxu0 %v6508
        %6866 = vmatpush.bf16.msra.mxu0 %v6504
        %6867 = vmatpush.bf16.msra.mxu0 %v6500
        %6868 = vmatpush.bf16.msra.mxu0 %v6496
        %6869 = vmatpush.bf16.msra.mxu0 %v6492
        %6870 = vmatpush.bf16.msra.mxu0 %v6488
        %6871 = vmatpush.bf16.msra.mxu0 %v6484
        %6872 = vmatmul.bf16.gmra.mxu0 %v3947
        %v6873 = vpop.f32.mrf.mxu0
        %v6874 = vadd.f32 %v6861, %v6873
        %v6875 = vpop.f32.mrf.mxu0
        %6876 = vdwg.mxu0
        %6877 = vmatpush.bf16.msra.mxu0 %v6544
        %6878 = vmatpush.bf16.msra.mxu0 %v6540
        %6879 = vmatpush.bf16.msra.mxu0 %v6536
        %6880 = vmatpush.bf16.msra.mxu0 %v6532
        %6881 = vmatpush.bf16.msra.mxu0 %v6528
        %6882 = vmatpush.bf16.msra.mxu0 %v6524
        %6883 = vmatpush.bf16.msra.mxu0 %v6520
        %6884 = vmatpush.bf16.msra.mxu0 %v6516
        %6885 = vmatmul.bf16.gmra.mxu0 %v3948
        %v6886 = vpop.f32.mrf.mxu0
        %v6887 = vadd.f32 %v6874, %v6886
        %v6888 = vpop.f32.mrf.mxu0
        %6889 = vdwg.mxu0
        %6890 = vmatpush.bf16.msra.mxu0 %v6576
        %6891 = vmatpush.bf16.msra.mxu0 %v6572
        %6892 = vmatpush.bf16.msra.mxu0 %v6568
        %6893 = vmatpush.bf16.msra.mxu0 %v6564
        %6894 = vmatpush.bf16.msra.mxu0 %v6560
        %6895 = vmatpush.bf16.msra.mxu0 %v6556
        %6896 = vmatpush.bf16.msra.mxu0 %v6552
        %6897 = vmatpush.bf16.msra.mxu0 %v6548
        %6898 = vmatmul.bf16.gmra.mxu0 %v3949
        %v6899 = vpop.f32.mrf.mxu0
        %v6900 = vadd.f32 %v6887, %v6899
        %v6901 = vpop.f32.mrf.mxu0
        %6902 = vdwg.mxu0
        %6903 = vmatpush.bf16.msra.mxu0 %v6608
        %6904 = vmatpush.bf16.msra.mxu0 %v6604
        %6905 = vmatpush.bf16.msra.mxu0 %v6600
        %6906 = vmatpush.bf16.msra.mxu0 %v6596
        %6907 = vmatpush.bf16.msra.mxu0 %v6592
        %6908 = vmatpush.bf16.msra.mxu0 %v6588
        %6909 = vmatpush.bf16.msra.mxu0 %v6584
        %6910 = vmatpush.bf16.msra.mxu0 %v6580
        %6911 = vmatmul.bf16.gmra.mxu0 %v3950
        %v6912 = vpop.f32.mrf.mxu0
        %v6913 = vadd.f32 %v6900, %v6912
        %v6914 = vpop.f32.mrf.mxu0
        %6915 = vdwg.mxu0
        %6916 = vmatpush.bf16.msra.mxu0 %v6640
        %6917 = vmatpush.bf16.msra.mxu0 %v6636
        %6918 = vmatpush.bf16.msra.mxu0 %v6632
        %6919 = vmatpush.bf16.msra.mxu0 %v6628
        %6920 = vmatpush.bf16.msra.mxu0 %v6624
        %6921 = vmatpush.bf16.msra.mxu0 %v6620
        %6922 = vmatpush.bf16.msra.mxu0 %v6616
        %6923 = vmatpush.bf16.msra.mxu0 %v6612
        %6924 = vmatmul.bf16.gmra.mxu0 %v3951
        %v6925 = vpop.f32.mrf.mxu0
        %v6926 = vadd.f32 %v6913, %v6925
        %v6927 = vpop.f32.mrf.mxu0
        %6928 = vdwg.mxu0
        %6929 = vmatpush.bf16.msra.mxu0 %v6672
        %6930 = vmatpush.bf16.msra.mxu0 %v6668
        %6931 = vmatpush.bf16.msra.mxu0 %v6664
        %6932 = vmatpush.bf16.msra.mxu0 %v6660
        %6933 = vmatpush.bf16.msra.mxu0 %v6656
        %6934 = vmatpush.bf16.msra.mxu0 %v6652
        %6935 = vmatpush.bf16.msra.mxu0 %v6648
        %6936 = vmatpush.bf16.msra.mxu0 %v6644
        %6937 = vmatmul.bf16.gmra.mxu0 %v3952
        %v6938 = vpop.f32.mrf.mxu0
        %v6939 = vadd.f32 %v6926, %v6938
        %v6940 = vpop.f32.mrf.mxu0
        %6941 = vdwg.mxu0
        %6942 = vmatpush.bf16.msra.mxu0 %v6704
        %6943 = vmatpush.bf16.msra.mxu0 %v6700
        %6944 = vmatpush.bf16.msra.mxu0 %v6696
        %6945 = vmatpush.bf16.msra.mxu0 %v6692
        %6946 = vmatpush.bf16.msra.mxu0 %v6688
        %6947 = vmatpush.bf16.msra.mxu0 %v6684
        %6948 = vmatpush.bf16.msra.mxu0 %v6680
        %6949 = vmatpush.bf16.msra.mxu0 %v6676
        %6950 = vmatmul.bf16.gmra.mxu0 %v3953
        %v6951 = vpop.f32.mrf.mxu0
        %v6952 = vadd.f32 %v6939, %v6951
        %v6953 = vpop.f32.mrf.mxu0
        %6954 = vdwg.mxu0
        %6955 = vmatpush.bf16.msra.mxu0 %v6736
        %6956 = vmatpush.bf16.msra.mxu0 %v6732
        %6957 = vmatpush.bf16.msra.mxu0 %v6728
        %6958 = vmatpush.bf16.msra.mxu0 %v6724
        %6959 = vmatpush.bf16.msra.mxu0 %v6720
        %6960 = vmatpush.bf16.msra.mxu0 %v6716
        %6961 = vmatpush.bf16.msra.mxu0 %v6712
        %6962 = vmatpush.bf16.msra.mxu0 %v6708
        %6963 = vmatmul.bf16.gmra.mxu0 %v3954
        %v6964 = vpop.f32.mrf.mxu0
        %v6965 = vadd.f32 %v6952, %v6964
        %v6966 = vpop.f32.mrf.mxu0
        %6967 = vdwg.mxu0
        %6968 = vmatpush.bf16.msra.mxu0 %v6768
        %6969 = vmatpush.bf16.msra.mxu0 %v6764
        %6970 = vmatpush.bf16.msra.mxu0 %v6760
        %6971 = vmatpush.bf16.msra.mxu0 %v6756
        %6972 = vmatpush.bf16.msra.mxu0 %v6752
        %6973 = vmatpush.bf16.msra.mxu0 %v6748
        %6974 = vmatpush.bf16.msra.mxu0 %v6744
        %6975 = vmatpush.bf16.msra.mxu0 %v6740
        %6976 = vmatmul.bf16.gmra.mxu0 %v3955
        %v6977 = vpop.f32.mrf.mxu0
        %v6978 = vadd.f32 %v6965, %v6977
        %v6979 = vpop.f32.mrf.mxu0
        %6980 = vdwg.mxu0
        %6981 = vmatpush.bf16.msra.mxu0 %v6289
        %6982 = vmatpush.bf16.msra.mxu0 %v6285
        %6983 = vmatpush.bf16.msra.mxu0 %v6281
        %6984 = vmatpush.bf16.msra.mxu0 %v6277
        %6985 = vmatpush.bf16.msra.mxu0 %v6273
        %6986 = vmatpush.bf16.msra.mxu0 %v6269
        %6987 = vmatpush.bf16.msra.mxu0 %v6265
        %6988 = vmatpush.bf16.msra.mxu0 %v6261
        %6989 = vmatmul.bf16.gmra.mxu0 %v3940
        %v6990 = vpop.f32.mrf.mxu0
        %v6991 = vadd.f32 0.0, %v6990
        %v6992 = vpop.f32.mrf.mxu0
        %6993 = vdwg.mxu0
        %6994 = vmatpush.bf16.msra.mxu0 %v6321
        %6995 = vmatpush.bf16.msra.mxu0 %v6317
        %6996 = vmatpush.bf16.msra.mxu0 %v6313
        %6997 = vmatpush.bf16.msra.mxu0 %v6309
        %6998 = vmatpush.bf16.msra.mxu0 %v6305
        %6999 = vmatpush.bf16.msra.mxu0 %v6301
        %7000 = vmatpush.bf16.msra.mxu0 %v6297
        %7001 = vmatpush.bf16.msra.mxu0 %v6293
        %7002 = vmatmul.bf16.gmra.mxu0 %v3941
        %v7003 = vpop.f32.mrf.mxu0
        %v7004 = vadd.f32 %v6991, %v7003
        %v7005 = vpop.f32.mrf.mxu0
        %7006 = vdwg.mxu0
        %7007 = vmatpush.bf16.msra.mxu0 %v6353
        %7008 = vmatpush.bf16.msra.mxu0 %v6349
        %7009 = vmatpush.bf16.msra.mxu0 %v6345
        %7010 = vmatpush.bf16.msra.mxu0 %v6341
        %7011 = vmatpush.bf16.msra.mxu0 %v6337
        %7012 = vmatpush.bf16.msra.mxu0 %v6333
        %7013 = vmatpush.bf16.msra.mxu0 %v6329
        %7014 = vmatpush.bf16.msra.mxu0 %v6325
        %7015 = vmatmul.bf16.gmra.mxu0 %v3942
        %v7016 = vpop.f32.mrf.mxu0
        %v7017 = vadd.f32 %v7004, %v7016
        %v7018 = vpop.f32.mrf.mxu0
        %7019 = vdwg.mxu0
        %7020 = vmatpush.bf16.msra.mxu0 %v6385
        %7021 = vmatpush.bf16.msra.mxu0 %v6381
        %7022 = vmatpush.bf16.msra.mxu0 %v6377
        %7023 = vmatpush.bf16.msra.mxu0 %v6373
        %7024 = vmatpush.bf16.msra.mxu0 %v6369
        %7025 = vmatpush.bf16.msra.mxu0 %v6365
        %7026 = vmatpush.bf16.msra.mxu0 %v6361
        %7027 = vmatpush.bf16.msra.mxu0 %v6357
        %7028 = vmatmul.bf16.gmra.mxu0 %v3943
        %v7029 = vpop.f32.mrf.mxu0
        %v7030 = vadd.f32 %v7017, %v7029
        %v7031 = vpop.f32.mrf.mxu0
        %7032 = vdwg.mxu0
        %7033 = vmatpush.bf16.msra.mxu0 %v6417
        %7034 = vmatpush.bf16.msra.mxu0 %v6413
        %7035 = vmatpush.bf16.msra.mxu0 %v6409
        %7036 = vmatpush.bf16.msra.mxu0 %v6405
        %7037 = vmatpush.bf16.msra.mxu0 %v6401
        %7038 = vmatpush.bf16.msra.mxu0 %v6397
        %7039 = vmatpush.bf16.msra.mxu0 %v6393
        %7040 = vmatpush.bf16.msra.mxu0 %v6389
        %7041 = vmatmul.bf16.gmra.mxu0 %v3944
        %v7042 = vpop.f32.mrf.mxu0
        %v7043 = vadd.f32 %v7030, %v7042
        %v7044 = vpop.f32.mrf.mxu0
        %7045 = vdwg.mxu0
        %7046 = vmatpush.bf16.msra.mxu0 %v6449
        %7047 = vmatpush.bf16.msra.mxu0 %v6445
        %7048 = vmatpush.bf16.msra.mxu0 %v6441
        %7049 = vmatpush.bf16.msra.mxu0 %v6437
        %7050 = vmatpush.bf16.msra.mxu0 %v6433
        %7051 = vmatpush.bf16.msra.mxu0 %v6429
        %7052 = vmatpush.bf16.msra.mxu0 %v6425
        %7053 = vmatpush.bf16.msra.mxu0 %v6421
        %7054 = vmatmul.bf16.gmra.mxu0 %v3945
        %v7055 = vpop.f32.mrf.mxu0
        %v7056 = vadd.f32 %v7043, %v7055
        %v7057 = vpop.f32.mrf.mxu0
        %7058 = vdwg.mxu0
        %7059 = vmatpush.bf16.msra.mxu0 %v6481
        %7060 = vmatpush.bf16.msra.mxu0 %v6477
        %7061 = vmatpush.bf16.msra.mxu0 %v6473
        %7062 = vmatpush.bf16.msra.mxu0 %v6469
        %7063 = vmatpush.bf16.msra.mxu0 %v6465
        %7064 = vmatpush.bf16.msra.mxu0 %v6461
        %7065 = vmatpush.bf16.msra.mxu0 %v6457
        %7066 = vmatpush.bf16.msra.mxu0 %v6453
        %7067 = vmatmul.bf16.gmra.mxu0 %v3946
        %v7068 = vpop.f32.mrf.mxu0
        %v7069 = vadd.f32 %v7056, %v7068
        %v7070 = vpop.f32.mrf.mxu0
        %7071 = vdwg.mxu0
        %7072 = vmatpush.bf16.msra.mxu0 %v6513
        %7073 = vmatpush.bf16.msra.mxu0 %v6509
        %7074 = vmatpush.bf16.msra.mxu0 %v6505
        %7075 = vmatpush.bf16.msra.mxu0 %v6501
        %7076 = vmatpush.bf16.msra.mxu0 %v6497
        %7077 = vmatpush.bf16.msra.mxu0 %v6493
        %7078 = vmatpush.bf16.msra.mxu0 %v6489
        %7079 = vmatpush.bf16.msra.mxu0 %v6485
        %7080 = vmatmul.bf16.gmra.mxu0 %v3947
        %v7081 = vpop.f32.mrf.mxu0
        %v7082 = vadd.f32 %v7069, %v7081
        %v7083 = vpop.f32.mrf.mxu0
        %7084 = vdwg.mxu0
        %7085 = vmatpush.bf16.msra.mxu0 %v6545
        %7086 = vmatpush.bf16.msra.mxu0 %v6541
        %7087 = vmatpush.bf16.msra.mxu0 %v6537
        %7088 = vmatpush.bf16.msra.mxu0 %v6533
        %7089 = vmatpush.bf16.msra.mxu0 %v6529
        %7090 = vmatpush.bf16.msra.mxu0 %v6525
        %7091 = vmatpush.bf16.msra.mxu0 %v6521
        %7092 = vmatpush.bf16.msra.mxu0 %v6517
        %7093 = vmatmul.bf16.gmra.mxu0 %v3948
        %v7094 = vpop.f32.mrf.mxu0
        %v7095 = vadd.f32 %v7082, %v7094
        %v7096 = vpop.f32.mrf.mxu0
        %7097 = vdwg.mxu0
        %7098 = vmatpush.bf16.msra.mxu0 %v6577
        %7099 = vmatpush.bf16.msra.mxu0 %v6573
        %7100 = vmatpush.bf16.msra.mxu0 %v6569
        %7101 = vmatpush.bf16.msra.mxu0 %v6565
        %7102 = vmatpush.bf16.msra.mxu0 %v6561
        %7103 = vmatpush.bf16.msra.mxu0 %v6557
        %7104 = vmatpush.bf16.msra.mxu0 %v6553
        %7105 = vmatpush.bf16.msra.mxu0 %v6549
        %7106 = vmatmul.bf16.gmra.mxu0 %v3949
        %v7107 = vpop.f32.mrf.mxu0
        %v7108 = vadd.f32 %v7095, %v7107
        %v7109 = vpop.f32.mrf.mxu0
        %7110 = vdwg.mxu0
        %7111 = vmatpush.bf16.msra.mxu0 %v6609
        %7112 = vmatpush.bf16.msra.mxu0 %v6605
        %7113 = vmatpush.bf16.msra.mxu0 %v6601
        %7114 = vmatpush.bf16.msra.mxu0 %v6597
        %7115 = vmatpush.bf16.msra.mxu0 %v6593
        %7116 = vmatpush.bf16.msra.mxu0 %v6589
        %7117 = vmatpush.bf16.msra.mxu0 %v6585
        %7118 = vmatpush.bf16.msra.mxu0 %v6581
        %7119 = vmatmul.bf16.gmra.mxu0 %v3950
        %v7120 = vpop.f32.mrf.mxu0
        %v7121 = vadd.f32 %v7108, %v7120
        %v7122 = vpop.f32.mrf.mxu0
        %7123 = vdwg.mxu0
        %7124 = vmatpush.bf16.msra.mxu0 %v6641
        %7125 = vmatpush.bf16.msra.mxu0 %v6637
        %7126 = vmatpush.bf16.msra.mxu0 %v6633
        %7127 = vmatpush.bf16.msra.mxu0 %v6629
        %7128 = vmatpush.bf16.msra.mxu0 %v6625
        %7129 = vmatpush.bf16.msra.mxu0 %v6621
        %7130 = vmatpush.bf16.msra.mxu0 %v6617
        %7131 = vmatpush.bf16.msra.mxu0 %v6613
        %7132 = vmatmul.bf16.gmra.mxu0 %v3951
        %v7133 = vpop.f32.mrf.mxu0
        %v7134 = vadd.f32 %v7121, %v7133
        %v7135 = vpop.f32.mrf.mxu0
        %7136 = vdwg.mxu0
        %7137 = vmatpush.bf16.msra.mxu0 %v6673
        %7138 = vmatpush.bf16.msra.mxu0 %v6669
        %7139 = vmatpush.bf16.msra.mxu0 %v6665
        %7140 = vmatpush.bf16.msra.mxu0 %v6661
        %7141 = vmatpush.bf16.msra.mxu0 %v6657
        %7142 = vmatpush.bf16.msra.mxu0 %v6653
        %7143 = vmatpush.bf16.msra.mxu0 %v6649
        %7144 = vmatpush.bf16.msra.mxu0 %v6645
        %7145 = vmatmul.bf16.gmra.mxu0 %v3952
        %v7146 = vpop.f32.mrf.mxu0
        %v7147 = vadd.f32 %v7134, %v7146
        %v7148 = vpop.f32.mrf.mxu0
        %7149 = vdwg.mxu0
        %7150 = vmatpush.bf16.msra.mxu0 %v6705
        %7151 = vmatpush.bf16.msra.mxu0 %v6701
        %7152 = vmatpush.bf16.msra.mxu0 %v6697
        %7153 = vmatpush.bf16.msra.mxu0 %v6693
        %7154 = vmatpush.bf16.msra.mxu0 %v6689
        %7155 = vmatpush.bf16.msra.mxu0 %v6685
        %7156 = vmatpush.bf16.msra.mxu0 %v6681
        %7157 = vmatpush.bf16.msra.mxu0 %v6677
        %7158 = vmatmul.bf16.gmra.mxu0 %v3953
        %v7159 = vpop.f32.mrf.mxu0
        %v7160 = vadd.f32 %v7147, %v7159
        %v7161 = vpop.f32.mrf.mxu0
        %7162 = vdwg.mxu0
        %7163 = vmatpush.bf16.msra.mxu0 %v6737
        %7164 = vmatpush.bf16.msra.mxu0 %v6733
        %7165 = vmatpush.bf16.msra.mxu0 %v6729
        %7166 = vmatpush.bf16.msra.mxu0 %v6725
        %7167 = vmatpush.bf16.msra.mxu0 %v6721
        %7168 = vmatpush.bf16.msra.mxu0 %v6717
        %7169 = vmatpush.bf16.msra.mxu0 %v6713
        %7170 = vmatpush.bf16.msra.mxu0 %v6709
        %7171 = vmatmul.bf16.gmra.mxu0 %v3954
        %v7172 = vpop.f32.mrf.mxu0
        %v7173 = vadd.f32 %v7160, %v7172
        %v7174 = vpop.f32.mrf.mxu0
        %7175 = vdwg.mxu0
        %7176 = vmatpush.bf16.msra.mxu0 %v6769
        %7177 = vmatpush.bf16.msra.mxu0 %v6765
        %7178 = vmatpush.bf16.msra.mxu0 %v6761
        %7179 = vmatpush.bf16.msra.mxu0 %v6757
        %7180 = vmatpush.bf16.msra.mxu0 %v6753
        %7181 = vmatpush.bf16.msra.mxu0 %v6749
        %7182 = vmatpush.bf16.msra.mxu0 %v6745
        %7183 = vmatpush.bf16.msra.mxu0 %v6741
        %7184 = vmatmul.bf16.gmra.mxu0 %v3955
        %v7185 = vpop.f32.mrf.mxu0
        %v7186 = vadd.f32 %v7173, %v7185
        %v7187 = vpop.f32.mrf.mxu0
        %7188 = vdwg.mxu0
        %7189 = vmatpush.bf16.msra.mxu0 %v6290
        %7190 = vmatpush.bf16.msra.mxu0 %v6286
        %7191 = vmatpush.bf16.msra.mxu0 %v6282
        %7192 = vmatpush.bf16.msra.mxu0 %v6278
        %7193 = vmatpush.bf16.msra.mxu0 %v6274
        %7194 = vmatpush.bf16.msra.mxu0 %v6270
        %7195 = vmatpush.bf16.msra.mxu0 %v6266
        %7196 = vmatpush.bf16.msra.mxu0 %v6262
        %7197 = vmatmul.bf16.gmra.mxu0 %v3940
        %v7198 = vpop.f32.mrf.mxu0
        %v7199 = vadd.f32 0.0, %v7198
        %v7200 = vpop.f32.mrf.mxu0
        %7201 = vdwg.mxu0
        %7202 = vmatpush.bf16.msra.mxu0 %v6322
        %7203 = vmatpush.bf16.msra.mxu0 %v6318
        %7204 = vmatpush.bf16.msra.mxu0 %v6314
        %7205 = vmatpush.bf16.msra.mxu0 %v6310
        %7206 = vmatpush.bf16.msra.mxu0 %v6306
        %7207 = vmatpush.bf16.msra.mxu0 %v6302
        %7208 = vmatpush.bf16.msra.mxu0 %v6298
        %7209 = vmatpush.bf16.msra.mxu0 %v6294
        %7210 = vmatmul.bf16.gmra.mxu0 %v3941
        %v7211 = vpop.f32.mrf.mxu0
        %v7212 = vadd.f32 %v7199, %v7211
        %v7213 = vpop.f32.mrf.mxu0
        %7214 = vdwg.mxu0
        %7215 = vmatpush.bf16.msra.mxu0 %v6354
        %7216 = vmatpush.bf16.msra.mxu0 %v6350
        %7217 = vmatpush.bf16.msra.mxu0 %v6346
        %7218 = vmatpush.bf16.msra.mxu0 %v6342
        %7219 = vmatpush.bf16.msra.mxu0 %v6338
        %7220 = vmatpush.bf16.msra.mxu0 %v6334
        %7221 = vmatpush.bf16.msra.mxu0 %v6330
        %7222 = vmatpush.bf16.msra.mxu0 %v6326
        %7223 = vmatmul.bf16.gmra.mxu0 %v3942
        %v7224 = vpop.f32.mrf.mxu0
        %v7225 = vadd.f32 %v7212, %v7224
        %v7226 = vpop.f32.mrf.mxu0
        %7227 = vdwg.mxu0
        %7228 = vmatpush.bf16.msra.mxu0 %v6386
        %7229 = vmatpush.bf16.msra.mxu0 %v6382
        %7230 = vmatpush.bf16.msra.mxu0 %v6378
        %7231 = vmatpush.bf16.msra.mxu0 %v6374
        %7232 = vmatpush.bf16.msra.mxu0 %v6370
        %7233 = vmatpush.bf16.msra.mxu0 %v6366
        %7234 = vmatpush.bf16.msra.mxu0 %v6362
        %7235 = vmatpush.bf16.msra.mxu0 %v6358
        %7236 = vmatmul.bf16.gmra.mxu0 %v3943
        %v7237 = vpop.f32.mrf.mxu0
        %v7238 = vadd.f32 %v7225, %v7237
        %v7239 = vpop.f32.mrf.mxu0
        %7240 = vdwg.mxu0
        %7241 = vmatpush.bf16.msra.mxu0 %v6418
        %7242 = vmatpush.bf16.msra.mxu0 %v6414
        %7243 = vmatpush.bf16.msra.mxu0 %v6410
        %7244 = vmatpush.bf16.msra.mxu0 %v6406
        %7245 = vmatpush.bf16.msra.mxu0 %v6402
        %7246 = vmatpush.bf16.msra.mxu0 %v6398
        %7247 = vmatpush.bf16.msra.mxu0 %v6394
        %7248 = vmatpush.bf16.msra.mxu0 %v6390
        %7249 = vmatmul.bf16.gmra.mxu0 %v3944
        %v7250 = vpop.f32.mrf.mxu0
        %v7251 = vadd.f32 %v7238, %v7250
        %v7252 = vpop.f32.mrf.mxu0
        %7253 = vdwg.mxu0
        %7254 = vmatpush.bf16.msra.mxu0 %v6450
        %7255 = vmatpush.bf16.msra.mxu0 %v6446
        %7256 = vmatpush.bf16.msra.mxu0 %v6442
        %7257 = vmatpush.bf16.msra.mxu0 %v6438
        %7258 = vmatpush.bf16.msra.mxu0 %v6434
        %7259 = vmatpush.bf16.msra.mxu0 %v6430
        %7260 = vmatpush.bf16.msra.mxu0 %v6426
        %7261 = vmatpush.bf16.msra.mxu0 %v6422
        %7262 = vmatmul.bf16.gmra.mxu0 %v3945
        %v7263 = vpop.f32.mrf.mxu0
        %v7264 = vadd.f32 %v7251, %v7263
        %v7265 = vpop.f32.mrf.mxu0
        %7266 = vdwg.mxu0
        %7267 = vmatpush.bf16.msra.mxu0 %v6482
        %7268 = vmatpush.bf16.msra.mxu0 %v6478
        %7269 = vmatpush.bf16.msra.mxu0 %v6474
        %7270 = vmatpush.bf16.msra.mxu0 %v6470
        %7271 = vmatpush.bf16.msra.mxu0 %v6466
        %7272 = vmatpush.bf16.msra.mxu0 %v6462
        %7273 = vmatpush.bf16.msra.mxu0 %v6458
        %7274 = vmatpush.bf16.msra.mxu0 %v6454
        %7275 = vmatmul.bf16.gmra.mxu0 %v3946
        %v7276 = vpop.f32.mrf.mxu0
        %v7277 = vadd.f32 %v7264, %v7276
        %v7278 = vpop.f32.mrf.mxu0
        %7279 = vdwg.mxu0
        %7280 = vmatpush.bf16.msra.mxu0 %v6514
        %7281 = vmatpush.bf16.msra.mxu0 %v6510
        %7282 = vmatpush.bf16.msra.mxu0 %v6506
        %7283 = vmatpush.bf16.msra.mxu0 %v6502
        %7284 = vmatpush.bf16.msra.mxu0 %v6498
        %7285 = vmatpush.bf16.msra.mxu0 %v6494
        %7286 = vmatpush.bf16.msra.mxu0 %v6490
        %7287 = vmatpush.bf16.msra.mxu0 %v6486
        %7288 = vmatmul.bf16.gmra.mxu0 %v3947
        %v7289 = vpop.f32.mrf.mxu0
        %v7290 = vadd.f32 %v7277, %v7289
        %v7291 = vpop.f32.mrf.mxu0
        %7292 = vdwg.mxu0
        %7293 = vmatpush.bf16.msra.mxu0 %v6546
        %7294 = vmatpush.bf16.msra.mxu0 %v6542
        %7295 = vmatpush.bf16.msra.mxu0 %v6538
        %7296 = vmatpush.bf16.msra.mxu0 %v6534
        %7297 = vmatpush.bf16.msra.mxu0 %v6530
        %7298 = vmatpush.bf16.msra.mxu0 %v6526
        %7299 = vmatpush.bf16.msra.mxu0 %v6522
        %7300 = vmatpush.bf16.msra.mxu0 %v6518
        %7301 = vmatmul.bf16.gmra.mxu0 %v3948
        %v7302 = vpop.f32.mrf.mxu0
        %v7303 = vadd.f32 %v7290, %v7302
        %v7304 = vpop.f32.mrf.mxu0
        %7305 = vdwg.mxu0
        %7306 = vmatpush.bf16.msra.mxu0 %v6578
        %7307 = vmatpush.bf16.msra.mxu0 %v6574
        %7308 = vmatpush.bf16.msra.mxu0 %v6570
        %7309 = vmatpush.bf16.msra.mxu0 %v6566
        %7310 = vmatpush.bf16.msra.mxu0 %v6562
        %7311 = vmatpush.bf16.msra.mxu0 %v6558
        %7312 = vmatpush.bf16.msra.mxu0 %v6554
        %7313 = vmatpush.bf16.msra.mxu0 %v6550
        %7314 = vmatmul.bf16.gmra.mxu0 %v3949
        %v7315 = vpop.f32.mrf.mxu0
        %v7316 = vadd.f32 %v7303, %v7315
        %v7317 = vpop.f32.mrf.mxu0
        %7318 = vdwg.mxu0
        %7319 = vmatpush.bf16.msra.mxu0 %v6610
        %7320 = vmatpush.bf16.msra.mxu0 %v6606
        %7321 = vmatpush.bf16.msra.mxu0 %v6602
        %7322 = vmatpush.bf16.msra.mxu0 %v6598
        %7323 = vmatpush.bf16.msra.mxu0 %v6594
        %7324 = vmatpush.bf16.msra.mxu0 %v6590
        %7325 = vmatpush.bf16.msra.mxu0 %v6586
        %7326 = vmatpush.bf16.msra.mxu0 %v6582
        %7327 = vmatmul.bf16.gmra.mxu0 %v3950
        %v7328 = vpop.f32.mrf.mxu0
        %v7329 = vadd.f32 %v7316, %v7328
        %v7330 = vpop.f32.mrf.mxu0
        %7331 = vdwg.mxu0
        %7332 = vmatpush.bf16.msra.mxu0 %v6642
        %7333 = vmatpush.bf16.msra.mxu0 %v6638
        %7334 = vmatpush.bf16.msra.mxu0 %v6634
        %7335 = vmatpush.bf16.msra.mxu0 %v6630
        %7336 = vmatpush.bf16.msra.mxu0 %v6626
        %7337 = vmatpush.bf16.msra.mxu0 %v6622
        %7338 = vmatpush.bf16.msra.mxu0 %v6618
        %7339 = vmatpush.bf16.msra.mxu0 %v6614
        %7340 = vmatmul.bf16.gmra.mxu0 %v3951
        %v7341 = vpop.f32.mrf.mxu0
        %v7342 = vadd.f32 %v7329, %v7341
        %v7343 = vpop.f32.mrf.mxu0
        %7344 = vdwg.mxu0
        %7345 = vmatpush.bf16.msra.mxu0 %v6674
        %7346 = vmatpush.bf16.msra.mxu0 %v6670
        %7347 = vmatpush.bf16.msra.mxu0 %v6666
        %7348 = vmatpush.bf16.msra.mxu0 %v6662
        %7349 = vmatpush.bf16.msra.mxu0 %v6658
        %7350 = vmatpush.bf16.msra.mxu0 %v6654
        %7351 = vmatpush.bf16.msra.mxu0 %v6650
        %7352 = vmatpush.bf16.msra.mxu0 %v6646
        %7353 = vmatmul.bf16.gmra.mxu0 %v3952
        %v7354 = vpop.f32.mrf.mxu0
        %v7355 = vadd.f32 %v7342, %v7354
        %v7356 = vpop.f32.mrf.mxu0
        %7357 = vdwg.mxu0
        %7358 = vmatpush.bf16.msra.mxu0 %v6706
        %7359 = vmatpush.bf16.msra.mxu0 %v6702
        %7360 = vmatpush.bf16.msra.mxu0 %v6698
        %7361 = vmatpush.bf16.msra.mxu0 %v6694
        %7362 = vmatpush.bf16.msra.mxu0 %v6690
        %7363 = vmatpush.bf16.msra.mxu0 %v6686
        %7364 = vmatpush.bf16.msra.mxu0 %v6682
        %7365 = vmatpush.bf16.msra.mxu0 %v6678
        %7366 = vmatmul.bf16.gmra.mxu0 %v3953
        %v7367 = vpop.f32.mrf.mxu0
        %v7368 = vadd.f32 %v7355, %v7367
        %v7369 = vpop.f32.mrf.mxu0
        %7370 = vdwg.mxu0
        %7371 = vmatpush.bf16.msra.mxu0 %v6738
        %7372 = vmatpush.bf16.msra.mxu0 %v6734
        %7373 = vmatpush.bf16.msra.mxu0 %v6730
        %7374 = vmatpush.bf16.msra.mxu0 %v6726
        %7375 = vmatpush.bf16.msra.mxu0 %v6722
        %7376 = vmatpush.bf16.msra.mxu0 %v6718
        %7377 = vmatpush.bf16.msra.mxu0 %v6714
        %7378 = vmatpush.bf16.msra.mxu0 %v6710
        %7379 = vmatmul.bf16.gmra.mxu0 %v3954
        %v7380 = vpop.f32.mrf.mxu0
        %v7381 = vadd.f32 %v7368, %v7380
        %v7382 = vpop.f32.mrf.mxu0
        %7383 = vdwg.mxu0
        %7384 = vmatpush.bf16.msra.mxu0 %v6770
        %7385 = vmatpush.bf16.msra.mxu0 %v6766
        %7386 = vmatpush.bf16.msra.mxu0 %v6762
        %7387 = vmatpush.bf16.msra.mxu0 %v6758
        %7388 = vmatpush.bf16.msra.mxu0 %v6754
        %7389 = vmatpush.bf16.msra.mxu0 %v6750
        %7390 = vmatpush.bf16.msra.mxu0 %v6746
        %7391 = vmatpush.bf16.msra.mxu0 %v6742
        %7392 = vmatmul.bf16.gmra.mxu0 %v3955
        %v7393 = vpop.f32.mrf.mxu0
        %v7394 = vadd.f32 %v7381, %v7393
        %v7395 = vpop.f32.mrf.mxu0
        %7396 = vdwg.mxu0
        %7397 = vmatpush.bf16.msra.mxu0 %v6291
        %7398 = vmatpush.bf16.msra.mxu0 %v6287
        %7399 = vmatpush.bf16.msra.mxu0 %v6283
        %7400 = vmatpush.bf16.msra.mxu0 %v6279
        %7401 = vmatpush.bf16.msra.mxu0 %v6275
        %7402 = vmatpush.bf16.msra.mxu0 %v6271
        %7403 = vmatpush.bf16.msra.mxu0 %v6267
        %7404 = vmatpush.bf16.msra.mxu0 %v6263
        %7405 = vmatmul.bf16.gmra.mxu0 %v3940
        %v7406 = vpop.f32.mrf.mxu0
        %v7407 = vadd.f32 0.0, %v7406
        %v7408 = vpop.f32.mrf.mxu0
        %7409 = vdwg.mxu0
        %7410 = vmatpush.bf16.msra.mxu0 %v6323
        %7411 = vmatpush.bf16.msra.mxu0 %v6319
        %7412 = vmatpush.bf16.msra.mxu0 %v6315
        %7413 = vmatpush.bf16.msra.mxu0 %v6311
        %7414 = vmatpush.bf16.msra.mxu0 %v6307
        %7415 = vmatpush.bf16.msra.mxu0 %v6303
        %7416 = vmatpush.bf16.msra.mxu0 %v6299
        %7417 = vmatpush.bf16.msra.mxu0 %v6295
        %7418 = vmatmul.bf16.gmra.mxu0 %v3941
        %v7419 = vpop.f32.mrf.mxu0
        %v7420 = vadd.f32 %v7407, %v7419
        %v7421 = vpop.f32.mrf.mxu0
        %7422 = vdwg.mxu0
        %7423 = vmatpush.bf16.msra.mxu0 %v6355
        %7424 = vmatpush.bf16.msra.mxu0 %v6351
        %7425 = vmatpush.bf16.msra.mxu0 %v6347
        %7426 = vmatpush.bf16.msra.mxu0 %v6343
        %7427 = vmatpush.bf16.msra.mxu0 %v6339
        %7428 = vmatpush.bf16.msra.mxu0 %v6335
        %7429 = vmatpush.bf16.msra.mxu0 %v6331
        %7430 = vmatpush.bf16.msra.mxu0 %v6327
        %7431 = vmatmul.bf16.gmra.mxu0 %v3942
        %v7432 = vpop.f32.mrf.mxu0
        %v7433 = vadd.f32 %v7420, %v7432
        %v7434 = vpop.f32.mrf.mxu0
        %7435 = vdwg.mxu0
        %7436 = vmatpush.bf16.msra.mxu0 %v6387
        %7437 = vmatpush.bf16.msra.mxu0 %v6383
        %7438 = vmatpush.bf16.msra.mxu0 %v6379
        %7439 = vmatpush.bf16.msra.mxu0 %v6375
        %7440 = vmatpush.bf16.msra.mxu0 %v6371
        %7441 = vmatpush.bf16.msra.mxu0 %v6367
        %7442 = vmatpush.bf16.msra.mxu0 %v6363
        %7443 = vmatpush.bf16.msra.mxu0 %v6359
        %7444 = vmatmul.bf16.gmra.mxu0 %v3943
        %v7445 = vpop.f32.mrf.mxu0
        %v7446 = vadd.f32 %v7433, %v7445
        %v7447 = vpop.f32.mrf.mxu0
        %7448 = vdwg.mxu0
        %7449 = vmatpush.bf16.msra.mxu0 %v6419
        %7450 = vmatpush.bf16.msra.mxu0 %v6415
        %7451 = vmatpush.bf16.msra.mxu0 %v6411
        %7452 = vmatpush.bf16.msra.mxu0 %v6407
        %7453 = vmatpush.bf16.msra.mxu0 %v6403
        %7454 = vmatpush.bf16.msra.mxu0 %v6399
        %7455 = vmatpush.bf16.msra.mxu0 %v6395
        %7456 = vmatpush.bf16.msra.mxu0 %v6391
        %7457 = vmatmul.bf16.gmra.mxu0 %v3944
        %v7458 = vpop.f32.mrf.mxu0
        %v7459 = vadd.f32 %v7446, %v7458
        %v7460 = vpop.f32.mrf.mxu0
        %7461 = vdwg.mxu0
        %7462 = vmatpush.bf16.msra.mxu0 %v6451
        %7463 = vmatpush.bf16.msra.mxu0 %v6447
        %7464 = vmatpush.bf16.msra.mxu0 %v6443
        %7465 = vmatpush.bf16.msra.mxu0 %v6439
        %7466 = vmatpush.bf16.msra.mxu0 %v6435
        %7467 = vmatpush.bf16.msra.mxu0 %v6431
        %7468 = vmatpush.bf16.msra.mxu0 %v6427
        %7469 = vmatpush.bf16.msra.mxu0 %v6423
        %7470 = vmatmul.bf16.gmra.mxu0 %v3945
        %v7471 = vpop.f32.mrf.mxu0
        %v7472 = vadd.f32 %v7459, %v7471
        %v7473 = vpop.f32.mrf.mxu0
        %7474 = vdwg.mxu0
        %7475 = vmatpush.bf16.msra.mxu0 %v6483
        %7476 = vmatpush.bf16.msra.mxu0 %v6479
        %7477 = vmatpush.bf16.msra.mxu0 %v6475
        %7478 = vmatpush.bf16.msra.mxu0 %v6471
        %7479 = vmatpush.bf16.msra.mxu0 %v6467
        %7480 = vmatpush.bf16.msra.mxu0 %v6463
        %7481 = vmatpush.bf16.msra.mxu0 %v6459
        %7482 = vmatpush.bf16.msra.mxu0 %v6455
        %7483 = vmatmul.bf16.gmra.mxu0 %v3946
        %v7484 = vpop.f32.mrf.mxu0
        %v7485 = vadd.f32 %v7472, %v7484
        %v7486 = vpop.f32.mrf.mxu0
        %7487 = vdwg.mxu0
        %7488 = vmatpush.bf16.msra.mxu0 %v6515
        %7489 = vmatpush.bf16.msra.mxu0 %v6511
        %7490 = vmatpush.bf16.msra.mxu0 %v6507
        %7491 = vmatpush.bf16.msra.mxu0 %v6503
        %7492 = vmatpush.bf16.msra.mxu0 %v6499
        %7493 = vmatpush.bf16.msra.mxu0 %v6495
        %7494 = vmatpush.bf16.msra.mxu0 %v6491
        %7495 = vmatpush.bf16.msra.mxu0 %v6487
        %7496 = vmatmul.bf16.gmra.mxu0 %v3947
        %v7497 = vpop.f32.mrf.mxu0
        %v7498 = vadd.f32 %v7485, %v7497
        %v7499 = vpop.f32.mrf.mxu0
        %7500 = vdwg.mxu0
        %7501 = vmatpush.bf16.msra.mxu0 %v6547
        %7502 = vmatpush.bf16.msra.mxu0 %v6543
        %7503 = vmatpush.bf16.msra.mxu0 %v6539
        %7504 = vmatpush.bf16.msra.mxu0 %v6535
        %7505 = vmatpush.bf16.msra.mxu0 %v6531
        %7506 = vmatpush.bf16.msra.mxu0 %v6527
        %7507 = vmatpush.bf16.msra.mxu0 %v6523
        %7508 = vmatpush.bf16.msra.mxu0 %v6519
        %7509 = vmatmul.bf16.gmra.mxu0 %v3948
        %v7510 = vpop.f32.mrf.mxu0
        %v7511 = vadd.f32 %v7498, %v7510
        %v7512 = vpop.f32.mrf.mxu0
        %7513 = vdwg.mxu0
        %7514 = vmatpush.bf16.msra.mxu0 %v6579
        %7515 = vmatpush.bf16.msra.mxu0 %v6575
        %7516 = vmatpush.bf16.msra.mxu0 %v6571
        %7517 = vmatpush.bf16.msra.mxu0 %v6567
        %7518 = vmatpush.bf16.msra.mxu0 %v6563
        %7519 = vmatpush.bf16.msra.mxu0 %v6559
        %7520 = vmatpush.bf16.msra.mxu0 %v6555
        %7521 = vmatpush.bf16.msra.mxu0 %v6551
        %7522 = vmatmul.bf16.gmra.mxu0 %v3949
        %v7523 = vpop.f32.mrf.mxu0
        %v7524 = vadd.f32 %v7511, %v7523
        %v7525 = vpop.f32.mrf.mxu0
        %7526 = vdwg.mxu0
        %7527 = vmatpush.bf16.msra.mxu0 %v6611
        %7528 = vmatpush.bf16.msra.mxu0 %v6607
        %7529 = vmatpush.bf16.msra.mxu0 %v6603
        %7530 = vmatpush.bf16.msra.mxu0 %v6599
        %7531 = vmatpush.bf16.msra.mxu0 %v6595
        %7532 = vmatpush.bf16.msra.mxu0 %v6591
        %7533 = vmatpush.bf16.msra.mxu0 %v6587
        %7534 = vmatpush.bf16.msra.mxu0 %v6583
        %7535 = vmatmul.bf16.gmra.mxu0 %v3950
        %v7536 = vpop.f32.mrf.mxu0
        %v7537 = vadd.f32 %v7524, %v7536
        %v7538 = vpop.f32.mrf.mxu0
        %7539 = vdwg.mxu0
        %7540 = vmatpush.bf16.msra.mxu0 %v6643
        %7541 = vmatpush.bf16.msra.mxu0 %v6639
        %7542 = vmatpush.bf16.msra.mxu0 %v6635
        %7543 = vmatpush.bf16.msra.mxu0 %v6631
        %7544 = vmatpush.bf16.msra.mxu0 %v6627
        %7545 = vmatpush.bf16.msra.mxu0 %v6623
        %7546 = vmatpush.bf16.msra.mxu0 %v6619
        %7547 = vmatpush.bf16.msra.mxu0 %v6615
        %7548 = vmatmul.bf16.gmra.mxu0 %v3951
        %v7549 = vpop.f32.mrf.mxu0
        %v7550 = vadd.f32 %v7537, %v7549
        %v7551 = vpop.f32.mrf.mxu0
        %7552 = vdwg.mxu0
        %7553 = vmatpush.bf16.msra.mxu0 %v6675
        %7554 = vmatpush.bf16.msra.mxu0 %v6671
        %7555 = vmatpush.bf16.msra.mxu0 %v6667
        %7556 = vmatpush.bf16.msra.mxu0 %v6663
        %7557 = vmatpush.bf16.msra.mxu0 %v6659
        %7558 = vmatpush.bf16.msra.mxu0 %v6655
        %7559 = vmatpush.bf16.msra.mxu0 %v6651
        %7560 = vmatpush.bf16.msra.mxu0 %v6647
        %7561 = vmatmul.bf16.gmra.mxu0 %v3952
        %v7562 = vpop.f32.mrf.mxu0
        %v7563 = vadd.f32 %v7550, %v7562
        %v7564 = vpop.f32.mrf.mxu0
        %7565 = vdwg.mxu0
        %7566 = vmatpush.bf16.msra.mxu0 %v6707
        %7567 = vmatpush.bf16.msra.mxu0 %v6703
        %7568 = vmatpush.bf16.msra.mxu0 %v6699
        %7569 = vmatpush.bf16.msra.mxu0 %v6695
        %7570 = vmatpush.bf16.msra.mxu0 %v6691
        %7571 = vmatpush.bf16.msra.mxu0 %v6687
        %7572 = vmatpush.bf16.msra.mxu0 %v6683
        %7573 = vmatpush.bf16.msra.mxu0 %v6679
        %7574 = vmatmul.bf16.gmra.mxu0 %v3953
        %v7575 = vpop.f32.mrf.mxu0
        %v7576 = vadd.f32 %v7563, %v7575
        %v7577 = vpop.f32.mrf.mxu0
        %7578 = vdwg.mxu0
        %7579 = vmatpush.bf16.msra.mxu0 %v6739
        %7580 = vmatpush.bf16.msra.mxu0 %v6735
        %7581 = vmatpush.bf16.msra.mxu0 %v6731
        %7582 = vmatpush.bf16.msra.mxu0 %v6727
        %7583 = vmatpush.bf16.msra.mxu0 %v6723
        %7584 = vmatpush.bf16.msra.mxu0 %v6719
        %7585 = vmatpush.bf16.msra.mxu0 %v6715
        %7586 = vmatpush.bf16.msra.mxu0 %v6711
        %7587 = vmatmul.bf16.gmra.mxu0 %v3954
        %v7588 = vpop.f32.mrf.mxu0
        %v7589 = vadd.f32 %v7576, %v7588
        %v7590 = vpop.f32.mrf.mxu0
        %7591 = vdwg.mxu0
        %7592 = vmatpush.bf16.msra.mxu0 %v6771
        %7593 = vmatpush.bf16.msra.mxu0 %v6767
        %7594 = vmatpush.bf16.msra.mxu0 %v6763
        %7595 = vmatpush.bf16.msra.mxu0 %v6759
        %7596 = vmatpush.bf16.msra.mxu0 %v6755
        %7597 = vmatpush.bf16.msra.mxu0 %v6751
        %7598 = vmatpush.bf16.msra.mxu0 %v6747
        %7599 = vmatpush.bf16.msra.mxu0 %v6743
        %7600 = vmatmul.bf16.gmra.mxu0 %v3955
        %v7601 = vpop.f32.mrf.mxu0
        %v7602 = vadd.f32 %v7589, %v7601
        %v7603 = vpop.f32.mrf.mxu0
        %7604 = vdwg.mxu0
        %v7609 = vrot.slane %v7186, 6
        %v7610 = vrot.slane %v7394, 4
        %v7611 = vrot.slane %v7602, 2
        %vm7612 = vcmask 1041408
        %v7613 = vsel %vm7612, %v6978, %v7609
        %vm7614 = vcmask 1045508
        %v7615 = vsel %vm7614, %v7610, %v7611
        %vm7616 = vcmask 1043456
        %v7617 = vsel %vm7616, %v7613, %v7615
        %v7619 = vadd.f32 %v6772, %v7617
        %7620 = vst [vmem:[%s768] sm:$0xff] %v7619
        %p7621 = scmp.lt.s32.totalorder %s20, 1
        %s7622 = scalar_select %p7621, %s20, 1
        %s7623 = smul.addr %s7622, 4
        %s7624 = smul.addr %s7623, 2
        %s7625 = scalar_lea.vmem %s5, %s7624
        // Predicated region
        $region68: #{lenet_forward.5} parent=58 // pred_check
          %p7626 = pneg %p187
        $region69: #{lenet_forward.5} parent=58 // pred_check_branch
          %7628 = sbr.rel (%p7626) target = $region71
        $region70: #{lenet_forward.5} parent=58 // pred_region
          _
        $region71: #{lenet_forward.5} parent=58 // pred_fallthru
          _
      $region59: #{lenet_forward.5} parent=5 // pred_fallthru
        _
      %p7629 = scmp.le.s32.totalorder 2, %s11
      // Predicated region
      $region72: #{lenet_forward.5} parent=5 // pred_check
        %p7630 = pneg %p7629
      $region73: #{lenet_forward.5} parent=5 // pred_check_branch
        %7632 = sbr.rel (%p7630) target = $region75
      $region74: #{lenet_forward.5} parent=5 // pred_region
        %s7633 = ssub.s32 %s11, 2
        // Predicated region
        $region76: #{lenet_forward.5} parent=74 // pred_check
          %p7634 = pneg %p193
        $region77: #{lenet_forward.5} parent=74 // pred_check_branch
          %7636 = sbr.rel (%p7634) target = $region79
        $region78: #{lenet_forward.5} parent=74 // pred_region
          %p7637 = scmp.lt.s32.totalorder %s22, 1
          %s7638 = scalar_select %p7637, %s22, 1
          %s7639 = smul.addr %s7638, 4
          %s7640 = smul.addr %s7639, 2
          %s7641 = scalar_lea.vmem %s5, %s7640
        $region79: #{lenet_forward.5} parent=74 // pred_fallthru
          _
      $region75: #{lenet_forward.5} parent=5 // pred_fallthru
        _
    $region6: #{lenet_forward.5} parent=1 // loop_footer
      %s15 = sadd.s32 1, %s11
    $region7: #{lenet_forward.5} parent=1 // loop_footer_branch
      %10 = sbr.rel target = $region3
    $region8: #{lenet_forward.5} parent=1 // loop_exit
      _

</llo_original>
